<compile_context>
chip_gen: v6e
topology: v6e:2x2x1
jax: 0.10.0
libtpu: 0.0.40
codegen_flags: <defaults>
</compile_context>

<pallas_src>
import jax
import jax.numpy as jnp
from jax import lax
from jax.experimental import pallas as pl
from jax.experimental.pallas import tpu as pltpu


NB = 128   # batch tile: 128 images on the lane axis per grid step


def _dot3(a, b):
    """f32 matmul as 3 bf16 MXU passes (~= lax.Precision.HIGH), f32 accumulate."""
    a_hi = a.astype(jnp.bfloat16)
    a_lo = (a - a_hi.astype(jnp.float32)).astype(jnp.bfloat16)
    b_hi = b.astype(jnp.bfloat16)
    b_lo = (b - b_hi.astype(jnp.float32)).astype(jnp.bfloat16)

    def d(u, v):
        return jnp.dot(u, v, preferred_element_type=jnp.float32)

    return d(a_hi, b_hi) + d(a_lo, b_hi) + d(a_hi, b_lo)


def _make_kernel(H, W):
    H2, W2 = H // 2, W // 2

    def fill_patches(pt_ref, src, C, Hs, Ws):
        """im2col for a 3x3 SAME conv, written into a VMEM scratch.

        src: (C, Hs*Ws*NB) activation, lane index = (h*Ws + w)*NB + b.
        pt_ref: (9*C, Hs*Ws*NB); rows k*C..k*C+C for tap k = kh*3+kw hold the
        zero-padded shifted window.  All stores are 128-lane aligned; padding
        uses constant zero chunks, so nothing needs border (re)initialisation.
        """
        zrow = jnp.zeros((C, Ws * NB), jnp.float32)
        for kh in range(3):
            for kw in range(3):
                r0 = (kh * 3 + kw) * C
                for h in range(Hs):
                    dst = h * Ws * NB
                    hi = h + kh - 1
                    if hi < 0 or hi >= Hs:                     # zero-pad row
                        pt_ref[r0:r0 + C, dst:dst + Ws * NB] = zrow
                        continue
                    row = src[:, hi * Ws * NB:(hi + 1) * Ws * NB]   # (C, Ws*NB)
                    if kw == 1:
                        pt_ref[r0:r0 + C, dst:dst + Ws * NB] = row
                    elif kw == 0:   # shift right: first output column is pad
                        pt_ref[r0:r0 + C, dst:dst + NB] = zrow[:, :NB]
                        pt_ref[r0:r0 + C, dst + NB:dst + Ws * NB] = row[:, :(Ws - 1) * NB]
                    else:           # kw == 2: last output column is pad
                        pt_ref[r0:r0 + C, dst:dst + (Ws - 1) * NB] = row[:, NB:]
                        pt_ref[r0:r0 + C, dst + (Ws - 1) * NB:dst + Ws * NB] = zrow[:, :NB]

    def pool2x2(a, Hs, Ws):
        """2x2/2 max pool on (C, Hs*Ws*NB); all slices are 128-lane aligned."""
        out = []
        for h2 in range(Hs // 2):
            r0 = a[:, (2 * h2) * Ws * NB:(2 * h2 + 1) * Ws * NB]
            r1 = a[:, (2 * h2 + 1) * Ws * NB:(2 * h2 + 2) * Ws * NB]
            rm = jnp.maximum(r0, r1)                          # (C, Ws*NB)
            for w2 in range(Ws // 2):
                out.append(jnp.maximum(rm[:, (2 * w2) * NB:(2 * w2 + 1) * NB],
                                       rm[:, (2 * w2 + 1) * NB:(2 * w2 + 2) * NB]))
        return jnp.concatenate(out, axis=1)                   # (C, (Hs//2)*(Ws//2)*NB)

    def kernel(x_ref, w1_ref, b1_ref, w2_ref, b2_ref,
               wd1_ref, bd1_ref, wd2_ref, bd2_ref,
               out_ref, pt1_ref, pt2_ref):
        # ---------------- encoder ----------------
        x = x_ref[0]                                          # (1, H*W*NB)
        fill_patches(pt1_ref, x, 1, H, W)
        a1 = jnp.maximum(_dot3(w1_ref[...], pt1_ref[...]) + b1_ref[...], 0.0)   # (16, H*W*NB)
        p1 = pool2x2(a1, H, W)                                # (16, H2*W2*NB)

        fill_patches(pt2_ref, p1, 16, H2, W2)
        a2 = jnp.maximum(_dot3(w2_ref[...], pt2_ref[...]) + b2_ref[...], 0.0)   # (4, H2*W2*NB)
        p2 = pool2x2(a2, H2, W2)                              # (4, H4*W4*NB)

        # ---------------- decoder: 2 fused matmuls ----------------
        # deconv1: the 4 stride-2 taps ride on the M axis -> rows (tap, cout).
        d1 = jnp.maximum(_dot3(wd1_ref[...], p2) + bd1_ref[...], 0.0)           # (64, H4*W4*NB)
        # deconv2: one (16, 64) residue-class matrix; rows = (Ho % 4, Wo % 4).
        out_ref[0] = _dot3(wd2_ref[...], d1) + bd2_ref[...]                     # (16, H4*W4*NB)

    return kernel


def _run_pallas(x3, packed, H, W, Nt):
    H2, W2 = H // 2, W // 2
    H4, W4 = H // 4, W // 4
    kernel = _make_kernel(H, W)
    wspecs = [pl.BlockSpec(p.shape, lambda n: (0, 0)) for p in packed]
    return pl.pallas_call(
        kernel,
        out_shape=jax.ShapeDtypeStruct((Nt, 16, H4 * W4 * NB), jnp.float32),
        grid_spec=pltpu.PrefetchScalarGridSpec(
            num_scalar_prefetch=0,
            grid=(Nt,),
            in_specs=[pl.BlockSpec((1, 1, H * W * NB), lambda n: (n, 0, 0))] + wspecs,
            out_specs=pl.BlockSpec((1, 16, H4 * W4 * NB), lambda n: (n, 0, 0)),
            scratch_shapes=[
                pltpu.VMEM((9, H * W * NB), jnp.float32),          # conv1 im2col patches
                pltpu.VMEM((9 * 16, H2 * W2 * NB), jnp.float32),   # conv2 im2col patches
            ]),
        compiler_params=pltpu.CompilerParams(
            dimension_semantics=("parallel",),   # batch tiles independent (megacore on v7x)
            vmem_limit_bytes=32 * 1024 * 1024),
    )(x3, *packed)


# -----------------------------------------------------------------------------
# Parameter packing: PyTorch-layout weights -> MXU-friendly (weights-as-LHS).
# -----------------------------------------------------------------------------
def pack_params(pt_params):
    w1, b1, w2, b2, wd1, bd1, wd2, bd2 = pt_params
    # Conv2d OIHW -> (cout, 9*cin); columns tap-major / channel-minor to match
    # the im2col row order of fill_patches.
    w1m = w1.reshape(16, 9)                                        # cin == 1
    w2m = jnp.transpose(w2, (0, 2, 3, 1)).reshape(4, 9 * 16)
    # ConvTranspose2d(4,16,2,2) IOHW -> (4 taps * 16 cout, 4 cin): row
    # (kh*2+kw)*16 + co, so the 4 taps ride on the matmul M axis.
    wd1m = jnp.transpose(wd1, (2, 3, 1, 0)).reshape(4 * 16, 4)
    bd1r = jnp.tile(bd1, 4).reshape(4 * 16, 1)
    # deconv2 folded over the deconv1 tap structure: output row = residue
    # class (Ho%4)*4 + (Wo%4); column (t1*16 + ci) selects the matching
    # deconv1 tap block and contracts its 16 channels.
    wd2m = jnp.zeros((16, 64), jnp.float32)
    for r in range(4):
        for s in range(4):
            t1 = (r // 2) * 2 + (s // 2)
            wd2m = wd2m.at[r * 4 + s, t1 * 16:(t1 + 1) * 16].set(wd2[:, 0, r % 2, s % 2])
    return (w1m, b1.reshape(16, 1),
            w2m, b2.reshape(4, 1),
            wd1m, bd1r,
            wd2m, bd2.reshape(1, 1))


# -----------------------------------------------------------------------------
# Wrapper: NCHW in / NCHW out (C == 1); host-side glue is layout plumbing only.
# -----------------------------------------------------------------------------
@jax.jit
def conv_ae_forward(x_nchw, packed):
    N, C, H, W = x_nchw.shape
    assert C == 1 and H % 4 == 0 and W % 4 == 0
    Nt = -(-N // NB)
    Np = Nt * NB
    H4, W4 = H // 4, W // 4

    # Batch-on-lanes input slab: (Nt, 1, H*W*NB), lane index = (h*W + w)*NB + b.
    x = x_nchw.astype(jnp.float32).reshape(N, H * W)
    if Np != N:
        x = jnp.concatenate([x, jnp.zeros((Np - N, H * W), jnp.float32)], axis=0)
    x3 = jnp.transpose(x.reshape(Nt, NB, H * W), (0, 2, 1)).reshape(Nt, 1, H * W * NB)

    out = _run_pallas(x3, packed, H, W, Nt)                   # (Nt, 16, H4*W4*NB)

    # Un-interleave: rows = (Ho%4, Wo%4), lanes = (Ho//4, Wo//4, b).
    o = out.reshape(Nt, 4, 4, H4, W4, NB)
    o = jnp.transpose(o, (0, 5, 3, 1, 4, 2)).reshape(Np, H, W)
    return o[:N].reshape(N, 1, H, W)


# -----------------------------------------------------------------------------
# Deterministic parameter init (PyTorch-layout shapes) + plain-JAX reference.
# -----------------------------------------------------------------------------
def init_params(key):
    ks = jax.random.split(key, 8)

    def u(k, shape, fan_in):
        bound = 1.0 / jnp.sqrt(float(fan_in))
        return jax.random.uniform(k, shape, jnp.float32, -bound, bound)

    w1 = u(ks[0], (16, 1, 3, 3), 1 * 9)      # Conv2d(1, 16, 3, padding=1)
    b1 = u(ks[1], (16,), 1 * 9)
    w2 = u(ks[2], (4, 16, 3, 3), 16 * 9)     # Conv2d(16, 4, 3, padding=1)
    b2 = u(ks[3], (4,), 16 * 9)
    wd1 = u(ks[4], (4, 16, 2, 2), 4 * 4)     # ConvTranspose2d(4, 16, 2, stride=2)
    bd1 = u(ks[5], (16,), 4 * 4)
    wd2 = u(ks[6], (16, 1, 2, 2), 16 * 4)    # ConvTranspose2d(16, 1, 2, stride=2)
    bd2 = u(ks[7], (1,), 16 * 4)
    return (w1, b1, w2, b2, wd1, bd1, wd2, bd2)


def reference_forward(x, pt_params):
    """Independent plain-JAX (lax.conv) reference of the PyTorch forward."""
    w1, b1, w2, b2, wd1, bd1, wd2, bd2 = pt_params
    dn = ('NCHW', 'OIHW', 'NCHW')
    prec = lax.Precision.HIGHEST

    def conv(x, w, b):
        y = lax.conv_general_dilated(x, w, (1, 1), 'SAME',
                                     dimension_numbers=dn, precision=prec)
        return jax.nn.relu(y + b[None, :, None, None])

    def pool(x):
        return lax.reduce_window(x, -jnp.inf, lax.max, (1, 1, 2, 2), (1, 1, 2, 2), 'VALID')

    def deconv(x, w_iohw, b):
        wf = jnp.flip(jnp.transpose(w_iohw, (1, 0, 2, 3)), axis=(2, 3))   # flipped OIHW
        y = lax.conv_general_dilated(x, wf, (1, 1), [(1, 1), (1, 1)],
                                     lhs_dilation=(2, 2), dimension_numbers=dn,
                                     precision=prec)
        return y + b[None, :, None, None]

    a = conv(x, w1, b1)
    a = pool(a)
    a = conv(a, w2, b2)
    a = pool(a)
    a = jax.nn.relu(deconv(a, wd1, bd1))
    return deconv(a, wd2, bd2)


if __name__ == "__main__":
    key = jax.random.PRNGKey(0)
    kx, kp = jax.random.split(key)

    N, C, H, W = 2, 1, 8, 8
    x = jax.random.normal(kx, (N, C, H, W), dtype=jnp.float32)

    pt_params = init_params(kp)
    packed = pack_params(pt_params)

    out = conv_ae_forward(x, packed)
    out = jax.block_until_ready(out)
    assert out.shape == (N, 1, H, W), out.shape

    ref = reference_forward(x, pt_params)
    max_err = float(jnp.max(jnp.abs(out - ref)))
    # Kernel matmuls use 3-pass bf16 (~Precision.HIGH); error << 1e-3.
    assert max_err < 1e-3, f"mismatch vs reference: {max_err}"

    print("KERNEL_OK")
</pallas_src>

<mosaic_0001>
module attributes {stable_mosaic.version = 11 : i64} {
  func.func @kernel(%arg0: i32, %arg1: memref<1x1x8192xf32, #tpu.memory_space<vmem>>, %arg2: memref<16x9xf32, #tpu.memory_space<vmem>>, %arg3: memref<16x1xf32, #tpu.memory_space<vmem>>, %arg4: memref<4x144xf32, #tpu.memory_space<vmem>>, %arg5: memref<4x1xf32, #tpu.memory_space<vmem>>, %arg6: memref<64x4xf32, #tpu.memory_space<vmem>>, %arg7: memref<64x1xf32, #tpu.memory_space<vmem>>, %arg8: memref<16x64xf32, #tpu.memory_space<vmem>>, %arg9: memref<1x1xf32, #tpu.memory_space<vmem>>, %arg10: memref<1x16x512xf32, #tpu.memory_space<vmem>>, %arg11: memref<9x8192xf32, #tpu.memory_space<vmem>>, %arg12: memref<144x2048xf32, #tpu.memory_space<vmem>>) attributes {dimension_semantics = [#tpu.dimension_semantics<parallel>], iteration_bounds = array<i64: 1>, scalar_prefetch = 0 : i64, scratch_operands = 2 : i64, tpu.core_type = #tpu.core_type<tc>, window_params = [{transform_indices = @transform_0, window_bounds = array<i64: 1, 1, 8192>}, {pipeline_mode = #tpu.pipeline_mode<synchronous>, transform_indices = @transform_1, window_bounds = array<i64: 16, 9>}, {pipeline_mode = #tpu.pipeline_mode<synchronous>, transform_indices = @transform_2, window_bounds = array<i64: 16, 1>}, {pipeline_mode = #tpu.pipeline_mode<synchronous>, transform_indices = @transform_3, window_bounds = array<i64: 4, 144>}, {pipeline_mode = #tpu.pipeline_mode<synchronous>, transform_indices = @transform_4, window_bounds = array<i64: 4, 1>}, {pipeline_mode = #tpu.pipeline_mode<synchronous>, transform_indices = @transform_5, window_bounds = array<i64: 64, 4>}, {pipeline_mode = #tpu.pipeline_mode<synchronous>, transform_indices = @transform_6, window_bounds = array<i64: 64, 1>}, {pipeline_mode = #tpu.pipeline_mode<synchronous>, transform_indices = @transform_7, window_bounds = array<i64: 16, 64>}, {pipeline_mode = #tpu.pipeline_mode<synchronous>, transform_indices = @transform_8, window_bounds = array<i64: 1, 1>}, {transform_indices = @transform_9, window_bounds = array<i64: 1, 16, 512>}]} {
    %c0 = arith.constant 0 : index
    %c0_0 = arith.constant 0 : index
    %c0_1 = arith.constant 0 : index
    %0 = vector.load %arg1[%c0, %c0_0, %c0_1] : memref<1x1x8192xf32, #tpu.memory_space<vmem>>, vector<1x1x8192xf32>
    %1 = vector.shape_cast %0 : vector<1x1x8192xf32> to vector<1x8192xf32>
    %cst = arith.constant 0.000000e+00 : f32
    %2 = vector.broadcast %cst : f32 to vector<1x1024xf32>
    %c0_2 = arith.constant 0 : index
    %c0_3 = arith.constant 0 : index
    %3 = vector.load %arg11[%c0_2, %c0_3] : memref<9x8192xf32, #tpu.memory_space<vmem>>, vector<1x1024xf32>
    tpu.vector_store %arg11[%c0_2, %c0_3], %2 {strides = array<i32>} : memref<9x8192xf32, #tpu.memory_space<vmem>>, vector<1x1024xf32>,
    %4 = vector.extract_strided_slice %1 {offsets = [0, 0], sizes = [1, 1024], strides = [1, 1]} : vector<1x8192xf32> to vector<1x1024xf32>
    %5 = vector.extract_strided_slice %2 {offsets = [0, 0], sizes = [1, 128], strides = [1, 1]} : vector<1x1024xf32> to vector<1x128xf32>
    %c0_4 = arith.constant 0 : index
    %c1024 = arith.constant 1024 : index
    %6 = vector.load %arg11[%c0_4, %c1024] : memref<9x8192xf32, #tpu.memory_space<vmem>>, vector<1x128xf32>
    tpu.vector_store %arg11[%c0_4, %c1024], %5 {strides = array<i32>} : memref<9x8192xf32, #tpu.memory_space<vmem>>, vector<1x128xf32>,
    %7 = vector.extract_strided_slice %4 {offsets = [0, 0], sizes = [1, 896], strides = [1, 1]} : vector<1x1024xf32> to vector<1x896xf32>
    %c0_5 = arith.constant 0 : index
    %c1152 = arith.constant 1152 : index
    %8 = vector.load %arg11[%c0_5, %c1152] : memref<9x8192xf32, #tpu.memory_space<vmem>>, vector<1x896xf32>
    tpu.vector_store %arg11[%c0_5, %c1152], %7 {strides = array<i32>} : memref<9x8192xf32, #tpu.memory_space<vmem>>, vector<1x896xf32>,
    %9 = vector.extract_strided_slice %1 {offsets = [0, 1024], sizes = [1, 1024], strides = [1, 1]} : vector<1x8192xf32> to vector<1x1024xf32>
    %10 = vector.extract_strided_slice %2 {offsets = [0, 0], sizes = [1, 128], strides = [1, 1]} : vector<1x1024xf32> to vector<1x128xf32>
    %c0_6 = arith.constant 0 : index
    %c2048 = arith.constant 2048 : index
    %11 = vector.load %arg11[%c0_6, %c2048] : memref<9x8192xf32, #tpu.memory_space<vmem>>, vector<1x128xf32>
    tpu.vector_store %arg11[%c0_6, %c2048], %10 {strides = array<i32>} : memref<9x8192xf32, #tpu.memory_space<vmem>>, vector<1x128xf32>,
    %12 = vector.extract_strided_slice %9 {offsets = [0, 0], sizes = [1, 896], strides = [1, 1]} : vector<1x1024xf32> to vector<1x896xf32>
    %c0_7 = arith.constant 0 : index
    %c2176 = arith.constant 2176 : index
    %13 = vector.load %arg11[%c0_7, %c2176] : memref<9x8192xf32, #tpu.memory_space<vmem>>, vector<1x896xf32>
    tpu.vector_store %arg11[%c0_7, %c2176], %12 {strides = array<i32>} : memref<9x8192xf32, #tpu.memory_space<vmem>>, vector<1x896xf32>,
    %14 = vector.extract_strided_slice %1 {offsets = [0, 2048], sizes = [1, 1024], strides = [1, 1]} : vector<1x8192xf32> to vector<1x1024xf32>
    %15 = vector.extract_strided_slice %2 {offsets = [0, 0], sizes = [1, 128], strides = [1, 1]} : vector<1x1024xf32> to vector<1x128xf32>
    %c0_8 = arith.constant 0 : index
    %c3072 = arith.constant 3072 : index
    %16 = vector.load %arg11[%c0_8, %c3072] : memref<9x8192xf32, #tpu.memory_space<vmem>>, vector<1x128xf32>
    tpu.vector_store %arg11[%c0_8, %c3072], %15 {strides = array<i32>} : memref<9x8192xf32, #tpu.memory_space<vmem>>, vector<1x128xf32>,
    %17 = vector.extract_strided_slice %14 {offsets = [0, 0], sizes = [1, 896], strides = [1, 1]} : vector<1x1024xf32> to vector<1x896xf32>
    %c0_9 = arith.constant 0 : index
    %c3200 = arith.constant 3200 : index
    %18 = vector.load %arg11[%c0_9, %c3200] : memref<9x8192xf32, #tpu.memory_space<vmem>>, vector<1x896xf32>
    tpu.vector_store %arg11[%c0_9, %c3200], %17 {strides = array<i32>} : memref<9x8192xf32, #tpu.memory_space<vmem>>, vector<1x896xf32>,
    %19 = vector.extract_strided_slice %1 {offsets = [0, 3072], sizes = [1, 1024], strides = [1, 1]} : vector<1x8192xf32> to vector<1x1024xf32>
    %20 = vector.extract_strided_slice %2 {offsets = [0, 0], sizes = [1, 128], strides = [1, 1]} : vector<1x1024xf32> to vector<1x128xf32>
    %c0_10 = arith.constant 0 : index
    %c4096 = arith.constant 4096 : index
    %21 = vector.load %arg11[%c0_10, %c4096] : memref<9x8192xf32, #tpu.memory_space<vmem>>, vector<1x128xf32>
    tpu.vector_store %arg11[%c0_10, %c4096], %20 {strides = array<i32>} : memref<9x8192xf32, #tpu.memory_space<vmem>>, vector<1x128xf32>,
    %22 = vector.extract_strided_slice %19 {offsets = [0, 0], sizes = [1, 896], strides = [1, 1]} : vector<1x1024xf32> to vector<1x896xf32>
    %c0_11 = arith.constant 0 : index
    %c4224 = arith.constant 4224 : index
    %23 = vector.load %arg11[%c0_11, %c4224] : memref<9x8192xf32, #tpu.memory_space<vmem>>, vector<1x896xf32>
    tpu.vector_store %arg11[%c0_11, %c4224], %22 {strides = array<i32>} : memref<9x8192xf32, #tpu.memory_space<vmem>>, vector<1x896xf32>,
    %24 = vector.extract_strided_slice %1 {offsets = [0, 4096], sizes = [1, 1024], strides = [1, 1]} : vector<1x8192xf32> to vector<1x1024xf32>
    %25 = vector.extract_strided_slice %2 {offsets = [0, 0], sizes = [1, 128], strides = [1, 1]} : vector<1x1024xf32> to vector<1x128xf32>
    %c0_12 = arith.constant 0 : index
    %c5120 = arith.constant 5120 : index
    %26 = vector.load %arg11[%c0_12, %c5120] : memref<9x8192xf32, #tpu.memory_space<vmem>>, vector<1x128xf32>
    tpu.vector_store %arg11[%c0_12, %c5120], %25 {strides = array<i32>} : memref<9x8192xf32, #tpu.memory_space<vmem>>, vector<1x128xf32>,
    %27 = vector.extract_strided_slice %24 {offsets = [0, 0], sizes = [1, 896], strides = [1, 1]} : vector<1x1024xf32> to vector<1x896xf32>
    %c0_13 = arith.constant 0 : index
    %c5248 = arith.constant 5248 : index
    %28 = vector.load %arg11[%c0_13, %c5248] : memref<9x8192xf32, #tpu.memory_space<vmem>>, vector<1x896xf32>
    tpu.vector_store %arg11[%c0_13, %c5248], %27 {strides = array<i32>} : memref<9x8192xf32, #tpu.memory_space<vmem>>, vector<1x896xf32>,
    %29 = vector.extract_strided_slice %1 {offsets = [0, 5120], sizes = [1, 1024], strides = [1, 1]} : vector<1x8192xf32> to vector<1x1024xf32>
    %30 = vector.extract_strided_slice %2 {offsets = [0, 0], sizes = [1, 128], strides = [1, 1]} : vector<1x1024xf32> to vector<1x128xf32>
    %c0_14 = arith.constant 0 : index
    %c6144 = arith.constant 6144 : index
    %31 = vector.load %arg11[%c0_14, %c6144] : memref<9x8192xf32, #tpu.memory_space<vmem>>, vector<1x128xf32>
    tpu.vector_store %arg11[%c0_14, %c6144], %30 {strides = array<i32>} : memref<9x8192xf32, #tpu.memory_space<vmem>>, vector<1x128xf32>,
    %32 = vector.extract_strided_slice %29 {offsets = [0, 0], sizes = [1, 896], strides = [1, 1]} : vector<1x1024xf32> to vector<1x896xf32>
    %c0_15 = arith.constant 0 : index
    %c6272 = arith.constant 6272 : index
    %33 = vector.load %arg11[%c0_15, %c6272] : memref<9x8192xf32, #tpu.memory_space<vmem>>, vector<1x896xf32>
    tpu.vector_store %arg11[%c0_15, %c6272], %32 {strides = array<i32>} : memref<9x8192xf32, #tpu.memory_space<vmem>>, vector<1x896xf32>,
    %34 = vector.extract_strided_slice %1 {offsets = [0, 6144], sizes = [1, 1024], strides = [1, 1]} : vector<1x8192xf32> to vector<1x1024xf32>
    %35 = vector.extract_strided_slice %2 {offsets = [0, 0], sizes = [1, 128], strides = [1, 1]} : vector<1x1024xf32> to vector<1x128xf32>
    %c0_16 = arith.constant 0 : index
    %c7168 = arith.constant 7168 : index
    %36 = vector.load %arg11[%c0_16, %c7168] : memref<9x8192xf32, #tpu.memory_space<vmem>>, vector<1x128xf32>
    tpu.vector_store %arg11[%c0_16, %c7168], %35 {strides = array<i32>} : memref<9x8192xf32, #tpu.memory_space<vmem>>, vector<1x128xf32>,
    %37 = vector.extract_strided_slice %34 {offsets = [0, 0], sizes = [1, 896], strides = [1, 1]} : vector<1x1024xf32> to vector<1x896xf32>
    %c0_17 = arith.constant 0 : index
    %c7296 = arith.constant 7296 : index
    %38 = vector.load %arg11[%c0_17, %c7296] : memref<9x8192xf32, #tpu.memory_space<vmem>>, vector<1x896xf32>
    tpu.vector_store %arg11[%c0_17, %c7296], %37 {strides = array<i32>} : memref<9x8192xf32, #tpu.memory_space<vmem>>, vector<1x896xf32>,
    %c1 = arith.constant 1 : index
    %c0_18 = arith.constant 0 : index
    %39 = vector.load %arg11[%c1, %c0_18] : memref<9x8192xf32, #tpu.memory_space<vmem>>, vector<1x1024xf32>
    tpu.vector_store %arg11[%c1, %c0_18], %2 {strides = array<i32>} : memref<9x8192xf32, #tpu.memory_space<vmem>>, vector<1x1024xf32>,
    %40 = vector.extract_strided_slice %1 {offsets = [0, 0], sizes = [1, 1024], strides = [1, 1]} : vector<1x8192xf32> to vector<1x1024xf32>
    %c1_19 = arith.constant 1 : index
    %c1024_20 = arith.constant 1024 : index
    %41 = vector.load %arg11[%c1_19, %c1024_20] : memref<9x8192xf32, #tpu.memory_space<vmem>>, vector<1x1024xf32>
    tpu.vector_store %arg11[%c1_19, %c1024_20], %40 {strides = array<i32>} : memref<9x8192xf32, #tpu.memory_space<vmem>>, vector<1x1024xf32>,
    %42 = vector.extract_strided_slice %1 {offsets = [0, 1024], sizes = [1, 1024], strides = [1, 1]} : vector<1x8192xf32> to vector<1x1024xf32>
    %c1_21 = arith.constant 1 : index
    %c2048_22 = arith.constant 2048 : index
    %43 = vector.load %arg11[%c1_21, %c2048_22] : memref<9x8192xf32, #tpu.memory_space<vmem>>, vector<1x1024xf32>
    tpu.vector_store %arg11[%c1_21, %c2048_22], %42 {strides = array<i32>} : memref<9x8192xf32, #tpu.memory_space<vmem>>, vector<1x1024xf32>,
    %44 = vector.extract_strided_slice %1 {offsets = [0, 2048], sizes = [1, 1024], strides = [1, 1]} : vector<1x8192xf32> to vector<1x1024xf32>
    %c1_23 = arith.constant 1 : index
    %c3072_24 = arith.constant 3072 : index
    %45 = vector.load %arg11[%c1_23, %c3072_24] : memref<9x8192xf32, #tpu.memory_space<vmem>>, vector<1x1024xf32>
    tpu.vector_store %arg11[%c1_23, %c3072_24], %44 {strides = array<i32>} : memref<9x8192xf32, #tpu.memory_space<vmem>>, vector<1x1024xf32>,
    %46 = vector.extract_strided_slice %1 {offsets = [0, 3072], sizes = [1, 1024], strides = [1, 1]} : vector<1x8192xf32> to vector<1x1024xf32>
    %c1_25 = arith.constant 1 : index
    %c4096_26 = arith.constant 4096 : index
    %47 = vector.load %arg11[%c1_25, %c4096_26] : memref<9x8192xf32, #tpu.memory_space<vmem>>, vector<1x1024xf32>
    tpu.vector_store %arg11[%c1_25, %c4096_26], %46 {strides = array<i32>} : memref<9x8192xf32, #tpu.memory_space<vmem>>, vector<1x1024xf32>,
    %48 = vector.extract_strided_slice %1 {offsets = [0, 4096], sizes = [1, 1024], strides = [1, 1]} : vector<1x8192xf32> to vector<1x1024xf32>
    %c1_27 = arith.constant 1 : index
    %c5120_28 = arith.constant 5120 : index
    %49 = vector.load %arg11[%c1_27, %c5120_28] : memref<9x8192xf32, #tpu.memory_space<vmem>>, vector<1x1024xf32>
    tpu.vector_store %arg11[%c1_27, %c5120_28], %48 {strides = array<i32>} : memref<9x8192xf32, #tpu.memory_space<vmem>>, vector<1x1024xf32>,
    %50 = vector.extract_strided_slice %1 {offsets = [0, 5120], sizes = [1, 1024], strides = [1, 1]} : vector<1x8192xf32> to vector<1x1024xf32>
    %c1_29 = arith.constant 1 : index
    %c6144_30 = arith.constant 6144 : index
    %51 = vector.load %arg11[%c1_29, %c6144_30] : memref<9x8192xf32, #tpu.memory_space<vmem>>, vector<1x1024xf32>
    tpu.vector_store %arg11[%c1_29, %c6144_30], %50 {strides = array<i32>} : memref<9x8192xf32, #tpu.memory_space<vmem>>, vector<1x1024xf32>,
    %52 = vector.extract_strided_slice %1 {offsets = [0, 6144], sizes = [1, 1024], strides = [1, 1]} : vector<1x8192xf32> to vector<1x1024xf32>
    %c1_31 = arith.constant 1 : index
    %c7168_32 = arith.constant 7168 : index
    %53 = vector.load %arg11[%c1_31, %c7168_32] : memref<9x8192xf32, #tpu.memory_space<vmem>>, vector<1x1024xf32>
    tpu.vector_store %arg11[%c1_31, %c7168_32], %52 {strides = array<i32>} : memref<9x8192xf32, #tpu.memory_space<vmem>>, vector<1x1024xf32>,
    %c2 = arith.constant 2 : index
    %c0_33 = arith.constant 0 : index
    %54 = vector.load %arg11[%c2, %c0_33] : memref<9x8192xf32, #tpu.memory_space<vmem>>, vector<1x1024xf32>
    tpu.vector_store %arg11[%c2, %c0_33], %2 {strides = array<i32>} : memref<9x8192xf32, #tpu.memory_space<vmem>>, vector<1x1024xf32>,
    %55 = vector.extract_strided_slice %1 {offsets = [0, 0], sizes = [1, 1024], strides = [1, 1]} : vector<1x8192xf32> to vector<1x1024xf32>
    %56 = vector.extract_strided_slice %55 {offsets = [0, 128], sizes = [1, 896], strides = [1, 1]} : vector<1x1024xf32> to vector<1x896xf32>
    %c2_34 = arith.constant 2 : index
    %c1024_35 = arith.constant 1024 : index
    %57 = vector.load %arg11[%c2_34, %c1024_35] : memref<9x8192xf32, #tpu.memory_space<vmem>>, vector<1x896xf32>
    tpu.vector_store %arg11[%c2_34, %c1024_35], %56 {strides = array<i32>} : memref<9x8192xf32, #tpu.memory_space<vmem>>, vector<1x896xf32>,
    %58 = vector.extract_strided_slice %2 {offsets = [0, 0], sizes = [1, 128], strides = [1, 1]} : vector<1x1024xf32> to vector<1x128xf32>
    %c2_36 = arith.constant 2 : index
    %c1920 = arith.constant 1920 : index
    %59 = vector.load %arg11[%c2_36, %c1920] : memref<9x8192xf32, #tpu.memory_space<vmem>>, vector<1x128xf32>
    tpu.vector_store %arg11[%c2_36, %c1920], %58 {strides = array<i32>} : memref<9x8192xf32, #tpu.memory_space<vmem>>, vector<1x128xf32>,
    %60 = vector.extract_strided_slice %1 {offsets = [0, 1024], sizes = [1, 1024], strides = [1, 1]} : vector<1x8192xf32> to vector<1x1024xf32>
    %61 = vector.extract_strided_slice %60 {offsets = [0, 128], sizes = [1, 896], strides = [1, 1]} : vector<1x1024xf32> to vector<1x896xf32>
    %c2_37 = arith.constant 2 : index
    %c2048_38 = arith.constant 2048 : index
    %62 = vector.load %arg11[%c2_37, %c2048_38] : memref<9x8192xf32, #tpu.memory_space<vmem>>, vector<1x896xf32>
    tpu.vector_store %arg11[%c2_37, %c2048_38], %61 {strides = array<i32>} : memref<9x8192xf32, #tpu.memory_space<vmem>>, vector<1x896xf32>,
    %63 = vector.extract_strided_slice %2 {offsets = [0, 0], sizes = [1, 128], strides = [1, 1]} : vector<1x1024xf32> to vector<1x128xf32>
    %c2_39 = arith.constant 2 : index
    %c2944 = arith.constant 2944 : index
    %64 = vector.load %arg11[%c2_39, %c2944] : memref<9x8192xf32, #tpu.memory_space<vmem>>, vector<1x128xf32>
    tpu.vector_store %arg11[%c2_39, %c2944], %63 {strides = array<i32>} : memref<9x8192xf32, #tpu.memory_space<vmem>>, vector<1x128xf32>,
    %65 = vector.extract_strided_slice %1 {offsets = [0, 2048], sizes = [1, 1024], strides = [1, 1]} : vector<1x8192xf32> to vector<1x1024xf32>
    %66 = vector.extract_strided_slice %65 {offsets = [0, 128], sizes = [1, 896], strides = [1, 1]} : vector<1x1024xf32> to vector<1x896xf32>
    %c2_40 = arith.constant 2 : index
    %c3072_41 = arith.constant 3072 : index
    %67 = vector.load %arg11[%c2_40, %c3072_41] : memref<9x8192xf32, #tpu.memory_space<vmem>>, vector<1x896xf32>
    tpu.vector_store %arg11[%c2_40, %c3072_41], %66 {strides = array<i32>} : memref<9x8192xf32, #tpu.memory_space<vmem>>, vector<1x896xf32>,
    %68 = vector.extract_strided_slice %2 {offsets = [0, 0], sizes = [1, 128], strides = [1, 1]} : vector<1x1024xf32> to vector<1x128xf32>
    %c2_42 = arith.constant 2 : index
    %c3968 = arith.constant 3968 : index
    %69 = vector.load %arg11[%c2_42, %c3968] : memref<9x8192xf32, #tpu.memory_space<vmem>>, vector<1x128xf32>
    tpu.vector_store %arg11[%c2_42, %c3968], %68 {strides = array<i32>} : memref<9x8192xf32, #tpu.memory_space<vmem>>, vector<1x128xf32>,
    %70 = vector.extract_strided_slice %1 {offsets = [0, 3072], sizes = [1, 1024], strides = [1, 1]} : vector<1x8192xf32> to vector<1x1024xf32>
    %71 = vector.extract_strided_slice %70 {offsets = [0, 128], sizes = [1, 896], strides = [1, 1]} : vector<1x1024xf32> to vector<1x896xf32>
    %c2_43 = arith.constant 2 : index
    %c4096_44 = arith.constant 4096 : index
    %72 = vector.load %arg11[%c2_43, %c4096_44] : memref<9x8192xf32, #tpu.memory_space<vmem>>, vector<1x896xf32>
    tpu.vector_store %arg11[%c2_43, %c4096_44], %71 {strides = array<i32>} : memref<9x8192xf32, #tpu.memory_space<vmem>>, vector<1x896xf32>,
    %73 = vector.extract_strided_slice %2 {offsets = [0, 0], sizes = [1, 128], strides = [1, 1]} : vector<1x1024xf32> to vector<1x128xf32>
    %c2_45 = arith.constant 2 : index
    %c4992 = arith.constant 4992 : index
    %74 = vector.load %arg11[%c2_45, %c4992] : memref<9x8192xf32, #tpu.memory_space<vmem>>, vector<1x128xf32>
    tpu.vector_store %arg11[%c2_45, %c4992], %73 {strides = array<i32>} : memref<9x8192xf32, #tpu.memory_space<vmem>>, vector<1x128xf32>,
    %75 = vector.extract_strided_slice %1 {offsets = [0, 4096], sizes = [1, 1024], strides = [1, 1]} : vector<1x8192xf32> to vector<1x1024xf32>
    %76 = vector.extract_strided_slice %75 {offsets = [0, 128], sizes = [1, 896], strides = [1, 1]} : vector<1x1024xf32> to vector<1x896xf32>
    %c2_46 = arith.constant 2 : index
    %c5120_47 = arith.constant 5120 : index
    %77 = vector.load %arg11[%c2_46, %c5120_47] : memref<9x8192xf32, #tpu.memory_space<vmem>>, vector<1x896xf32>
    tpu.vector_store %arg11[%c2_46, %c5120_47], %76 {strides = array<i32>} : memref<9x8192xf32, #tpu.memory_space<vmem>>, vector<1x896xf32>,
    %78 = vector.extract_strided_slice %2 {offsets = [0, 0], sizes = [1, 128], strides = [1, 1]} : vector<1x1024xf32> to vector<1x128xf32>
    %c2_48 = arith.constant 2 : index
    %c6016 = arith.constant 6016 : index
    %79 = vector.load %arg11[%c2_48, %c6016] : memref<9x8192xf32, #tpu.memory_space<vmem>>, vector<1x128xf32>
    tpu.vector_store %arg11[%c2_48, %c6016], %78 {strides = array<i32>} : memref<9x8192xf32, #tpu.memory_space<vmem>>, vector<1x128xf32>,
    %80 = vector.extract_strided_slice %1 {offsets = [0, 5120], sizes = [1, 1024], strides = [1, 1]} : vector<1x8192xf32> to vector<1x1024xf32>
    %81 = vector.extract_strided_slice %80 {offsets = [0, 128], sizes = [1, 896], strides = [1, 1]} : vector<1x1024xf32> to vector<1x896xf32>
    %c2_49 = arith.constant 2 : index
    %c6144_50 = arith.constant 6144 : index
    %82 = vector.load %arg11[%c2_49, %c6144_50] : memref<9x8192xf32, #tpu.memory_space<vmem>>, vector<1x896xf32>
    tpu.vector_store %arg11[%c2_49, %c6144_50], %81 {strides = array<i32>} : memref<9x8192xf32, #tpu.memory_space<vmem>>, vector<1x896xf32>,
    %83 = vector.extract_strided_slice %2 {offsets = [0, 0], sizes = [1, 128], strides = [1, 1]} : vector<1x1024xf32> to vector<1x128xf32>
    %c2_51 = arith.constant 2 : index
    %c7040 = arith.constant 7040 : index
    %84 = vector.load %arg11[%c2_51, %c7040] : memref<9x8192xf32, #tpu.memory_space<vmem>>, vector<1x128xf32>
    tpu.vector_store %arg11[%c2_51, %c7040], %83 {strides = array<i32>} : memref<9x8192xf32, #tpu.memory_space<vmem>>, vector<1x128xf32>,
    %85 = vector.extract_strided_slice %1 {offsets = [0, 6144], sizes = [1, 1024], strides = [1, 1]} : vector<1x8192xf32> to vector<1x1024xf32>
    %86 = vector.extract_strided_slice %85 {offsets = [0, 128], sizes = [1, 896], strides = [1, 1]} : vector<1x1024xf32> to vector<1x896xf32>
    %c2_52 = arith.constant 2 : index
    %c7168_53 = arith.constant 7168 : index
    %87 = vector.load %arg11[%c2_52, %c7168_53] : memref<9x8192xf32, #tpu.memory_space<vmem>>, vector<1x896xf32>
    tpu.vector_store %arg11[%c2_52, %c7168_53], %86 {strides = array<i32>} : memref<9x8192xf32, #tpu.memory_space<vmem>>, vector<1x896xf32>,
    %88 = vector.extract_strided_slice %2 {offsets = [0, 0], sizes = [1, 128], strides = [1, 1]} : vector<1x1024xf32> to vector<1x128xf32>
    %c2_54 = arith.constant 2 : index
    %c8064 = arith.constant 8064 : index
    %89 = vector.load %arg11[%c2_54, %c8064] : memref<9x8192xf32, #tpu.memory_space<vmem>>, vector<1x128xf32>
    tpu.vector_store %arg11[%c2_54, %c8064], %88 {strides = array<i32>} : memref<9x8192xf32, #tpu.memory_space<vmem>>, vector<1x128xf32>,
    %90 = vector.extract_strided_slice %1 {offsets = [0, 0], sizes = [1, 1024], strides = [1, 1]} : vector<1x8192xf32> to vector<1x1024xf32>
    %91 = vector.extract_strided_slice %2 {offsets = [0, 0], sizes = [1, 128], strides = [1, 1]} : vector<1x1024xf32> to vector<1x128xf32>
    %c3 = arith.constant 3 : index
    %c0_55 = arith.constant 0 : index
    %92 = vector.load %arg11[%c3, %c0_55] : memref<9x8192xf32, #tpu.memory_space<vmem>>, vector<1x128xf32>
    tpu.vector_store %arg11[%c3, %c0_55], %91 {strides = array<i32>} : memref<9x8192xf32, #tpu.memory_space<vmem>>, vector<1x128xf32>,
    %93 = vector.extract_strided_slice %90 {offsets = [0, 0], sizes = [1, 896], strides = [1, 1]} : vector<1x1024xf32> to vector<1x896xf32>
    %c3_56 = arith.constant 3 : index
    %c128 = arith.constant 128 : index
    %94 = vector.load %arg11[%c3_56, %c128] : memref<9x8192xf32, #tpu.memory_space<vmem>>, vector<1x896xf32>
    tpu.vector_store %arg11[%c3_56, %c128], %93 {strides = array<i32>} : memref<9x8192xf32, #tpu.memory_space<vmem>>, vector<1x896xf32>,
    %95 = vector.extract_strided_slice %1 {offsets = [0, 1024], sizes = [1, 1024], strides = [1, 1]} : vector<1x8192xf32> to vector<1x1024xf32>
    %96 = vector.extract_strided_slice %2 {offsets = [0, 0], sizes = [1, 128], strides = [1, 1]} : vector<1x1024xf32> to vector<1x128xf32>
    %c3_57 = arith.constant 3 : index
    %c1024_58 = arith.constant 1024 : index
    %97 = vector.load %arg11[%c3_57, %c1024_58] : memref<9x8192xf32, #tpu.memory_space<vmem>>, vector<1x128xf32>
    tpu.vector_store %arg11[%c3_57, %c1024_58], %96 {strides = array<i32>} : memref<9x8192xf32, #tpu.memory_space<vmem>>, vector<1x128xf32>,
    %98 = vector.extract_strided_slice %95 {offsets = [0, 0], sizes = [1, 896], strides = [1, 1]} : vector<1x1024xf32> to vector<1x896xf32>
    %c3_59 = arith.constant 3 : index
    %c1152_60 = arith.constant 1152 : index
    %99 = vector.load %arg11[%c3_59, %c1152_60] : memref<9x8192xf32, #tpu.memory_space<vmem>>, vector<1x896xf32>
    tpu.vector_store %arg11[%c3_59, %c1152_60], %98 {strides = array<i32>} : memref<9x8192xf32, #tpu.memory_space<vmem>>, vector<1x896xf32>,
    %100 = vector.extract_strided_slice %1 {offsets = [0, 2048], sizes = [1, 1024], strides = [1, 1]} : vector<1x8192xf32> to vector<1x1024xf32>
    %101 = vector.extract_strided_slice %2 {offsets = [0, 0], sizes = [1, 128], strides = [1, 1]} : vector<1x1024xf32> to vector<1x128xf32>
    %c3_61 = arith.constant 3 : index
    %c2048_62 = arith.constant 2048 : index
    %102 = vector.load %arg11[%c3_61, %c2048_62] : memref<9x8192xf32, #tpu.memory_space<vmem>>, vector<1x128xf32>
    tpu.vector_store %arg11[%c3_61, %c2048_62], %101 {strides = array<i32>} : memref<9x8192xf32, #tpu.memory_space<vmem>>, vector<1x128xf32>,
    %103 = vector.extract_strided_slice %100 {offsets = [0, 0], sizes = [1, 896], strides = [1, 1]} : vector<1x1024xf32> to vector<1x896xf32>
    %c3_63 = arith.constant 3 : index
    %c2176_64 = arith.constant 2176 : index
    %104 = vector.load %arg11[%c3_63, %c2176_64] : memref<9x8192xf32, #tpu.memory_space<vmem>>, vector<1x896xf32>
    tpu.vector_store %arg11[%c3_63, %c2176_64], %103 {strides = array<i32>} : memref<9x8192xf32, #tpu.memory_space<vmem>>, vector<1x896xf32>,
    %105 = vector.extract_strided_slice %1 {offsets = [0, 3072], sizes = [1, 1024], strides = [1, 1]} : vector<1x8192xf32> to vector<1x1024xf32>
    %106 = vector.extract_strided_slice %2 {offsets = [0, 0], sizes = [1, 128], strides = [1, 1]} : vector<1x1024xf32> to vector<1x128xf32>
    %c3_65 = arith.constant 3 : index
    %c3072_66 = arith.constant 3072 : index
    %107 = vector.load %arg11[%c3_65, %c3072_66] : memref<9x8192xf32, #tpu.memory_space<vmem>>, vector<1x128xf32>
    tpu.vector_store %arg11[%c3_65, %c3072_66], %106 {strides = array<i32>} : memref<9x8192xf32, #tpu.memory_space<vmem>>, vector<1x128xf32>,
    %108 = vector.extract_strided_slice %105 {offsets = [0, 0], sizes = [1, 896], strides = [1, 1]} : vector<1x1024xf32> to vector<1x896xf32>
    %c3_67 = arith.constant 3 : index
    %c3200_68 = arith.constant 3200 : index
    %109 = vector.load %arg11[%c3_67, %c3200_68] : memref<9x8192xf32, #tpu.memory_space<vmem>>, vector<1x896xf32>
    tpu.vector_store %arg11[%c3_67, %c3200_68], %108 {strides = array<i32>} : memref<9x8192xf32, #tpu.memory_space<vmem>>, vector<1x896xf32>,
    %110 = vector.extract_strided_slice %1 {offsets = [0, 4096], sizes = [1, 1024], strides = [1, 1]} : vector<1x8192xf32> to vector<1x1024xf32>
    %111 = vector.extract_strided_slice %2 {offsets = [0, 0], sizes = [1, 128], strides = [1, 1]} : vector<1x1024xf32> to vector<1x128xf32>
    %c3_69 = arith.constant 3 : index
    %c4096_70 = arith.constant 4096 : index
    %112 = vector.load %arg11[%c3_69, %c4096_70] : memref<9x8192xf32, #tpu.memory_space<vmem>>, vector<1x128xf32>
    tpu.vector_store %arg11[%c3_69, %c4096_70], %111 {strides = array<i32>} : memref<9x8192xf32, #tpu.memory_space<vmem>>, vector<1x128xf32>,
    %113 = vector.extract_strided_slice %110 {offsets = [0, 0], sizes = [1, 896], strides = [1, 1]} : vector<1x1024xf32> to vector<1x896xf32>
    %c3_71 = arith.constant 3 : index
    %c4224_72 = arith.constant 4224 : index
    %114 = vector.load %arg11[%c3_71, %c4224_72] : memref<9x8192xf32, #tpu.memory_space<vmem>>, vector<1x896xf32>
    tpu.vector_store %arg11[%c3_71, %c4224_72], %113 {strides = array<i32>} : memref<9x8192xf32, #tpu.memory_space<vmem>>, vector<1x896xf32>,
    %115 = vector.extract_strided_slice %1 {offsets = [0, 5120], sizes = [1, 1024], strides = [1, 1]} : vector<1x8192xf32> to vector<1x1024xf32>
    %116 = vector.extract_strided_slice %2 {offsets = [0, 0], sizes = [1, 128], strides = [1, 1]} : vector<1x1024xf32> to vector<1x128xf32>
    %c3_73 = arith.constant 3 : index
    %c5120_74 = arith.constant 5120 : index
    %117 = vector.load %arg11[%c3_73, %c5120_74] : memref<9x8192xf32, #tpu.memory_space<vmem>>, vector<1x128xf32>
    tpu.vector_store %arg11[%c3_73, %c5120_74], %116 {strides = array<i32>} : memref<9x8192xf32, #tpu.memory_space<vmem>>, vector<1x128xf32>,
    %118 = vector.extract_strided_slice %115 {offsets = [0, 0], sizes = [1, 896], strides = [1, 1]} : vector<1x1024xf32> to vector<1x896xf32>
    %c3_75 = arith.constant 3 : index
    %c5248_76 = arith.constant 5248 : index
    %119 = vector.load %arg11[%c3_75, %c5248_76] : memref<9x8192xf32, #tpu.memory_space<vmem>>, vector<1x896xf32>
    tpu.vector_store %arg11[%c3_75, %c5248_76], %118 {strides = array<i32>} : memref<9x8192xf32, #tpu.memory_space<vmem>>, vector<1x896xf32>,
    %120 = vector.extract_strided_slice %1 {offsets = [0, 6144], sizes = [1, 1024], strides = [1, 1]} : vector<1x8192xf32> to vector<1x1024xf32>
    %121 = vector.extract_strided_slice %2 {offsets = [0, 0], sizes = [1, 128], strides = [1, 1]} : vector<1x1024xf32> to vector<1x128xf32>
    %c3_77 = arith.constant 3 : index
    %c6144_78 = arith.constant 6144 : index
    %122 = vector.load %arg11[%c3_77, %c6144_78] : memref<9x8192xf32, #tpu.memory_space<vmem>>, vector<1x128xf32>
    tpu.vector_store %arg11[%c3_77, %c6144_78], %121 {strides = array<i32>} : memref<9x8192xf32, #tpu.memory_space<vmem>>, vector<1x128xf32>,
    %123 = vector.extract_strided_slice %120 {offsets = [0, 0], sizes = [1, 896], strides = [1, 1]} : vector<1x1024xf32> to vector<1x896xf32>
    %c3_79 = arith.constant 3 : index
    %c6272_80 = arith.constant 6272 : index
    %124 = vector.load %arg11[%c3_79, %c6272_80] : memref<9x8192xf32, #tpu.memory_space<vmem>>, vector<1x896xf32>
    tpu.vector_store %arg11[%c3_79, %c6272_80], %123 {strides = array<i32>} : memref<9x8192xf32, #tpu.memory_space<vmem>>, vector<1x896xf32>,
    %125 = vector.extract_strided_slice %1 {offsets = [0, 7168], sizes = [1, 1024], strides = [1, 1]} : vector<1x8192xf32> to vector<1x1024xf32>
    %126 = vector.extract_strided_slice %2 {offsets = [0, 0], sizes = [1, 128], strides = [1, 1]} : vector<1x1024xf32> to vector<1x128xf32>
    %c3_81 = arith.constant 3 : index
    %c7168_82 = arith.constant 7168 : index
    %127 = vector.load %arg11[%c3_81, %c7168_82] : memref<9x8192xf32, #tpu.memory_space<vmem>>, vector<1x128xf32>
    tpu.vector_store %arg11[%c3_81, %c7168_82], %126 {strides = array<i32>} : memref<9x8192xf32, #tpu.memory_space<vmem>>, vector<1x128xf32>,
    %128 = vector.extract_strided_slice %125 {offsets = [0, 0], sizes = [1, 896], strides = [1, 1]} : vector<1x1024xf32> to vector<1x896xf32>
    %c3_83 = arith.constant 3 : index
    %c7296_84 = arith.constant 7296 : index
    %129 = vector.load %arg11[%c3_83, %c7296_84] : memref<9x8192xf32, #tpu.memory_space<vmem>>, vector<1x896xf32>
    tpu.vector_store %arg11[%c3_83, %c7296_84], %128 {strides = array<i32>} : memref<9x8192xf32, #tpu.memory_space<vmem>>, vector<1x896xf32>,
    %130 = vector.extract_strided_slice %1 {offsets = [0, 0], sizes = [1, 1024], strides = [1, 1]} : vector<1x8192xf32> to vector<1x1024xf32>
    %c4 = arith.constant 4 : index
    %c0_85 = arith.constant 0 : index
    %131 = vector.load %arg11[%c4, %c0_85] : memref<9x8192xf32, #tpu.memory_space<vmem>>, vector<1x1024xf32>
    tpu.vector_store %arg11[%c4, %c0_85], %130 {strides = array<i32>} : memref<9x8192xf32, #tpu.memory_space<vmem>>, vector<1x1024xf32>,
    %132 = vector.extract_strided_slice %1 {offsets = [0, 1024], sizes = [1, 1024], strides = [1, 1]} : vector<1x8192xf32> to vector<1x1024xf32>
    %c4_86 = arith.constant 4 : index
    %c1024_87 = arith.constant 1024 : index
    %133 = vector.load %arg11[%c4_86, %c1024_87] : memref<9x8192xf32, #tpu.memory_space<vmem>>, vector<1x1024xf32>
    tpu.vector_store %arg11[%c4_86, %c1024_87], %132 {strides = array<i32>} : memref<9x8192xf32, #tpu.memory_space<vmem>>, vector<1x1024xf32>,
    %134 = vector.extract_strided_slice %1 {offsets = [0, 2048], sizes = [1, 1024], strides = [1, 1]} : vector<1x8192xf32> to vector<1x1024xf32>
    %c4_88 = arith.constant 4 : index
    %c2048_89 = arith.constant 2048 : index
    %135 = vector.load %arg11[%c4_88, %c2048_89] : memref<9x8192xf32, #tpu.memory_space<vmem>>, vector<1x1024xf32>
    tpu.vector_store %arg11[%c4_88, %c2048_89], %134 {strides = array<i32>} : memref<9x8192xf32, #tpu.memory_space<vmem>>, vector<1x1024xf32>,
    %136 = vector.extract_strided_slice %1 {offsets = [0, 3072], sizes = [1, 1024], strides = [1, 1]} : vector<1x8192xf32> to vector<1x1024xf32>
    %c4_90 = arith.constant 4 : index
    %c3072_91 = arith.constant 3072 : index
    %137 = vector.load %arg11[%c4_90, %c3072_91] : memref<9x8192xf32, #tpu.memory_space<vmem>>, vector<1x1024xf32>
    tpu.vector_store %arg11[%c4_90, %c3072_91], %136 {strides = array<i32>} : memref<9x8192xf32, #tpu.memory_space<vmem>>, vector<1x1024xf32>,
    %138 = vector.extract_strided_slice %1 {offsets = [0, 4096], sizes = [1, 1024], strides = [1, 1]} : vector<1x8192xf32> to vector<1x1024xf32>
    %c4_92 = arith.constant 4 : index
    %c4096_93 = arith.constant 4096 : index
    %139 = vector.load %arg11[%c4_92, %c4096_93] : memref<9x8192xf32, #tpu.memory_space<vmem>>, vector<1x1024xf32>
    tpu.vector_store %arg11[%c4_92, %c4096_93], %138 {strides = array<i32>} : memref<9x8192xf32, #tpu.memory_space<vmem>>, vector<1x1024xf32>,
    %140 = vector.extract_strided_slice %1 {offsets = [0, 5120], sizes = [1, 1024], strides = [1, 1]} : vector<1x8192xf32> to vector<1x1024xf32>
    %c4_94 = arith.constant 4 : index
    %c5120_95 = arith.constant 5120 : index
    %141 = vector.load %arg11[%c4_94, %c5120_95] : memref<9x8192xf32, #tpu.memory_space<vmem>>, vector<1x1024xf32>
    tpu.vector_store %arg11[%c4_94, %c5120_95], %140 {strides = array<i32>} : memref<9x8192xf32, #tpu.memory_space<vmem>>, vector<1x1024xf32>,
    %142 = vector.extract_strided_slice %1 {offsets = [0, 6144], sizes = [1, 1024], strides = [1, 1]} : vector<1x8192xf32> to vector<1x1024xf32>
    %c4_96 = arith.constant 4 : index
    %c6144_97 = arith.constant 6144 : index
    %143 = vector.load %arg11[%c4_96, %c6144_97] : memref<9x8192xf32, #tpu.memory_space<vmem>>, vector<1x1024xf32>
    tpu.vector_store %arg11[%c4_96, %c6144_97], %142 {strides = array<i32>} : memref<9x8192xf32, #tpu.memory_space<vmem>>, vector<1x1024xf32>,
    %144 = vector.extract_strided_slice %1 {offsets = [0, 7168], sizes = [1, 1024], strides = [1, 1]} : vector<1x8192xf32> to vector<1x1024xf32>
    %c4_98 = arith.constant 4 : index
    %c7168_99 = arith.constant 7168 : index
    %145 = vector.load %arg11[%c4_98, %c7168_99] : memref<9x8192xf32, #tpu.memory_space<vmem>>, vector<1x1024xf32>
    tpu.vector_store %arg11[%c4_98, %c7168_99], %144 {strides = array<i32>} : memref<9x8192xf32, #tpu.memory_space<vmem>>, vector<1x1024xf32>,
    %146 = vector.extract_strided_slice %1 {offsets = [0, 0], sizes = [1, 1024], strides = [1, 1]} : vector<1x8192xf32> to vector<1x1024xf32>
    %147 = vector.extract_strided_slice %146 {offsets = [0, 128], sizes = [1, 896], strides = [1, 1]} : vector<1x1024xf32> to vector<1x896xf32>
    %c5 = arith.constant 5 : index
    %c0_100 = arith.constant 0 : index
    %148 = vector.load %arg11[%c5, %c0_100] : memref<9x8192xf32, #tpu.memory_space<vmem>>, vector<1x896xf32>
    tpu.vector_store %arg11[%c5, %c0_100], %147 {strides = array<i32>} : memref<9x8192xf32, #tpu.memory_space<vmem>>, vector<1x896xf32>,
    %149 = vector.extract_strided_slice %2 {offsets = [0, 0], sizes = [1, 128], strides = [1, 1]} : vector<1x1024xf32> to vector<1x128xf32>
    %c5_101 = arith.constant 5 : index
    %c896 = arith.constant 896 : index
    %150 = vector.load %arg11[%c5_101, %c896] : memref<9x8192xf32, #tpu.memory_space<vmem>>, vector<1x128xf32>
    tpu.vector_store %arg11[%c5_101, %c896], %149 {strides = array<i32>} : memref<9x8192xf32, #tpu.memory_space<vmem>>, vector<1x128xf32>,
    %151 = vector.extract_strided_slice %1 {offsets = [0, 1024], sizes = [1, 1024], strides = [1, 1]} : vector<1x8192xf32> to vector<1x1024xf32>
    %152 = vector.extract_strided_slice %151 {offsets = [0, 128], sizes = [1, 896], strides = [1, 1]} : vector<1x1024xf32> to vector<1x896xf32>
    %c5_102 = arith.constant 5 : index
    %c1024_103 = arith.constant 1024 : index
    %153 = vector.load %arg11[%c5_102, %c1024_103] : memref<9x8192xf32, #tpu.memory_space<vmem>>, vector<1x896xf32>
    tpu.vector_store %arg11[%c5_102, %c1024_103], %152 {strides = array<i32>} : memref<9x8192xf32, #tpu.memory_space<vmem>>, vector<1x896xf32>,
    %154 = vector.extract_strided_slice %2 {offsets = [0, 0], sizes = [1, 128], strides = [1, 1]} : vector<1x1024xf32> to vector<1x128xf32>
    %c5_104 = arith.constant 5 : index
    %c1920_105 = arith.constant 1920 : index
    %155 = vector.load %arg11[%c5_104, %c1920_105] : memref<9x8192xf32, #tpu.memory_space<vmem>>, vector<1x128xf32>
    tpu.vector_store %arg11[%c5_104, %c1920_105], %154 {strides = array<i32>} : memref<9x8192xf32, #tpu.memory_space<vmem>>, vector<1x128xf32>,
    %156 = vector.extract_strided_slice %1 {offsets = [0, 2048], sizes = [1, 1024], strides = [1, 1]} : vector<1x8192xf32> to vector<1x1024xf32>
    %157 = vector.extract_strided_slice %156 {offsets = [0, 128], sizes = [1, 896], strides = [1, 1]} : vector<1x1024xf32> to vector<1x896xf32>
    %c5_106 = arith.constant 5 : index
    %c2048_107 = arith.constant 2048 : index
    %158 = vector.load %arg11[%c5_106, %c2048_107] : memref<9x8192xf32, #tpu.memory_space<vmem>>, vector<1x896xf32>
    tpu.vector_store %arg11[%c5_106, %c2048_107], %157 {strides = array<i32>} : memref<9x8192xf32, #tpu.memory_space<vmem>>, vector<1x896xf32>,
    %159 = vector.extract_strided_slice %2 {offsets = [0, 0], sizes = [1, 128], strides = [1, 1]} : vector<1x1024xf32> to vector<1x128xf32>
    %c5_108 = arith.constant 5 : index
    %c2944_109 = arith.constant 2944 : index
    %160 = vector.load %arg11[%c5_108, %c2944_109] : memref<9x8192xf32, #tpu.memory_space<vmem>>, vector<1x128xf32>
    tpu.vector_store %arg11[%c5_108, %c2944_109], %159 {strides = array<i32>} : memref<9x8192xf32, #tpu.memory_space<vmem>>, vector<1x128xf32>,
    %161 = vector.extract_strided_slice %1 {offsets = [0, 3072], sizes = [1, 1024], strides = [1, 1]} : vector<1x8192xf32> to vector<1x1024xf32>
    %162 = vector.extract_strided_slice %161 {offsets = [0, 128], sizes = [1, 896], strides = [1, 1]} : vector<1x1024xf32> to vector<1x896xf32>
    %c5_110 = arith.constant 5 : index
    %c3072_111 = arith.constant 3072 : index
    %163 = vector.load %arg11[%c5_110, %c3072_111] : memref<9x8192xf32, #tpu.memory_space<vmem>>, vector<1x896xf32>
    tpu.vector_store %arg11[%c5_110, %c3072_111], %162 {strides = array<i32>} : memref<9x8192xf32, #tpu.memory_space<vmem>>, vector<1x896xf32>,
    %164 = vector.extract_strided_slice %2 {offsets = [0, 0], sizes = [1, 128], strides = [1, 1]} : vector<1x1024xf32> to vector<1x128xf32>
    %c5_112 = arith.constant 5 : index
    %c3968_113 = arith.constant 3968 : index
    %165 = vector.load %arg11[%c5_112, %c3968_113] : memref<9x8192xf32, #tpu.memory_space<vmem>>, vector<1x128xf32>
    tpu.vector_store %arg11[%c5_112, %c3968_113], %164 {strides = array<i32>} : memref<9x8192xf32, #tpu.memory_space<vmem>>, vector<1x128xf32>,
    %166 = vector.extract_strided_slice %1 {offsets = [0, 4096], sizes = [1, 1024], strides = [1, 1]} : vector<1x8192xf32> to vector<1x1024xf32>
    %167 = vector.extract_strided_slice %166 {offsets = [0, 128], sizes = [1, 896], strides = [1, 1]} : vector<1x1024xf32> to vector<1x896xf32>
    %c5_114 = arith.constant 5 : index
    %c4096_115 = arith.constant 4096 : index
    %168 = vector.load %arg11[%c5_114, %c4096_115] : memref<9x8192xf32, #tpu.memory_space<vmem>>, vector<1x896xf32>
    tpu.vector_store %arg11[%c5_114, %c4096_115], %167 {strides = array<i32>} : memref<9x8192xf32, #tpu.memory_space<vmem>>, vector<1x896xf32>,
    %169 = vector.extract_strided_slice %2 {offsets = [0, 0], sizes = [1, 128], strides = [1, 1]} : vector<1x1024xf32> to vector<1x128xf32>
    %c5_116 = arith.constant 5 : index
    %c4992_117 = arith.constant 4992 : index
    %170 = vector.load %arg11[%c5_116, %c4992_117] : memref<9x8192xf32, #tpu.memory_space<vmem>>, vector<1x128xf32>
    tpu.vector_store %arg11[%c5_116, %c4992_117], %169 {strides = array<i32>} : memref<9x8192xf32, #tpu.memory_space<vmem>>, vector<1x128xf32>,
    %171 = vector.extract_strided_slice %1 {offsets = [0, 5120], sizes = [1, 1024], strides = [1, 1]} : vector<1x8192xf32> to vector<1x1024xf32>
    %172 = vector.extract_strided_slice %171 {offsets = [0, 128], sizes = [1, 896], strides = [1, 1]} : vector<1x1024xf32> to vector<1x896xf32>
    %c5_118 = arith.constant 5 : index
    %c5120_119 = arith.constant 5120 : index
    %173 = vector.load %arg11[%c5_118, %c5120_119] : memref<9x8192xf32, #tpu.memory_space<vmem>>, vector<1x896xf32>
    tpu.vector_store %arg11[%c5_118, %c5120_119], %172 {strides = array<i32>} : memref<9x8192xf32, #tpu.memory_space<vmem>>, vector<1x896xf32>,
    %174 = vector.extract_strided_slice %2 {offsets = [0, 0], sizes = [1, 128], strides = [1, 1]} : vector<1x1024xf32> to vector<1x128xf32>
    %c5_120 = arith.constant 5 : index
    %c6016_121 = arith.constant 6016 : index
    %175 = vector.load %arg11[%c5_120, %c6016_121] : memref<9x8192xf32, #tpu.memory_space<vmem>>, vector<1x128xf32>
    tpu.vector_store %arg11[%c5_120, %c6016_121], %174 {strides = array<i32>} : memref<9x8192xf32, #tpu.memory_space<vmem>>, vector<1x128xf32>,
    %176 = vector.extract_strided_slice %1 {offsets = [0, 6144], sizes = [1, 1024], strides = [1, 1]} : vector<1x8192xf32> to vector<1x1024xf32>
    %177 = vector.extract_strided_slice %176 {offsets = [0, 128], sizes = [1, 896], strides = [1, 1]} : vector<1x1024xf32> to vector<1x896xf32>
    %c5_122 = arith.constant 5 : index
    %c6144_123 = arith.constant 6144 : index
    %178 = vector.load %arg11[%c5_122, %c6144_123] : memref<9x8192xf32, #tpu.memory_space<vmem>>, vector<1x896xf32>
    tpu.vector_store %arg11[%c5_122, %c6144_123], %177 {strides = array<i32>} : memref<9x8192xf32, #tpu.memory_space<vmem>>, vector<1x896xf32>,
    %179 = vector.extract_strided_slice %2 {offsets = [0, 0], sizes = [1, 128], strides = [1, 1]} : vector<1x1024xf32> to vector<1x128xf32>
    %c5_124 = arith.constant 5 : index
    %c7040_125 = arith.constant 7040 : index
    %180 = vector.load %arg11[%c5_124, %c7040_125] : memref<9x8192xf32, #tpu.memory_space<vmem>>, vector<1x128xf32>
    tpu.vector_store %arg11[%c5_124, %c7040_125], %179 {strides = array<i32>} : memref<9x8192xf32, #tpu.memory_space<vmem>>, vector<1x128xf32>,
    %181 = vector.extract_strided_slice %1 {offsets = [0, 7168], sizes = [1, 1024], strides = [1, 1]} : vector<1x8192xf32> to vector<1x1024xf32>
    %182 = vector.extract_strided_slice %181 {offsets = [0, 128], sizes = [1, 896], strides = [1, 1]} : vector<1x1024xf32> to vector<1x896xf32>
    %c5_126 = arith.constant 5 : index
    %c7168_127 = arith.constant 7168 : index
    %183 = vector.load %arg11[%c5_126, %c7168_127] : memref<9x8192xf32, #tpu.memory_space<vmem>>, vector<1x896xf32>
    tpu.vector_store %arg11[%c5_126, %c7168_127], %182 {strides = array<i32>} : memref<9x8192xf32, #tpu.memory_space<vmem>>, vector<1x896xf32>,
    %184 = vector.extract_strided_slice %2 {offsets = [0, 0], sizes = [1, 128], strides = [1, 1]} : vector<1x1024xf32> to vector<1x128xf32>
    %c5_128 = arith.constant 5 : index
    %c8064_129 = arith.constant 8064 : index
    %185 = vector.load %arg11[%c5_128, %c8064_129] : memref<9x8192xf32, #tpu.memory_space<vmem>>, vector<1x128xf32>
    tpu.vector_store %arg11[%c5_128, %c8064_129], %184 {strides = array<i32>} : memref<9x8192xf32, #tpu.memory_space<vmem>>, vector<1x128xf32>,
    %186 = vector.extract_strided_slice %1 {offsets = [0, 1024], sizes = [1, 1024], strides = [1, 1]} : vector<1x8192xf32> to vector<1x1024xf32>
    %187 = vector.extract_strided_slice %2 {offsets = [0, 0], sizes = [1, 128], strides = [1, 1]} : vector<1x1024xf32> to vector<1x128xf32>
    %c6 = arith.constant 6 : index
    %c0_130 = arith.constant 0 : index
    %188 = vector.load %arg11[%c6, %c0_130] : memref<9x8192xf32, #tpu.memory_space<vmem>>, vector<1x128xf32>
    tpu.vector_store %arg11[%c6, %c0_130], %187 {strides = array<i32>} : memref<9x8192xf32, #tpu.memory_space<vmem>>, vector<1x128xf32>,
    %189 = vector.extract_strided_slice %186 {offsets = [0, 0], sizes = [1, 896], strides = [1, 1]} : vector<1x1024xf32> to vector<1x896xf32>
    %c6_131 = arith.constant 6 : index
    %c128_132 = arith.constant 128 : index
    %190 = vector.load %arg11[%c6_131, %c128_132] : memref<9x8192xf32, #tpu.memory_space<vmem>>, vector<1x896xf32>
    tpu.vector_store %arg11[%c6_131, %c128_132], %189 {strides = array<i32>} : memref<9x8192xf32, #tpu.memory_space<vmem>>, vector<1x896xf32>,
    %191 = vector.extract_strided_slice %1 {offsets = [0, 2048], sizes = [1, 1024], strides = [1, 1]} : vector<1x8192xf32> to vector<1x1024xf32>
    %192 = vector.extract_strided_slice %2 {offsets = [0, 0], sizes = [1, 128], strides = [1, 1]} : vector<1x1024xf32> to vector<1x128xf32>
    %c6_133 = arith.constant 6 : index
    %c1024_134 = arith.constant 1024 : index
    %193 = vector.load %arg11[%c6_133, %c1024_134] : memref<9x8192xf32, #tpu.memory_space<vmem>>, vector<1x128xf32>
    tpu.vector_store %arg11[%c6_133, %c1024_134], %192 {strides = array<i32>} : memref<9x8192xf32, #tpu.memory_space<vmem>>, vector<1x128xf32>,
    %194 = vector.extract_strided_slice %191 {offsets = [0, 0], sizes = [1, 896], strides = [1, 1]} : vector<1x1024xf32> to vector<1x896xf32>
    %c6_135 = arith.constant 6 : index
    %c1152_136 = arith.constant 1152 : index
    %195 = vector.load %arg11[%c6_135, %c1152_136] : memref<9x8192xf32, #tpu.memory_space<vmem>>, vector<1x896xf32>
    tpu.vector_store %arg11[%c6_135, %c1152_136], %194 {strides = array<i32>} : memref<9x8192xf32, #tpu.memory_space<vmem>>, vector<1x896xf32>,
    %196 = vector.extract_strided_slice %1 {offsets = [0, 3072], sizes = [1, 1024], strides = [1, 1]} : vector<1x8192xf32> to vector<1x1024xf32>
    %197 = vector.extract_strided_slice %2 {offsets = [0, 0], sizes = [1, 128], strides = [1, 1]} : vector<1x1024xf32> to vector<1x128xf32>
    %c6_137 = arith.constant 6 : index
    %c2048_138 = arith.constant 2048 : index
    %198 = vector.load %arg11[%c6_137, %c2048_138] : memref<9x8192xf32, #tpu.memory_space<vmem>>, vector<1x128xf32>
    tpu.vector_store %arg11[%c6_137, %c2048_138], %197 {strides = array<i32>} : memref<9x8192xf32, #tpu.memory_space<vmem>>, vector<1x128xf32>,
    %199 = vector.extract_strided_slice %196 {offsets = [0, 0], sizes = [1, 896], strides = [1, 1]} : vector<1x1024xf32> to vector<1x896xf32>
    %c6_139 = arith.constant 6 : index
    %c2176_140 = arith.constant 2176 : index
    %200 = vector.load %arg11[%c6_139, %c2176_140] : memref<9x8192xf32, #tpu.memory_space<vmem>>, vector<1x896xf32>
    tpu.vector_store %arg11[%c6_139, %c2176_140], %199 {strides = array<i32>} : memref<9x8192xf32, #tpu.memory_space<vmem>>, vector<1x896xf32>,
    %201 = vector.extract_strided_slice %1 {offsets = [0, 4096], sizes = [1, 1024], strides = [1, 1]} : vector<1x8192xf32> to vector<1x1024xf32>
    %202 = vector.extract_strided_slice %2 {offsets = [0, 0], sizes = [1, 128], strides = [1, 1]} : vector<1x1024xf32> to vector<1x128xf32>
    %c6_141 = arith.constant 6 : index
    %c3072_142 = arith.constant 3072 : index
    %203 = vector.load %arg11[%c6_141, %c3072_142] : memref<9x8192xf32, #tpu.memory_space<vmem>>, vector<1x128xf32>
    tpu.vector_store %arg11[%c6_141, %c3072_142], %202 {strides = array<i32>} : memref<9x8192xf32, #tpu.memory_space<vmem>>, vector<1x128xf32>,
    %204 = vector.extract_strided_slice %201 {offsets = [0, 0], sizes = [1, 896], strides = [1, 1]} : vector<1x1024xf32> to vector<1x896xf32>
    %c6_143 = arith.constant 6 : index
    %c3200_144 = arith.constant 3200 : index
    %205 = vector.load %arg11[%c6_143, %c3200_144] : memref<9x8192xf32, #tpu.memory_space<vmem>>, vector<1x896xf32>
    tpu.vector_store %arg11[%c6_143, %c3200_144], %204 {strides = array<i32>} : memref<9x8192xf32, #tpu.memory_space<vmem>>, vector<1x896xf32>,
    %206 = vector.extract_strided_slice %1 {offsets = [0, 5120], sizes = [1, 1024], strides = [1, 1]} : vector<1x8192xf32> to vector<1x1024xf32>
    %207 = vector.extract_strided_slice %2 {offsets = [0, 0], sizes = [1, 128], strides = [1, 1]} : vector<1x1024xf32> to vector<1x128xf32>
    %c6_145 = arith.constant 6 : index
    %c4096_146 = arith.constant 4096 : index
    %208 = vector.load %arg11[%c6_145, %c4096_146] : memref<9x8192xf32, #tpu.memory_space<vmem>>, vector<1x128xf32>
    tpu.vector_store %arg11[%c6_145, %c4096_146], %207 {strides = array<i32>} : memref<9x8192xf32, #tpu.memory_space<vmem>>, vector<1x128xf32>,
    %209 = vector.extract_strided_slice %206 {offsets = [0, 0], sizes = [1, 896], strides = [1, 1]} : vector<1x1024xf32> to vector<1x896xf32>
    %c6_147 = arith.constant 6 : index
    %c4224_148 = arith.constant 4224 : index
    %210 = vector.load %arg11[%c6_147, %c4224_148] : memref<9x8192xf32, #tpu.memory_space<vmem>>, vector<1x896xf32>
    tpu.vector_store %arg11[%c6_147, %c4224_148], %209 {strides = array<i32>} : memref<9x8192xf32, #tpu.memory_space<vmem>>, vector<1x896xf32>,
    %211 = vector.extract_strided_slice %1 {offsets = [0, 6144], sizes = [1, 1024], strides = [1, 1]} : vector<1x8192xf32> to vector<1x1024xf32>
    %212 = vector.extract_strided_slice %2 {offsets = [0, 0], sizes = [1, 128], strides = [1, 1]} : vector<1x1024xf32> to vector<1x128xf32>
    %c6_149 = arith.constant 6 : index
    %c5120_150 = arith.constant 5120 : index
    %213 = vector.load %arg11[%c6_149, %c5120_150] : memref<9x8192xf32, #tpu.memory_space<vmem>>, vector<1x128xf32>
    tpu.vector_store %arg11[%c6_149, %c5120_150], %212 {strides = array<i32>} : memref<9x8192xf32, #tpu.memory_space<vmem>>, vector<1x128xf32>,
    %214 = vector.extract_strided_slice %211 {offsets = [0, 0], sizes = [1, 896], strides = [1, 1]} : vector<1x1024xf32> to vector<1x896xf32>
    %c6_151 = arith.constant 6 : index
    %c5248_152 = arith.constant 5248 : index
    %215 = vector.load %arg11[%c6_151, %c5248_152] : memref<9x8192xf32, #tpu.memory_space<vmem>>, vector<1x896xf32>
    tpu.vector_store %arg11[%c6_151, %c5248_152], %214 {strides = array<i32>} : memref<9x8192xf32, #tpu.memory_space<vmem>>, vector<1x896xf32>,
    %216 = vector.extract_strided_slice %1 {offsets = [0, 7168], sizes = [1, 1024], strides = [1, 1]} : vector<1x8192xf32> to vector<1x1024xf32>
    %217 = vector.extract_strided_slice %2 {offsets = [0, 0], sizes = [1, 128], strides = [1, 1]} : vector<1x1024xf32> to vector<1x128xf32>
    %c6_153 = arith.constant 6 : index
    %c6144_154 = arith.constant 6144 : index
    %218 = vector.load %arg11[%c6_153, %c6144_154] : memref<9x8192xf32, #tpu.memory_space<vmem>>, vector<1x128xf32>
    tpu.vector_store %arg11[%c6_153, %c6144_154], %217 {strides = array<i32>} : memref<9x8192xf32, #tpu.memory_space<vmem>>, vector<1x128xf32>,
    %219 = vector.extract_strided_slice %216 {offsets = [0, 0], sizes = [1, 896], strides = [1, 1]} : vector<1x1024xf32> to vector<1x896xf32>
    %c6_155 = arith.constant 6 : index
    %c6272_156 = arith.constant 6272 : index
    %220 = vector.load %arg11[%c6_155, %c6272_156] : memref<9x8192xf32, #tpu.memory_space<vmem>>, vector<1x896xf32>
    tpu.vector_store %arg11[%c6_155, %c6272_156], %219 {strides = array<i32>} : memref<9x8192xf32, #tpu.memory_space<vmem>>, vector<1x896xf32>,
    %c6_157 = arith.constant 6 : index
    %c7168_158 = arith.constant 7168 : index
    %221 = vector.load %arg11[%c6_157, %c7168_158] : memref<9x8192xf32, #tpu.memory_space<vmem>>, vector<1x1024xf32>
    tpu.vector_store %arg11[%c6_157, %c7168_158], %2 {strides = array<i32>} : memref<9x8192xf32, #tpu.memory_space<vmem>>, vector<1x1024xf32>,
    %222 = vector.extract_strided_slice %1 {offsets = [0, 1024], sizes = [1, 1024], strides = [1, 1]} : vector<1x8192xf32> to vector<1x1024xf32>
    %c7 = arith.constant 7 : index
    %c0_159 = arith.constant 0 : index
    %223 = vector.load %arg11[%c7, %c0_159] : memref<9x8192xf32, #tpu.memory_space<vmem>>, vector<1x1024xf32>
    tpu.vector_store %arg11[%c7, %c0_159], %222 {strides = array<i32>} : memref<9x8192xf32, #tpu.memory_space<vmem>>, vector<1x1024xf32>,
    %224 = vector.extract_strided_slice %1 {offsets = [0, 2048], sizes = [1, 1024], strides = [1, 1]} : vector<1x8192xf32> to vector<1x1024xf32>
    %c7_160 = arith.constant 7 : index
    %c1024_161 = arith.constant 1024 : index
    %225 = vector.load %arg11[%c7_160, %c1024_161] : memref<9x8192xf32, #tpu.memory_space<vmem>>, vector<1x1024xf32>
    tpu.vector_store %arg11[%c7_160, %c1024_161], %224 {strides = array<i32>} : memref<9x8192xf32, #tpu.memory_space<vmem>>, vector<1x1024xf32>,
    %226 = vector.extract_strided_slice %1 {offsets = [0, 3072], sizes = [1, 1024], strides = [1, 1]} : vector<1x8192xf32> to vector<1x1024xf32>
    %c7_162 = arith.constant 7 : index
    %c2048_163 = arith.constant 2048 : index
    %227 = vector.load %arg11[%c7_162, %c2048_163] : memref<9x8192xf32, #tpu.memory_space<vmem>>, vector<1x1024xf32>
    tpu.vector_store %arg11[%c7_162, %c2048_163], %226 {strides = array<i32>} : memref<9x8192xf32, #tpu.memory_space<vmem>>, vector<1x1024xf32>,
    %228 = vector.extract_strided_slice %1 {offsets = [0, 4096], sizes = [1, 1024], strides = [1, 1]} : vector<1x8192xf32> to vector<1x1024xf32>
    %c7_164 = arith.constant 7 : index
    %c3072_165 = arith.constant 3072 : index
    %229 = vector.load %arg11[%c7_164, %c3072_165] : memref<9x8192xf32, #tpu.memory_space<vmem>>, vector<1x1024xf32>
    tpu.vector_store %arg11[%c7_164, %c3072_165], %228 {strides = array<i32>} : memref<9x8192xf32, #tpu.memory_space<vmem>>, vector<1x1024xf32>,
    %230 = vector.extract_strided_slice %1 {offsets = [0, 5120], sizes = [1, 1024], strides = [1, 1]} : vector<1x8192xf32> to vector<1x1024xf32>
    %c7_166 = arith.constant 7 : index
    %c4096_167 = arith.constant 4096 : index
    %231 = vector.load %arg11[%c7_166, %c4096_167] : memref<9x8192xf32, #tpu.memory_space<vmem>>, vector<1x1024xf32>
    tpu.vector_store %arg11[%c7_166, %c4096_167], %230 {strides = array<i32>} : memref<9x8192xf32, #tpu.memory_space<vmem>>, vector<1x1024xf32>,
    %232 = vector.extract_strided_slice %1 {offsets = [0, 6144], sizes = [1, 1024], strides = [1, 1]} : vector<1x8192xf32> to vector<1x1024xf32>
    %c7_168 = arith.constant 7 : index
    %c5120_169 = arith.constant 5120 : index
    %233 = vector.load %arg11[%c7_168, %c5120_169] : memref<9x8192xf32, #tpu.memory_space<vmem>>, vector<1x1024xf32>
    tpu.vector_store %arg11[%c7_168, %c5120_169], %232 {strides = array<i32>} : memref<9x8192xf32, #tpu.memory_space<vmem>>, vector<1x1024xf32>,
    %234 = vector.extract_strided_slice %1 {offsets = [0, 7168], sizes = [1, 1024], strides = [1, 1]} : vector<1x8192xf32> to vector<1x1024xf32>
    %c7_170 = arith.constant 7 : index
    %c6144_171 = arith.constant 6144 : index
    %235 = vector.load %arg11[%c7_170, %c6144_171] : memref<9x8192xf32, #tpu.memory_space<vmem>>, vector<1x1024xf32>
    tpu.vector_store %arg11[%c7_170, %c6144_171], %234 {strides = array<i32>} : memref<9x8192xf32, #tpu.memory_space<vmem>>, vector<1x1024xf32>,
    %c7_172 = arith.constant 7 : index
    %c7168_173 = arith.constant 7168 : index
    %236 = vector.load %arg11[%c7_172, %c7168_173] : memref<9x8192xf32, #tpu.memory_space<vmem>>, vector<1x1024xf32>
    tpu.vector_store %arg11[%c7_172, %c7168_173], %2 {strides = array<i32>} : memref<9x8192xf32, #tpu.memory_space<vmem>>, vector<1x1024xf32>,
    %237 = vector.extract_strided_slice %1 {offsets = [0, 1024], sizes = [1, 1024], strides = [1, 1]} : vector<1x8192xf32> to vector<1x1024xf32>
    %238 = vector.extract_strided_slice %237 {offsets = [0, 128], sizes = [1, 896], strides = [1, 1]} : vector<1x1024xf32> to vector<1x896xf32>
    %c8 = arith.constant 8 : index
    %c0_174 = arith.constant 0 : index
    %239 = vector.load %arg11[%c8, %c0_174] : memref<9x8192xf32, #tpu.memory_space<vmem>>, vector<1x896xf32>
    tpu.vector_store %arg11[%c8, %c0_174], %238 {strides = array<i32>} : memref<9x8192xf32, #tpu.memory_space<vmem>>, vector<1x896xf32>,
    %240 = vector.extract_strided_slice %2 {offsets = [0, 0], sizes = [1, 128], strides = [1, 1]} : vector<1x1024xf32> to vector<1x128xf32>
    %c8_175 = arith.constant 8 : index
    %c896_176 = arith.constant 896 : index
    %241 = vector.load %arg11[%c8_175, %c896_176] : memref<9x8192xf32, #tpu.memory_space<vmem>>, vector<1x128xf32>
    tpu.vector_store %arg11[%c8_175, %c896_176], %240 {strides = array<i32>} : memref<9x8192xf32, #tpu.memory_space<vmem>>, vector<1x128xf32>,
    %242 = vector.extract_strided_slice %1 {offsets = [0, 2048], sizes = [1, 1024], strides = [1, 1]} : vector<1x8192xf32> to vector<1x1024xf32>
    %243 = vector.extract_strided_slice %242 {offsets = [0, 128], sizes = [1, 896], strides = [1, 1]} : vector<1x1024xf32> to vector<1x896xf32>
    %c8_177 = arith.constant 8 : index
    %c1024_178 = arith.constant 1024 : index
    %244 = vector.load %arg11[%c8_177, %c1024_178] : memref<9x8192xf32, #tpu.memory_space<vmem>>, vector<1x896xf32>
    tpu.vector_store %arg11[%c8_177, %c1024_178], %243 {strides = array<i32>} : memref<9x8192xf32, #tpu.memory_space<vmem>>, vector<1x896xf32>,
    %245 = vector.extract_strided_slice %2 {offsets = [0, 0], sizes = [1, 128], strides = [1, 1]} : vector<1x1024xf32> to vector<1x128xf32>
    %c8_179 = arith.constant 8 : index
    %c1920_180 = arith.constant 1920 : index
    %246 = vector.load %arg11[%c8_179, %c1920_180] : memref<9x8192xf32, #tpu.memory_space<vmem>>, vector<1x128xf32>
    tpu.vector_store %arg11[%c8_179, %c1920_180], %245 {strides = array<i32>} : memref<9x8192xf32, #tpu.memory_space<vmem>>, vector<1x128xf32>,
    %247 = vector.extract_strided_slice %1 {offsets = [0, 3072], sizes = [1, 1024], strides = [1, 1]} : vector<1x8192xf32> to vector<1x1024xf32>
    %248 = vector.extract_strided_slice %247 {offsets = [0, 128], sizes = [1, 896], strides = [1, 1]} : vector<1x1024xf32> to vector<1x896xf32>
    %c8_181 = arith.constant 8 : index
    %c2048_182 = arith.constant 2048 : index
    %249 = vector.load %arg11[%c8_181, %c2048_182] : memref<9x8192xf32, #tpu.memory_space<vmem>>, vector<1x896xf32>
    tpu.vector_store %arg11[%c8_181, %c2048_182], %248 {strides = array<i32>} : memref<9x8192xf32, #tpu.memory_space<vmem>>, vector<1x896xf32>,
    %250 = vector.extract_strided_slice %2 {offsets = [0, 0], sizes = [1, 128], strides = [1, 1]} : vector<1x1024xf32> to vector<1x128xf32>
    %c8_183 = arith.constant 8 : index
    %c2944_184 = arith.constant 2944 : index
    %251 = vector.load %arg11[%c8_183, %c2944_184] : memref<9x8192xf32, #tpu.memory_space<vmem>>, vector<1x128xf32>
    tpu.vector_store %arg11[%c8_183, %c2944_184], %250 {strides = array<i32>} : memref<9x8192xf32, #tpu.memory_space<vmem>>, vector<1x128xf32>,
    %252 = vector.extract_strided_slice %1 {offsets = [0, 4096], sizes = [1, 1024], strides = [1, 1]} : vector<1x8192xf32> to vector<1x1024xf32>
    %253 = vector.extract_strided_slice %252 {offsets = [0, 128], sizes = [1, 896], strides = [1, 1]} : vector<1x1024xf32> to vector<1x896xf32>
    %c8_185 = arith.constant 8 : index
    %c3072_186 = arith.constant 3072 : index
    %254 = vector.load %arg11[%c8_185, %c3072_186] : memref<9x8192xf32, #tpu.memory_space<vmem>>, vector<1x896xf32>
    tpu.vector_store %arg11[%c8_185, %c3072_186], %253 {strides = array<i32>} : memref<9x8192xf32, #tpu.memory_space<vmem>>, vector<1x896xf32>,
    %255 = vector.extract_strided_slice %2 {offsets = [0, 0], sizes = [1, 128], strides = [1, 1]} : vector<1x1024xf32> to vector<1x128xf32>
    %c8_187 = arith.constant 8 : index
    %c3968_188 = arith.constant 3968 : index
    %256 = vector.load %arg11[%c8_187, %c3968_188] : memref<9x8192xf32, #tpu.memory_space<vmem>>, vector<1x128xf32>
    tpu.vector_store %arg11[%c8_187, %c3968_188], %255 {strides = array<i32>} : memref<9x8192xf32, #tpu.memory_space<vmem>>, vector<1x128xf32>,
    %257 = vector.extract_strided_slice %1 {offsets = [0, 5120], sizes = [1, 1024], strides = [1, 1]} : vector<1x8192xf32> to vector<1x1024xf32>
    %258 = vector.extract_strided_slice %257 {offsets = [0, 128], sizes = [1, 896], strides = [1, 1]} : vector<1x1024xf32> to vector<1x896xf32>
    %c8_189 = arith.constant 8 : index
    %c4096_190 = arith.constant 4096 : index
    %259 = vector.load %arg11[%c8_189, %c4096_190] : memref<9x8192xf32, #tpu.memory_space<vmem>>, vector<1x896xf32>
    tpu.vector_store %arg11[%c8_189, %c4096_190], %258 {strides = array<i32>} : memref<9x8192xf32, #tpu.memory_space<vmem>>, vector<1x896xf32>,
    %260 = vector.extract_strided_slice %2 {offsets = [0, 0], sizes = [1, 128], strides = [1, 1]} : vector<1x1024xf32> to vector<1x128xf32>
    %c8_191 = arith.constant 8 : index
    %c4992_192 = arith.constant 4992 : index
    %261 = vector.load %arg11[%c8_191, %c4992_192] : memref<9x8192xf32, #tpu.memory_space<vmem>>, vector<1x128xf32>
    tpu.vector_store %arg11[%c8_191, %c4992_192], %260 {strides = array<i32>} : memref<9x8192xf32, #tpu.memory_space<vmem>>, vector<1x128xf32>,
    %262 = vector.extract_strided_slice %1 {offsets = [0, 6144], sizes = [1, 1024], strides = [1, 1]} : vector<1x8192xf32> to vector<1x1024xf32>
    %263 = vector.extract_strided_slice %262 {offsets = [0, 128], sizes = [1, 896], strides = [1, 1]} : vector<1x1024xf32> to vector<1x896xf32>
    %c8_193 = arith.constant 8 : index
    %c5120_194 = arith.constant 5120 : index
    %264 = vector.load %arg11[%c8_193, %c5120_194] : memref<9x8192xf32, #tpu.memory_space<vmem>>, vector<1x896xf32>
    tpu.vector_store %arg11[%c8_193, %c5120_194], %263 {strides = array<i32>} : memref<9x8192xf32, #tpu.memory_space<vmem>>, vector<1x896xf32>,
    %265 = vector.extract_strided_slice %2 {offsets = [0, 0], sizes = [1, 128], strides = [1, 1]} : vector<1x1024xf32> to vector<1x128xf32>
    %c8_195 = arith.constant 8 : index
    %c6016_196 = arith.constant 6016 : index
    %266 = vector.load %arg11[%c8_195, %c6016_196] : memref<9x8192xf32, #tpu.memory_space<vmem>>, vector<1x128xf32>
    tpu.vector_store %arg11[%c8_195, %c6016_196], %265 {strides = array<i32>} : memref<9x8192xf32, #tpu.memory_space<vmem>>, vector<1x128xf32>,
    %267 = vector.extract_strided_slice %1 {offsets = [0, 7168], sizes = [1, 1024], strides = [1, 1]} : vector<1x8192xf32> to vector<1x1024xf32>
    %268 = vector.extract_strided_slice %267 {offsets = [0, 128], sizes = [1, 896], strides = [1, 1]} : vector<1x1024xf32> to vector<1x896xf32>
    %c8_197 = arith.constant 8 : index
    %c6144_198 = arith.constant 6144 : index
    %269 = vector.load %arg11[%c8_197, %c6144_198] : memref<9x8192xf32, #tpu.memory_space<vmem>>, vector<1x896xf32>
    tpu.vector_store %arg11[%c8_197, %c6144_198], %268 {strides = array<i32>} : memref<9x8192xf32, #tpu.memory_space<vmem>>, vector<1x896xf32>,
    %270 = vector.extract_strided_slice %2 {offsets = [0, 0], sizes = [1, 128], strides = [1, 1]} : vector<1x1024xf32> to vector<1x128xf32>
    %c8_199 = arith.constant 8 : index
    %c7040_200 = arith.constant 7040 : index
    %271 = vector.load %arg11[%c8_199, %c7040_200] : memref<9x8192xf32, #tpu.memory_space<vmem>>, vector<1x128xf32>
    tpu.vector_store %arg11[%c8_199, %c7040_200], %270 {strides = array<i32>} : memref<9x8192xf32, #tpu.memory_space<vmem>>, vector<1x128xf32>,
    %c8_201 = arith.constant 8 : index
    %c7168_202 = arith.constant 7168 : index
    %272 = vector.load %arg11[%c8_201, %c7168_202] : memref<9x8192xf32, #tpu.memory_space<vmem>>, vector<1x1024xf32>
    tpu.vector_store %arg11[%c8_201, %c7168_202], %2 {strides = array<i32>} : memref<9x8192xf32, #tpu.memory_space<vmem>>, vector<1x1024xf32>,
    %c0_203 = arith.constant 0 : index
    %c0_204 = arith.constant 0 : index
    %273 = vector.load %arg2[%c0_203, %c0_204] : memref<16x9xf32, #tpu.memory_space<vmem>>, vector<16x9xf32>
    %c0_205 = arith.constant 0 : index
    %c0_206 = arith.constant 0 : index
    %274 = vector.load %arg11[%c0_205, %c0_206] : memref<9x8192xf32, #tpu.memory_space<vmem>>, vector<9x8192xf32>
    %275 = arith.truncf %273 : vector<16x9xf32> to vector<16x9xbf16>
    %276 = arith.extf %275 : vector<16x9xbf16> to vector<16x9xf32>
    %277 = arith.subf %273, %276 : vector<16x9xf32>
    %278 = arith.truncf %277 : vector<16x9xf32> to vector<16x9xbf16>
    %279 = arith.truncf %274 : vector<9x8192xf32> to vector<9x8192xbf16>
    %280 = arith.extf %279 : vector<9x8192xbf16> to vector<9x8192xf32>
    %281 = arith.subf %274, %280 : vector<9x8192xf32>
    %282 = arith.truncf %281 : vector<9x8192xf32> to vector<9x8192xbf16>
    %cst_207 = arith.constant dense<0.000000e+00> : vector<16x8192xf32>
    %283 = tpu.matmul %275, %279, %cst_207 {dimension_numbers = #tpu.dot_dimension_numbers<[1], [0], [0], [1], [0, 0, 1, 1], [], []>} : vector<16x9xbf16>, vector<9x8192xbf16>, vector<16x8192xf32> -> vector<16x8192xf32>
    %cst_208 = arith.constant dense<0.000000e+00> : vector<16x8192xf32>
    %284 = tpu.matmul %278, %279, %cst_208 {dimension_numbers = #tpu.dot_dimension_numbers<[1], [0], [0], [1], [0, 0, 1, 1], [], []>} : vector<16x9xbf16>, vector<9x8192xbf16>, vector<16x8192xf32> -> vector<16x8192xf32>
    %285 = arith.addf %283, %284 : vector<16x8192xf32>
    %cst_209 = arith.constant dense<0.000000e+00> : vector<16x8192xf32>
    %286 = tpu.matmul %275, %282, %cst_209 {dimension_numbers = #tpu.dot_dimension_numbers<[1], [0], [0], [1], [0, 0, 1, 1], [], []>} : vector<16x9xbf16>, vector<9x8192xbf16>, vector<16x8192xf32> -> vector<16x8192xf32>
    %287 = arith.addf %285, %286 : vector<16x8192xf32>
    %c0_210 = arith.constant 0 : index
    %c0_211 = arith.constant 0 : index
    %288 = vector.load %arg3[%c0_210, %c0_211] : memref<16x1xf32, #tpu.memory_space<vmem>>, vector<16x1xf32>
    %289 = vector.broadcast %288 : vector<16x1xf32> to vector<16x8192xf32>
    %290 = arith.addf %287, %289 : vector<16x8192xf32>
    %cst_212 = arith.constant 0.000000e+00 : f32
    %291 = vector.broadcast %cst_212 : f32 to vector<16x8192xf32>
    %292 = arith.maximumf %290, %291 : vector<16x8192xf32>
    %293 = vector.extract_strided_slice %292 {offsets = [0, 0], sizes = [16, 1024], strides = [1, 1]} : vector<16x8192xf32> to vector<16x1024xf32>
    %294 = vector.extract_strided_slice %292 {offsets = [0, 1024], sizes = [16, 1024], strides = [1, 1]} : vector<16x8192xf32> to vector<16x1024xf32>
    %295 = arith.maximumf %293, %294 : vector<16x1024xf32>
    %296 = vector.extract_strided_slice %295 {offsets = [0, 0], sizes = [16, 128], strides = [1, 1]} : vector<16x1024xf32> to vector<16x128xf32>
    %297 = vector.extract_strided_slice %295 {offsets = [0, 128], sizes = [16, 128], strides = [1, 1]} : vector<16x1024xf32> to vector<16x128xf32>
    %298 = arith.maximumf %296, %297 : vector<16x128xf32>
    %299 = vector.extract_strided_slice %295 {offsets = [0, 256], sizes = [16, 128], strides = [1, 1]} : vector<16x1024xf32> to vector<16x128xf32>
    %300 = vector.extract_strided_slice %295 {offsets = [0, 384], sizes = [16, 128], strides = [1, 1]} : vector<16x1024xf32> to vector<16x128xf32>
    %301 = arith.maximumf %299, %300 : vector<16x128xf32>
    %302 = vector.extract_strided_slice %295 {offsets = [0, 512], sizes = [16, 128], strides = [1, 1]} : vector<16x1024xf32> to vector<16x128xf32>
    %303 = vector.extract_strided_slice %295 {offsets = [0, 640], sizes = [16, 128], strides = [1, 1]} : vector<16x1024xf32> to vector<16x128xf32>
    %304 = arith.maximumf %302, %303 : vector<16x128xf32>
    %305 = vector.extract_strided_slice %295 {offsets = [0, 768], sizes = [16, 128], strides = [1, 1]} : vector<16x1024xf32> to vector<16x128xf32>
    %306 = vector.extract_strided_slice %295 {offsets = [0, 896], sizes = [16, 128], strides = [1, 1]} : vector<16x1024xf32> to vector<16x128xf32>
    %307 = arith.maximumf %305, %306 : vector<16x128xf32>
    %308 = vector.extract_strided_slice %292 {offsets = [0, 2048], sizes = [16, 1024], strides = [1, 1]} : vector<16x8192xf32> to vector<16x1024xf32>
    %309 = vector.extract_strided_slice %292 {offsets = [0, 3072], sizes = [16, 1024], strides = [1, 1]} : vector<16x8192xf32> to vector<16x1024xf32>
    %310 = arith.maximumf %308, %309 : vector<16x1024xf32>
    %311 = vector.extract_strided_slice %310 {offsets = [0, 0], sizes = [16, 128], strides = [1, 1]} : vector<16x1024xf32> to vector<16x128xf32>
    %312 = vector.extract_strided_slice %310 {offsets = [0, 128], sizes = [16, 128], strides = [1, 1]} : vector<16x1024xf32> to vector<16x128xf32>
    %313 = arith.maximumf %311, %312 : vector<16x128xf32>
    %314 = vector.extract_strided_slice %310 {offsets = [0, 256], sizes = [16, 128], strides = [1, 1]} : vector<16x1024xf32> to vector<16x128xf32>
    %315 = vector.extract_strided_slice %310 {offsets = [0, 384], sizes = [16, 128], strides = [1, 1]} : vector<16x1024xf32> to vector<16x128xf32>
    %316 = arith.maximumf %314, %315 : vector<16x128xf32>
    %317 = vector.extract_strided_slice %310 {offsets = [0, 512], sizes = [16, 128], strides = [1, 1]} : vector<16x1024xf32> to vector<16x128xf32>
    %318 = vector.extract_strided_slice %310 {offsets = [0, 640], sizes = [16, 128], strides = [1, 1]} : vector<16x1024xf32> to vector<16x128xf32>
    %319 = arith.maximumf %317, %318 : vector<16x128xf32>
    %320 = vector.extract_strided_slice %310 {offsets = [0, 768], sizes = [16, 128], strides = [1, 1]} : vector<16x1024xf32> to vector<16x128xf32>
    %321 = vector.extract_strided_slice %310 {offsets = [0, 896], sizes = [16, 128], strides = [1, 1]} : vector<16x1024xf32> to vector<16x128xf32>
    %322 = arith.maximumf %320, %321 : vector<16x128xf32>
    %323 = vector.extract_strided_slice %292 {offsets = [0, 4096], sizes = [16, 1024], strides = [1, 1]} : vector<16x8192xf32> to vector<16x1024xf32>
    %324 = vector.extract_strided_slice %292 {offsets = [0, 5120], sizes = [16, 1024], strides = [1, 1]} : vector<16x8192xf32> to vector<16x1024xf32>
    %325 = arith.maximumf %323, %324 : vector<16x1024xf32>
    %326 = vector.extract_strided_slice %325 {offsets = [0, 0], sizes = [16, 128], strides = [1, 1]} : vector<16x1024xf32> to vector<16x128xf32>
    %327 = vector.extract_strided_slice %325 {offsets = [0, 128], sizes = [16, 128], strides = [1, 1]} : vector<16x1024xf32> to vector<16x128xf32>
    %328 = arith.maximumf %326, %327 : vector<16x128xf32>
    %329 = vector.extract_strided_slice %325 {offsets = [0, 256], sizes = [16, 128], strides = [1, 1]} : vector<16x1024xf32> to vector<16x128xf32>
    %330 = vector.extract_strided_slice %325 {offsets = [0, 384], sizes = [16, 128], strides = [1, 1]} : vector<16x1024xf32> to vector<16x128xf32>
    %331 = arith.maximumf %329, %330 : vector<16x128xf32>
    %332 = vector.extract_strided_slice %325 {offsets = [0, 512], sizes = [16, 128], strides = [1, 1]} : vector<16x1024xf32> to vector<16x128xf32>
    %333 = vector.extract_strided_slice %325 {offsets = [0, 640], sizes = [16, 128], strides = [1, 1]} : vector<16x1024xf32> to vector<16x128xf32>
    %334 = arith.maximumf %332, %333 : vector<16x128xf32>
    %335 = vector.extract_strided_slice %325 {offsets = [0, 768], sizes = [16, 128], strides = [1, 1]} : vector<16x1024xf32> to vector<16x128xf32>
    %336 = vector.extract_strided_slice %325 {offsets = [0, 896], sizes = [16, 128], strides = [1, 1]} : vector<16x1024xf32> to vector<16x128xf32>
    %337 = arith.maximumf %335, %336 : vector<16x128xf32>
    %338 = vector.extract_strided_slice %292 {offsets = [0, 6144], sizes = [16, 1024], strides = [1, 1]} : vector<16x8192xf32> to vector<16x1024xf32>
    %339 = vector.extract_strided_slice %292 {offsets = [0, 7168], sizes = [16, 1024], strides = [1, 1]} : vector<16x8192xf32> to vector<16x1024xf32>
    %340 = arith.maximumf %338, %339 : vector<16x1024xf32>
    %341 = vector.extract_strided_slice %340 {offsets = [0, 0], sizes = [16, 128], strides = [1, 1]} : vector<16x1024xf32> to vector<16x128xf32>
    %342 = vector.extract_strided_slice %340 {offsets = [0, 128], sizes = [16, 128], strides = [1, 1]} : vector<16x1024xf32> to vector<16x128xf32>
    %343 = arith.maximumf %341, %342 : vector<16x128xf32>
    %344 = vector.extract_strided_slice %340 {offsets = [0, 256], sizes = [16, 128], strides = [1, 1]} : vector<16x1024xf32> to vector<16x128xf32>
    %345 = vector.extract_strided_slice %340 {offsets = [0, 384], sizes = [16, 128], strides = [1, 1]} : vector<16x1024xf32> to vector<16x128xf32>
    %346 = arith.maximumf %344, %345 : vector<16x128xf32>
    %347 = vector.extract_strided_slice %340 {offsets = [0, 512], sizes = [16, 128], strides = [1, 1]} : vector<16x1024xf32> to vector<16x128xf32>
    %348 = vector.extract_strided_slice %340 {offsets = [0, 640], sizes = [16, 128], strides = [1, 1]} : vector<16x1024xf32> to vector<16x128xf32>
    %349 = arith.maximumf %347, %348 : vector<16x128xf32>
    %350 = vector.extract_strided_slice %340 {offsets = [0, 768], sizes = [16, 128], strides = [1, 1]} : vector<16x1024xf32> to vector<16x128xf32>
    %351 = vector.extract_strided_slice %340 {offsets = [0, 896], sizes = [16, 128], strides = [1, 1]} : vector<16x1024xf32> to vector<16x128xf32>
    %352 = arith.maximumf %350, %351 : vector<16x128xf32>
    %353 = tpu.concatenate %298, %301, %304, %307, %313, %316, %319, %322, %328, %331, %334, %337, %343, %346, %349, %352 in 1 : vector<16x128xf32>, vector<16x128xf32>, vector<16x128xf32>, vector<16x128xf32>, vector<16x128xf32>, vector<16x128xf32>, vector<16x128xf32>, vector<16x128xf32>, vector<16x128xf32>, vector<16x128xf32>, vector<16x128xf32>, vector<16x128xf32>, vector<16x128xf32>, vector<16x128xf32>, vector<16x128xf32>, vector<16x128xf32> -> vector<16x2048xf32>
    %cst_213 = arith.constant 0.000000e+00 : f32
    %354 = vector.broadcast %cst_213 : f32 to vector<16x512xf32>
    %c0_214 = arith.constant 0 : index
    %c0_215 = arith.constant 0 : index
    %355 = vector.load %arg12[%c0_214, %c0_215] : memref<144x2048xf32, #tpu.memory_space<vmem>>, vector<16x512xf32>
    tpu.vector_store %arg12[%c0_214, %c0_215], %354 {strides = array<i32>} : memref<144x2048xf32, #tpu.memory_space<vmem>>, vector<16x512xf32>,
    %356 = vector.extract_strided_slice %353 {offsets = [0, 0], sizes = [16, 512], strides = [1, 1]} : vector<16x2048xf32> to vector<16x512xf32>
    %357 = vector.extract_strided_slice %354 {offsets = [0, 0], sizes = [16, 128], strides = [1, 1]} : vector<16x512xf32> to vector<16x128xf32>
    %c0_216 = arith.constant 0 : index
    %c512 = arith.constant 512 : index
    %358 = vector.load %arg12[%c0_216, %c512] : memref<144x2048xf32, #tpu.memory_space<vmem>>, vector<16x128xf32>
    tpu.vector_store %arg12[%c0_216, %c512], %357 {strides = array<i32>} : memref<144x2048xf32, #tpu.memory_space<vmem>>, vector<16x128xf32>,
    %359 = vector.extract_strided_slice %356 {offsets = [0, 0], sizes = [16, 384], strides = [1, 1]} : vector<16x512xf32> to vector<16x384xf32>
    %c0_217 = arith.constant 0 : index
    %c640 = arith.constant 640 : index
    %360 = vector.load %arg12[%c0_217, %c640] : memref<144x2048xf32, #tpu.memory_space<vmem>>, vector<16x384xf32>
    tpu.vector_store %arg12[%c0_217, %c640], %359 {strides = array<i32>} : memref<144x2048xf32, #tpu.memory_space<vmem>>, vector<16x384xf32>,
    %361 = vector.extract_strided_slice %353 {offsets = [0, 512], sizes = [16, 512], strides = [1, 1]} : vector<16x2048xf32> to vector<16x512xf32>
    %362 = vector.extract_strided_slice %354 {offsets = [0, 0], sizes = [16, 128], strides = [1, 1]} : vector<16x512xf32> to vector<16x128xf32>
    %c0_218 = arith.constant 0 : index
    %c1024_219 = arith.constant 1024 : index
    %363 = vector.load %arg12[%c0_218, %c1024_219] : memref<144x2048xf32, #tpu.memory_space<vmem>>, vector<16x128xf32>
    tpu.vector_store %arg12[%c0_218, %c1024_219], %362 {strides = array<i32>} : memref<144x2048xf32, #tpu.memory_space<vmem>>, vector<16x128xf32>,
    %364 = vector.extract_strided_slice %361 {offsets = [0, 0], sizes = [16, 384], strides = [1, 1]} : vector<16x512xf32> to vector<16x384xf32>
    %c0_220 = arith.constant 0 : index
    %c1152_221 = arith.constant 1152 : index
    %365 = vector.load %arg12[%c0_220, %c1152_221] : memref<144x2048xf32, #tpu.memory_space<vmem>>, vector<16x384xf32>
    tpu.vector_store %arg12[%c0_220, %c1152_221], %364 {strides = array<i32>} : memref<144x2048xf32, #tpu.memory_space<vmem>>, vector<16x384xf32>,
    %366 = vector.extract_strided_slice %353 {offsets = [0, 1024], sizes = [16, 512], strides = [1, 1]} : vector<16x2048xf32> to vector<16x512xf32>
    %367 = vector.extract_strided_slice %354 {offsets = [0, 0], sizes = [16, 128], strides = [1, 1]} : vector<16x512xf32> to vector<16x128xf32>
    %c0_222 = arith.constant 0 : index
    %c1536 = arith.constant 1536 : index
    %368 = vector.load %arg12[%c0_222, %c1536] : memref<144x2048xf32, #tpu.memory_space<vmem>>, vector<16x128xf32>
    tpu.vector_store %arg12[%c0_222, %c1536], %367 {strides = array<i32>} : memref<144x2048xf32, #tpu.memory_space<vmem>>, vector<16x128xf32>,
    %369 = vector.extract_strided_slice %366 {offsets = [0, 0], sizes = [16, 384], strides = [1, 1]} : vector<16x512xf32> to vector<16x384xf32>
    %c0_223 = arith.constant 0 : index
    %c1664 = arith.constant 1664 : index
    %370 = vector.load %arg12[%c0_223, %c1664] : memref<144x2048xf32, #tpu.memory_space<vmem>>, vector<16x384xf32>
    tpu.vector_store %arg12[%c0_223, %c1664], %369 {strides = array<i32>} : memref<144x2048xf32, #tpu.memory_space<vmem>>, vector<16x384xf32>,
    %c16 = arith.constant 16 : index
    %c0_224 = arith.constant 0 : index
    %371 = vector.load %arg12[%c16, %c0_224] : memref<144x2048xf32, #tpu.memory_space<vmem>>, vector<16x512xf32>
    tpu.vector_store %arg12[%c16, %c0_224], %354 {strides = array<i32>} : memref<144x2048xf32, #tpu.memory_space<vmem>>, vector<16x512xf32>,
    %372 = vector.extract_strided_slice %353 {offsets = [0, 0], sizes = [16, 512], strides = [1, 1]} : vector<16x2048xf32> to vector<16x512xf32>
    %c16_225 = arith.constant 16 : index
    %c512_226 = arith.constant 512 : index
    %373 = vector.load %arg12[%c16_225, %c512_226] : memref<144x2048xf32, #tpu.memory_space<vmem>>, vector<16x512xf32>
    tpu.vector_store %arg12[%c16_225, %c512_226], %372 {strides = array<i32>} : memref<144x2048xf32, #tpu.memory_space<vmem>>, vector<16x512xf32>,
    %374 = vector.extract_strided_slice %353 {offsets = [0, 512], sizes = [16, 512], strides = [1, 1]} : vector<16x2048xf32> to vector<16x512xf32>
    %c16_227 = arith.constant 16 : index
    %c1024_228 = arith.constant 1024 : index
    %375 = vector.load %arg12[%c16_227, %c1024_228] : memref<144x2048xf32, #tpu.memory_space<vmem>>, vector<16x512xf32>
    tpu.vector_store %arg12[%c16_227, %c1024_228], %374 {strides = array<i32>} : memref<144x2048xf32, #tpu.memory_space<vmem>>, vector<16x512xf32>,
    %376 = vector.extract_strided_slice %353 {offsets = [0, 1024], sizes = [16, 512], strides = [1, 1]} : vector<16x2048xf32> to vector<16x512xf32>
    %c16_229 = arith.constant 16 : index
    %c1536_230 = arith.constant 1536 : index
    %377 = vector.load %arg12[%c16_229, %c1536_230] : memref<144x2048xf32, #tpu.memory_space<vmem>>, vector<16x512xf32>
    tpu.vector_store %arg12[%c16_229, %c1536_230], %376 {strides = array<i32>} : memref<144x2048xf32, #tpu.memory_space<vmem>>, vector<16x512xf32>,
    %c32 = arith.constant 32 : index
    %c0_231 = arith.constant 0 : index
    %378 = vector.load %arg12[%c32, %c0_231] : memref<144x2048xf32, #tpu.memory_space<vmem>>, vector<16x512xf32>
    tpu.vector_store %arg12[%c32, %c0_231], %354 {strides = array<i32>} : memref<144x2048xf32, #tpu.memory_space<vmem>>, vector<16x512xf32>,
    %379 = vector.extract_strided_slice %353 {offsets = [0, 0], sizes = [16, 512], strides = [1, 1]} : vector<16x2048xf32> to vector<16x512xf32>
    %380 = vector.extract_strided_slice %379 {offsets = [0, 128], sizes = [16, 384], strides = [1, 1]} : vector<16x512xf32> to vector<16x384xf32>
    %c32_232 = arith.constant 32 : index
    %c512_233 = arith.constant 512 : index
    %381 = vector.load %arg12[%c32_232, %c512_233] : memref<144x2048xf32, #tpu.memory_space<vmem>>, vector<16x384xf32>
    tpu.vector_store %arg12[%c32_232, %c512_233], %380 {strides = array<i32>} : memref<144x2048xf32, #tpu.memory_space<vmem>>, vector<16x384xf32>,
    %382 = vector.extract_strided_slice %354 {offsets = [0, 0], sizes = [16, 128], strides = [1, 1]} : vector<16x512xf32> to vector<16x128xf32>
    %c32_234 = arith.constant 32 : index
    %c896_235 = arith.constant 896 : index
    %383 = vector.load %arg12[%c32_234, %c896_235] : memref<144x2048xf32, #tpu.memory_space<vmem>>, vector<16x128xf32>
    tpu.vector_store %arg12[%c32_234, %c896_235], %382 {strides = array<i32>} : memref<144x2048xf32, #tpu.memory_space<vmem>>, vector<16x128xf32>,
    %384 = vector.extract_strided_slice %353 {offsets = [0, 512], sizes = [16, 512], strides = [1, 1]} : vector<16x2048xf32> to vector<16x512xf32>
    %385 = vector.extract_strided_slice %384 {offsets = [0, 128], sizes = [16, 384], strides = [1, 1]} : vector<16x512xf32> to vector<16x384xf32>
    %c32_236 = arith.constant 32 : index
    %c1024_237 = arith.constant 1024 : index
    %386 = vector.load %arg12[%c32_236, %c1024_237] : memref<144x2048xf32, #tpu.memory_space<vmem>>, vector<16x384xf32>
    tpu.vector_store %arg12[%c32_236, %c1024_237], %385 {strides = array<i32>} : memref<144x2048xf32, #tpu.memory_space<vmem>>, vector<16x384xf32>,
    %387 = vector.extract_strided_slice %354 {offsets = [0, 0], sizes = [16, 128], strides = [1, 1]} : vector<16x512xf32> to vector<16x128xf32>
    %c32_238 = arith.constant 32 : index
    %c1408 = arith.constant 1408 : index
    %388 = vector.load %arg12[%c32_238, %c1408] : memref<144x2048xf32, #tpu.memory_space<vmem>>, vector<16x128xf32>
    tpu.vector_store %arg12[%c32_238, %c1408], %387 {strides = array<i32>} : memref<144x2048xf32, #tpu.memory_space<vmem>>, vector<16x128xf32>,
    %389 = vector.extract_strided_slice %353 {offsets = [0, 1024], sizes = [16, 512], strides = [1, 1]} : vector<16x2048xf32> to vector<16x512xf32>
    %390 = vector.extract_strided_slice %389 {offsets = [0, 128], sizes = [16, 384], strides = [1, 1]} : vector<16x512xf32> to vector<16x384xf32>
    %c32_239 = arith.constant 32 : index
    %c1536_240 = arith.constant 1536 : index
    %391 = vector.load %arg12[%c32_239, %c1536_240] : memref<144x2048xf32, #tpu.memory_space<vmem>>, vector<16x384xf32>
    tpu.vector_store %arg12[%c32_239, %c1536_240], %390 {strides = array<i32>} : memref<144x2048xf32, #tpu.memory_space<vmem>>, vector<16x384xf32>,
    %392 = vector.extract_strided_slice %354 {offsets = [0, 0], sizes = [16, 128], strides = [1, 1]} : vector<16x512xf32> to vector<16x128xf32>
    %c32_241 = arith.constant 32 : index
    %c1920_242 = arith.constant 1920 : index
    %393 = vector.load %arg12[%c32_241, %c1920_242] : memref<144x2048xf32, #tpu.memory_space<vmem>>, vector<16x128xf32>
    tpu.vector_store %arg12[%c32_241, %c1920_242], %392 {strides = array<i32>} : memref<144x2048xf32, #tpu.memory_space<vmem>>, vector<16x128xf32>,
    %394 = vector.extract_strided_slice %353 {offsets = [0, 0], sizes = [16, 512], strides = [1, 1]} : vector<16x2048xf32> to vector<16x512xf32>
    %395 = vector.extract_strided_slice %354 {offsets = [0, 0], sizes = [16, 128], strides = [1, 1]} : vector<16x512xf32> to vector<16x128xf32>
    %c48 = arith.constant 48 : index
    %c0_243 = arith.constant 0 : index
    %396 = vector.load %arg12[%c48, %c0_243] : memref<144x2048xf32, #tpu.memory_space<vmem>>, vector<16x128xf32>
    tpu.vector_store %arg12[%c48, %c0_243], %395 {strides = array<i32>} : memref<144x2048xf32, #tpu.memory_space<vmem>>, vector<16x128xf32>,
    %397 = vector.extract_strided_slice %394 {offsets = [0, 0], sizes = [16, 384], strides = [1, 1]} : vector<16x512xf32> to vector<16x384xf32>
    %c48_244 = arith.constant 48 : index
    %c128_245 = arith.constant 128 : index
    %398 = vector.load %arg12[%c48_244, %c128_245] : memref<144x2048xf32, #tpu.memory_space<vmem>>, vector<16x384xf32>
    tpu.vector_store %arg12[%c48_244, %c128_245], %397 {strides = array<i32>} : memref<144x2048xf32, #tpu.memory_space<vmem>>, vector<16x384xf32>,
    %399 = vector.extract_strided_slice %353 {offsets = [0, 512], sizes = [16, 512], strides = [1, 1]} : vector<16x2048xf32> to vector<16x512xf32>
    %400 = vector.extract_strided_slice %354 {offsets = [0, 0], sizes = [16, 128], strides = [1, 1]} : vector<16x512xf32> to vector<16x128xf32>
    %c48_246 = arith.constant 48 : index
    %c512_247 = arith.constant 512 : index
    %401 = vector.load %arg12[%c48_246, %c512_247] : memref<144x2048xf32, #tpu.memory_space<vmem>>, vector<16x128xf32>
    tpu.vector_store %arg12[%c48_246, %c512_247], %400 {strides = array<i32>} : memref<144x2048xf32, #tpu.memory_space<vmem>>, vector<16x128xf32>,
    %402 = vector.extract_strided_slice %399 {offsets = [0, 0], sizes = [16, 384], strides = [1, 1]} : vector<16x512xf32> to vector<16x384xf32>
    %c48_248 = arith.constant 48 : index
    %c640_249 = arith.constant 640 : index
    %403 = vector.load %arg12[%c48_248, %c640_249] : memref<144x2048xf32, #tpu.memory_space<vmem>>, vector<16x384xf32>
    tpu.vector_store %arg12[%c48_248, %c640_249], %402 {strides = array<i32>} : memref<144x2048xf32, #tpu.memory_space<vmem>>, vector<16x384xf32>,
    %404 = vector.extract_strided_slice %353 {offsets = [0, 1024], sizes = [16, 512], strides = [1, 1]} : vector<16x2048xf32> to vector<16x512xf32>
    %405 = vector.extract_strided_slice %354 {offsets = [0, 0], sizes = [16, 128], strides = [1, 1]} : vector<16x512xf32> to vector<16x128xf32>
    %c48_250 = arith.constant 48 : index
    %c1024_251 = arith.constant 1024 : index
    %406 = vector.load %arg12[%c48_250, %c1024_251] : memref<144x2048xf32, #tpu.memory_space<vmem>>, vector<16x128xf32>
    tpu.vector_store %arg12[%c48_250, %c1024_251], %405 {strides = array<i32>} : memref<144x2048xf32, #tpu.memory_space<vmem>>, vector<16x128xf32>,
    %407 = vector.extract_strided_slice %404 {offsets = [0, 0], sizes = [16, 384], strides = [1, 1]} : vector<16x512xf32> to vector<16x384xf32>
    %c48_252 = arith.constant 48 : index
    %c1152_253 = arith.constant 1152 : index
    %408 = vector.load %arg12[%c48_252, %c1152_253] : memref<144x2048xf32, #tpu.memory_space<vmem>>, vector<16x384xf32>
    tpu.vector_store %arg12[%c48_252, %c1152_253], %407 {strides = array<i32>} : memref<144x2048xf32, #tpu.memory_space<vmem>>, vector<16x384xf32>,
    %409 = vector.extract_strided_slice %353 {offsets = [0, 1536], sizes = [16, 512], strides = [1, 1]} : vector<16x2048xf32> to vector<16x512xf32>
    %410 = vector.extract_strided_slice %354 {offsets = [0, 0], sizes = [16, 128], strides = [1, 1]} : vector<16x512xf32> to vector<16x128xf32>
    %c48_254 = arith.constant 48 : index
    %c1536_255 = arith.constant 1536 : index
    %411 = vector.load %arg12[%c48_254, %c1536_255] : memref<144x2048xf32, #tpu.memory_space<vmem>>, vector<16x128xf32>
    tpu.vector_store %arg12[%c48_254, %c1536_255], %410 {strides = array<i32>} : memref<144x2048xf32, #tpu.memory_space<vmem>>, vector<16x128xf32>,
    %412 = vector.extract_strided_slice %409 {offsets = [0, 0], sizes = [16, 384], strides = [1, 1]} : vector<16x512xf32> to vector<16x384xf32>
    %c48_256 = arith.constant 48 : index
    %c1664_257 = arith.constant 1664 : index
    %413 = vector.load %arg12[%c48_256, %c1664_257] : memref<144x2048xf32, #tpu.memory_space<vmem>>, vector<16x384xf32>
    tpu.vector_store %arg12[%c48_256, %c1664_257], %412 {strides = array<i32>} : memref<144x2048xf32, #tpu.memory_space<vmem>>, vector<16x384xf32>,
    %414 = vector.extract_strided_slice %353 {offsets = [0, 0], sizes = [16, 512], strides = [1, 1]} : vector<16x2048xf32> to vector<16x512xf32>
    %c64 = arith.constant 64 : index
    %c0_258 = arith.constant 0 : index
    %415 = vector.load %arg12[%c64, %c0_258] : memref<144x2048xf32, #tpu.memory_space<vmem>>, vector<16x512xf32>
    tpu.vector_store %arg12[%c64, %c0_258], %414 {strides = array<i32>} : memref<144x2048xf32, #tpu.memory_space<vmem>>, vector<16x512xf32>,
    %416 = vector.extract_strided_slice %353 {offsets = [0, 512], sizes = [16, 512], strides = [1, 1]} : vector<16x2048xf32> to vector<16x512xf32>
    %c64_259 = arith.constant 64 : index
    %c512_260 = arith.constant 512 : index
    %417 = vector.load %arg12[%c64_259, %c512_260] : memref<144x2048xf32, #tpu.memory_space<vmem>>, vector<16x512xf32>
    tpu.vector_store %arg12[%c64_259, %c512_260], %416 {strides = array<i32>} : memref<144x2048xf32, #tpu.memory_space<vmem>>, vector<16x512xf32>,
    %418 = vector.extract_strided_slice %353 {offsets = [0, 1024], sizes = [16, 512], strides = [1, 1]} : vector<16x2048xf32> to vector<16x512xf32>
    %c64_261 = arith.constant 64 : index
    %c1024_262 = arith.constant 1024 : index
    %419 = vector.load %arg12[%c64_261, %c1024_262] : memref<144x2048xf32, #tpu.memory_space<vmem>>, vector<16x512xf32>
    tpu.vector_store %arg12[%c64_261, %c1024_262], %418 {strides = array<i32>} : memref<144x2048xf32, #tpu.memory_space<vmem>>, vector<16x512xf32>,
    %420 = vector.extract_strided_slice %353 {offsets = [0, 1536], sizes = [16, 512], strides = [1, 1]} : vector<16x2048xf32> to vector<16x512xf32>
    %c64_263 = arith.constant 64 : index
    %c1536_264 = arith.constant 1536 : index
    %421 = vector.load %arg12[%c64_263, %c1536_264] : memref<144x2048xf32, #tpu.memory_space<vmem>>, vector<16x512xf32>
    tpu.vector_store %arg12[%c64_263, %c1536_264], %420 {strides = array<i32>} : memref<144x2048xf32, #tpu.memory_space<vmem>>, vector<16x512xf32>,
    %422 = vector.extract_strided_slice %353 {offsets = [0, 0], sizes = [16, 512], strides = [1, 1]} : vector<16x2048xf32> to vector<16x512xf32>
    %423 = vector.extract_strided_slice %422 {offsets = [0, 128], sizes = [16, 384], strides = [1, 1]} : vector<16x512xf32> to vector<16x384xf32>
    %c80 = arith.constant 80 : index
    %c0_265 = arith.constant 0 : index
    %424 = vector.load %arg12[%c80, %c0_265] : memref<144x2048xf32, #tpu.memory_space<vmem>>, vector<16x384xf32>
    tpu.vector_store %arg12[%c80, %c0_265], %423 {strides = array<i32>} : memref<144x2048xf32, #tpu.memory_space<vmem>>, vector<16x384xf32>,
    %425 = vector.extract_strided_slice %354 {offsets = [0, 0], sizes = [16, 128], strides = [1, 1]} : vector<16x512xf32> to vector<16x128xf32>
    %c80_266 = arith.constant 80 : index
    %c384 = arith.constant 384 : index
    %426 = vector.load %arg12[%c80_266, %c384] : memref<144x2048xf32, #tpu.memory_space<vmem>>, vector<16x128xf32>
    tpu.vector_store %arg12[%c80_266, %c384], %425 {strides = array<i32>} : memref<144x2048xf32, #tpu.memory_space<vmem>>, vector<16x128xf32>,
    %427 = vector.extract_strided_slice %353 {offsets = [0, 512], sizes = [16, 512], strides = [1, 1]} : vector<16x2048xf32> to vector<16x512xf32>
    %428 = vector.extract_strided_slice %427 {offsets = [0, 128], sizes = [16, 384], strides = [1, 1]} : vector<16x512xf32> to vector<16x384xf32>
    %c80_267 = arith.constant 80 : index
    %c512_268 = arith.constant 512 : index
    %429 = vector.load %arg12[%c80_267, %c512_268] : memref<144x2048xf32, #tpu.memory_space<vmem>>, vector<16x384xf32>
    tpu.vector_store %arg12[%c80_267, %c512_268], %428 {strides = array<i32>} : memref<144x2048xf32, #tpu.memory_space<vmem>>, vector<16x384xf32>,
    %430 = vector.extract_strided_slice %354 {offsets = [0, 0], sizes = [16, 128], strides = [1, 1]} : vector<16x512xf32> to vector<16x128xf32>
    %c80_269 = arith.constant 80 : index
    %c896_270 = arith.constant 896 : index
    %431 = vector.load %arg12[%c80_269, %c896_270] : memref<144x2048xf32, #tpu.memory_space<vmem>>, vector<16x128xf32>
    tpu.vector_store %arg12[%c80_269, %c896_270], %430 {strides = array<i32>} : memref<144x2048xf32, #tpu.memory_space<vmem>>, vector<16x128xf32>,
    %432 = vector.extract_strided_slice %353 {offsets = [0, 1024], sizes = [16, 512], strides = [1, 1]} : vector<16x2048xf32> to vector<16x512xf32>
    %433 = vector.extract_strided_slice %432 {offsets = [0, 128], sizes = [16, 384], strides = [1, 1]} : vector<16x512xf32> to vector<16x384xf32>
    %c80_271 = arith.constant 80 : index
    %c1024_272 = arith.constant 1024 : index
    %434 = vector.load %arg12[%c80_271, %c1024_272] : memref<144x2048xf32, #tpu.memory_space<vmem>>, vector<16x384xf32>
    tpu.vector_store %arg12[%c80_271, %c1024_272], %433 {strides = array<i32>} : memref<144x2048xf32, #tpu.memory_space<vmem>>, vector<16x384xf32>,
    %435 = vector.extract_strided_slice %354 {offsets = [0, 0], sizes = [16, 128], strides = [1, 1]} : vector<16x512xf32> to vector<16x128xf32>
    %c80_273 = arith.constant 80 : index
    %c1408_274 = arith.constant 1408 : index
    %436 = vector.load %arg12[%c80_273, %c1408_274] : memref<144x2048xf32, #tpu.memory_space<vmem>>, vector<16x128xf32>
    tpu.vector_store %arg12[%c80_273, %c1408_274], %435 {strides = array<i32>} : memref<144x2048xf32, #tpu.memory_space<vmem>>, vector<16x128xf32>,
    %437 = vector.extract_strided_slice %353 {offsets = [0, 1536], sizes = [16, 512], strides = [1, 1]} : vector<16x2048xf32> to vector<16x512xf32>
    %438 = vector.extract_strided_slice %437 {offsets = [0, 128], sizes = [16, 384], strides = [1, 1]} : vector<16x512xf32> to vector<16x384xf32>
    %c80_275 = arith.constant 80 : index
    %c1536_276 = arith.constant 1536 : index
    %439 = vector.load %arg12[%c80_275, %c1536_276] : memref<144x2048xf32, #tpu.memory_space<vmem>>, vector<16x384xf32>
    tpu.vector_store %arg12[%c80_275, %c1536_276], %438 {strides = array<i32>} : memref<144x2048xf32, #tpu.memory_space<vmem>>, vector<16x384xf32>,
    %440 = vector.extract_strided_slice %354 {offsets = [0, 0], sizes = [16, 128], strides = [1, 1]} : vector<16x512xf32> to vector<16x128xf32>
    %c80_277 = arith.constant 80 : index
    %c1920_278 = arith.constant 1920 : index
    %441 = vector.load %arg12[%c80_277, %c1920_278] : memref<144x2048xf32, #tpu.memory_space<vmem>>, vector<16x128xf32>
    tpu.vector_store %arg12[%c80_277, %c1920_278], %440 {strides = array<i32>} : memref<144x2048xf32, #tpu.memory_space<vmem>>, vector<16x128xf32>,
    %442 = vector.extract_strided_slice %353 {offsets = [0, 512], sizes = [16, 512], strides = [1, 1]} : vector<16x2048xf32> to vector<16x512xf32>
    %443 = vector.extract_strided_slice %354 {offsets = [0, 0], sizes = [16, 128], strides = [1, 1]} : vector<16x512xf32> to vector<16x128xf32>
    %c96 = arith.constant 96 : index
    %c0_279 = arith.constant 0 : index
    %444 = vector.load %arg12[%c96, %c0_279] : memref<144x2048xf32, #tpu.memory_space<vmem>>, vector<16x128xf32>
    tpu.vector_store %arg12[%c96, %c0_279], %443 {strides = array<i32>} : memref<144x2048xf32, #tpu.memory_space<vmem>>, vector<16x128xf32>,
    %445 = vector.extract_strided_slice %442 {offsets = [0, 0], sizes = [16, 384], strides = [1, 1]} : vector<16x512xf32> to vector<16x384xf32>
    %c96_280 = arith.constant 96 : index
    %c128_281 = arith.constant 128 : index
    %446 = vector.load %arg12[%c96_280, %c128_281] : memref<144x2048xf32, #tpu.memory_space<vmem>>, vector<16x384xf32>
    tpu.vector_store %arg12[%c96_280, %c128_281], %445 {strides = array<i32>} : memref<144x2048xf32, #tpu.memory_space<vmem>>, vector<16x384xf32>,
    %447 = vector.extract_strided_slice %353 {offsets = [0, 1024], sizes = [16, 512], strides = [1, 1]} : vector<16x2048xf32> to vector<16x512xf32>
    %448 = vector.extract_strided_slice %354 {offsets = [0, 0], sizes = [16, 128], strides = [1, 1]} : vector<16x512xf32> to vector<16x128xf32>
    %c96_282 = arith.constant 96 : index
    %c512_283 = arith.constant 512 : index
    %449 = vector.load %arg12[%c96_282, %c512_283] : memref<144x2048xf32, #tpu.memory_space<vmem>>, vector<16x128xf32>
    tpu.vector_store %arg12[%c96_282, %c512_283], %448 {strides = array<i32>} : memref<144x2048xf32, #tpu.memory_space<vmem>>, vector<16x128xf32>,
    %450 = vector.extract_strided_slice %447 {offsets = [0, 0], sizes = [16, 384], strides = [1, 1]} : vector<16x512xf32> to vector<16x384xf32>
    %c96_284 = arith.constant 96 : index
    %c640_285 = arith.constant 640 : index
    %451 = vector.load %arg12[%c96_284, %c640_285] : memref<144x2048xf32, #tpu.memory_space<vmem>>, vector<16x384xf32>
    tpu.vector_store %arg12[%c96_284, %c640_285], %450 {strides = array<i32>} : memref<144x2048xf32, #tpu.memory_space<vmem>>, vector<16x384xf32>,
    %452 = vector.extract_strided_slice %353 {offsets = [0, 1536], sizes = [16, 512], strides = [1, 1]} : vector<16x2048xf32> to vector<16x512xf32>
    %453 = vector.extract_strided_slice %354 {offsets = [0, 0], sizes = [16, 128], strides = [1, 1]} : vector<16x512xf32> to vector<16x128xf32>
    %c96_286 = arith.constant 96 : index
    %c1024_287 = arith.constant 1024 : index
    %454 = vector.load %arg12[%c96_286, %c1024_287] : memref<144x2048xf32, #tpu.memory_space<vmem>>, vector<16x128xf32>
    tpu.vector_store %arg12[%c96_286, %c1024_287], %453 {strides = array<i32>} : memref<144x2048xf32, #tpu.memory_space<vmem>>, vector<16x128xf32>,
    %455 = vector.extract_strided_slice %452 {offsets = [0, 0], sizes = [16, 384], strides = [1, 1]} : vector<16x512xf32> to vector<16x384xf32>
    %c96_288 = arith.constant 96 : index
    %c1152_289 = arith.constant 1152 : index
    %456 = vector.load %arg12[%c96_288, %c1152_289] : memref<144x2048xf32, #tpu.memory_space<vmem>>, vector<16x384xf32>
    tpu.vector_store %arg12[%c96_288, %c1152_289], %455 {strides = array<i32>} : memref<144x2048xf32, #tpu.memory_space<vmem>>, vector<16x384xf32>,
    %c96_290 = arith.constant 96 : index
    %c1536_291 = arith.constant 1536 : index
    %457 = vector.load %arg12[%c96_290, %c1536_291] : memref<144x2048xf32, #tpu.memory_space<vmem>>, vector<16x512xf32>
    tpu.vector_store %arg12[%c96_290, %c1536_291], %354 {strides = array<i32>} : memref<144x2048xf32, #tpu.memory_space<vmem>>, vector<16x512xf32>,
    %458 = vector.extract_strided_slice %353 {offsets = [0, 512], sizes = [16, 512], strides = [1, 1]} : vector<16x2048xf32> to vector<16x512xf32>
    %c112 = arith.constant 112 : index
    %c0_292 = arith.constant 0 : index
    %459 = vector.load %arg12[%c112, %c0_292] : memref<144x2048xf32, #tpu.memory_space<vmem>>, vector<16x512xf32>
    tpu.vector_store %arg12[%c112, %c0_292], %458 {strides = array<i32>} : memref<144x2048xf32, #tpu.memory_space<vmem>>, vector<16x512xf32>,
    %460 = vector.extract_strided_slice %353 {offsets = [0, 1024], sizes = [16, 512], strides = [1, 1]} : vector<16x2048xf32> to vector<16x512xf32>
    %c112_293 = arith.constant 112 : index
    %c512_294 = arith.constant 512 : index
    %461 = vector.load %arg12[%c112_293, %c512_294] : memref<144x2048xf32, #tpu.memory_space<vmem>>, vector<16x512xf32>
    tpu.vector_store %arg12[%c112_293, %c512_294], %460 {strides = array<i32>} : memref<144x2048xf32, #tpu.memory_space<vmem>>, vector<16x512xf32>,
    %462 = vector.extract_strided_slice %353 {offsets = [0, 1536], sizes = [16, 512], strides = [1, 1]} : vector<16x2048xf32> to vector<16x512xf32>
    %c112_295 = arith.constant 112 : index
    %c1024_296 = arith.constant 1024 : index
    %463 = vector.load %arg12[%c112_295, %c1024_296] : memref<144x2048xf32, #tpu.memory_space<vmem>>, vector<16x512xf32>
    tpu.vector_store %arg12[%c112_295, %c1024_296], %462 {strides = array<i32>} : memref<144x2048xf32, #tpu.memory_space<vmem>>, vector<16x512xf32>,
    %c112_297 = arith.constant 112 : index
    %c1536_298 = arith.constant 1536 : index
    %464 = vector.load %arg12[%c112_297, %c1536_298] : memref<144x2048xf32, #tpu.memory_space<vmem>>, vector<16x512xf32>
    tpu.vector_store %arg12[%c112_297, %c1536_298], %354 {strides = array<i32>} : memref<144x2048xf32, #tpu.memory_space<vmem>>, vector<16x512xf32>,
    %465 = vector.extract_strided_slice %353 {offsets = [0, 512], sizes = [16, 512], strides = [1, 1]} : vector<16x2048xf32> to vector<16x512xf32>
    %466 = vector.extract_strided_slice %465 {offsets = [0, 128], sizes = [16, 384], strides = [1, 1]} : vector<16x512xf32> to vector<16x384xf32>
    %c128_299 = arith.constant 128 : index
    %c0_300 = arith.constant 0 : index
    %467 = vector.load %arg12[%c128_299, %c0_300] : memref<144x2048xf32, #tpu.memory_space<vmem>>, vector<16x384xf32>
    tpu.vector_store %arg12[%c128_299, %c0_300], %466 {strides = array<i32>} : memref<144x2048xf32, #tpu.memory_space<vmem>>, vector<16x384xf32>,
    %468 = vector.extract_strided_slice %354 {offsets = [0, 0], sizes = [16, 128], strides = [1, 1]} : vector<16x512xf32> to vector<16x128xf32>
    %c128_301 = arith.constant 128 : index
    %c384_302 = arith.constant 384 : index
    %469 = vector.load %arg12[%c128_301, %c384_302] : memref<144x2048xf32, #tpu.memory_space<vmem>>, vector<16x128xf32>
    tpu.vector_store %arg12[%c128_301, %c384_302], %468 {strides = array<i32>} : memref<144x2048xf32, #tpu.memory_space<vmem>>, vector<16x128xf32>,
    %470 = vector.extract_strided_slice %353 {offsets = [0, 1024], sizes = [16, 512], strides = [1, 1]} : vector<16x2048xf32> to vector<16x512xf32>
    %471 = vector.extract_strided_slice %470 {offsets = [0, 128], sizes = [16, 384], strides = [1, 1]} : vector<16x512xf32> to vector<16x384xf32>
    %c128_303 = arith.constant 128 : index
    %c512_304 = arith.constant 512 : index
    %472 = vector.load %arg12[%c128_303, %c512_304] : memref<144x2048xf32, #tpu.memory_space<vmem>>, vector<16x384xf32>
    tpu.vector_store %arg12[%c128_303, %c512_304], %471 {strides = array<i32>} : memref<144x2048xf32, #tpu.memory_space<vmem>>, vector<16x384xf32>,
    %473 = vector.extract_strided_slice %354 {offsets = [0, 0], sizes = [16, 128], strides = [1, 1]} : vector<16x512xf32> to vector<16x128xf32>
    %c128_305 = arith.constant 128 : index
    %c896_306 = arith.constant 896 : index
    %474 = vector.load %arg12[%c128_305, %c896_306] : memref<144x2048xf32, #tpu.memory_space<vmem>>, vector<16x128xf32>
    tpu.vector_store %arg12[%c128_305, %c896_306], %473 {strides = array<i32>} : memref<144x2048xf32, #tpu.memory_space<vmem>>, vector<16x128xf32>,
    %475 = vector.extract_strided_slice %353 {offsets = [0, 1536], sizes = [16, 512], strides = [1, 1]} : vector<16x2048xf32> to vector<16x512xf32>
    %476 = vector.extract_strided_slice %475 {offsets = [0, 128], sizes = [16, 384], strides = [1, 1]} : vector<16x512xf32> to vector<16x384xf32>
    %c128_307 = arith.constant 128 : index
    %c1024_308 = arith.constant 1024 : index
    %477 = vector.load %arg12[%c128_307, %c1024_308] : memref<144x2048xf32, #tpu.memory_space<vmem>>, vector<16x384xf32>
    tpu.vector_store %arg12[%c128_307, %c1024_308], %476 {strides = array<i32>} : memref<144x2048xf32, #tpu.memory_space<vmem>>, vector<16x384xf32>,
    %478 = vector.extract_strided_slice %354 {offsets = [0, 0], sizes = [16, 128], strides = [1, 1]} : vector<16x512xf32> to vector<16x128xf32>
    %c128_309 = arith.constant 128 : index
    %c1408_310 = arith.constant 1408 : index
    %479 = vector.load %arg12[%c128_309, %c1408_310] : memref<144x2048xf32, #tpu.memory_space<vmem>>, vector<16x128xf32>
    tpu.vector_store %arg12[%c128_309, %c1408_310], %478 {strides = array<i32>} : memref<144x2048xf32, #tpu.memory_space<vmem>>, vector<16x128xf32>,
    %c128_311 = arith.constant 128 : index
    %c1536_312 = arith.constant 1536 : index
    %480 = vector.load %arg12[%c128_311, %c1536_312] : memref<144x2048xf32, #tpu.memory_space<vmem>>, vector<16x512xf32>
    tpu.vector_store %arg12[%c128_311, %c1536_312], %354 {strides = array<i32>} : memref<144x2048xf32, #tpu.memory_space<vmem>>, vector<16x512xf32>,
    %c0_313 = arith.constant 0 : index
    %c0_314 = arith.constant 0 : index
    %481 = vector.load %arg4[%c0_313, %c0_314] : memref<4x144xf32, #tpu.memory_space<vmem>>, vector<4x144xf32>
    %c0_315 = arith.constant 0 : index
    %c0_316 = arith.constant 0 : index
    %482 = vector.load %arg12[%c0_315, %c0_316] : memref<144x2048xf32, #tpu.memory_space<vmem>>, vector<144x2048xf32>
    %483 = arith.truncf %481 : vector<4x144xf32> to vector<4x144xbf16>
    %484 = arith.extf %483 : vector<4x144xbf16> to vector<4x144xf32>
    %485 = arith.subf %481, %484 : vector<4x144xf32>
    %486 = arith.truncf %485 : vector<4x144xf32> to vector<4x144xbf16>
    %487 = arith.truncf %482 : vector<144x2048xf32> to vector<144x2048xbf16>
    %488 = arith.extf %487 : vector<144x2048xbf16> to vector<144x2048xf32>
    %489 = arith.subf %482, %488 : vector<144x2048xf32>
    %490 = arith.truncf %489 : vector<144x2048xf32> to vector<144x2048xbf16>
    %cst_317 = arith.constant dense<0.000000e+00> : vector<4x2048xf32>
    %491 = tpu.matmul %483, %487, %cst_317 {dimension_numbers = #tpu.dot_dimension_numbers<[1], [0], [0], [1], [0, 0, 1, 1], [], []>} : vector<4x144xbf16>, vector<144x2048xbf16>, vector<4x2048xf32> -> vector<4x2048xf32>
    %cst_318 = arith.constant dense<0.000000e+00> : vector<4x2048xf32>
    %492 = tpu.matmul %486, %487, %cst_318 {dimension_numbers = #tpu.dot_dimension_numbers<[1], [0], [0], [1], [0, 0, 1, 1], [], []>} : vector<4x144xbf16>, vector<144x2048xbf16>, vector<4x2048xf32> -> vector<4x2048xf32>
    %493 = arith.addf %491, %492 : vector<4x2048xf32>
    %cst_319 = arith.constant dense<0.000000e+00> : vector<4x2048xf32>
    %494 = tpu.matmul %483, %490, %cst_319 {dimension_numbers = #tpu.dot_dimension_numbers<[1], [0], [0], [1], [0, 0, 1, 1], [], []>} : vector<4x144xbf16>, vector<144x2048xbf16>, vector<4x2048xf32> -> vector<4x2048xf32>
    %495 = arith.addf %493, %494 : vector<4x2048xf32>
    %c0_320 = arith.constant 0 : index
    %c0_321 = arith.constant 0 : index
    %496 = vector.load %arg5[%c0_320, %c0_321] : memref<4x1xf32, #tpu.memory_space<vmem>>, vector<4x1xf32>
    %497 = vector.broadcast %496 : vector<4x1xf32> to vector<4x2048xf32>
    %498 = arith.addf %495, %497 : vector<4x2048xf32>
    %cst_322 = arith.constant 0.000000e+00 : f32
    %499 = vector.broadcast %cst_322 : f32 to vector<4x2048xf32>
    %500 = arith.maximumf %498, %499 : vector<4x2048xf32>
    %501 = vector.extract_strided_slice %500 {offsets = [0, 0], sizes = [4, 512], strides = [1, 1]} : vector<4x2048xf32> to vector<4x512xf32>
    %502 = vector.extract_strided_slice %500 {offsets = [0, 512], sizes = [4, 512], strides = [1, 1]} : vector<4x2048xf32> to vector<4x512xf32>
    %503 = arith.maximumf %501, %502 : vector<4x512xf32>
    %504 = vector.extract_strided_slice %503 {offsets = [0, 0], sizes = [4, 128], strides = [1, 1]} : vector<4x512xf32> to vector<4x128xf32>
    %505 = vector.extract_strided_slice %503 {offsets = [0, 128], sizes = [4, 128], strides = [1, 1]} : vector<4x512xf32> to vector<4x128xf32>
    %506 = arith.maximumf %504, %505 : vector<4x128xf32>
    %507 = vector.extract_strided_slice %503 {offsets = [0, 256], sizes = [4, 128], strides = [1, 1]} : vector<4x512xf32> to vector<4x128xf32>
    %508 = vector.extract_strided_slice %503 {offsets = [0, 384], sizes = [4, 128], strides = [1, 1]} : vector<4x512xf32> to vector<4x128xf32>
    %509 = arith.maximumf %507, %508 : vector<4x128xf32>
    %510 = vector.extract_strided_slice %500 {offsets = [0, 1024], sizes = [4, 512], strides = [1, 1]} : vector<4x2048xf32> to vector<4x512xf32>
    %511 = vector.extract_strided_slice %500 {offsets = [0, 1536], sizes = [4, 512], strides = [1, 1]} : vector<4x2048xf32> to vector<4x512xf32>
    %512 = arith.maximumf %510, %511 : vector<4x512xf32>
    %513 = vector.extract_strided_slice %512 {offsets = [0, 0], sizes = [4, 128], strides = [1, 1]} : vector<4x512xf32> to vector<4x128xf32>
    %514 = vector.extract_strided_slice %512 {offsets = [0, 128], sizes = [4, 128], strides = [1, 1]} : vector<4x512xf32> to vector<4x128xf32>
    %515 = arith.maximumf %513, %514 : vector<4x128xf32>
    %516 = vector.extract_strided_slice %512 {offsets = [0, 256], sizes = [4, 128], strides = [1, 1]} : vector<4x512xf32> to vector<4x128xf32>
    %517 = vector.extract_strided_slice %512 {offsets = [0, 384], sizes = [4, 128], strides = [1, 1]} : vector<4x512xf32> to vector<4x128xf32>
    %518 = arith.maximumf %516, %517 : vector<4x128xf32>
    %519 = tpu.concatenate %506, %509, %515, %518 in 1 : vector<4x128xf32>, vector<4x128xf32>, vector<4x128xf32>, vector<4x128xf32> -> vector<4x512xf32>
    %c0_323 = arith.constant 0 : index
    %c0_324 = arith.constant 0 : index
    %520 = vector.load %arg6[%c0_323, %c0_324] : memref<64x4xf32, #tpu.memory_space<vmem>>, vector<64x4xf32>
    %521 = arith.truncf %520 : vector<64x4xf32> to vector<64x4xbf16>
    %522 = arith.extf %521 : vector<64x4xbf16> to vector<64x4xf32>
    %523 = arith.subf %520, %522 : vector<64x4xf32>
    %524 = arith.truncf %523 : vector<64x4xf32> to vector<64x4xbf16>
    %525 = arith.truncf %519 : vector<4x512xf32> to vector<4x512xbf16>
    %526 = arith.extf %525 : vector<4x512xbf16> to vector<4x512xf32>
    %527 = arith.subf %519, %526 : vector<4x512xf32>
    %528 = arith.truncf %527 : vector<4x512xf32> to vector<4x512xbf16>
    %cst_325 = arith.constant dense<0.000000e+00> : vector<64x512xf32>
    %529 = tpu.matmul %521, %525, %cst_325 {dimension_numbers = #tpu.dot_dimension_numbers<[1], [0], [0], [1], [0, 0, 1, 1], [], []>} : vector<64x4xbf16>, vector<4x512xbf16>, vector<64x512xf32> -> vector<64x512xf32>
    %cst_326 = arith.constant dense<0.000000e+00> : vector<64x512xf32>
    %530 = tpu.matmul %524, %525, %cst_326 {dimension_numbers = #tpu.dot_dimension_numbers<[1], [0], [0], [1], [0, 0, 1, 1], [], []>} : vector<64x4xbf16>, vector<4x512xbf16>, vector<64x512xf32> -> vector<64x512xf32>
    %531 = arith.addf %529, %530 : vector<64x512xf32>
    %cst_327 = arith.constant dense<0.000000e+00> : vector<64x512xf32>
    %532 = tpu.matmul %521, %528, %cst_327 {dimension_numbers = #tpu.dot_dimension_numbers<[1], [0], [0], [1], [0, 0, 1, 1], [], []>} : vector<64x4xbf16>, vector<4x512xbf16>, vector<64x512xf32> -> vector<64x512xf32>
    %533 = arith.addf %531, %532 : vector<64x512xf32>
    %c0_328 = arith.constant 0 : index
    %c0_329 = arith.constant 0 : index
    %534 = vector.load %arg7[%c0_328, %c0_329] : memref<64x1xf32, #tpu.memory_space<vmem>>, vector<64x1xf32>
    %535 = vector.broadcast %534 : vector<64x1xf32> to vector<64x512xf32>
    %536 = arith.addf %533, %535 : vector<64x512xf32>
    %cst_330 = arith.constant 0.000000e+00 : f32
    %537 = vector.broadcast %cst_330 : f32 to vector<64x512xf32>
    %538 = arith.maximumf %536, %537 : vector<64x512xf32>
    %c0_331 = arith.constant 0 : index
    %c0_332 = arith.constant 0 : index
    %539 = vector.load %arg8[%c0_331, %c0_332] : memref<16x64xf32, #tpu.memory_space<vmem>>, vector<16x64xf32>
    %540 = arith.truncf %539 : vector<16x64xf32> to vector<16x64xbf16>
    %541 = arith.extf %540 : vector<16x64xbf16> to vector<16x64xf32>
    %542 = arith.subf %539, %541 : vector<16x64xf32>
    %543 = arith.truncf %542 : vector<16x64xf32> to vector<16x64xbf16>
    %544 = arith.truncf %538 : vector<64x512xf32> to vector<64x512xbf16>
    %545 = arith.extf %544 : vector<64x512xbf16> to vector<64x512xf32>
    %546 = arith.subf %538, %545 : vector<64x512xf32>
    %547 = arith.truncf %546 : vector<64x512xf32> to vector<64x512xbf16>
    %cst_333 = arith.constant dense<0.000000e+00> : vector<16x512xf32>
    %548 = tpu.matmul %540, %544, %cst_333 {dimension_numbers = #tpu.dot_dimension_numbers<[1], [0], [0], [1], [0, 0, 1, 1], [], []>} : vector<16x64xbf16>, vector<64x512xbf16>, vector<16x512xf32> -> vector<16x512xf32>
    %cst_334 = arith.constant dense<0.000000e+00> : vector<16x512xf32>
    %549 = tpu.matmul %543, %544, %cst_334 {dimension_numbers = #tpu.dot_dimension_numbers<[1], [0], [0], [1], [0, 0, 1, 1], [], []>} : vector<16x64xbf16>, vector<64x512xbf16>, vector<16x512xf32> -> vector<16x512xf32>
    %550 = arith.addf %548, %549 : vector<16x512xf32>
    %cst_335 = arith.constant dense<0.000000e+00> : vector<16x512xf32>
    %551 = tpu.matmul %540, %547, %cst_335 {dimension_numbers = #tpu.dot_dimension_numbers<[1], [0], [0], [1], [0, 0, 1, 1], [], []>} : vector<16x64xbf16>, vector<64x512xbf16>, vector<16x512xf32> -> vector<16x512xf32>
    %552 = arith.addf %550, %551 : vector<16x512xf32>
    %c0_336 = arith.constant 0 : index
    %c0_337 = arith.constant 0 : index
    %553 = vector.load %arg9[%c0_336, %c0_337] : memref<1x1xf32, #tpu.memory_space<vmem>>, vector<1x1xf32>
    %554 = vector.broadcast %553 : vector<1x1xf32> to vector<16x512xf32>
    %555 = arith.addf %552, %554 : vector<16x512xf32>
    %c0_338 = arith.constant 0 : index
    %c0_339 = arith.constant 0 : index
    %c0_340 = arith.constant 0 : index
    %556 = vector.load %arg10[%c0_338, %c0_339, %c0_340] : memref<1x16x512xf32, #tpu.memory_space<vmem>>, vector<1x16x512xf32>
    %557 = vector.shape_cast %556 : vector<1x16x512xf32> to vector<16x512xf32>
    %558 = vector.shape_cast %555 : vector<16x512xf32> to vector<1x16x512xf32>
    tpu.vector_store %arg10[%c0_338, %c0_339, %c0_340], %558 {strides = array<i32>} : memref<1x16x512xf32, #tpu.memory_space<vmem>>, vector<1x16x512xf32>,
    return
  }
  func.func @transform_0(%arg0: i32) -> (i32, i32, i32) {
    %c0_i32 = arith.constant 0 : i32
    %c0_i32_0 = arith.constant 0 : i32
    %c0_i32_1 = arith.constant 0 : i32
    return %arg0, %c0_i32, %c0_i32_0 : i32, i32, i32
  }
  func.func @transform_1(%arg0: i32) -> (i32, i32) {
    %c0_i32 = arith.constant 0 : i32
    %c0_i32_0 = arith.constant 0 : i32
    %c0_i32_1 = arith.constant 0 : i32
    return %c0_i32, %c0_i32_0 : i32, i32
  }
  func.func @transform_2(%arg0: i32) -> (i32, i32) {
    %c0_i32 = arith.constant 0 : i32
    %c0_i32_0 = arith.constant 0 : i32
    %c0_i32_1 = arith.constant 0 : i32
    return %c0_i32, %c0_i32_0 : i32, i32
  }
  func.func @transform_3(%arg0: i32) -> (i32, i32) {
    %c0_i32 = arith.constant 0 : i32
    %c0_i32_0 = arith.constant 0 : i32
    %c0_i32_1 = arith.constant 0 : i32
    return %c0_i32, %c0_i32_0 : i32, i32
  }
  func.func @transform_4(%arg0: i32) -> (i32, i32) {
    %c0_i32 = arith.constant 0 : i32
    %c0_i32_0 = arith.constant 0 : i32
    %c0_i32_1 = arith.constant 0 : i32
    return %c0_i32, %c0_i32_0 : i32, i32
  }
  func.func @transform_5(%arg0: i32) -> (i32, i32) {
    %c0_i32 = arith.constant 0 : i32
    %c0_i32_0 = arith.constant 0 : i32
    %c0_i32_1 = arith.constant 0 : i32
    return %c0_i32, %c0_i32_0 : i32, i32
  }
  func.func @transform_6(%arg0: i32) -> (i32, i32) {
    %c0_i32 = arith.constant 0 : i32
    %c0_i32_0 = arith.constant 0 : i32
    %c0_i32_1 = arith.constant 0 : i32
    return %c0_i32, %c0_i32_0 : i32, i32
  }
  func.func @transform_7(%arg0: i32) -> (i32, i32) {
    %c0_i32 = arith.constant 0 : i32
    %c0_i32_0 = arith.constant 0 : i32
    %c0_i32_1 = arith.constant 0 : i32
    return %c0_i32, %c0_i32_0 : i32, i32
  }
  func.func @transform_8(%arg0: i32) -> (i32, i32) {
    %c0_i32 = arith.constant 0 : i32
    %c0_i32_0 = arith.constant 0 : i32
    %c0_i32_1 = arith.constant 0 : i32
    return %c0_i32, %c0_i32_0 : i32, i32
  }
  func.func @transform_9(%arg0: i32) -> (i32, i32, i32) {
    %c0_i32 = arith.constant 0 : i32
    %c0_i32_0 = arith.constant 0 : i32
    %c0_i32_1 = arith.constant 0 : i32
    return %arg0, %c0_i32, %c0_i32_0 : i32, i32, i32
  }
}

</mosaic_0001>

<llo_original>
// kernel: conv_ae_forward.1
$region0: #{conv_ae_forward.1}
  #allocation0 [shape = 'u32[]', space=smem, size = 0x4, offset = 0x4, fixed_abs, tag = 'smem constant byte address 0x4 - core index']
  #allocation1 [shape = 'u32[144,128]{1,0:T(1,128)}', space=vmem, size = 0x12000, scoped, tag = 'internal scratch']
  #allocation2 [shape = 'f32[9,8192]{1,0:T(8,128)}', space=vmem, size = 0x80000, scoped, tag = 'scratch operand']
  #allocation3 [shape = 'f32[144,2048]{1,0:T(8,128)}', space=vmem, size = 0x120000, scoped, tag = 'scratch operand']
  #allocation4 [shape = 'f32[1,1]{1,0:T(1,128)S(1)}', space=vmem, size = 0x200, scoped, tag = 'scoped memory for conv_ae_forward.1']
  %s0 = inlined_call_operand.vmem [shape: f32[1,1,8192], index: 0, kind: input, shape index: {}]
  %s1 = inlined_call_operand.vmem [shape: f32[16,9], index: 1, kind: input, shape index: {}]
  %s2 = inlined_call_operand.vmem [shape: f32[16,1], index: 2, kind: input, shape index: {}]
  %s3 = inlined_call_operand.vmem [shape: f32[4,144], index: 3, kind: input, shape index: {}]
  %s4 = inlined_call_operand.vmem [shape: f32[4,1], index: 4, kind: input, shape index: {}]
  %s5 = inlined_call_operand.vmem [shape: f32[64,4], index: 5, kind: input, shape index: {}]
  %s6 = inlined_call_operand.vmem [shape: f32[64,1], index: 6, kind: input, shape index: {}]
  %s7 = inlined_call_operand.vmem [shape: f32[16,64], index: 7, kind: input, shape index: {}]
  %s8 = inlined_call_operand.<no memory space> [shape: f32[1,1], index: 8, kind: input, shape index: {}]
  %s9 = inlined_call_operand.vmem [shape: f32[1,16,512], index: 9, kind: output, shape index: {}]
  %s10 = sld [smem:[#allocation0]]
  $region46: #{conv_ae_forward.1} parent=0
    _
  %s12 = ssub.s32 1, %s10
  %s13 = scalar_select 0, %s12, %s10
  %v14 = vstv %s8
  %15 = vst [vmem:[#allocation4] sm:$0x1] %v14
  // Predicated region
  $region2: #{conv_ae_forward.1} parent=0 // pred_check
    _
  $region3: #{conv_ae_forward.1} parent=0 // pred_check_branch
    %17 = sbr.rel (0) target = $region5
  $region4: #{conv_ae_forward.1} parent=0 // pred_region
    _
  $region5: #{conv_ae_forward.1} parent=0 // pred_fallthru
    _
  // Predicated region
  $region6: #{conv_ae_forward.1} parent=0 // pred_check
    _
  $region7: #{conv_ae_forward.1} parent=0 // pred_check_branch
    %19 = sbr.rel (0) target = $region9
  $region8: #{conv_ae_forward.1} parent=0 // pred_region
    _
  $region9: #{conv_ae_forward.1} parent=0 // pred_fallthru
    _
  // Predicated region
  $region10: #{conv_ae_forward.1} parent=0 // pred_check
    _
  $region11: #{conv_ae_forward.1} parent=0 // pred_check_branch
    %21 = sbr.rel (0) target = $region13
  $region12: #{conv_ae_forward.1} parent=0 // pred_region
    _
  $region13: #{conv_ae_forward.1} parent=0 // pred_fallthru
    _
  // Predicated region
  $region14: #{conv_ae_forward.1} parent=0 // pred_check
    _
  $region15: #{conv_ae_forward.1} parent=0 // pred_check_branch
    %23 = sbr.rel (0) target = $region17
  $region16: #{conv_ae_forward.1} parent=0 // pred_region
    _
  $region17: #{conv_ae_forward.1} parent=0 // pred_fallthru
    _
  // Predicated region
  $region18: #{conv_ae_forward.1} parent=0 // pred_check
    _
  $region19: #{conv_ae_forward.1} parent=0 // pred_check_branch
    %25 = sbr.rel (0) target = $region21
  $region20: #{conv_ae_forward.1} parent=0 // pred_region
    _
  $region21: #{conv_ae_forward.1} parent=0 // pred_fallthru
    _
  // Predicated region
  $region22: #{conv_ae_forward.1} parent=0 // pred_check
    _
  $region23: #{conv_ae_forward.1} parent=0 // pred_check_branch
    %27 = sbr.rel (0) target = $region25
  $region24: #{conv_ae_forward.1} parent=0 // pred_region
    _
  $region25: #{conv_ae_forward.1} parent=0 // pred_fallthru
    _
  // Predicated region
  $region26: #{conv_ae_forward.1} parent=0 // pred_check
    _
  $region27: #{conv_ae_forward.1} parent=0 // pred_check_branch
    %29 = sbr.rel (0) target = $region29
  $region28: #{conv_ae_forward.1} parent=0 // pred_region
    _
  $region29: #{conv_ae_forward.1} parent=0 // pred_fallthru
    _
  // Predicated region
  $region30: #{conv_ae_forward.1} parent=0 // pred_check
    _
  $region31: #{conv_ae_forward.1} parent=0 // pred_check_branch
    %31 = sbr.rel (0) target = $region33
  $region32: #{conv_ae_forward.1} parent=0 // pred_region
    _
  $region33: #{conv_ae_forward.1} parent=0 // pred_fallthru
    _
  // Predicated region
  $region34: #{conv_ae_forward.1} parent=0 // pred_check
    _
  $region35: #{conv_ae_forward.1} parent=0 // pred_check_branch
    %33 = sbr.rel (0) target = $region37
  $region36: #{conv_ae_forward.1} parent=0 // pred_region
    _
  $region37: #{conv_ae_forward.1} parent=0 // pred_fallthru
    _
  %v35 = vld [vmem:[%s0] sm:$0xff]
  %v36 = vld [vmem:[%s0 + $0x8] sm:$0xff]
  %v37 = vld [vmem:[%s0 + $0x10] sm:$0xff]
  %v38 = vld [vmem:[%s0 + $0x18] sm:$0xff]
  %v39 = vld [vmem:[%s0 + $0x20] sm:$0xff]
  %v40 = vld [vmem:[%s0 + $0x28] sm:$0xff]
  %v41 = vld [vmem:[%s0 + $0x30] sm:$0xff]
  %v42 = vld [vmem:[%s0 + $0x38] sm:$0xff]
  %43 = vst [vmem:[#allocation2] ss:$8 sm:$0xf] 0.0
  %44 = vst [vmem:[#allocation2] ss:$8 sm:$0xf0] 0.0
  %45 = vst [vmem:[#allocation2 + $0x40] sm:$0x1] 0.0
  %v46 = vlaneseq
  %vm47 = vcmp.ge.s32.totalorder %v46, 0
  %vm48 = vcmp.lt.s32.totalorder %v46, 896
  %vm49 = vmand %vm47, %vm48
  %s50 = scalar_lea.vmem [#allocation2], 72
  %51 = vst.msk [vmem:[%s50] ss:$8 sm:$0xf] %vm49, %v35
  %52 = vst.msk [vmem:[%s50] ss:$8 sm:$0x70] %vm49, %v35
  %53 = vst [vmem:[#allocation2 + $0x80] sm:$0x1] 0.0
  %s54 = scalar_lea.vmem [#allocation2], 136
  %55 = vst.msk [vmem:[%s54] ss:$8 sm:$0xf] %vm49, %v36
  %56 = vst.msk [vmem:[%s54] ss:$8 sm:$0x70] %vm49, %v36
  %57 = vst [vmem:[#allocation2 + $0xc0] sm:$0x1] 0.0
  %s58 = scalar_lea.vmem [#allocation2], 200
  %59 = vst.msk [vmem:[%s58] ss:$8 sm:$0xf] %vm49, %v37
  %60 = vst.msk [vmem:[%s58] ss:$8 sm:$0x70] %vm49, %v37
  %61 = vst [vmem:[#allocation2 + $0x100] sm:$0x1] 0.0
  %s62 = scalar_lea.vmem [#allocation2], 264
  %63 = vst.msk [vmem:[%s62] ss:$8 sm:$0xf] %vm49, %v38
  %64 = vst.msk [vmem:[%s62] ss:$8 sm:$0x70] %vm49, %v38
  %65 = vst [vmem:[#allocation2 + $0x140] sm:$0x1] 0.0
  %s66 = scalar_lea.vmem [#allocation2], 328
  %67 = vst.msk [vmem:[%s66] ss:$8 sm:$0xf] %vm49, %v39
  %68 = vst.msk [vmem:[%s66] ss:$8 sm:$0x70] %vm49, %v39
  %69 = vst [vmem:[#allocation2 + $0x180] sm:$0x1] 0.0
  %s70 = scalar_lea.vmem [#allocation2], 392
  %71 = vst.msk [vmem:[%s70] ss:$8 sm:$0xf] %vm49, %v40
  %72 = vst.msk [vmem:[%s70] ss:$8 sm:$0x70] %vm49, %v40
  %73 = vst [vmem:[#allocation2 + $0x1c0] sm:$0x1] 0.0
  %s74 = scalar_lea.vmem [#allocation2], 456
  %75 = vst.msk [vmem:[%s74] ss:$8 sm:$0xf] %vm49, %v41
  %76 = vst.msk [vmem:[%s74] ss:$8 sm:$0x70] %vm49, %v41
  %s77 = scalar_lea.vmem [#allocation2], 1
  %78 = vst [vmem:[%s77] ss:$8 sm:$0xf] 0.0
  %79 = vst [vmem:[%s77] ss:$8 sm:$0xf0] 0.0
  %s80 = scalar_lea.vmem [#allocation2], 65
  %81 = vst [vmem:[%s80] ss:$8 sm:$0xf] %v35
  %82 = vst [vmem:[%s80] ss:$8 sm:$0xf0] %v35
  %s83 = scalar_lea.vmem [#allocation2], 129
  %84 = vst [vmem:[%s83] ss:$8 sm:$0xf] %v36
  %85 = vst [vmem:[%s83] ss:$8 sm:$0xf0] %v36
  %s86 = scalar_lea.vmem [#allocation2], 193
  %87 = vst [vmem:[%s86] ss:$8 sm:$0xf] %v37
  %88 = vst [vmem:[%s86] ss:$8 sm:$0xf0] %v37
  %s89 = scalar_lea.vmem [#allocation2], 257
  %90 = vst [vmem:[%s89] ss:$8 sm:$0xf] %v38
  %91 = vst [vmem:[%s89] ss:$8 sm:$0xf0] %v38
  %s92 = scalar_lea.vmem [#allocation2], 321
  %93 = vst [vmem:[%s92] ss:$8 sm:$0xf] %v39
  %94 = vst [vmem:[%s92] ss:$8 sm:$0xf0] %v39
  %s95 = scalar_lea.vmem [#allocation2], 385
  %96 = vst [vmem:[%s95] ss:$8 sm:$0xf] %v40
  %97 = vst [vmem:[%s95] ss:$8 sm:$0xf0] %v40
  %s98 = scalar_lea.vmem [#allocation2], 449
  %99 = vst [vmem:[%s98] ss:$8 sm:$0xf] %v41
  %100 = vst [vmem:[%s98] ss:$8 sm:$0xf0] %v41
  %s101 = scalar_lea.vmem [#allocation2], 2
  %102 = vst [vmem:[%s101] ss:$8 sm:$0xf] 0.0
  %103 = vst [vmem:[%s101] ss:$8 sm:$0xf0] 0.0
  %v105 = vrot.slane %v35, 1
  %s107 = scalar_lea.vmem [#allocation2], 66
  %108 = vst.msk [vmem:[%s107] ss:$8 sm:$0xf] %vm49, %v105
  %109 = vst.msk [vmem:[%s107] ss:$8 sm:$0x70] %vm49, %v105
  %110 = vst [vmem:[#allocation2 + $0x7a] sm:$0x1] 0.0
  %v112 = vrot.slane %v36, 1
  %s114 = scalar_lea.vmem [#allocation2], 130
  %115 = vst.msk [vmem:[%s114] ss:$8 sm:$0xf] %vm49, %v112
  %116 = vst.msk [vmem:[%s114] ss:$8 sm:$0x70] %vm49, %v112
  %117 = vst [vmem:[#allocation2 + $0xba] sm:$0x1] 0.0
  %v119 = vrot.slane %v37, 1
  %s121 = scalar_lea.vmem [#allocation2], 194
  %122 = vst.msk [vmem:[%s121] ss:$8 sm:$0xf] %vm49, %v119
  %123 = vst.msk [vmem:[%s121] ss:$8 sm:$0x70] %vm49, %v119
  %124 = vst [vmem:[#allocation2 + $0xfa] sm:$0x1] 0.0
  %v126 = vrot.slane %v38, 1
  %s128 = scalar_lea.vmem [#allocation2], 258
  %129 = vst.msk [vmem:[%s128] ss:$8 sm:$0xf] %vm49, %v126
  %130 = vst.msk [vmem:[%s128] ss:$8 sm:$0x70] %vm49, %v126
  %131 = vst [vmem:[#allocation2 + $0x13a] sm:$0x1] 0.0
  %v133 = vrot.slane %v39, 1
  %s135 = scalar_lea.vmem [#allocation2], 322
  %136 = vst.msk [vmem:[%s135] ss:$8 sm:$0xf] %vm49, %v133
  %137 = vst.msk [vmem:[%s135] ss:$8 sm:$0x70] %vm49, %v133
  %138 = vst [vmem:[#allocation2 + $0x17a] sm:$0x1] 0.0
  %v140 = vrot.slane %v40, 1
  %s142 = scalar_lea.vmem [#allocation2], 386
  %143 = vst.msk [vmem:[%s142] ss:$8 sm:$0xf] %vm49, %v140
  %144 = vst.msk [vmem:[%s142] ss:$8 sm:$0x70] %vm49, %v140
  %145 = vst [vmem:[#allocation2 + $0x1ba] sm:$0x1] 0.0
  %v147 = vrot.slane %v41, 1
  %s149 = scalar_lea.vmem [#allocation2], 450
  %150 = vst.msk [vmem:[%s149] ss:$8 sm:$0xf] %vm49, %v147
  %151 = vst.msk [vmem:[%s149] ss:$8 sm:$0x70] %vm49, %v147
  %152 = vst [vmem:[#allocation2 + $0x1fa] sm:$0x1] 0.0
  %153 = vst [vmem:[#allocation2 + $0x3] sm:$0x1] 0.0
  %s154 = scalar_lea.vmem [#allocation2], 11
  %155 = vst.msk [vmem:[%s154] ss:$8 sm:$0xf] %vm49, %v35
  %156 = vst.msk [vmem:[%s154] ss:$8 sm:$0x70] %vm49, %v35
  %157 = vst [vmem:[#allocation2 + $0x43] sm:$0x1] 0.0
  %s158 = scalar_lea.vmem [#allocation2], 75
  %159 = vst.msk [vmem:[%s158] ss:$8 sm:$0xf] %vm49, %v36
  %160 = vst.msk [vmem:[%s158] ss:$8 sm:$0x70] %vm49, %v36
  %161 = vst [vmem:[#allocation2 + $0x83] sm:$0x1] 0.0
  %s162 = scalar_lea.vmem [#allocation2], 139
  %163 = vst.msk [vmem:[%s162] ss:$8 sm:$0xf] %vm49, %v37
  %164 = vst.msk [vmem:[%s162] ss:$8 sm:$0x70] %vm49, %v37
  %165 = vst [vmem:[#allocation2 + $0xc3] sm:$0x1] 0.0
  %s166 = scalar_lea.vmem [#allocation2], 203
  %167 = vst.msk [vmem:[%s166] ss:$8 sm:$0xf] %vm49, %v38
  %168 = vst.msk [vmem:[%s166] ss:$8 sm:$0x70] %vm49, %v38
  %169 = vst [vmem:[#allocation2 + $0x103] sm:$0x1] 0.0
  %s170 = scalar_lea.vmem [#allocation2], 267
  %171 = vst.msk [vmem:[%s170] ss:$8 sm:$0xf] %vm49, %v39
  %172 = vst.msk [vmem:[%s170] ss:$8 sm:$0x70] %vm49, %v39
  %173 = vst [vmem:[#allocation2 + $0x143] sm:$0x1] 0.0
  %s174 = scalar_lea.vmem [#allocation2], 331
  %175 = vst.msk [vmem:[%s174] ss:$8 sm:$0xf] %vm49, %v40
  %176 = vst.msk [vmem:[%s174] ss:$8 sm:$0x70] %vm49, %v40
  %177 = vst [vmem:[#allocation2 + $0x183] sm:$0x1] 0.0
  %s178 = scalar_lea.vmem [#allocation2], 395
  %179 = vst.msk [vmem:[%s178] ss:$8 sm:$0xf] %vm49, %v41
  %180 = vst.msk [vmem:[%s178] ss:$8 sm:$0x70] %vm49, %v41
  %181 = vst [vmem:[#allocation2 + $0x1c3] sm:$0x1] 0.0
  %s182 = scalar_lea.vmem [#allocation2], 459
  %183 = vst.msk [vmem:[%s182] ss:$8 sm:$0xf] %vm49, %v42
  %184 = vst.msk [vmem:[%s182] ss:$8 sm:$0x70] %vm49, %v42
  %s185 = scalar_lea.vmem [#allocation2], 4
  %186 = vst [vmem:[%s185] ss:$8 sm:$0xf] %v35
  %187 = vst [vmem:[%s185] ss:$8 sm:$0xf0] %v35
  %s188 = scalar_lea.vmem [#allocation2], 68
  %189 = vst [vmem:[%s188] ss:$8 sm:$0xf] %v36
  %190 = vst [vmem:[%s188] ss:$8 sm:$0xf0] %v36
  %s191 = scalar_lea.vmem [#allocation2], 132
  %192 = vst [vmem:[%s191] ss:$8 sm:$0xf] %v37
  %193 = vst [vmem:[%s191] ss:$8 sm:$0xf0] %v37
  %s194 = scalar_lea.vmem [#allocation2], 196
  %195 = vst [vmem:[%s194] ss:$8 sm:$0xf] %v38
  %196 = vst [vmem:[%s194] ss:$8 sm:$0xf0] %v38
  %s197 = scalar_lea.vmem [#allocation2], 260
  %198 = vst [vmem:[%s197] ss:$8 sm:$0xf] %v39
  %199 = vst [vmem:[%s197] ss:$8 sm:$0xf0] %v39
  %s200 = scalar_lea.vmem [#allocation2], 324
  %201 = vst [vmem:[%s200] ss:$8 sm:$0xf] %v40
  %202 = vst [vmem:[%s200] ss:$8 sm:$0xf0] %v40
  %s203 = scalar_lea.vmem [#allocation2], 388
  %204 = vst [vmem:[%s203] ss:$8 sm:$0xf] %v41
  %205 = vst [vmem:[%s203] ss:$8 sm:$0xf0] %v41
  %s206 = scalar_lea.vmem [#allocation2], 452
  %207 = vst [vmem:[%s206] ss:$8 sm:$0xf] %v42
  %208 = vst [vmem:[%s206] ss:$8 sm:$0xf0] %v42
  %s209 = scalar_lea.vmem [#allocation2], 5
  %210 = vst.msk [vmem:[%s209] ss:$8 sm:$0xf] %vm49, %v105
  %211 = vst.msk [vmem:[%s209] ss:$8 sm:$0x70] %vm49, %v105
  %212 = vst [vmem:[#allocation2 + $0x3d] sm:$0x1] 0.0
  %s213 = scalar_lea.vmem [#allocation2], 69
  %214 = vst.msk [vmem:[%s213] ss:$8 sm:$0xf] %vm49, %v112
  %215 = vst.msk [vmem:[%s213] ss:$8 sm:$0x70] %vm49, %v112
  %216 = vst [vmem:[#allocation2 + $0x7d] sm:$0x1] 0.0
  %s217 = scalar_lea.vmem [#allocation2], 133
  %218 = vst.msk [vmem:[%s217] ss:$8 sm:$0xf] %vm49, %v119
  %219 = vst.msk [vmem:[%s217] ss:$8 sm:$0x70] %vm49, %v119
  %220 = vst [vmem:[#allocation2 + $0xbd] sm:$0x1] 0.0
  %s221 = scalar_lea.vmem [#allocation2], 197
  %222 = vst.msk [vmem:[%s221] ss:$8 sm:$0xf] %vm49, %v126
  %223 = vst.msk [vmem:[%s221] ss:$8 sm:$0x70] %vm49, %v126
  %224 = vst [vmem:[#allocation2 + $0xfd] sm:$0x1] 0.0
  %s225 = scalar_lea.vmem [#allocation2], 261
  %226 = vst.msk [vmem:[%s225] ss:$8 sm:$0xf] %vm49, %v133
  %227 = vst.msk [vmem:[%s225] ss:$8 sm:$0x70] %vm49, %v133
  %228 = vst [vmem:[#allocation2 + $0x13d] sm:$0x1] 0.0
  %s229 = scalar_lea.vmem [#allocation2], 325
  %230 = vst.msk [vmem:[%s229] ss:$8 sm:$0xf] %vm49, %v140
  %231 = vst.msk [vmem:[%s229] ss:$8 sm:$0x70] %vm49, %v140
  %232 = vst [vmem:[#allocation2 + $0x17d] sm:$0x1] 0.0
  %s233 = scalar_lea.vmem [#allocation2], 389
  %234 = vst.msk [vmem:[%s233] ss:$8 sm:$0xf] %vm49, %v147
  %235 = vst.msk [vmem:[%s233] ss:$8 sm:$0x70] %vm49, %v147
  %236 = vst [vmem:[#allocation2 + $0x1bd] sm:$0x1] 0.0
  %v238 = vrot.slane %v42, 1
  %s240 = scalar_lea.vmem [#allocation2], 453
  %241 = vst.msk [vmem:[%s240] ss:$8 sm:$0xf] %vm49, %v238
  %242 = vst.msk [vmem:[%s240] ss:$8 sm:$0x70] %vm49, %v238
  %243 = vst [vmem:[#allocation2 + $0x1fd] sm:$0x1] 0.0
  %244 = vst [vmem:[#allocation2 + $0x6] sm:$0x1] 0.0
  %s245 = scalar_lea.vmem [#allocation2], 14
  %246 = vst.msk [vmem:[%s245] ss:$8 sm:$0xf] %vm49, %v36
  %247 = vst.msk [vmem:[%s245] ss:$8 sm:$0x70] %vm49, %v36
  %248 = vst [vmem:[#allocation2 + $0x46] sm:$0x1] 0.0
  %s249 = scalar_lea.vmem [#allocation2], 78
  %250 = vst.msk [vmem:[%s249] ss:$8 sm:$0xf] %vm49, %v37
  %251 = vst.msk [vmem:[%s249] ss:$8 sm:$0x70] %vm49, %v37
  %252 = vst [vmem:[#allocation2 + $0x86] sm:$0x1] 0.0
  %s253 = scalar_lea.vmem [#allocation2], 142
  %254 = vst.msk [vmem:[%s253] ss:$8 sm:$0xf] %vm49, %v38
  %255 = vst.msk [vmem:[%s253] ss:$8 sm:$0x70] %vm49, %v38
  %256 = vst [vmem:[#allocation2 + $0xc6] sm:$0x1] 0.0
  %s257 = scalar_lea.vmem [#allocation2], 206
  %258 = vst.msk [vmem:[%s257] ss:$8 sm:$0xf] %vm49, %v39
  %259 = vst.msk [vmem:[%s257] ss:$8 sm:$0x70] %vm49, %v39
  %260 = vst [vmem:[#allocation2 + $0x106] sm:$0x1] 0.0
  %s261 = scalar_lea.vmem [#allocation2], 270
  %262 = vst.msk [vmem:[%s261] ss:$8 sm:$0xf] %vm49, %v40
  %263 = vst.msk [vmem:[%s261] ss:$8 sm:$0x70] %vm49, %v40
  %264 = vst [vmem:[#allocation2 + $0x146] sm:$0x1] 0.0
  %s265 = scalar_lea.vmem [#allocation2], 334
  %266 = vst.msk [vmem:[%s265] ss:$8 sm:$0xf] %vm49, %v41
  %267 = vst.msk [vmem:[%s265] ss:$8 sm:$0x70] %vm49, %v41
  %268 = vst [vmem:[#allocation2 + $0x186] sm:$0x1] 0.0
  %s269 = scalar_lea.vmem [#allocation2], 398
  %270 = vst.msk [vmem:[%s269] ss:$8 sm:$0xf] %vm49, %v42
  %271 = vst.msk [vmem:[%s269] ss:$8 sm:$0x70] %vm49, %v42
  %s272 = scalar_lea.vmem [#allocation2], 454
  %273 = vst [vmem:[%s272] ss:$8 sm:$0xf] 0.0
  %274 = vst [vmem:[%s272] ss:$8 sm:$0xf0] 0.0
  %s275 = scalar_lea.vmem [#allocation2], 7
  %276 = vst [vmem:[%s275] ss:$8 sm:$0xf] %v36
  %277 = vst [vmem:[%s275] ss:$8 sm:$0xf0] %v36
  %s278 = scalar_lea.vmem [#allocation2], 71
  %279 = vst [vmem:[%s278] ss:$8 sm:$0xf] %v37
  %280 = vst [vmem:[%s278] ss:$8 sm:$0xf0] %v37
  %s281 = scalar_lea.vmem [#allocation2], 135
  %282 = vst [vmem:[%s281] ss:$8 sm:$0xf] %v38
  %283 = vst [vmem:[%s281] ss:$8 sm:$0xf0] %v38
  %s284 = scalar_lea.vmem [#allocation2], 199
  %285 = vst [vmem:[%s284] ss:$8 sm:$0xf] %v39
  %286 = vst [vmem:[%s284] ss:$8 sm:$0xf0] %v39
  %s287 = scalar_lea.vmem [#allocation2], 263
  %288 = vst [vmem:[%s287] ss:$8 sm:$0xf] %v40
  %289 = vst [vmem:[%s287] ss:$8 sm:$0xf0] %v40
  %s290 = scalar_lea.vmem [#allocation2], 327
  %291 = vst [vmem:[%s290] ss:$8 sm:$0xf] %v41
  %292 = vst [vmem:[%s290] ss:$8 sm:$0xf0] %v41
  %s293 = scalar_lea.vmem [#allocation2], 391
  %294 = vst [vmem:[%s293] ss:$8 sm:$0xf] %v42
  %295 = vst [vmem:[%s293] ss:$8 sm:$0xf0] %v42
  %s296 = scalar_lea.vmem [#allocation2], 455
  %297 = vst [vmem:[%s296] ss:$8 sm:$0xf] 0.0
  %298 = vst [vmem:[%s296] ss:$8 sm:$0xf0] 0.0
  %s299 = scalar_lea.vmem [#allocation2], 512
  %300 = vst.msk [vmem:[%s299] ss:$8 sm:$0xf] %vm49, %v112
  %301 = vst.msk [vmem:[%s299] ss:$8 sm:$0x70] %vm49, %v112
  %302 = vst [vmem:[#allocation2 + $0x238] sm:$0x1] 0.0
  %s303 = scalar_lea.vmem [#allocation2], 576
  %304 = vst.msk [vmem:[%s303] ss:$8 sm:$0xf] %vm49, %v119
  %305 = vst.msk [vmem:[%s303] ss:$8 sm:$0x70] %vm49, %v119
  %306 = vst [vmem:[#allocation2 + $0x278] sm:$0x1] 0.0
  %s307 = scalar_lea.vmem [#allocation2], 640
  %308 = vst.msk [vmem:[%s307] ss:$8 sm:$0xf] %vm49, %v126
  %309 = vst.msk [vmem:[%s307] ss:$8 sm:$0x70] %vm49, %v126
  %310 = vst [vmem:[#allocation2 + $0x2b8] sm:$0x1] 0.0
  %s311 = scalar_lea.vmem [#allocation2], 704
  %312 = vst.msk [vmem:[%s311] ss:$8 sm:$0xf] %vm49, %v133
  %313 = vst.msk [vmem:[%s311] ss:$8 sm:$0x70] %vm49, %v133
  %314 = vst [vmem:[#allocation2 + $0x2f8] sm:$0x1] 0.0
  %s315 = scalar_lea.vmem [#allocation2], 768
  %316 = vst.msk [vmem:[%s315] ss:$8 sm:$0xf] %vm49, %v140
  %317 = vst.msk [vmem:[%s315] ss:$8 sm:$0x70] %vm49, %v140
  %318 = vst [vmem:[#allocation2 + $0x338] sm:$0x1] 0.0
  %s319 = scalar_lea.vmem [#allocation2], 832
  %320 = vst.msk [vmem:[%s319] ss:$8 sm:$0xf] %vm49, %v147
  %321 = vst.msk [vmem:[%s319] ss:$8 sm:$0x70] %vm49, %v147
  %322 = vst [vmem:[#allocation2 + $0x378] sm:$0x1] 0.0
  %s323 = scalar_lea.vmem [#allocation2], 896
  %324 = vst.msk [vmem:[%s323] ss:$8 sm:$0xf] %vm49, %v238
  %325 = vst.msk [vmem:[%s323] ss:$8 sm:$0x70] %vm49, %v238
  %326 = vst [vmem:[#allocation2 + $0x3b8] sm:$0x1] 0.0
  %s327 = scalar_lea.vmem [#allocation2], 960
  %328 = vst [vmem:[%s327] ss:$8 sm:$0xf] 0.0
  %329 = vst [vmem:[%s327] ss:$8 sm:$0xf0] 0.0
  %v330 = vld [vmem:[%s1] sm:$0xff]
  %v331 = vld [vmem:[%s1 + $0x8] sm:$0xff]
  %v332 = vld [vmem:[#allocation2] sm:$0xff]
  %v333 = vld [vmem:[#allocation2 + $0x8] sm:$0xff]
  %v334 = vld [vmem:[#allocation2 + $0x10] sm:$0xff]
  %v335 = vld [vmem:[#allocation2 + $0x18] sm:$0xff]
  %v336 = vld [vmem:[#allocation2 + $0x20] sm:$0xff]
  %v337 = vld [vmem:[#allocation2 + $0x28] sm:$0xff]
  %v338 = vld [vmem:[#allocation2 + $0x30] sm:$0xff]
  %v339 = vld [vmem:[#allocation2 + $0x38] sm:$0xff]
  %v340 = vld [vmem:[#allocation2 + $0x40] sm:$0xff]
  %v341 = vld [vmem:[#allocation2 + $0x48] sm:$0xff]
  %v342 = vld [vmem:[#allocation2 + $0x50] sm:$0xff]
  %v343 = vld [vmem:[#allocation2 + $0x58] sm:$0xff]
  %v344 = vld [vmem:[#allocation2 + $0x60] sm:$0xff]
  %v345 = vld [vmem:[#allocation2 + $0x68] sm:$0xff]
  %v346 = vld [vmem:[#allocation2 + $0x70] sm:$0xff]
  %v347 = vld [vmem:[#allocation2 + $0x78] sm:$0xff]
  %v348 = vld [vmem:[#allocation2 + $0x80] sm:$0xff]
  %v349 = vld [vmem:[#allocation2 + $0x88] sm:$0xff]
  %v350 = vld [vmem:[#allocation2 + $0x90] sm:$0xff]
  %v351 = vld [vmem:[#allocation2 + $0x98] sm:$0xff]
  %v352 = vld [vmem:[#allocation2 + $0xa0] sm:$0xff]
  %v353 = vld [vmem:[#allocation2 + $0xa8] sm:$0xff]
  %v354 = vld [vmem:[#allocation2 + $0xb0] sm:$0xff]
  %v355 = vld [vmem:[#allocation2 + $0xb8] sm:$0xff]
  %v356 = vld [vmem:[#allocation2 + $0xc0] sm:$0xff]
  %v357 = vld [vmem:[#allocation2 + $0xc8] sm:$0xff]
  %v358 = vld [vmem:[#allocation2 + $0xd0] sm:$0xff]
  %v359 = vld [vmem:[#allocation2 + $0xd8] sm:$0xff]
  %v360 = vld [vmem:[#allocation2 + $0xe0] sm:$0xff]
  %v361 = vld [vmem:[#allocation2 + $0xe8] sm:$0xff]
  %v362 = vld [vmem:[#allocation2 + $0xf0] sm:$0xff]
  %v363 = vld [vmem:[#allocation2 + $0xf8] sm:$0xff]
  %v364 = vld [vmem:[#allocation2 + $0x100] sm:$0xff]
  %v365 = vld [vmem:[#allocation2 + $0x108] sm:$0xff]
  %v366 = vld [vmem:[#allocation2 + $0x110] sm:$0xff]
  %v367 = vld [vmem:[#allocation2 + $0x118] sm:$0xff]
  %v368 = vld [vmem:[#allocation2 + $0x120] sm:$0xff]
  %v369 = vld [vmem:[#allocation2 + $0x128] sm:$0xff]
  %v370 = vld [vmem:[#allocation2 + $0x130] sm:$0xff]
  %v371 = vld [vmem:[#allocation2 + $0x138] sm:$0xff]
  %v372 = vld [vmem:[#allocation2 + $0x140] sm:$0xff]
  %v373 = vld [vmem:[#allocation2 + $0x148] sm:$0xff]
  %v374 = vld [vmem:[#allocation2 + $0x150] sm:$0xff]
  %v375 = vld [vmem:[#allocation2 + $0x158] sm:$0xff]
  %v376 = vld [vmem:[#allocation2 + $0x160] sm:$0xff]
  %v377 = vld [vmem:[#allocation2 + $0x168] sm:$0xff]
  %v378 = vld [vmem:[#allocation2 + $0x170] sm:$0xff]
  %v379 = vld [vmem:[#allocation2 + $0x178] sm:$0xff]
  %v380 = vld [vmem:[#allocation2 + $0x180] sm:$0xff]
  %v381 = vld [vmem:[#allocation2 + $0x188] sm:$0xff]
  %v382 = vld [vmem:[#allocation2 + $0x190] sm:$0xff]
  %v383 = vld [vmem:[#allocation2 + $0x198] sm:$0xff]
  %v384 = vld [vmem:[#allocation2 + $0x1a0] sm:$0xff]
  %v385 = vld [vmem:[#allocation2 + $0x1a8] sm:$0xff]
  %v386 = vld [vmem:[#allocation2 + $0x1b0] sm:$0xff]
  %v387 = vld [vmem:[#allocation2 + $0x1b8] sm:$0xff]
  %v388 = vld [vmem:[#allocation2 + $0x1c0] sm:$0xff]
  %v389 = vld [vmem:[#allocation2 + $0x1c8] sm:$0xff]
  %v390 = vld [vmem:[#allocation2 + $0x1d0] sm:$0xff]
  %v391 = vld [vmem:[#allocation2 + $0x1d8] sm:$0xff]
  %v392 = vld [vmem:[#allocation2 + $0x1e0] sm:$0xff]
  %v393 = vld [vmem:[#allocation2 + $0x1e8] sm:$0xff]
  %v394 = vld [vmem:[#allocation2 + $0x1f0] sm:$0xff]
  %v395 = vld [vmem:[#allocation2 + $0x1f8] sm:$0xff]
  %v396 = vld [vmem:[#allocation2 + $0x200] sm:$0x1]
  %v397 = vld [vmem:[#allocation2 + $0x208] sm:$0x1]
  %v398 = vld [vmem:[#allocation2 + $0x210] sm:$0x1]
  %v399 = vld [vmem:[#allocation2 + $0x218] sm:$0x1]
  %v400 = vld [vmem:[#allocation2 + $0x220] sm:$0x1]
  %v401 = vld [vmem:[#allocation2 + $0x228] sm:$0x1]
  %v402 = vld [vmem:[#allocation2 + $0x230] sm:$0x1]
  %v403 = vld [vmem:[#allocation2 + $0x238] sm:$0x1]
  %v404 = vld [vmem:[#allocation2 + $0x240] sm:$0x1]
  %v405 = vld [vmem:[#allocation2 + $0x248] sm:$0x1]
  %v406 = vld [vmem:[#allocation2 + $0x250] sm:$0x1]
  %v407 = vld [vmem:[#allocation2 + $0x258] sm:$0x1]
  %v408 = vld [vmem:[#allocation2 + $0x260] sm:$0x1]
  %v409 = vld [vmem:[#allocation2 + $0x268] sm:$0x1]
  %v410 = vld [vmem:[#allocation2 + $0x270] sm:$0x1]
  %v411 = vld [vmem:[#allocation2 + $0x278] sm:$0x1]
  %v412 = vld [vmem:[#allocation2 + $0x280] sm:$0x1]
  %v413 = vld [vmem:[#allocation2 + $0x288] sm:$0x1]
  %v414 = vld [vmem:[#allocation2 + $0x290] sm:$0x1]
  %v415 = vld [vmem:[#allocation2 + $0x298] sm:$0x1]
  %v416 = vld [vmem:[#allocation2 + $0x2a0] sm:$0x1]
  %v417 = vld [vmem:[#allocation2 + $0x2a8] sm:$0x1]
  %v418 = vld [vmem:[#allocation2 + $0x2b0] sm:$0x1]
  %v419 = vld [vmem:[#allocation2 + $0x2b8] sm:$0x1]
  %v420 = vld [vmem:[#allocation2 + $0x2c0] sm:$0x1]
  %v421 = vld [vmem:[#allocation2 + $0x2c8] sm:$0x1]
  %v422 = vld [vmem:[#allocation2 + $0x2d0] sm:$0x1]
  %v423 = vld [vmem:[#allocation2 + $0x2d8] sm:$0x1]
  %v424 = vld [vmem:[#allocation2 + $0x2e0] sm:$0x1]
  %v425 = vld [vmem:[#allocation2 + $0x2e8] sm:$0x1]
  %v426 = vld [vmem:[#allocation2 + $0x2f0] sm:$0x1]
  %v427 = vld [vmem:[#allocation2 + $0x2f8] sm:$0x1]
  %v428 = vld [vmem:[#allocation2 + $0x300] sm:$0x1]
  %v429 = vld [vmem:[#allocation2 + $0x308] sm:$0x1]
  %v430 = vld [vmem:[#allocation2 + $0x310] sm:$0x1]
  %v431 = vld [vmem:[#allocation2 + $0x318] sm:$0x1]
  %v432 = vld [vmem:[#allocation2 + $0x320] sm:$0x1]
  %v433 = vld [vmem:[#allocation2 + $0x328] sm:$0x1]
  %v434 = vld [vmem:[#allocation2 + $0x330] sm:$0x1]
  %v435 = vld [vmem:[#allocation2 + $0x338] sm:$0x1]
  %v436 = vld [vmem:[#allocation2 + $0x340] sm:$0x1]
  %v437 = vld [vmem:[#allocation2 + $0x348] sm:$0x1]
  %v438 = vld [vmem:[#allocation2 + $0x350] sm:$0x1]
  %v439 = vld [vmem:[#allocation2 + $0x358] sm:$0x1]
  %v440 = vld [vmem:[#allocation2 + $0x360] sm:$0x1]
  %v441 = vld [vmem:[#allocation2 + $0x368] sm:$0x1]
  %v442 = vld [vmem:[#allocation2 + $0x370] sm:$0x1]
  %v443 = vld [vmem:[#allocation2 + $0x378] sm:$0x1]
  %v444 = vld [vmem:[#allocation2 + $0x380] sm:$0x1]
  %v445 = vld [vmem:[#allocation2 + $0x388] sm:$0x1]
  %v446 = vld [vmem:[#allocation2 + $0x390] sm:$0x1]
  %v447 = vld [vmem:[#allocation2 + $0x398] sm:$0x1]
  %v448 = vld [vmem:[#allocation2 + $0x3a0] sm:$0x1]
  %v449 = vld [vmem:[#allocation2 + $0x3a8] sm:$0x1]
  %v450 = vld [vmem:[#allocation2 + $0x3b0] sm:$0x1]
  %v451 = vld [vmem:[#allocation2 + $0x3b8] sm:$0x1]
  %v452 = vld [vmem:[#allocation2 + $0x3c0] sm:$0x1]
  %v453 = vld [vmem:[#allocation2 + $0x3c8] sm:$0x1]
  %v454 = vld [vmem:[#allocation2 + $0x3d0] sm:$0x1]
  %v455 = vld [vmem:[#allocation2 + $0x3d8] sm:$0x1]
  %v456 = vld [vmem:[#allocation2 + $0x3e0] sm:$0x1]
  %v457 = vld [vmem:[#allocation2 + $0x3e8] sm:$0x1]
  %v458 = vld [vmem:[#allocation2 + $0x3f0] sm:$0x1]
  %v459 = vld [vmem:[#allocation2 + $0x3f8] sm:$0x1]
  %v460 = vpack.c.bf16 %v331, %v330
  %v461 = vunpack.c.l.bf16 %v460
  %v462 = vunpack.c.h.bf16 %v460
  %v463 = vsub.f32 %v330, %v461
  %v464 = vsub.f32 %v331, %v462
  %v465 = vpack.c.bf16 %v464, %v463
  %v466 = vpack.c.bf16 %v396, %v332
  %v467 = vpack.c.bf16 %v397, %v333
  %v468 = vpack.c.bf16 %v398, %v334
  %v469 = vpack.c.bf16 %v399, %v335
  %v470 = vpack.c.bf16 %v400, %v336
  %v471 = vpack.c.bf16 %v401, %v337
  %v472 = vpack.c.bf16 %v402, %v338
  %v473 = vpack.c.bf16 %v403, %v339
  %v474 = vpack.c.bf16 %v404, %v340
  %v475 = vpack.c.bf16 %v405, %v341
  %v476 = vpack.c.bf16 %v406, %v342
  %v477 = vpack.c.bf16 %v407, %v343
  %v478 = vpack.c.bf16 %v408, %v344
  %v479 = vpack.c.bf16 %v409, %v345
  %v480 = vpack.c.bf16 %v410, %v346
  %v481 = vpack.c.bf16 %v411, %v347
  %v482 = vpack.c.bf16 %v412, %v348
  %v483 = vpack.c.bf16 %v413, %v349
  %v484 = vpack.c.bf16 %v414, %v350
  %v485 = vpack.c.bf16 %v415, %v351
  %v486 = vpack.c.bf16 %v416, %v352
  %v487 = vpack.c.bf16 %v417, %v353
  %v488 = vpack.c.bf16 %v418, %v354
  %v489 = vpack.c.bf16 %v419, %v355
  %v490 = vpack.c.bf16 %v420, %v356
  %v491 = vpack.c.bf16 %v421, %v357
  %v492 = vpack.c.bf16 %v422, %v358
  %v493 = vpack.c.bf16 %v423, %v359
  %v494 = vpack.c.bf16 %v424, %v360
  %v495 = vpack.c.bf16 %v425, %v361
  %v496 = vpack.c.bf16 %v426, %v362
  %v497 = vpack.c.bf16 %v427, %v363
  %v498 = vpack.c.bf16 %v428, %v364
  %v499 = vpack.c.bf16 %v429, %v365
  %v500 = vpack.c.bf16 %v430, %v366
  %v501 = vpack.c.bf16 %v431, %v367
  %v502 = vpack.c.bf16 %v432, %v368
  %v503 = vpack.c.bf16 %v433, %v369
  %v504 = vpack.c.bf16 %v434, %v370
  %v505 = vpack.c.bf16 %v435, %v371
  %v506 = vpack.c.bf16 %v436, %v372
  %v507 = vpack.c.bf16 %v437, %v373
  %v508 = vpack.c.bf16 %v438, %v374
  %v509 = vpack.c.bf16 %v439, %v375
  %v510 = vpack.c.bf16 %v440, %v376
  %v511 = vpack.c.bf16 %v441, %v377
  %v512 = vpack.c.bf16 %v442, %v378
  %v513 = vpack.c.bf16 %v443, %v379
  %v514 = vpack.c.bf16 %v444, %v380
  %v515 = vpack.c.bf16 %v445, %v381
  %v516 = vpack.c.bf16 %v446, %v382
  %v517 = vpack.c.bf16 %v447, %v383
  %v518 = vpack.c.bf16 %v448, %v384
  %v519 = vpack.c.bf16 %v449, %v385
  %v520 = vpack.c.bf16 %v450, %v386
  %v521 = vpack.c.bf16 %v451, %v387
  %v522 = vpack.c.bf16 %v452, %v388
  %v523 = vpack.c.bf16 %v453, %v389
  %v524 = vpack.c.bf16 %v454, %v390
  %v525 = vpack.c.bf16 %v455, %v391
  %v526 = vpack.c.bf16 %v456, %v392
  %v527 = vpack.c.bf16 %v457, %v393
  %v528 = vpack.c.bf16 %v458, %v394
  %v529 = vpack.c.bf16 %v459, %v395
  %v530 = vunpack.c.l.bf16 %v466
  %v531 = vunpack.c.l.bf16 %v467
  %v532 = vunpack.c.l.bf16 %v468
  %v533 = vunpack.c.l.bf16 %v469
  %v534 = vunpack.c.l.bf16 %v470
  %v535 = vunpack.c.l.bf16 %v471
  %v536 = vunpack.c.l.bf16 %v472
  %v537 = vunpack.c.l.bf16 %v473
  %v538 = vunpack.c.l.bf16 %v474
  %v539 = vunpack.c.l.bf16 %v475
  %v540 = vunpack.c.l.bf16 %v476
  %v541 = vunpack.c.l.bf16 %v477
  %v542 = vunpack.c.l.bf16 %v478
  %v543 = vunpack.c.l.bf16 %v479
  %v544 = vunpack.c.l.bf16 %v480
  %v545 = vunpack.c.l.bf16 %v481
  %v546 = vunpack.c.l.bf16 %v482
  %v547 = vunpack.c.l.bf16 %v483
  %v548 = vunpack.c.l.bf16 %v484
  %v549 = vunpack.c.l.bf16 %v485
  %v550 = vunpack.c.l.bf16 %v486
  %v551 = vunpack.c.l.bf16 %v487
  %v552 = vunpack.c.l.bf16 %v488
  %v553 = vunpack.c.l.bf16 %v489
  %v554 = vunpack.c.l.bf16 %v490
  %v555 = vunpack.c.l.bf16 %v491
  %v556 = vunpack.c.l.bf16 %v492
  %v557 = vunpack.c.l.bf16 %v493
  %v558 = vunpack.c.l.bf16 %v494
  %v559 = vunpack.c.l.bf16 %v495
  %v560 = vunpack.c.l.bf16 %v496
  %v561 = vunpack.c.l.bf16 %v497
  %v562 = vunpack.c.l.bf16 %v498
  %v563 = vunpack.c.l.bf16 %v499
  %v564 = vunpack.c.l.bf16 %v500
  %v565 = vunpack.c.l.bf16 %v501
  %v566 = vunpack.c.l.bf16 %v502
  %v567 = vunpack.c.l.bf16 %v503
  %v568 = vunpack.c.l.bf16 %v504
  %v569 = vunpack.c.l.bf16 %v505
  %v570 = vunpack.c.l.bf16 %v506
  %v571 = vunpack.c.l.bf16 %v507
  %v572 = vunpack.c.l.bf16 %v508
  %v573 = vunpack.c.l.bf16 %v509
  %v574 = vunpack.c.l.bf16 %v510
  %v575 = vunpack.c.l.bf16 %v511
  %v576 = vunpack.c.l.bf16 %v512
  %v577 = vunpack.c.l.bf16 %v513
  %v578 = vunpack.c.l.bf16 %v514
  %v579 = vunpack.c.l.bf16 %v515
  %v580 = vunpack.c.l.bf16 %v516
  %v581 = vunpack.c.l.bf16 %v517
  %v582 = vunpack.c.l.bf16 %v518
  %v583 = vunpack.c.l.bf16 %v519
  %v584 = vunpack.c.l.bf16 %v520
  %v585 = vunpack.c.l.bf16 %v521
  %v586 = vunpack.c.l.bf16 %v522
  %v587 = vunpack.c.l.bf16 %v523
  %v588 = vunpack.c.l.bf16 %v524
  %v589 = vunpack.c.l.bf16 %v525
  %v590 = vunpack.c.l.bf16 %v526
  %v591 = vunpack.c.l.bf16 %v527
  %v592 = vunpack.c.l.bf16 %v528
  %v593 = vunpack.c.l.bf16 %v529
  %v594 = vunpack.c.h.bf16 %v466
  %v595 = vunpack.c.h.bf16 %v467
  %v596 = vunpack.c.h.bf16 %v468
  %v597 = vunpack.c.h.bf16 %v469
  %v598 = vunpack.c.h.bf16 %v470
  %v599 = vunpack.c.h.bf16 %v471
  %v600 = vunpack.c.h.bf16 %v472
  %v601 = vunpack.c.h.bf16 %v473
  %v602 = vunpack.c.h.bf16 %v474
  %v603 = vunpack.c.h.bf16 %v475
  %v604 = vunpack.c.h.bf16 %v476
  %v605 = vunpack.c.h.bf16 %v477
  %v606 = vunpack.c.h.bf16 %v478
  %v607 = vunpack.c.h.bf16 %v479
  %v608 = vunpack.c.h.bf16 %v480
  %v609 = vunpack.c.h.bf16 %v481
  %v610 = vunpack.c.h.bf16 %v482
  %v611 = vunpack.c.h.bf16 %v483
  %v612 = vunpack.c.h.bf16 %v484
  %v613 = vunpack.c.h.bf16 %v485
  %v614 = vunpack.c.h.bf16 %v486
  %v615 = vunpack.c.h.bf16 %v487
  %v616 = vunpack.c.h.bf16 %v488
  %v617 = vunpack.c.h.bf16 %v489
  %v618 = vunpack.c.h.bf16 %v490
  %v619 = vunpack.c.h.bf16 %v491
  %v620 = vunpack.c.h.bf16 %v492
  %v621 = vunpack.c.h.bf16 %v493
  %v622 = vunpack.c.h.bf16 %v494
  %v623 = vunpack.c.h.bf16 %v495
  %v624 = vunpack.c.h.bf16 %v496
  %v625 = vunpack.c.h.bf16 %v497
  %v626 = vunpack.c.h.bf16 %v498
  %v627 = vunpack.c.h.bf16 %v499
  %v628 = vunpack.c.h.bf16 %v500
  %v629 = vunpack.c.h.bf16 %v501
  %v630 = vunpack.c.h.bf16 %v502
  %v631 = vunpack.c.h.bf16 %v503
  %v632 = vunpack.c.h.bf16 %v504
  %v633 = vunpack.c.h.bf16 %v505
  %v634 = vunpack.c.h.bf16 %v506
  %v635 = vunpack.c.h.bf16 %v507
  %v636 = vunpack.c.h.bf16 %v508
  %v637 = vunpack.c.h.bf16 %v509
  %v638 = vunpack.c.h.bf16 %v510
  %v639 = vunpack.c.h.bf16 %v511
  %v640 = vunpack.c.h.bf16 %v512
  %v641 = vunpack.c.h.bf16 %v513
  %v642 = vunpack.c.h.bf16 %v514
  %v643 = vunpack.c.h.bf16 %v515
  %v644 = vunpack.c.h.bf16 %v516
  %v645 = vunpack.c.h.bf16 %v517
  %v646 = vunpack.c.h.bf16 %v518
  %v647 = vunpack.c.h.bf16 %v519
  %v648 = vunpack.c.h.bf16 %v520
  %v649 = vunpack.c.h.bf16 %v521
  %v650 = vunpack.c.h.bf16 %v522
  %v651 = vunpack.c.h.bf16 %v523
  %v652 = vunpack.c.h.bf16 %v524
  %v653 = vunpack.c.h.bf16 %v525
  %v654 = vunpack.c.h.bf16 %v526
  %v655 = vunpack.c.h.bf16 %v527
  %v656 = vunpack.c.h.bf16 %v528
  %v657 = vunpack.c.h.bf16 %v529
  %v658 = vsub.f32 %v332, %v530
  %v659 = vsub.f32 %v333, %v531
  %v660 = vsub.f32 %v334, %v532
  %v661 = vsub.f32 %v335, %v533
  %v662 = vsub.f32 %v336, %v534
  %v663 = vsub.f32 %v337, %v535
  %v664 = vsub.f32 %v338, %v536
  %v665 = vsub.f32 %v339, %v537
  %v666 = vsub.f32 %v340, %v538
  %v667 = vsub.f32 %v341, %v539
  %v668 = vsub.f32 %v342, %v540
  %v669 = vsub.f32 %v343, %v541
  %v670 = vsub.f32 %v344, %v542
  %v671 = vsub.f32 %v345, %v543
  %v672 = vsub.f32 %v346, %v544
  %v673 = vsub.f32 %v347, %v545
  %v674 = vsub.f32 %v348, %v546
  %v675 = vsub.f32 %v349, %v547
  %v676 = vsub.f32 %v350, %v548
  %v677 = vsub.f32 %v351, %v549
  %v678 = vsub.f32 %v352, %v550
  %v679 = vsub.f32 %v353, %v551
  %v680 = vsub.f32 %v354, %v552
  %v681 = vsub.f32 %v355, %v553
  %v682 = vsub.f32 %v356, %v554
  %v683 = vsub.f32 %v357, %v555
  %v684 = vsub.f32 %v358, %v556
  %v685 = vsub.f32 %v359, %v557
  %v686 = vsub.f32 %v360, %v558
  %v687 = vsub.f32 %v361, %v559
  %v688 = vsub.f32 %v362, %v560
  %v689 = vsub.f32 %v363, %v561
  %v690 = vsub.f32 %v364, %v562
  %v691 = vsub.f32 %v365, %v563
  %v692 = vsub.f32 %v366, %v564
  %v693 = vsub.f32 %v367, %v565
  %v694 = vsub.f32 %v368, %v566
  %v695 = vsub.f32 %v369, %v567
  %v696 = vsub.f32 %v370, %v568
  %v697 = vsub.f32 %v371, %v569
  %v698 = vsub.f32 %v372, %v570
  %v699 = vsub.f32 %v373, %v571
  %v700 = vsub.f32 %v374, %v572
  %v701 = vsub.f32 %v375, %v573
  %v702 = vsub.f32 %v376, %v574
  %v703 = vsub.f32 %v377, %v575
  %v704 = vsub.f32 %v378, %v576
  %v705 = vsub.f32 %v379, %v577
  %v706 = vsub.f32 %v380, %v578
  %v707 = vsub.f32 %v381, %v579
  %v708 = vsub.f32 %v382, %v580
  %v709 = vsub.f32 %v383, %v581
  %v710 = vsub.f32 %v384, %v582
  %v711 = vsub.f32 %v385, %v583
  %v712 = vsub.f32 %v386, %v584
  %v713 = vsub.f32 %v387, %v585
  %v714 = vsub.f32 %v388, %v586
  %v715 = vsub.f32 %v389, %v587
  %v716 = vsub.f32 %v390, %v588
  %v717 = vsub.f32 %v391, %v589
  %v718 = vsub.f32 %v392, %v590
  %v719 = vsub.f32 %v393, %v591
  %v720 = vsub.f32 %v394, %v592
  %v721 = vsub.f32 %v395, %v593
  %v722 = vsub.f32 %v396, %v594
  %v723 = vsub.f32 %v397, %v595
  %v724 = vsub.f32 %v398, %v596
  %v725 = vsub.f32 %v399, %v597
  %v726 = vsub.f32 %v400, %v598
  %v727 = vsub.f32 %v401, %v599
  %v728 = vsub.f32 %v402, %v600
  %v729 = vsub.f32 %v403, %v601
  %v730 = vsub.f32 %v404, %v602
  %v731 = vsub.f32 %v405, %v603
  %v732 = vsub.f32 %v406, %v604
  %v733 = vsub.f32 %v407, %v605
  %v734 = vsub.f32 %v408, %v606
  %v735 = vsub.f32 %v409, %v607
  %v736 = vsub.f32 %v410, %v608
  %v737 = vsub.f32 %v411, %v609
  %v738 = vsub.f32 %v412, %v610
  %v739 = vsub.f32 %v413, %v611
  %v740 = vsub.f32 %v414, %v612
  %v741 = vsub.f32 %v415, %v613
  %v742 = vsub.f32 %v416, %v614
  %v743 = vsub.f32 %v417, %v615
  %v744 = vsub.f32 %v418, %v616
  %v745 = vsub.f32 %v419, %v617
  %v746 = vsub.f32 %v420, %v618
  %v747 = vsub.f32 %v421, %v619
  %v748 = vsub.f32 %v422, %v620
  %v749 = vsub.f32 %v423, %v621
  %v750 = vsub.f32 %v424, %v622
  %v751 = vsub.f32 %v425, %v623
  %v752 = vsub.f32 %v426, %v624
  %v753 = vsub.f32 %v427, %v625
  %v754 = vsub.f32 %v428, %v626
  %v755 = vsub.f32 %v429, %v627
  %v756 = vsub.f32 %v430, %v628
  %v757 = vsub.f32 %v431, %v629
  %v758 = vsub.f32 %v432, %v630
  %v759 = vsub.f32 %v433, %v631
  %v760 = vsub.f32 %v434, %v632
  %v761 = vsub.f32 %v435, %v633
  %v762 = vsub.f32 %v436, %v634
  %v763 = vsub.f32 %v437, %v635
  %v764 = vsub.f32 %v438, %v636
  %v765 = vsub.f32 %v439, %v637
  %v766 = vsub.f32 %v440, %v638
  %v767 = vsub.f32 %v441, %v639
  %v768 = vsub.f32 %v442, %v640
  %v769 = vsub.f32 %v443, %v641
  %v770 = vsub.f32 %v444, %v642
  %v771 = vsub.f32 %v445, %v643
  %v772 = vsub.f32 %v446, %v644
  %v773 = vsub.f32 %v447, %v645
  %v774 = vsub.f32 %v448, %v646
  %v775 = vsub.f32 %v449, %v647
  %v776 = vsub.f32 %v450, %v648
  %v777 = vsub.f32 %v451, %v649
  %v778 = vsub.f32 %v452, %v650
  %v779 = vsub.f32 %v453, %v651
  %v780 = vsub.f32 %v454, %v652
  %v781 = vsub.f32 %v455, %v653
  %v782 = vsub.f32 %v456, %v654
  %v783 = vsub.f32 %v457, %v655
  %v784 = vsub.f32 %v458, %v656
  %v785 = vsub.f32 %v459, %v657
  %v786 = vpack.c.bf16 %v722, %v658
  %v787 = vpack.c.bf16 %v723, %v659
  %v788 = vpack.c.bf16 %v724, %v660
  %v789 = vpack.c.bf16 %v725, %v661
  %v790 = vpack.c.bf16 %v726, %v662
  %v791 = vpack.c.bf16 %v727, %v663
  %v792 = vpack.c.bf16 %v728, %v664
  %v793 = vpack.c.bf16 %v729, %v665
  %v794 = vpack.c.bf16 %v730, %v666
  %v795 = vpack.c.bf16 %v731, %v667
  %v796 = vpack.c.bf16 %v732, %v668
  %v797 = vpack.c.bf16 %v733, %v669
  %v798 = vpack.c.bf16 %v734, %v670
  %v799 = vpack.c.bf16 %v735, %v671
  %v800 = vpack.c.bf16 %v736, %v672
  %v801 = vpack.c.bf16 %v737, %v673
  %v802 = vpack.c.bf16 %v738, %v674
  %v803 = vpack.c.bf16 %v739, %v675
  %v804 = vpack.c.bf16 %v740, %v676
  %v805 = vpack.c.bf16 %v741, %v677
  %v806 = vpack.c.bf16 %v742, %v678
  %v807 = vpack.c.bf16 %v743, %v679
  %v808 = vpack.c.bf16 %v744, %v680
  %v809 = vpack.c.bf16 %v745, %v681
  %v810 = vpack.c.bf16 %v746, %v682
  %v811 = vpack.c.bf16 %v747, %v683
  %v812 = vpack.c.bf16 %v748, %v684
  %v813 = vpack.c.bf16 %v749, %v685
  %v814 = vpack.c.bf16 %v750, %v686
  %v815 = vpack.c.bf16 %v751, %v687
  %v816 = vpack.c.bf16 %v752, %v688
  %v817 = vpack.c.bf16 %v753, %v689
  %v818 = vpack.c.bf16 %v754, %v690
  %v819 = vpack.c.bf16 %v755, %v691
  %v820 = vpack.c.bf16 %v756, %v692
  %v821 = vpack.c.bf16 %v757, %v693
  %v822 = vpack.c.bf16 %v758, %v694
  %v823 = vpack.c.bf16 %v759, %v695
  %v824 = vpack.c.bf16 %v760, %v696
  %v825 = vpack.c.bf16 %v761, %v697
  %v826 = vpack.c.bf16 %v762, %v698
  %v827 = vpack.c.bf16 %v763, %v699
  %v828 = vpack.c.bf16 %v764, %v700
  %v829 = vpack.c.bf16 %v765, %v701
  %v830 = vpack.c.bf16 %v766, %v702
  %v831 = vpack.c.bf16 %v767, %v703
  %v832 = vpack.c.bf16 %v768, %v704
  %v833 = vpack.c.bf16 %v769, %v705
  %v834 = vpack.c.bf16 %v770, %v706
  %v835 = vpack.c.bf16 %v771, %v707
  %v836 = vpack.c.bf16 %v772, %v708
  %v837 = vpack.c.bf16 %v773, %v709
  %v838 = vpack.c.bf16 %v774, %v710
  %v839 = vpack.c.bf16 %v775, %v711
  %v840 = vpack.c.bf16 %v776, %v712
  %v841 = vpack.c.bf16 %v777, %v713
  %v842 = vpack.c.bf16 %v778, %v714
  %v843 = vpack.c.bf16 %v779, %v715
  %v844 = vpack.c.bf16 %v780, %v716
  %v845 = vpack.c.bf16 %v781, %v717
  %v846 = vpack.c.bf16 %v782, %v718
  %v847 = vpack.c.bf16 %v783, %v719
  %v848 = vpack.c.bf16 %v784, %v720
  %v849 = vpack.c.bf16 %v785, %v721
  %vm850 = vcmask 72704
  %v852 = vsel %vm850, %v465, 0
  %vm854 = vcmask 1043456
  %vm855 = vcmask 1044480
  %v856 = vsel %vm854, 4294967295, 65535
  %v857 = vsel %vm855, %v856, 0
  %v859 = vand.u32 %v466, %v857
  %v862 = vand.u32 %v467, %v857
  %v865 = vand.u32 %v468, %v857
  %v868 = vand.u32 %v469, %v857
  %v871 = vand.u32 %v470, %v857
  %v874 = vand.u32 %v471, %v857
  %v877 = vand.u32 %v472, %v857
  %v880 = vand.u32 %v473, %v857
  %v883 = vand.u32 %v474, %v857
  %v886 = vand.u32 %v475, %v857
  %v889 = vand.u32 %v476, %v857
  %v892 = vand.u32 %v477, %v857
  %v895 = vand.u32 %v478, %v857
  %v898 = vand.u32 %v479, %v857
  %v901 = vand.u32 %v480, %v857
  %v904 = vand.u32 %v481, %v857
  %v907 = vand.u32 %v482, %v857
  %v910 = vand.u32 %v483, %v857
  %v913 = vand.u32 %v484, %v857
  %v916 = vand.u32 %v485, %v857
  %v919 = vand.u32 %v486, %v857
  %v922 = vand.u32 %v487, %v857
  %v925 = vand.u32 %v488, %v857
  %v928 = vand.u32 %v489, %v857
  %v931 = vand.u32 %v490, %v857
  %v934 = vand.u32 %v491, %v857
  %v937 = vand.u32 %v492, %v857
  %v940 = vand.u32 %v493, %v857
  %v943 = vand.u32 %v494, %v857
  %v946 = vand.u32 %v495, %v857
  %v949 = vand.u32 %v496, %v857
  %v952 = vand.u32 %v497, %v857
  %v955 = vand.u32 %v498, %v857
  %v958 = vand.u32 %v499, %v857
  %v961 = vand.u32 %v500, %v857
  %v964 = vand.u32 %v501, %v857
  %v967 = vand.u32 %v502, %v857
  %v970 = vand.u32 %v503, %v857
  %v973 = vand.u32 %v504, %v857
  %v976 = vand.u32 %v505, %v857
  %v979 = vand.u32 %v506, %v857
  %v982 = vand.u32 %v507, %v857
  %v985 = vand.u32 %v508, %v857
  %v988 = vand.u32 %v509, %v857
  %v991 = vand.u32 %v510, %v857
  %v994 = vand.u32 %v511, %v857
  %v997 = vand.u32 %v512, %v857
  %v1000 = vand.u32 %v513, %v857
  %v1003 = vand.u32 %v514, %v857
  %v1006 = vand.u32 %v515, %v857
  %v1009 = vand.u32 %v516, %v857
  %v1012 = vand.u32 %v517, %v857
  %v1015 = vand.u32 %v518, %v857
  %v1018 = vand.u32 %v519, %v857
  %v1021 = vand.u32 %v520, %v857
  %v1024 = vand.u32 %v521, %v857
  %v1027 = vand.u32 %v522, %v857
  %v1030 = vand.u32 %v523, %v857
  %v1033 = vand.u32 %v524, %v857
  %v1036 = vand.u32 %v525, %v857
  %v1039 = vand.u32 %v526, %v857
  %v1042 = vand.u32 %v527, %v857
  %v1045 = vand.u32 %v528, %v857
  %v1048 = vand.u32 %v529, %v857
  %1050 = vmatprep.subr.bf16.mxu0 0
  %1051 = vmatpush1.bf16.msra.mxu0 0
  %1052 = vmatprep.subr.bf16.mxu0 0
  %1053 = vmatpush1.bf16.msra.mxu0 0
  %1054 = vmatprep.subr.bf16.mxu0 0
  %1055 = vmatpush1.bf16.msra.mxu0 0
  %1056 = vmatprep.subr.bf16.mxu0 0
  %1057 = vmatpush1.bf16.msra.mxu0 0
  %1058 = vmatprep.subr.bf16.mxu0 0
  %1059 = vmatpush1.bf16.msra.mxu0 0
  %1060 = vmatprep.subr.bf16.mxu0 0
  %1061 = vmatpush1.bf16.msra.mxu0 0
  %1062 = vmatprep.subr.bf16.mxu0 0
  %1063 = vmatpush1.bf16.msra.mxu0 0
  %1064 = vmatprep.subr.bf16.mxu0 %v862
  %1065 = vmatpush1.bf16.msra.mxu0 %v859
  %1066 = vmatprep.subr.bf16.mxu0 0
  %1067 = vmatpush2.bf16.msra.mxu0 0
  %1068 = vmatprep.subr.bf16.mxu0 0
  %1069 = vmatpush2.bf16.msra.mxu0 0
  %1070 = vmatprep.subr.bf16.mxu0 0
  %1071 = vmatpush2.bf16.msra.mxu0 0
  %1072 = vmatprep.subr.bf16.mxu0 0
  %1073 = vmatpush2.bf16.msra.mxu0 0
  %1074 = vmatprep.subr.bf16.mxu0 0
  %1075 = vmatpush2.bf16.msra.mxu0 0
  %1076 = vmatprep.subr.bf16.mxu0 0
  %1077 = vmatpush2.bf16.msra.mxu0 0
  %1078 = vmatprep.subr.bf16.mxu0 0
  %1079 = vmatpush2.bf16.msra.mxu0 0
  %1080 = vmatprep.subr.bf16.mxu0 0
  %1081 = vmatpush2.bf16.msra.mxu0 0
  %1082 = vmatprep.mubr.bf16.mxu0 0
  %1083 = vmatmul.mubr.bf16.gmra.mxu0 %v852
  %v1084 = vpop.f32.mrf.mxu0
  %v1085 = vadd.f32 0.0, %v1084
  %v1086 = vpop.f32.mrf.mxu0
  %v1087 = vadd.f32 0.0, %v1086
  %v1088 = vpop.f32.mrf.mxu0
  %v1089 = vadd.f32 0.0, %v1088
  %v1090 = vpop.f32.mrf.mxu0
  %v1091 = vadd.f32 0.0, %v1090
  %1092 = vdwg.mxu0
  %1093 = vmatprep.subr.bf16.mxu0 0
  %1094 = vmatpush1.bf16.msra.mxu0 0
  %1095 = vmatprep.subr.bf16.mxu0 0
  %1096 = vmatpush1.bf16.msra.mxu0 0
  %1097 = vmatprep.subr.bf16.mxu0 0
  %1098 = vmatpush1.bf16.msra.mxu0 0
  %1099 = vmatprep.subr.bf16.mxu0 0
  %1100 = vmatpush1.bf16.msra.mxu0 0
  %1101 = vmatprep.subr.bf16.mxu0 0
  %1102 = vmatpush1.bf16.msra.mxu0 0
  %1103 = vmatprep.subr.bf16.mxu0 0
  %1104 = vmatpush1.bf16.msra.mxu0 0
  %1105 = vmatprep.subr.bf16.mxu0 0
  %1106 = vmatpush1.bf16.msra.mxu0 0
  %1107 = vmatprep.subr.bf16.mxu0 %v868
  %1108 = vmatpush1.bf16.msra.mxu0 %v865
  %1109 = vmatprep.subr.bf16.mxu0 0
  %1110 = vmatpush2.bf16.msra.mxu0 0
  %1111 = vmatprep.subr.bf16.mxu0 0
  %1112 = vmatpush2.bf16.msra.mxu0 0
  %1113 = vmatprep.subr.bf16.mxu0 0
  %1114 = vmatpush2.bf16.msra.mxu0 0
  %1115 = vmatprep.subr.bf16.mxu0 0
  %1116 = vmatpush2.bf16.msra.mxu0 0
  %1117 = vmatprep.subr.bf16.mxu0 0
  %1118 = vmatpush2.bf16.msra.mxu0 0
  %1119 = vmatprep.subr.bf16.mxu0 0
  %1120 = vmatpush2.bf16.msra.mxu0 0
  %1121 = vmatprep.subr.bf16.mxu0 0
  %1122 = vmatpush2.bf16.msra.mxu0 0
  %1123 = vmatprep.subr.bf16.mxu0 0
  %1124 = vmatpush2.bf16.msra.mxu0 0
  %1125 = vmatprep.mubr.bf16.mxu0 0
  %1126 = vmatmul.mubr.bf16.gmra.mxu0 %v852
  %v1127 = vpop.f32.mrf.mxu0
  %v1128 = vadd.f32 0.0, %v1127
  %v1129 = vpop.f32.mrf.mxu0
  %v1130 = vadd.f32 0.0, %v1129
  %v1131 = vpop.f32.mrf.mxu0
  %v1132 = vadd.f32 0.0, %v1131
  %v1133 = vpop.f32.mrf.mxu0
  %v1134 = vadd.f32 0.0, %v1133
  %1135 = vdwg.mxu0
  %1136 = vmatprep.subr.bf16.mxu0 0
  %1137 = vmatpush1.bf16.msra.mxu0 0
  %1138 = vmatprep.subr.bf16.mxu0 0
  %1139 = vmatpush1.bf16.msra.mxu0 0
  %1140 = vmatprep.subr.bf16.mxu0 0
  %1141 = vmatpush1.bf16.msra.mxu0 0
  %1142 = vmatprep.subr.bf16.mxu0 0
  %1143 = vmatpush1.bf16.msra.mxu0 0
  %1144 = vmatprep.subr.bf16.mxu0 0
  %1145 = vmatpush1.bf16.msra.mxu0 0
  %1146 = vmatprep.subr.bf16.mxu0 0
  %1147 = vmatpush1.bf16.msra.mxu0 0
  %1148 = vmatprep.subr.bf16.mxu0 0
  %1149 = vmatpush1.bf16.msra.mxu0 0
  %1150 = vmatprep.subr.bf16.mxu0 %v874
  %1151 = vmatpush1.bf16.msra.mxu0 %v871
  %1152 = vmatprep.subr.bf16.mxu0 0
  %1153 = vmatpush2.bf16.msra.mxu0 0
  %1154 = vmatprep.subr.bf16.mxu0 0
  %1155 = vmatpush2.bf16.msra.mxu0 0
  %1156 = vmatprep.subr.bf16.mxu0 0
  %1157 = vmatpush2.bf16.msra.mxu0 0
  %1158 = vmatprep.subr.bf16.mxu0 0
  %1159 = vmatpush2.bf16.msra.mxu0 0
  %1160 = vmatprep.subr.bf16.mxu0 0
  %1161 = vmatpush2.bf16.msra.mxu0 0
  %1162 = vmatprep.subr.bf16.mxu0 0
  %1163 = vmatpush2.bf16.msra.mxu0 0
  %1164 = vmatprep.subr.bf16.mxu0 0
  %1165 = vmatpush2.bf16.msra.mxu0 0
  %1166 = vmatprep.subr.bf16.mxu0 0
  %1167 = vmatpush2.bf16.msra.mxu0 0
  %1168 = vmatprep.mubr.bf16.mxu0 0
  %1169 = vmatmul.mubr.bf16.gmra.mxu0 %v852
  %v1170 = vpop.f32.mrf.mxu0
  %v1171 = vadd.f32 0.0, %v1170
  %v1172 = vpop.f32.mrf.mxu0
  %v1173 = vadd.f32 0.0, %v1172
  %v1174 = vpop.f32.mrf.mxu0
  %v1175 = vadd.f32 0.0, %v1174
  %v1176 = vpop.f32.mrf.mxu0
  %v1177 = vadd.f32 0.0, %v1176
  %1178 = vdwg.mxu0
  %1179 = vmatprep.subr.bf16.mxu0 0
  %1180 = vmatpush1.bf16.msra.mxu0 0
  %1181 = vmatprep.subr.bf16.mxu0 0
  %1182 = vmatpush1.bf16.msra.mxu0 0
  %1183 = vmatprep.subr.bf16.mxu0 0
  %1184 = vmatpush1.bf16.msra.mxu0 0
  %1185 = vmatprep.subr.bf16.mxu0 0
  %1186 = vmatpush1.bf16.msra.mxu0 0
  %1187 = vmatprep.subr.bf16.mxu0 0
  %1188 = vmatpush1.bf16.msra.mxu0 0
  %1189 = vmatprep.subr.bf16.mxu0 0
  %1190 = vmatpush1.bf16.msra.mxu0 0
  %1191 = vmatprep.subr.bf16.mxu0 0
  %1192 = vmatpush1.bf16.msra.mxu0 0
  %1193 = vmatprep.subr.bf16.mxu0 %v880
  %1194 = vmatpush1.bf16.msra.mxu0 %v877
  %1195 = vmatprep.subr.bf16.mxu0 0
  %1196 = vmatpush2.bf16.msra.mxu0 0
  %1197 = vmatprep.subr.bf16.mxu0 0
  %1198 = vmatpush2.bf16.msra.mxu0 0
  %1199 = vmatprep.subr.bf16.mxu0 0
  %1200 = vmatpush2.bf16.msra.mxu0 0
  %1201 = vmatprep.subr.bf16.mxu0 0
  %1202 = vmatpush2.bf16.msra.mxu0 0
  %1203 = vmatprep.subr.bf16.mxu0 0
  %1204 = vmatpush2.bf16.msra.mxu0 0
  %1205 = vmatprep.subr.bf16.mxu0 0
  %1206 = vmatpush2.bf16.msra.mxu0 0
  %1207 = vmatprep.subr.bf16.mxu0 0
  %1208 = vmatpush2.bf16.msra.mxu0 0
  %1209 = vmatprep.subr.bf16.mxu0 0
  %1210 = vmatpush2.bf16.msra.mxu0 0
  %1211 = vmatprep.mubr.bf16.mxu0 0
  %1212 = vmatmul.mubr.bf16.gmra.mxu0 %v852
  %v1213 = vpop.f32.mrf.mxu0
  %v1214 = vadd.f32 0.0, %v1213
  %v1215 = vpop.f32.mrf.mxu0
  %v1216 = vadd.f32 0.0, %v1215
  %v1217 = vpop.f32.mrf.mxu0
  %v1218 = vadd.f32 0.0, %v1217
  %v1219 = vpop.f32.mrf.mxu0
  %v1220 = vadd.f32 0.0, %v1219
  %1221 = vdwg.mxu0
  %1222 = vmatprep.subr.bf16.mxu0 0
  %1223 = vmatpush1.bf16.msra.mxu0 0
  %1224 = vmatprep.subr.bf16.mxu0 0
  %1225 = vmatpush1.bf16.msra.mxu0 0
  %1226 = vmatprep.subr.bf16.mxu0 0
  %1227 = vmatpush1.bf16.msra.mxu0 0
  %1228 = vmatprep.subr.bf16.mxu0 0
  %1229 = vmatpush1.bf16.msra.mxu0 0
  %1230 = vmatprep.subr.bf16.mxu0 0
  %1231 = vmatpush1.bf16.msra.mxu0 0
  %1232 = vmatprep.subr.bf16.mxu0 0
  %1233 = vmatpush1.bf16.msra.mxu0 0
  %1234 = vmatprep.subr.bf16.mxu0 0
  %1235 = vmatpush1.bf16.msra.mxu0 0
  %1236 = vmatprep.subr.bf16.mxu0 %v886
  %1237 = vmatpush1.bf16.msra.mxu0 %v883
  %1238 = vmatprep.subr.bf16.mxu0 0
  %1239 = vmatpush2.bf16.msra.mxu0 0
  %1240 = vmatprep.subr.bf16.mxu0 0
  %1241 = vmatpush2.bf16.msra.mxu0 0
  %1242 = vmatprep.subr.bf16.mxu0 0
  %1243 = vmatpush2.bf16.msra.mxu0 0
  %1244 = vmatprep.subr.bf16.mxu0 0
  %1245 = vmatpush2.bf16.msra.mxu0 0
  %1246 = vmatprep.subr.bf16.mxu0 0
  %1247 = vmatpush2.bf16.msra.mxu0 0
  %1248 = vmatprep.subr.bf16.mxu0 0
  %1249 = vmatpush2.bf16.msra.mxu0 0
  %1250 = vmatprep.subr.bf16.mxu0 0
  %1251 = vmatpush2.bf16.msra.mxu0 0
  %1252 = vmatprep.subr.bf16.mxu0 0
  %1253 = vmatpush2.bf16.msra.mxu0 0
  %1254 = vmatprep.mubr.bf16.mxu0 0
  %1255 = vmatmul.mubr.bf16.gmra.mxu0 %v852
  %v1256 = vpop.f32.mrf.mxu0
  %v1257 = vadd.f32 0.0, %v1256
  %v1258 = vpop.f32.mrf.mxu0
  %v1259 = vadd.f32 0.0, %v1258
  %v1260 = vpop.f32.mrf.mxu0
  %v1261 = vadd.f32 0.0, %v1260
  %v1262 = vpop.f32.mrf.mxu0
  %v1263 = vadd.f32 0.0, %v1262
  %1264 = vdwg.mxu0
  %1265 = vmatprep.subr.bf16.mxu0 0
  %1266 = vmatpush1.bf16.msra.mxu0 0
  %1267 = vmatprep.subr.bf16.mxu0 0
  %1268 = vmatpush1.bf16.msra.mxu0 0
  %1269 = vmatprep.subr.bf16.mxu0 0
  %1270 = vmatpush1.bf16.msra.mxu0 0
  %1271 = vmatprep.subr.bf16.mxu0 0
  %1272 = vmatpush1.bf16.msra.mxu0 0
  %1273 = vmatprep.subr.bf16.mxu0 0
  %1274 = vmatpush1.bf16.msra.mxu0 0
  %1275 = vmatprep.subr.bf16.mxu0 0
  %1276 = vmatpush1.bf16.msra.mxu0 0
  %1277 = vmatprep.subr.bf16.mxu0 0
  %1278 = vmatpush1.bf16.msra.mxu0 0
  %1279 = vmatprep.subr.bf16.mxu0 %v892
  %1280 = vmatpush1.bf16.msra.mxu0 %v889
  %1281 = vmatprep.subr.bf16.mxu0 0
  %1282 = vmatpush2.bf16.msra.mxu0 0
  %1283 = vmatprep.subr.bf16.mxu0 0
  %1284 = vmatpush2.bf16.msra.mxu0 0
  %1285 = vmatprep.subr.bf16.mxu0 0
  %1286 = vmatpush2.bf16.msra.mxu0 0
  %1287 = vmatprep.subr.bf16.mxu0 0
  %1288 = vmatpush2.bf16.msra.mxu0 0
  %1289 = vmatprep.subr.bf16.mxu0 0
  %1290 = vmatpush2.bf16.msra.mxu0 0
  %1291 = vmatprep.subr.bf16.mxu0 0
  %1292 = vmatpush2.bf16.msra.mxu0 0
  %1293 = vmatprep.subr.bf16.mxu0 0
  %1294 = vmatpush2.bf16.msra.mxu0 0
  %1295 = vmatprep.subr.bf16.mxu0 0
  %1296 = vmatpush2.bf16.msra.mxu0 0
  %1297 = vmatprep.mubr.bf16.mxu0 0
  %1298 = vmatmul.mubr.bf16.gmra.mxu0 %v852
  %v1299 = vpop.f32.mrf.mxu0
  %v1300 = vadd.f32 0.0, %v1299
  %v1301 = vpop.f32.mrf.mxu0
  %v1302 = vadd.f32 0.0, %v1301
  %v1303 = vpop.f32.mrf.mxu0
  %v1304 = vadd.f32 0.0, %v1303
  %v1305 = vpop.f32.mrf.mxu0
  %v1306 = vadd.f32 0.0, %v1305
  %1307 = vdwg.mxu0
  %1308 = vmatprep.subr.bf16.mxu0 0
  %1309 = vmatpush1.bf16.msra.mxu0 0
  %1310 = vmatprep.subr.bf16.mxu0 0
  %1311 = vmatpush1.bf16.msra.mxu0 0
  %1312 = vmatprep.subr.bf16.mxu0 0
  %1313 = vmatpush1.bf16.msra.mxu0 0
  %1314 = vmatprep.subr.bf16.mxu0 0
  %1315 = vmatpush1.bf16.msra.mxu0 0
  %1316 = vmatprep.subr.bf16.mxu0 0
  %1317 = vmatpush1.bf16.msra.mxu0 0
  %1318 = vmatprep.subr.bf16.mxu0 0
  %1319 = vmatpush1.bf16.msra.mxu0 0
  %1320 = vmatprep.subr.bf16.mxu0 0
  %1321 = vmatpush1.bf16.msra.mxu0 0
  %1322 = vmatprep.subr.bf16.mxu0 %v898
  %1323 = vmatpush1.bf16.msra.mxu0 %v895
  %1324 = vmatprep.subr.bf16.mxu0 0
  %1325 = vmatpush2.bf16.msra.mxu0 0
  %1326 = vmatprep.subr.bf16.mxu0 0
  %1327 = vmatpush2.bf16.msra.mxu0 0
  %1328 = vmatprep.subr.bf16.mxu0 0
  %1329 = vmatpush2.bf16.msra.mxu0 0
  %1330 = vmatprep.subr.bf16.mxu0 0
  %1331 = vmatpush2.bf16.msra.mxu0 0
  %1332 = vmatprep.subr.bf16.mxu0 0
  %1333 = vmatpush2.bf16.msra.mxu0 0
  %1334 = vmatprep.subr.bf16.mxu0 0
  %1335 = vmatpush2.bf16.msra.mxu0 0
  %1336 = vmatprep.subr.bf16.mxu0 0
  %1337 = vmatpush2.bf16.msra.mxu0 0
  %1338 = vmatprep.subr.bf16.mxu0 0
  %1339 = vmatpush2.bf16.msra.mxu0 0
  %1340 = vmatprep.mubr.bf16.mxu0 0
  %1341 = vmatmul.mubr.bf16.gmra.mxu0 %v852
  %v1342 = vpop.f32.mrf.mxu0
  %v1343 = vadd.f32 0.0, %v1342
  %v1344 = vpop.f32.mrf.mxu0
  %v1345 = vadd.f32 0.0, %v1344
  %v1346 = vpop.f32.mrf.mxu0
  %v1347 = vadd.f32 0.0, %v1346
  %v1348 = vpop.f32.mrf.mxu0
  %v1349 = vadd.f32 0.0, %v1348
  %1350 = vdwg.mxu0
  %1351 = vmatprep.subr.bf16.mxu0 0
  %1352 = vmatpush1.bf16.msra.mxu0 0
  %1353 = vmatprep.subr.bf16.mxu0 0
  %1354 = vmatpush1.bf16.msra.mxu0 0
  %1355 = vmatprep.subr.bf16.mxu0 0
  %1356 = vmatpush1.bf16.msra.mxu0 0
  %1357 = vmatprep.subr.bf16.mxu0 0
  %1358 = vmatpush1.bf16.msra.mxu0 0
  %1359 = vmatprep.subr.bf16.mxu0 0
  %1360 = vmatpush1.bf16.msra.mxu0 0
  %1361 = vmatprep.subr.bf16.mxu0 0
  %1362 = vmatpush1.bf16.msra.mxu0 0
  %1363 = vmatprep.subr.bf16.mxu0 0
  %1364 = vmatpush1.bf16.msra.mxu0 0
  %1365 = vmatprep.subr.bf16.mxu0 %v904
  %1366 = vmatpush1.bf16.msra.mxu0 %v901
  %1367 = vmatprep.subr.bf16.mxu0 0
  %1368 = vmatpush2.bf16.msra.mxu0 0
  %1369 = vmatprep.subr.bf16.mxu0 0
  %1370 = vmatpush2.bf16.msra.mxu0 0
  %1371 = vmatprep.subr.bf16.mxu0 0
  %1372 = vmatpush2.bf16.msra.mxu0 0
  %1373 = vmatprep.subr.bf16.mxu0 0
  %1374 = vmatpush2.bf16.msra.mxu0 0
  %1375 = vmatprep.subr.bf16.mxu0 0
  %1376 = vmatpush2.bf16.msra.mxu0 0
  %1377 = vmatprep.subr.bf16.mxu0 0
  %1378 = vmatpush2.bf16.msra.mxu0 0
  %1379 = vmatprep.subr.bf16.mxu0 0
  %1380 = vmatpush2.bf16.msra.mxu0 0
  %1381 = vmatprep.subr.bf16.mxu0 0
  %1382 = vmatpush2.bf16.msra.mxu0 0
  %1383 = vmatprep.mubr.bf16.mxu0 0
  %1384 = vmatmul.mubr.bf16.gmra.mxu0 %v852
  %v1385 = vpop.f32.mrf.mxu0
  %v1386 = vadd.f32 0.0, %v1385
  %v1387 = vpop.f32.mrf.mxu0
  %v1388 = vadd.f32 0.0, %v1387
  %v1389 = vpop.f32.mrf.mxu0
  %v1390 = vadd.f32 0.0, %v1389
  %v1391 = vpop.f32.mrf.mxu0
  %v1392 = vadd.f32 0.0, %v1391
  %1393 = vdwg.mxu0
  %1394 = vmatprep.subr.bf16.mxu0 0
  %1395 = vmatpush1.bf16.msra.mxu0 0
  %1396 = vmatprep.subr.bf16.mxu0 0
  %1397 = vmatpush1.bf16.msra.mxu0 0
  %1398 = vmatprep.subr.bf16.mxu0 0
  %1399 = vmatpush1.bf16.msra.mxu0 0
  %1400 = vmatprep.subr.bf16.mxu0 0
  %1401 = vmatpush1.bf16.msra.mxu0 0
  %1402 = vmatprep.subr.bf16.mxu0 0
  %1403 = vmatpush1.bf16.msra.mxu0 0
  %1404 = vmatprep.subr.bf16.mxu0 0
  %1405 = vmatpush1.bf16.msra.mxu0 0
  %1406 = vmatprep.subr.bf16.mxu0 0
  %1407 = vmatpush1.bf16.msra.mxu0 0
  %1408 = vmatprep.subr.bf16.mxu0 %v910
  %1409 = vmatpush1.bf16.msra.mxu0 %v907
  %1410 = vmatprep.subr.bf16.mxu0 0
  %1411 = vmatpush2.bf16.msra.mxu0 0
  %1412 = vmatprep.subr.bf16.mxu0 0
  %1413 = vmatpush2.bf16.msra.mxu0 0
  %1414 = vmatprep.subr.bf16.mxu0 0
  %1415 = vmatpush2.bf16.msra.mxu0 0
  %1416 = vmatprep.subr.bf16.mxu0 0
  %1417 = vmatpush2.bf16.msra.mxu0 0
  %1418 = vmatprep.subr.bf16.mxu0 0
  %1419 = vmatpush2.bf16.msra.mxu0 0
  %1420 = vmatprep.subr.bf16.mxu0 0
  %1421 = vmatpush2.bf16.msra.mxu0 0
  %1422 = vmatprep.subr.bf16.mxu0 0
  %1423 = vmatpush2.bf16.msra.mxu0 0
  %1424 = vmatprep.subr.bf16.mxu0 0
  %1425 = vmatpush2.bf16.msra.mxu0 0
  %1426 = vmatprep.mubr.bf16.mxu0 0
  %1427 = vmatmul.mubr.bf16.gmra.mxu0 %v852
  %v1428 = vpop.f32.mrf.mxu0
  %v1429 = vadd.f32 0.0, %v1428
  %v1430 = vpop.f32.mrf.mxu0
  %v1431 = vadd.f32 0.0, %v1430
  %v1432 = vpop.f32.mrf.mxu0
  %v1433 = vadd.f32 0.0, %v1432
  %v1434 = vpop.f32.mrf.mxu0
  %v1435 = vadd.f32 0.0, %v1434
  %1436 = vdwg.mxu0
  %1437 = vmatprep.subr.bf16.mxu0 0
  %1438 = vmatpush1.bf16.msra.mxu0 0
  %1439 = vmatprep.subr.bf16.mxu0 0
  %1440 = vmatpush1.bf16.msra.mxu0 0
  %1441 = vmatprep.subr.bf16.mxu0 0
  %1442 = vmatpush1.bf16.msra.mxu0 0
  %1443 = vmatprep.subr.bf16.mxu0 0
  %1444 = vmatpush1.bf16.msra.mxu0 0
  %1445 = vmatprep.subr.bf16.mxu0 0
  %1446 = vmatpush1.bf16.msra.mxu0 0
  %1447 = vmatprep.subr.bf16.mxu0 0
  %1448 = vmatpush1.bf16.msra.mxu0 0
  %1449 = vmatprep.subr.bf16.mxu0 0
  %1450 = vmatpush1.bf16.msra.mxu0 0
  %1451 = vmatprep.subr.bf16.mxu0 %v916
  %1452 = vmatpush1.bf16.msra.mxu0 %v913
  %1453 = vmatprep.subr.bf16.mxu0 0
  %1454 = vmatpush2.bf16.msra.mxu0 0
  %1455 = vmatprep.subr.bf16.mxu0 0
  %1456 = vmatpush2.bf16.msra.mxu0 0
  %1457 = vmatprep.subr.bf16.mxu0 0
  %1458 = vmatpush2.bf16.msra.mxu0 0
  %1459 = vmatprep.subr.bf16.mxu0 0
  %1460 = vmatpush2.bf16.msra.mxu0 0
  %1461 = vmatprep.subr.bf16.mxu0 0
  %1462 = vmatpush2.bf16.msra.mxu0 0
  %1463 = vmatprep.subr.bf16.mxu0 0
  %1464 = vmatpush2.bf16.msra.mxu0 0
  %1465 = vmatprep.subr.bf16.mxu0 0
  %1466 = vmatpush2.bf16.msra.mxu0 0
  %1467 = vmatprep.subr.bf16.mxu0 0
  %1468 = vmatpush2.bf16.msra.mxu0 0
  %1469 = vmatprep.mubr.bf16.mxu0 0
  %1470 = vmatmul.mubr.bf16.gmra.mxu0 %v852
  %v1471 = vpop.f32.mrf.mxu0
  %v1472 = vadd.f32 0.0, %v1471
  %v1473 = vpop.f32.mrf.mxu0
  %v1474 = vadd.f32 0.0, %v1473
  %v1475 = vpop.f32.mrf.mxu0
  %v1476 = vadd.f32 0.0, %v1475
  %v1477 = vpop.f32.mrf.mxu0
  %v1478 = vadd.f32 0.0, %v1477
  %1479 = vdwg.mxu0
  %1480 = vmatprep.subr.bf16.mxu0 0
  %1481 = vmatpush1.bf16.msra.mxu0 0
  %1482 = vmatprep.subr.bf16.mxu0 0
  %1483 = vmatpush1.bf16.msra.mxu0 0
  %1484 = vmatprep.subr.bf16.mxu0 0
  %1485 = vmatpush1.bf16.msra.mxu0 0
  %1486 = vmatprep.subr.bf16.mxu0 0
  %1487 = vmatpush1.bf16.msra.mxu0 0
  %1488 = vmatprep.subr.bf16.mxu0 0
  %1489 = vmatpush1.bf16.msra.mxu0 0
  %1490 = vmatprep.subr.bf16.mxu0 0
  %1491 = vmatpush1.bf16.msra.mxu0 0
  %1492 = vmatprep.subr.bf16.mxu0 0
  %1493 = vmatpush1.bf16.msra.mxu0 0
  %1494 = vmatprep.subr.bf16.mxu0 %v922
  %1495 = vmatpush1.bf16.msra.mxu0 %v919
  %1496 = vmatprep.subr.bf16.mxu0 0
  %1497 = vmatpush2.bf16.msra.mxu0 0
  %1498 = vmatprep.subr.bf16.mxu0 0
  %1499 = vmatpush2.bf16.msra.mxu0 0
  %1500 = vmatprep.subr.bf16.mxu0 0
  %1501 = vmatpush2.bf16.msra.mxu0 0
  %1502 = vmatprep.subr.bf16.mxu0 0
  %1503 = vmatpush2.bf16.msra.mxu0 0
  %1504 = vmatprep.subr.bf16.mxu0 0
  %1505 = vmatpush2.bf16.msra.mxu0 0
  %1506 = vmatprep.subr.bf16.mxu0 0
  %1507 = vmatpush2.bf16.msra.mxu0 0
  %1508 = vmatprep.subr.bf16.mxu0 0
  %1509 = vmatpush2.bf16.msra.mxu0 0
  %1510 = vmatprep.subr.bf16.mxu0 0
  %1511 = vmatpush2.bf16.msra.mxu0 0
  %1512 = vmatprep.mubr.bf16.mxu0 0
  %1513 = vmatmul.mubr.bf16.gmra.mxu0 %v852
  %v1514 = vpop.f32.mrf.mxu0
  %v1515 = vadd.f32 0.0, %v1514
  %v1516 = vpop.f32.mrf.mxu0
  %v1517 = vadd.f32 0.0, %v1516
  %v1518 = vpop.f32.mrf.mxu0
  %v1519 = vadd.f32 0.0, %v1518
  %v1520 = vpop.f32.mrf.mxu0
  %v1521 = vadd.f32 0.0, %v1520
  %1522 = vdwg.mxu0
  %1523 = vmatprep.subr.bf16.mxu0 0
  %1524 = vmatpush1.bf16.msra.mxu0 0
  %1525 = vmatprep.subr.bf16.mxu0 0
  %1526 = vmatpush1.bf16.msra.mxu0 0
  %1527 = vmatprep.subr.bf16.mxu0 0
  %1528 = vmatpush1.bf16.msra.mxu0 0
  %1529 = vmatprep.subr.bf16.mxu0 0
  %1530 = vmatpush1.bf16.msra.mxu0 0
  %1531 = vmatprep.subr.bf16.mxu0 0
  %1532 = vmatpush1.bf16.msra.mxu0 0
  %1533 = vmatprep.subr.bf16.mxu0 0
  %1534 = vmatpush1.bf16.msra.mxu0 0
  %1535 = vmatprep.subr.bf16.mxu0 0
  %1536 = vmatpush1.bf16.msra.mxu0 0
  %1537 = vmatprep.subr.bf16.mxu0 %v928
  %1538 = vmatpush1.bf16.msra.mxu0 %v925
  %1539 = vmatprep.subr.bf16.mxu0 0
  %1540 = vmatpush2.bf16.msra.mxu0 0
  %1541 = vmatprep.subr.bf16.mxu0 0
  %1542 = vmatpush2.bf16.msra.mxu0 0
  %1543 = vmatprep.subr.bf16.mxu0 0
  %1544 = vmatpush2.bf16.msra.mxu0 0
  %1545 = vmatprep.subr.bf16.mxu0 0
  %1546 = vmatpush2.bf16.msra.mxu0 0
  %1547 = vmatprep.subr.bf16.mxu0 0
  %1548 = vmatpush2.bf16.msra.mxu0 0
  %1549 = vmatprep.subr.bf16.mxu0 0
  %1550 = vmatpush2.bf16.msra.mxu0 0
  %1551 = vmatprep.subr.bf16.mxu0 0
  %1552 = vmatpush2.bf16.msra.mxu0 0
  %1553 = vmatprep.subr.bf16.mxu0 0
  %1554 = vmatpush2.bf16.msra.mxu0 0
  %1555 = vmatprep.mubr.bf16.mxu0 0
  %1556 = vmatmul.mubr.bf16.gmra.mxu0 %v852
  %v1557 = vpop.f32.mrf.mxu0
  %v1558 = vadd.f32 0.0, %v1557
  %v1559 = vpop.f32.mrf.mxu0
  %v1560 = vadd.f32 0.0, %v1559
  %v1561 = vpop.f32.mrf.mxu0
  %v1562 = vadd.f32 0.0, %v1561
  %v1563 = vpop.f32.mrf.mxu0
  %v1564 = vadd.f32 0.0, %v1563
  %1565 = vdwg.mxu0
  %1566 = vmatprep.subr.bf16.mxu0 0
  %1567 = vmatpush1.bf16.msra.mxu0 0
  %1568 = vmatprep.subr.bf16.mxu0 0
  %1569 = vmatpush1.bf16.msra.mxu0 0
  %1570 = vmatprep.subr.bf16.mxu0 0
  %1571 = vmatpush1.bf16.msra.mxu0 0
  %1572 = vmatprep.subr.bf16.mxu0 0
  %1573 = vmatpush1.bf16.msra.mxu0 0
  %1574 = vmatprep.subr.bf16.mxu0 0
  %1575 = vmatpush1.bf16.msra.mxu0 0
  %1576 = vmatprep.subr.bf16.mxu0 0
  %1577 = vmatpush1.bf16.msra.mxu0 0
  %1578 = vmatprep.subr.bf16.mxu0 0
  %1579 = vmatpush1.bf16.msra.mxu0 0
  %1580 = vmatprep.subr.bf16.mxu0 %v934
  %1581 = vmatpush1.bf16.msra.mxu0 %v931
  %1582 = vmatprep.subr.bf16.mxu0 0
  %1583 = vmatpush2.bf16.msra.mxu0 0
  %1584 = vmatprep.subr.bf16.mxu0 0
  %1585 = vmatpush2.bf16.msra.mxu0 0
  %1586 = vmatprep.subr.bf16.mxu0 0
  %1587 = vmatpush2.bf16.msra.mxu0 0
  %1588 = vmatprep.subr.bf16.mxu0 0
  %1589 = vmatpush2.bf16.msra.mxu0 0
  %1590 = vmatprep.subr.bf16.mxu0 0
  %1591 = vmatpush2.bf16.msra.mxu0 0
  %1592 = vmatprep.subr.bf16.mxu0 0
  %1593 = vmatpush2.bf16.msra.mxu0 0
  %1594 = vmatprep.subr.bf16.mxu0 0
  %1595 = vmatpush2.bf16.msra.mxu0 0
  %1596 = vmatprep.subr.bf16.mxu0 0
  %1597 = vmatpush2.bf16.msra.mxu0 0
  %1598 = vmatprep.mubr.bf16.mxu0 0
  %1599 = vmatmul.mubr.bf16.gmra.mxu0 %v852
  %v1600 = vpop.f32.mrf.mxu0
  %v1601 = vadd.f32 0.0, %v1600
  %v1602 = vpop.f32.mrf.mxu0
  %v1603 = vadd.f32 0.0, %v1602
  %v1604 = vpop.f32.mrf.mxu0
  %v1605 = vadd.f32 0.0, %v1604
  %v1606 = vpop.f32.mrf.mxu0
  %v1607 = vadd.f32 0.0, %v1606
  %1608 = vdwg.mxu0
  %1609 = vmatprep.subr.bf16.mxu0 0
  %1610 = vmatpush1.bf16.msra.mxu0 0
  %1611 = vmatprep.subr.bf16.mxu0 0
  %1612 = vmatpush1.bf16.msra.mxu0 0
  %1613 = vmatprep.subr.bf16.mxu0 0
  %1614 = vmatpush1.bf16.msra.mxu0 0
  %1615 = vmatprep.subr.bf16.mxu0 0
  %1616 = vmatpush1.bf16.msra.mxu0 0
  %1617 = vmatprep.subr.bf16.mxu0 0
  %1618 = vmatpush1.bf16.msra.mxu0 0
  %1619 = vmatprep.subr.bf16.mxu0 0
  %1620 = vmatpush1.bf16.msra.mxu0 0
  %1621 = vmatprep.subr.bf16.mxu0 0
  %1622 = vmatpush1.bf16.msra.mxu0 0
  %1623 = vmatprep.subr.bf16.mxu0 %v940
  %1624 = vmatpush1.bf16.msra.mxu0 %v937
  %1625 = vmatprep.subr.bf16.mxu0 0
  %1626 = vmatpush2.bf16.msra.mxu0 0
  %1627 = vmatprep.subr.bf16.mxu0 0
  %1628 = vmatpush2.bf16.msra.mxu0 0
  %1629 = vmatprep.subr.bf16.mxu0 0
  %1630 = vmatpush2.bf16.msra.mxu0 0
  %1631 = vmatprep.subr.bf16.mxu0 0
  %1632 = vmatpush2.bf16.msra.mxu0 0
  %1633 = vmatprep.subr.bf16.mxu0 0
  %1634 = vmatpush2.bf16.msra.mxu0 0
  %1635 = vmatprep.subr.bf16.mxu0 0
  %1636 = vmatpush2.bf16.msra.mxu0 0
  %1637 = vmatprep.subr.bf16.mxu0 0
  %1638 = vmatpush2.bf16.msra.mxu0 0
  %1639 = vmatprep.subr.bf16.mxu0 0
  %1640 = vmatpush2.bf16.msra.mxu0 0
  %1641 = vmatprep.mubr.bf16.mxu0 0
  %1642 = vmatmul.mubr.bf16.gmra.mxu0 %v852
  %v1643 = vpop.f32.mrf.mxu0
  %v1644 = vadd.f32 0.0, %v1643
  %v1645 = vpop.f32.mrf.mxu0
  %v1646 = vadd.f32 0.0, %v1645
  %v1647 = vpop.f32.mrf.mxu0
  %v1648 = vadd.f32 0.0, %v1647
  %v1649 = vpop.f32.mrf.mxu0
  %v1650 = vadd.f32 0.0, %v1649
  %1651 = vdwg.mxu0
  %1652 = vmatprep.subr.bf16.mxu0 0
  %1653 = vmatpush1.bf16.msra.mxu0 0
  %1654 = vmatprep.subr.bf16.mxu0 0
  %1655 = vmatpush1.bf16.msra.mxu0 0
  %1656 = vmatprep.subr.bf16.mxu0 0
  %1657 = vmatpush1.bf16.msra.mxu0 0
  %1658 = vmatprep.subr.bf16.mxu0 0
  %1659 = vmatpush1.bf16.msra.mxu0 0
  %1660 = vmatprep.subr.bf16.mxu0 0
  %1661 = vmatpush1.bf16.msra.mxu0 0
  %1662 = vmatprep.subr.bf16.mxu0 0
  %1663 = vmatpush1.bf16.msra.mxu0 0
  %1664 = vmatprep.subr.bf16.mxu0 0
  %1665 = vmatpush1.bf16.msra.mxu0 0
  %1666 = vmatprep.subr.bf16.mxu0 %v946
  %1667 = vmatpush1.bf16.msra.mxu0 %v943
  %1668 = vmatprep.subr.bf16.mxu0 0
  %1669 = vmatpush2.bf16.msra.mxu0 0
  %1670 = vmatprep.subr.bf16.mxu0 0
  %1671 = vmatpush2.bf16.msra.mxu0 0
  %1672 = vmatprep.subr.bf16.mxu0 0
  %1673 = vmatpush2.bf16.msra.mxu0 0
  %1674 = vmatprep.subr.bf16.mxu0 0
  %1675 = vmatpush2.bf16.msra.mxu0 0
  %1676 = vmatprep.subr.bf16.mxu0 0
  %1677 = vmatpush2.bf16.msra.mxu0 0
  %1678 = vmatprep.subr.bf16.mxu0 0
  %1679 = vmatpush2.bf16.msra.mxu0 0
  %1680 = vmatprep.subr.bf16.mxu0 0
  %1681 = vmatpush2.bf16.msra.mxu0 0
  %1682 = vmatprep.subr.bf16.mxu0 0
  %1683 = vmatpush2.bf16.msra.mxu0 0
  %1684 = vmatprep.mubr.bf16.mxu0 0
  %1685 = vmatmul.mubr.bf16.gmra.mxu0 %v852
  %v1686 = vpop.f32.mrf.mxu0
  %v1687 = vadd.f32 0.0, %v1686
  %v1688 = vpop.f32.mrf.mxu0
  %v1689 = vadd.f32 0.0, %v1688
  %v1690 = vpop.f32.mrf.mxu0
  %v1691 = vadd.f32 0.0, %v1690
  %v1692 = vpop.f32.mrf.mxu0
  %v1693 = vadd.f32 0.0, %v1692
  %1694 = vdwg.mxu0
  %1695 = vmatprep.subr.bf16.mxu0 0
  %1696 = vmatpush1.bf16.msra.mxu0 0
  %1697 = vmatprep.subr.bf16.mxu0 0
  %1698 = vmatpush1.bf16.msra.mxu0 0
  %1699 = vmatprep.subr.bf16.mxu0 0
  %1700 = vmatpush1.bf16.msra.mxu0 0
  %1701 = vmatprep.subr.bf16.mxu0 0
  %1702 = vmatpush1.bf16.msra.mxu0 0
  %1703 = vmatprep.subr.bf16.mxu0 0
  %1704 = vmatpush1.bf16.msra.mxu0 0
  %1705 = vmatprep.subr.bf16.mxu0 0
  %1706 = vmatpush1.bf16.msra.mxu0 0
  %1707 = vmatprep.subr.bf16.mxu0 0
  %1708 = vmatpush1.bf16.msra.mxu0 0
  %1709 = vmatprep.subr.bf16.mxu0 %v952
  %1710 = vmatpush1.bf16.msra.mxu0 %v949
  %1711 = vmatprep.subr.bf16.mxu0 0
  %1712 = vmatpush2.bf16.msra.mxu0 0
  %1713 = vmatprep.subr.bf16.mxu0 0
  %1714 = vmatpush2.bf16.msra.mxu0 0
  %1715 = vmatprep.subr.bf16.mxu0 0
  %1716 = vmatpush2.bf16.msra.mxu0 0
  %1717 = vmatprep.subr.bf16.mxu0 0
  %1718 = vmatpush2.bf16.msra.mxu0 0
  %1719 = vmatprep.subr.bf16.mxu0 0
  %1720 = vmatpush2.bf16.msra.mxu0 0
  %1721 = vmatprep.subr.bf16.mxu0 0
  %1722 = vmatpush2.bf16.msra.mxu0 0
  %1723 = vmatprep.subr.bf16.mxu0 0
  %1724 = vmatpush2.bf16.msra.mxu0 0
  %1725 = vmatprep.subr.bf16.mxu0 0
  %1726 = vmatpush2.bf16.msra.mxu0 0
  %1727 = vmatprep.mubr.bf16.mxu0 0
  %1728 = vmatmul.mubr.bf16.gmra.mxu0 %v852
  %v1729 = vpop.f32.mrf.mxu0
  %v1730 = vadd.f32 0.0, %v1729
  %v1731 = vpop.f32.mrf.mxu0
  %v1732 = vadd.f32 0.0, %v1731
  %v1733 = vpop.f32.mrf.mxu0
  %v1734 = vadd.f32 0.0, %v1733
  %v1735 = vpop.f32.mrf.mxu0
  %v1736 = vadd.f32 0.0, %v1735
  %1737 = vdwg.mxu0
  %1738 = vmatprep.subr.bf16.mxu0 0
  %1739 = vmatpush1.bf16.msra.mxu0 0
  %1740 = vmatprep.subr.bf16.mxu0 0
  %1741 = vmatpush1.bf16.msra.mxu0 0
  %1742 = vmatprep.subr.bf16.mxu0 0
  %1743 = vmatpush1.bf16.msra.mxu0 0
  %1744 = vmatprep.subr.bf16.mxu0 0
  %1745 = vmatpush1.bf16.msra.mxu0 0
  %1746 = vmatprep.subr.bf16.mxu0 0
  %1747 = vmatpush1.bf16.msra.mxu0 0
  %1748 = vmatprep.subr.bf16.mxu0 0
  %1749 = vmatpush1.bf16.msra.mxu0 0
  %1750 = vmatprep.subr.bf16.mxu0 0
  %1751 = vmatpush1.bf16.msra.mxu0 0
  %1752 = vmatprep.subr.bf16.mxu0 %v958
  %1753 = vmatpush1.bf16.msra.mxu0 %v955
  %1754 = vmatprep.subr.bf16.mxu0 0
  %1755 = vmatpush2.bf16.msra.mxu0 0
  %1756 = vmatprep.subr.bf16.mxu0 0
  %1757 = vmatpush2.bf16.msra.mxu0 0
  %1758 = vmatprep.subr.bf16.mxu0 0
  %1759 = vmatpush2.bf16.msra.mxu0 0
  %1760 = vmatprep.subr.bf16.mxu0 0
  %1761 = vmatpush2.bf16.msra.mxu0 0
  %1762 = vmatprep.subr.bf16.mxu0 0
  %1763 = vmatpush2.bf16.msra.mxu0 0
  %1764 = vmatprep.subr.bf16.mxu0 0
  %1765 = vmatpush2.bf16.msra.mxu0 0
  %1766 = vmatprep.subr.bf16.mxu0 0
  %1767 = vmatpush2.bf16.msra.mxu0 0
  %1768 = vmatprep.subr.bf16.mxu0 0
  %1769 = vmatpush2.bf16.msra.mxu0 0
  %1770 = vmatprep.mubr.bf16.mxu0 0
  %1771 = vmatmul.mubr.bf16.gmra.mxu0 %v852
  %v1772 = vpop.f32.mrf.mxu0
  %v1773 = vadd.f32 0.0, %v1772
  %v1774 = vpop.f32.mrf.mxu0
  %v1775 = vadd.f32 0.0, %v1774
  %v1776 = vpop.f32.mrf.mxu0
  %v1777 = vadd.f32 0.0, %v1776
  %v1778 = vpop.f32.mrf.mxu0
  %v1779 = vadd.f32 0.0, %v1778
  %1780 = vdwg.mxu0
  %1781 = vmatprep.subr.bf16.mxu0 0
  %1782 = vmatpush1.bf16.msra.mxu0 0
  %1783 = vmatprep.subr.bf16.mxu0 0
  %1784 = vmatpush1.bf16.msra.mxu0 0
  %1785 = vmatprep.subr.bf16.mxu0 0
  %1786 = vmatpush1.bf16.msra.mxu0 0
  %1787 = vmatprep.subr.bf16.mxu0 0
  %1788 = vmatpush1.bf16.msra.mxu0 0
  %1789 = vmatprep.subr.bf16.mxu0 0
  %1790 = vmatpush1.bf16.msra.mxu0 0
  %1791 = vmatprep.subr.bf16.mxu0 0
  %1792 = vmatpush1.bf16.msra.mxu0 0
  %1793 = vmatprep.subr.bf16.mxu0 0
  %1794 = vmatpush1.bf16.msra.mxu0 0
  %1795 = vmatprep.subr.bf16.mxu0 %v964
  %1796 = vmatpush1.bf16.msra.mxu0 %v961
  %1797 = vmatprep.subr.bf16.mxu0 0
  %1798 = vmatpush2.bf16.msra.mxu0 0
  %1799 = vmatprep.subr.bf16.mxu0 0
  %1800 = vmatpush2.bf16.msra.mxu0 0
  %1801 = vmatprep.subr.bf16.mxu0 0
  %1802 = vmatpush2.bf16.msra.mxu0 0
  %1803 = vmatprep.subr.bf16.mxu0 0
  %1804 = vmatpush2.bf16.msra.mxu0 0
  %1805 = vmatprep.subr.bf16.mxu0 0
  %1806 = vmatpush2.bf16.msra.mxu0 0
  %1807 = vmatprep.subr.bf16.mxu0 0
  %1808 = vmatpush2.bf16.msra.mxu0 0
  %1809 = vmatprep.subr.bf16.mxu0 0
  %1810 = vmatpush2.bf16.msra.mxu0 0
  %1811 = vmatprep.subr.bf16.mxu0 0
  %1812 = vmatpush2.bf16.msra.mxu0 0
  %1813 = vmatprep.mubr.bf16.mxu0 0
  %1814 = vmatmul.mubr.bf16.gmra.mxu0 %v852
  %v1815 = vpop.f32.mrf.mxu0
  %v1816 = vadd.f32 0.0, %v1815
  %v1817 = vpop.f32.mrf.mxu0
  %v1818 = vadd.f32 0.0, %v1817
  %v1819 = vpop.f32.mrf.mxu0
  %v1820 = vadd.f32 0.0, %v1819
  %v1821 = vpop.f32.mrf.mxu0
  %v1822 = vadd.f32 0.0, %v1821
  %1823 = vdwg.mxu0
  %1824 = vmatprep.subr.bf16.mxu0 0
  %1825 = vmatpush1.bf16.msra.mxu0 0
  %1826 = vmatprep.subr.bf16.mxu0 0
  %1827 = vmatpush1.bf16.msra.mxu0 0
  %1828 = vmatprep.subr.bf16.mxu0 0
  %1829 = vmatpush1.bf16.msra.mxu0 0
  %1830 = vmatprep.subr.bf16.mxu0 0
  %1831 = vmatpush1.bf16.msra.mxu0 0
  %1832 = vmatprep.subr.bf16.mxu0 0
  %1833 = vmatpush1.bf16.msra.mxu0 0
  %1834 = vmatprep.subr.bf16.mxu0 0
  %1835 = vmatpush1.bf16.msra.mxu0 0
  %1836 = vmatprep.subr.bf16.mxu0 0
  %1837 = vmatpush1.bf16.msra.mxu0 0
  %1838 = vmatprep.subr.bf16.mxu0 %v970
  %1839 = vmatpush1.bf16.msra.mxu0 %v967
  %1840 = vmatprep.subr.bf16.mxu0 0
  %1841 = vmatpush2.bf16.msra.mxu0 0
  %1842 = vmatprep.subr.bf16.mxu0 0
  %1843 = vmatpush2.bf16.msra.mxu0 0
  %1844 = vmatprep.subr.bf16.mxu0 0
  %1845 = vmatpush2.bf16.msra.mxu0 0
  %1846 = vmatprep.subr.bf16.mxu0 0
  %1847 = vmatpush2.bf16.msra.mxu0 0
  %1848 = vmatprep.subr.bf16.mxu0 0
  %1849 = vmatpush2.bf16.msra.mxu0 0
  %1850 = vmatprep.subr.bf16.mxu0 0
  %1851 = vmatpush2.bf16.msra.mxu0 0
  %1852 = vmatprep.subr.bf16.mxu0 0
  %1853 = vmatpush2.bf16.msra.mxu0 0
  %1854 = vmatprep.subr.bf16.mxu0 0
  %1855 = vmatpush2.bf16.msra.mxu0 0
  %1856 = vmatprep.mubr.bf16.mxu0 0
  %1857 = vmatmul.mubr.bf16.gmra.mxu0 %v852
  %v1858 = vpop.f32.mrf.mxu0
  %v1859 = vadd.f32 0.0, %v1858
  %v1860 = vpop.f32.mrf.mxu0
  %v1861 = vadd.f32 0.0, %v1860
  %v1862 = vpop.f32.mrf.mxu0
  %v1863 = vadd.f32 0.0, %v1862
  %v1864 = vpop.f32.mrf.mxu0
  %v1865 = vadd.f32 0.0, %v1864
  %1866 = vdwg.mxu0
  %1867 = vmatprep.subr.bf16.mxu0 0
  %1868 = vmatpush1.bf16.msra.mxu0 0
  %1869 = vmatprep.subr.bf16.mxu0 0
  %1870 = vmatpush1.bf16.msra.mxu0 0
  %1871 = vmatprep.subr.bf16.mxu0 0
  %1872 = vmatpush1.bf16.msra.mxu0 0
  %1873 = vmatprep.subr.bf16.mxu0 0
  %1874 = vmatpush1.bf16.msra.mxu0 0
  %1875 = vmatprep.subr.bf16.mxu0 0
  %1876 = vmatpush1.bf16.msra.mxu0 0
  %1877 = vmatprep.subr.bf16.mxu0 0
  %1878 = vmatpush1.bf16.msra.mxu0 0
  %1879 = vmatprep.subr.bf16.mxu0 0
  %1880 = vmatpush1.bf16.msra.mxu0 0
  %1881 = vmatprep.subr.bf16.mxu0 %v976
  %1882 = vmatpush1.bf16.msra.mxu0 %v973
  %1883 = vmatprep.subr.bf16.mxu0 0
  %1884 = vmatpush2.bf16.msra.mxu0 0
  %1885 = vmatprep.subr.bf16.mxu0 0
  %1886 = vmatpush2.bf16.msra.mxu0 0
  %1887 = vmatprep.subr.bf16.mxu0 0
  %1888 = vmatpush2.bf16.msra.mxu0 0
  %1889 = vmatprep.subr.bf16.mxu0 0
  %1890 = vmatpush2.bf16.msra.mxu0 0
  %1891 = vmatprep.subr.bf16.mxu0 0
  %1892 = vmatpush2.bf16.msra.mxu0 0
  %1893 = vmatprep.subr.bf16.mxu0 0
  %1894 = vmatpush2.bf16.msra.mxu0 0
  %1895 = vmatprep.subr.bf16.mxu0 0
  %1896 = vmatpush2.bf16.msra.mxu0 0
  %1897 = vmatprep.subr.bf16.mxu0 0
  %1898 = vmatpush2.bf16.msra.mxu0 0
  %1899 = vmatprep.mubr.bf16.mxu0 0
  %1900 = vmatmul.mubr.bf16.gmra.mxu0 %v852
  %v1901 = vpop.f32.mrf.mxu0
  %v1902 = vadd.f32 0.0, %v1901
  %v1903 = vpop.f32.mrf.mxu0
  %v1904 = vadd.f32 0.0, %v1903
  %v1905 = vpop.f32.mrf.mxu0
  %v1906 = vadd.f32 0.0, %v1905
  %v1907 = vpop.f32.mrf.mxu0
  %v1908 = vadd.f32 0.0, %v1907
  %1909 = vdwg.mxu0
  %1910 = vmatprep.subr.bf16.mxu0 0
  %1911 = vmatpush1.bf16.msra.mxu0 0
  %1912 = vmatprep.subr.bf16.mxu0 0
  %1913 = vmatpush1.bf16.msra.mxu0 0
  %1914 = vmatprep.subr.bf16.mxu0 0
  %1915 = vmatpush1.bf16.msra.mxu0 0
  %1916 = vmatprep.subr.bf16.mxu0 0
  %1917 = vmatpush1.bf16.msra.mxu0 0
  %1918 = vmatprep.subr.bf16.mxu0 0
  %1919 = vmatpush1.bf16.msra.mxu0 0
  %1920 = vmatprep.subr.bf16.mxu0 0
  %1921 = vmatpush1.bf16.msra.mxu0 0
  %1922 = vmatprep.subr.bf16.mxu0 0
  %1923 = vmatpush1.bf16.msra.mxu0 0
  %1924 = vmatprep.subr.bf16.mxu0 %v982
  %1925 = vmatpush1.bf16.msra.mxu0 %v979
  %1926 = vmatprep.subr.bf16.mxu0 0
  %1927 = vmatpush2.bf16.msra.mxu0 0
  %1928 = vmatprep.subr.bf16.mxu0 0
  %1929 = vmatpush2.bf16.msra.mxu0 0
  %1930 = vmatprep.subr.bf16.mxu0 0
  %1931 = vmatpush2.bf16.msra.mxu0 0
  %1932 = vmatprep.subr.bf16.mxu0 0
  %1933 = vmatpush2.bf16.msra.mxu0 0
  %1934 = vmatprep.subr.bf16.mxu0 0
  %1935 = vmatpush2.bf16.msra.mxu0 0
  %1936 = vmatprep.subr.bf16.mxu0 0
  %1937 = vmatpush2.bf16.msra.mxu0 0
  %1938 = vmatprep.subr.bf16.mxu0 0
  %1939 = vmatpush2.bf16.msra.mxu0 0
  %1940 = vmatprep.subr.bf16.mxu0 0
  %1941 = vmatpush2.bf16.msra.mxu0 0
  %1942 = vmatprep.mubr.bf16.mxu0 0
  %1943 = vmatmul.mubr.bf16.gmra.mxu0 %v852
  %v1944 = vpop.f32.mrf.mxu0
  %v1945 = vadd.f32 0.0, %v1944
  %v1946 = vpop.f32.mrf.mxu0
  %v1947 = vadd.f32 0.0, %v1946
  %v1948 = vpop.f32.mrf.mxu0
  %v1949 = vadd.f32 0.0, %v1948
  %v1950 = vpop.f32.mrf.mxu0
  %v1951 = vadd.f32 0.0, %v1950
  %1952 = vdwg.mxu0
  %1953 = vmatprep.subr.bf16.mxu0 0
  %1954 = vmatpush1.bf16.msra.mxu0 0
  %1955 = vmatprep.subr.bf16.mxu0 0
  %1956 = vmatpush1.bf16.msra.mxu0 0
  %1957 = vmatprep.subr.bf16.mxu0 0
  %1958 = vmatpush1.bf16.msra.mxu0 0
  %1959 = vmatprep.subr.bf16.mxu0 0
  %1960 = vmatpush1.bf16.msra.mxu0 0
  %1961 = vmatprep.subr.bf16.mxu0 0
  %1962 = vmatpush1.bf16.msra.mxu0 0
  %1963 = vmatprep.subr.bf16.mxu0 0
  %1964 = vmatpush1.bf16.msra.mxu0 0
  %1965 = vmatprep.subr.bf16.mxu0 0
  %1966 = vmatpush1.bf16.msra.mxu0 0
  %1967 = vmatprep.subr.bf16.mxu0 %v988
  %1968 = vmatpush1.bf16.msra.mxu0 %v985
  %1969 = vmatprep.subr.bf16.mxu0 0
  %1970 = vmatpush2.bf16.msra.mxu0 0
  %1971 = vmatprep.subr.bf16.mxu0 0
  %1972 = vmatpush2.bf16.msra.mxu0 0
  %1973 = vmatprep.subr.bf16.mxu0 0
  %1974 = vmatpush2.bf16.msra.mxu0 0
  %1975 = vmatprep.subr.bf16.mxu0 0
  %1976 = vmatpush2.bf16.msra.mxu0 0
  %1977 = vmatprep.subr.bf16.mxu0 0
  %1978 = vmatpush2.bf16.msra.mxu0 0
  %1979 = vmatprep.subr.bf16.mxu0 0
  %1980 = vmatpush2.bf16.msra.mxu0 0
  %1981 = vmatprep.subr.bf16.mxu0 0
  %1982 = vmatpush2.bf16.msra.mxu0 0
  %1983 = vmatprep.subr.bf16.mxu0 0
  %1984 = vmatpush2.bf16.msra.mxu0 0
  %1985 = vmatprep.mubr.bf16.mxu0 0
  %1986 = vmatmul.mubr.bf16.gmra.mxu0 %v852
  %v1987 = vpop.f32.mrf.mxu0
  %v1988 = vadd.f32 0.0, %v1987
  %v1989 = vpop.f32.mrf.mxu0
  %v1990 = vadd.f32 0.0, %v1989
  %v1991 = vpop.f32.mrf.mxu0
  %v1992 = vadd.f32 0.0, %v1991
  %v1993 = vpop.f32.mrf.mxu0
  %v1994 = vadd.f32 0.0, %v1993
  %1995 = vdwg.mxu0
  %1996 = vmatprep.subr.bf16.mxu0 0
  %1997 = vmatpush1.bf16.msra.mxu0 0
  %1998 = vmatprep.subr.bf16.mxu0 0
  %1999 = vmatpush1.bf16.msra.mxu0 0
  %2000 = vmatprep.subr.bf16.mxu0 0
  %2001 = vmatpush1.bf16.msra.mxu0 0
  %2002 = vmatprep.subr.bf16.mxu0 0
  %2003 = vmatpush1.bf16.msra.mxu0 0
  %2004 = vmatprep.subr.bf16.mxu0 0
  %2005 = vmatpush1.bf16.msra.mxu0 0
  %2006 = vmatprep.subr.bf16.mxu0 0
  %2007 = vmatpush1.bf16.msra.mxu0 0
  %2008 = vmatprep.subr.bf16.mxu0 0
  %2009 = vmatpush1.bf16.msra.mxu0 0
  %2010 = vmatprep.subr.bf16.mxu0 %v994
  %2011 = vmatpush1.bf16.msra.mxu0 %v991
  %2012 = vmatprep.subr.bf16.mxu0 0
  %2013 = vmatpush2.bf16.msra.mxu0 0
  %2014 = vmatprep.subr.bf16.mxu0 0
  %2015 = vmatpush2.bf16.msra.mxu0 0
  %2016 = vmatprep.subr.bf16.mxu0 0
  %2017 = vmatpush2.bf16.msra.mxu0 0
  %2018 = vmatprep.subr.bf16.mxu0 0
  %2019 = vmatpush2.bf16.msra.mxu0 0
  %2020 = vmatprep.subr.bf16.mxu0 0
  %2021 = vmatpush2.bf16.msra.mxu0 0
  %2022 = vmatprep.subr.bf16.mxu0 0
  %2023 = vmatpush2.bf16.msra.mxu0 0
  %2024 = vmatprep.subr.bf16.mxu0 0
  %2025 = vmatpush2.bf16.msra.mxu0 0
  %2026 = vmatprep.subr.bf16.mxu0 0
  %2027 = vmatpush2.bf16.msra.mxu0 0
  %2028 = vmatprep.mubr.bf16.mxu0 0
  %2029 = vmatmul.mubr.bf16.gmra.mxu0 %v852
  %v2030 = vpop.f32.mrf.mxu0
  %v2031 = vadd.f32 0.0, %v2030
  %v2032 = vpop.f32.mrf.mxu0
  %v2033 = vadd.f32 0.0, %v2032
  %v2034 = vpop.f32.mrf.mxu0
  %v2035 = vadd.f32 0.0, %v2034
  %v2036 = vpop.f32.mrf.mxu0
  %v2037 = vadd.f32 0.0, %v2036
  %2038 = vdwg.mxu0
  %2039 = vmatprep.subr.bf16.mxu0 0
  %2040 = vmatpush1.bf16.msra.mxu0 0
  %2041 = vmatprep.subr.bf16.mxu0 0
  %2042 = vmatpush1.bf16.msra.mxu0 0
  %2043 = vmatprep.subr.bf16.mxu0 0
  %2044 = vmatpush1.bf16.msra.mxu0 0
  %2045 = vmatprep.subr.bf16.mxu0 0
  %2046 = vmatpush1.bf16.msra.mxu0 0
  %2047 = vmatprep.subr.bf16.mxu0 0
  %2048 = vmatpush1.bf16.msra.mxu0 0
  %2049 = vmatprep.subr.bf16.mxu0 0
  %2050 = vmatpush1.bf16.msra.mxu0 0
  %2051 = vmatprep.subr.bf16.mxu0 0
  %2052 = vmatpush1.bf16.msra.mxu0 0
  %2053 = vmatprep.subr.bf16.mxu0 %v1000
  %2054 = vmatpush1.bf16.msra.mxu0 %v997
  %2055 = vmatprep.subr.bf16.mxu0 0
  %2056 = vmatpush2.bf16.msra.mxu0 0
  %2057 = vmatprep.subr.bf16.mxu0 0
  %2058 = vmatpush2.bf16.msra.mxu0 0
  %2059 = vmatprep.subr.bf16.mxu0 0
  %2060 = vmatpush2.bf16.msra.mxu0 0
  %2061 = vmatprep.subr.bf16.mxu0 0
  %2062 = vmatpush2.bf16.msra.mxu0 0
  %2063 = vmatprep.subr.bf16.mxu0 0
  %2064 = vmatpush2.bf16.msra.mxu0 0
  %2065 = vmatprep.subr.bf16.mxu0 0
  %2066 = vmatpush2.bf16.msra.mxu0 0
  %2067 = vmatprep.subr.bf16.mxu0 0
  %2068 = vmatpush2.bf16.msra.mxu0 0
  %2069 = vmatprep.subr.bf16.mxu0 0
  %2070 = vmatpush2.bf16.msra.mxu0 0
  %2071 = vmatprep.mubr.bf16.mxu0 0
  %2072 = vmatmul.mubr.bf16.gmra.mxu0 %v852
  %v2073 = vpop.f32.mrf.mxu0
  %v2074 = vadd.f32 0.0, %v2073
  %v2075 = vpop.f32.mrf.mxu0
  %v2076 = vadd.f32 0.0, %v2075
  %v2077 = vpop.f32.mrf.mxu0
  %v2078 = vadd.f32 0.0, %v2077
  %v2079 = vpop.f32.mrf.mxu0
  %v2080 = vadd.f32 0.0, %v2079
  %2081 = vdwg.mxu0
  %2082 = vmatprep.subr.bf16.mxu0 0
  %2083 = vmatpush1.bf16.msra.mxu0 0
  %2084 = vmatprep.subr.bf16.mxu0 0
  %2085 = vmatpush1.bf16.msra.mxu0 0
  %2086 = vmatprep.subr.bf16.mxu0 0
  %2087 = vmatpush1.bf16.msra.mxu0 0
  %2088 = vmatprep.subr.bf16.mxu0 0
  %2089 = vmatpush1.bf16.msra.mxu0 0
  %2090 = vmatprep.subr.bf16.mxu0 0
  %2091 = vmatpush1.bf16.msra.mxu0 0
  %2092 = vmatprep.subr.bf16.mxu0 0
  %2093 = vmatpush1.bf16.msra.mxu0 0
  %2094 = vmatprep.subr.bf16.mxu0 0
  %2095 = vmatpush1.bf16.msra.mxu0 0
  %2096 = vmatprep.subr.bf16.mxu0 %v1006
  %2097 = vmatpush1.bf16.msra.mxu0 %v1003
  %2098 = vmatprep.subr.bf16.mxu0 0
  %2099 = vmatpush2.bf16.msra.mxu0 0
  %2100 = vmatprep.subr.bf16.mxu0 0
  %2101 = vmatpush2.bf16.msra.mxu0 0
  %2102 = vmatprep.subr.bf16.mxu0 0
  %2103 = vmatpush2.bf16.msra.mxu0 0
  %2104 = vmatprep.subr.bf16.mxu0 0
  %2105 = vmatpush2.bf16.msra.mxu0 0
  %2106 = vmatprep.subr.bf16.mxu0 0
  %2107 = vmatpush2.bf16.msra.mxu0 0
  %2108 = vmatprep.subr.bf16.mxu0 0
  %2109 = vmatpush2.bf16.msra.mxu0 0
  %2110 = vmatprep.subr.bf16.mxu0 0
  %2111 = vmatpush2.bf16.msra.mxu0 0
  %2112 = vmatprep.subr.bf16.mxu0 0
  %2113 = vmatpush2.bf16.msra.mxu0 0
  %2114 = vmatprep.mubr.bf16.mxu0 0
  %2115 = vmatmul.mubr.bf16.gmra.mxu0 %v852
  %v2116 = vpop.f32.mrf.mxu0
  %v2117 = vadd.f32 0.0, %v2116
  %v2118 = vpop.f32.mrf.mxu0
  %v2119 = vadd.f32 0.0, %v2118
  %v2120 = vpop.f32.mrf.mxu0
  %v2121 = vadd.f32 0.0, %v2120
  %v2122 = vpop.f32.mrf.mxu0
  %v2123 = vadd.f32 0.0, %v2122
  %2124 = vdwg.mxu0
  %2125 = vmatprep.subr.bf16.mxu0 0
  %2126 = vmatpush1.bf16.msra.mxu0 0
  %2127 = vmatprep.subr.bf16.mxu0 0
  %2128 = vmatpush1.bf16.msra.mxu0 0
  %2129 = vmatprep.subr.bf16.mxu0 0
  %2130 = vmatpush1.bf16.msra.mxu0 0
  %2131 = vmatprep.subr.bf16.mxu0 0
  %2132 = vmatpush1.bf16.msra.mxu0 0
  %2133 = vmatprep.subr.bf16.mxu0 0
  %2134 = vmatpush1.bf16.msra.mxu0 0
  %2135 = vmatprep.subr.bf16.mxu0 0
  %2136 = vmatpush1.bf16.msra.mxu0 0
  %2137 = vmatprep.subr.bf16.mxu0 0
  %2138 = vmatpush1.bf16.msra.mxu0 0
  %2139 = vmatprep.subr.bf16.mxu0 %v1012
  %2140 = vmatpush1.bf16.msra.mxu0 %v1009
  %2141 = vmatprep.subr.bf16.mxu0 0
  %2142 = vmatpush2.bf16.msra.mxu0 0
  %2143 = vmatprep.subr.bf16.mxu0 0
  %2144 = vmatpush2.bf16.msra.mxu0 0
  %2145 = vmatprep.subr.bf16.mxu0 0
  %2146 = vmatpush2.bf16.msra.mxu0 0
  %2147 = vmatprep.subr.bf16.mxu0 0
  %2148 = vmatpush2.bf16.msra.mxu0 0
  %2149 = vmatprep.subr.bf16.mxu0 0
  %2150 = vmatpush2.bf16.msra.mxu0 0
  %2151 = vmatprep.subr.bf16.mxu0 0
  %2152 = vmatpush2.bf16.msra.mxu0 0
  %2153 = vmatprep.subr.bf16.mxu0 0
  %2154 = vmatpush2.bf16.msra.mxu0 0
  %2155 = vmatprep.subr.bf16.mxu0 0
  %2156 = vmatpush2.bf16.msra.mxu0 0
  %2157 = vmatprep.mubr.bf16.mxu0 0
  %2158 = vmatmul.mubr.bf16.gmra.mxu0 %v852
  %v2159 = vpop.f32.mrf.mxu0
  %v2160 = vadd.f32 0.0, %v2159
  %v2161 = vpop.f32.mrf.mxu0
  %v2162 = vadd.f32 0.0, %v2161
  %v2163 = vpop.f32.mrf.mxu0
  %v2164 = vadd.f32 0.0, %v2163
  %v2165 = vpop.f32.mrf.mxu0
  %v2166 = vadd.f32 0.0, %v2165
  %2167 = vdwg.mxu0
  %2168 = vmatprep.subr.bf16.mxu0 0
  %2169 = vmatpush1.bf16.msra.mxu0 0
  %2170 = vmatprep.subr.bf16.mxu0 0
  %2171 = vmatpush1.bf16.msra.mxu0 0
  %2172 = vmatprep.subr.bf16.mxu0 0
  %2173 = vmatpush1.bf16.msra.mxu0 0
  %2174 = vmatprep.subr.bf16.mxu0 0
  %2175 = vmatpush1.bf16.msra.mxu0 0
  %2176 = vmatprep.subr.bf16.mxu0 0
  %2177 = vmatpush1.bf16.msra.mxu0 0
  %2178 = vmatprep.subr.bf16.mxu0 0
  %2179 = vmatpush1.bf16.msra.mxu0 0
  %2180 = vmatprep.subr.bf16.mxu0 0
  %2181 = vmatpush1.bf16.msra.mxu0 0
  %2182 = vmatprep.subr.bf16.mxu0 %v1018
  %2183 = vmatpush1.bf16.msra.mxu0 %v1015
  %2184 = vmatprep.subr.bf16.mxu0 0
  %2185 = vmatpush2.bf16.msra.mxu0 0
  %2186 = vmatprep.subr.bf16.mxu0 0
  %2187 = vmatpush2.bf16.msra.mxu0 0
  %2188 = vmatprep.subr.bf16.mxu0 0
  %2189 = vmatpush2.bf16.msra.mxu0 0
  %2190 = vmatprep.subr.bf16.mxu0 0
  %2191 = vmatpush2.bf16.msra.mxu0 0
  %2192 = vmatprep.subr.bf16.mxu0 0
  %2193 = vmatpush2.bf16.msra.mxu0 0
  %2194 = vmatprep.subr.bf16.mxu0 0
  %2195 = vmatpush2.bf16.msra.mxu0 0
  %2196 = vmatprep.subr.bf16.mxu0 0
  %2197 = vmatpush2.bf16.msra.mxu0 0
  %2198 = vmatprep.subr.bf16.mxu0 0
  %2199 = vmatpush2.bf16.msra.mxu0 0
  %2200 = vmatprep.mubr.bf16.mxu0 0
  %2201 = vmatmul.mubr.bf16.gmra.mxu0 %v852
  %v2202 = vpop.f32.mrf.mxu0
  %v2203 = vadd.f32 0.0, %v2202
  %v2204 = vpop.f32.mrf.mxu0
  %v2205 = vadd.f32 0.0, %v2204
  %v2206 = vpop.f32.mrf.mxu0
  %v2207 = vadd.f32 0.0, %v2206
  %v2208 = vpop.f32.mrf.mxu0
  %v2209 = vadd.f32 0.0, %v2208
  %2210 = vdwg.mxu0
  %2211 = vmatprep.subr.bf16.mxu0 0
  %2212 = vmatpush1.bf16.msra.mxu0 0
  %2213 = vmatprep.subr.bf16.mxu0 0
  %2214 = vmatpush1.bf16.msra.mxu0 0
  %2215 = vmatprep.subr.bf16.mxu0 0
  %2216 = vmatpush1.bf16.msra.mxu0 0
  %2217 = vmatprep.subr.bf16.mxu0 0
  %2218 = vmatpush1.bf16.msra.mxu0 0
  %2219 = vmatprep.subr.bf16.mxu0 0
  %2220 = vmatpush1.bf16.msra.mxu0 0
  %2221 = vmatprep.subr.bf16.mxu0 0
  %2222 = vmatpush1.bf16.msra.mxu0 0
  %2223 = vmatprep.subr.bf16.mxu0 0
  %2224 = vmatpush1.bf16.msra.mxu0 0
  %2225 = vmatprep.subr.bf16.mxu0 %v1024
  %2226 = vmatpush1.bf16.msra.mxu0 %v1021
  %2227 = vmatprep.subr.bf16.mxu0 0
  %2228 = vmatpush2.bf16.msra.mxu0 0
  %2229 = vmatprep.subr.bf16.mxu0 0
  %2230 = vmatpush2.bf16.msra.mxu0 0
  %2231 = vmatprep.subr.bf16.mxu0 0
  %2232 = vmatpush2.bf16.msra.mxu0 0
  %2233 = vmatprep.subr.bf16.mxu0 0
  %2234 = vmatpush2.bf16.msra.mxu0 0
  %2235 = vmatprep.subr.bf16.mxu0 0
  %2236 = vmatpush2.bf16.msra.mxu0 0
  %2237 = vmatprep.subr.bf16.mxu0 0
  %2238 = vmatpush2.bf16.msra.mxu0 0
  %2239 = vmatprep.subr.bf16.mxu0 0
  %2240 = vmatpush2.bf16.msra.mxu0 0
  %2241 = vmatprep.subr.bf16.mxu0 0
  %2242 = vmatpush2.bf16.msra.mxu0 0
  %2243 = vmatprep.mubr.bf16.mxu0 0
  %2244 = vmatmul.mubr.bf16.gmra.mxu0 %v852
  %v2245 = vpop.f32.mrf.mxu0
  %v2246 = vadd.f32 0.0, %v2245
  %v2247 = vpop.f32.mrf.mxu0
  %v2248 = vadd.f32 0.0, %v2247
  %v2249 = vpop.f32.mrf.mxu0
  %v2250 = vadd.f32 0.0, %v2249
  %v2251 = vpop.f32.mrf.mxu0
  %v2252 = vadd.f32 0.0, %v2251
  %2253 = vdwg.mxu0
  %2254 = vmatprep.subr.bf16.mxu0 0
  %2255 = vmatpush1.bf16.msra.mxu0 0
  %2256 = vmatprep.subr.bf16.mxu0 0
  %2257 = vmatpush1.bf16.msra.mxu0 0
  %2258 = vmatprep.subr.bf16.mxu0 0
  %2259 = vmatpush1.bf16.msra.mxu0 0
  %2260 = vmatprep.subr.bf16.mxu0 0
  %2261 = vmatpush1.bf16.msra.mxu0 0
  %2262 = vmatprep.subr.bf16.mxu0 0
  %2263 = vmatpush1.bf16.msra.mxu0 0
  %2264 = vmatprep.subr.bf16.mxu0 0
  %2265 = vmatpush1.bf16.msra.mxu0 0
  %2266 = vmatprep.subr.bf16.mxu0 0
  %2267 = vmatpush1.bf16.msra.mxu0 0
  %2268 = vmatprep.subr.bf16.mxu0 %v1030
  %2269 = vmatpush1.bf16.msra.mxu0 %v1027
  %2270 = vmatprep.subr.bf16.mxu0 0
  %2271 = vmatpush2.bf16.msra.mxu0 0
  %2272 = vmatprep.subr.bf16.mxu0 0
  %2273 = vmatpush2.bf16.msra.mxu0 0
  %2274 = vmatprep.subr.bf16.mxu0 0
  %2275 = vmatpush2.bf16.msra.mxu0 0
  %2276 = vmatprep.subr.bf16.mxu0 0
  %2277 = vmatpush2.bf16.msra.mxu0 0
  %2278 = vmatprep.subr.bf16.mxu0 0
  %2279 = vmatpush2.bf16.msra.mxu0 0
  %2280 = vmatprep.subr.bf16.mxu0 0
  %2281 = vmatpush2.bf16.msra.mxu0 0
  %2282 = vmatprep.subr.bf16.mxu0 0
  %2283 = vmatpush2.bf16.msra.mxu0 0
  %2284 = vmatprep.subr.bf16.mxu0 0
  %2285 = vmatpush2.bf16.msra.mxu0 0
  %2286 = vmatprep.mubr.bf16.mxu0 0
  %2287 = vmatmul.mubr.bf16.gmra.mxu0 %v852
  %v2288 = vpop.f32.mrf.mxu0
  %v2289 = vadd.f32 0.0, %v2288
  %v2290 = vpop.f32.mrf.mxu0
  %v2291 = vadd.f32 0.0, %v2290
  %v2292 = vpop.f32.mrf.mxu0
  %v2293 = vadd.f32 0.0, %v2292
  %v2294 = vpop.f32.mrf.mxu0
  %v2295 = vadd.f32 0.0, %v2294
  %2296 = vdwg.mxu0
  %2297 = vmatprep.subr.bf16.mxu0 0
  %2298 = vmatpush1.bf16.msra.mxu0 0
  %2299 = vmatprep.subr.bf16.mxu0 0
  %2300 = vmatpush1.bf16.msra.mxu0 0
  %2301 = vmatprep.subr.bf16.mxu0 0
  %2302 = vmatpush1.bf16.msra.mxu0 0
  %2303 = vmatprep.subr.bf16.mxu0 0
  %2304 = vmatpush1.bf16.msra.mxu0 0
  %2305 = vmatprep.subr.bf16.mxu0 0
  %2306 = vmatpush1.bf16.msra.mxu0 0
  %2307 = vmatprep.subr.bf16.mxu0 0
  %2308 = vmatpush1.bf16.msra.mxu0 0
  %2309 = vmatprep.subr.bf16.mxu0 0
  %2310 = vmatpush1.bf16.msra.mxu0 0
  %2311 = vmatprep.subr.bf16.mxu0 %v1036
  %2312 = vmatpush1.bf16.msra.mxu0 %v1033
  %2313 = vmatprep.subr.bf16.mxu0 0
  %2314 = vmatpush2.bf16.msra.mxu0 0
  %2315 = vmatprep.subr.bf16.mxu0 0
  %2316 = vmatpush2.bf16.msra.mxu0 0
  %2317 = vmatprep.subr.bf16.mxu0 0
  %2318 = vmatpush2.bf16.msra.mxu0 0
  %2319 = vmatprep.subr.bf16.mxu0 0
  %2320 = vmatpush2.bf16.msra.mxu0 0
  %2321 = vmatprep.subr.bf16.mxu0 0
  %2322 = vmatpush2.bf16.msra.mxu0 0
  %2323 = vmatprep.subr.bf16.mxu0 0
  %2324 = vmatpush2.bf16.msra.mxu0 0
  %2325 = vmatprep.subr.bf16.mxu0 0
  %2326 = vmatpush2.bf16.msra.mxu0 0
  %2327 = vmatprep.subr.bf16.mxu0 0
  %2328 = vmatpush2.bf16.msra.mxu0 0
  %2329 = vmatprep.mubr.bf16.mxu0 0
  %2330 = vmatmul.mubr.bf16.gmra.mxu0 %v852
  %v2331 = vpop.f32.mrf.mxu0
  %v2332 = vadd.f32 0.0, %v2331
  %v2333 = vpop.f32.mrf.mxu0
  %v2334 = vadd.f32 0.0, %v2333
  %v2335 = vpop.f32.mrf.mxu0
  %v2336 = vadd.f32 0.0, %v2335
  %v2337 = vpop.f32.mrf.mxu0
  %v2338 = vadd.f32 0.0, %v2337
  %2339 = vdwg.mxu0
  %2340 = vmatprep.subr.bf16.mxu0 0
  %2341 = vmatpush1.bf16.msra.mxu0 0
  %2342 = vmatprep.subr.bf16.mxu0 0
  %2343 = vmatpush1.bf16.msra.mxu0 0
  %2344 = vmatprep.subr.bf16.mxu0 0
  %2345 = vmatpush1.bf16.msra.mxu0 0
  %2346 = vmatprep.subr.bf16.mxu0 0
  %2347 = vmatpush1.bf16.msra.mxu0 0
  %2348 = vmatprep.subr.bf16.mxu0 0
  %2349 = vmatpush1.bf16.msra.mxu0 0
  %2350 = vmatprep.subr.bf16.mxu0 0
  %2351 = vmatpush1.bf16.msra.mxu0 0
  %2352 = vmatprep.subr.bf16.mxu0 0
  %2353 = vmatpush1.bf16.msra.mxu0 0
  %2354 = vmatprep.subr.bf16.mxu0 %v1042
  %2355 = vmatpush1.bf16.msra.mxu0 %v1039
  %2356 = vmatprep.subr.bf16.mxu0 0
  %2357 = vmatpush2.bf16.msra.mxu0 0
  %2358 = vmatprep.subr.bf16.mxu0 0
  %2359 = vmatpush2.bf16.msra.mxu0 0
  %2360 = vmatprep.subr.bf16.mxu0 0
  %2361 = vmatpush2.bf16.msra.mxu0 0
  %2362 = vmatprep.subr.bf16.mxu0 0
  %2363 = vmatpush2.bf16.msra.mxu0 0
  %2364 = vmatprep.subr.bf16.mxu0 0
  %2365 = vmatpush2.bf16.msra.mxu0 0
  %2366 = vmatprep.subr.bf16.mxu0 0
  %2367 = vmatpush2.bf16.msra.mxu0 0
  %2368 = vmatprep.subr.bf16.mxu0 0
  %2369 = vmatpush2.bf16.msra.mxu0 0
  %2370 = vmatprep.subr.bf16.mxu0 0
  %2371 = vmatpush2.bf16.msra.mxu0 0
  %2372 = vmatprep.mubr.bf16.mxu0 0
  %2373 = vmatmul.mubr.bf16.gmra.mxu0 %v852
  %v2374 = vpop.f32.mrf.mxu0
  %v2375 = vadd.f32 0.0, %v2374
  %v2376 = vpop.f32.mrf.mxu0
  %v2377 = vadd.f32 0.0, %v2376
  %v2378 = vpop.f32.mrf.mxu0
  %v2379 = vadd.f32 0.0, %v2378
  %v2380 = vpop.f32.mrf.mxu0
  %v2381 = vadd.f32 0.0, %v2380
  %2382 = vdwg.mxu0
  %2383 = vmatprep.subr.bf16.mxu0 0
  %2384 = vmatpush1.bf16.msra.mxu0 0
  %2385 = vmatprep.subr.bf16.mxu0 0
  %2386 = vmatpush1.bf16.msra.mxu0 0
  %2387 = vmatprep.subr.bf16.mxu0 0
  %2388 = vmatpush1.bf16.msra.mxu0 0
  %2389 = vmatprep.subr.bf16.mxu0 0
  %2390 = vmatpush1.bf16.msra.mxu0 0
  %2391 = vmatprep.subr.bf16.mxu0 0
  %2392 = vmatpush1.bf16.msra.mxu0 0
  %2393 = vmatprep.subr.bf16.mxu0 0
  %2394 = vmatpush1.bf16.msra.mxu0 0
  %2395 = vmatprep.subr.bf16.mxu0 0
  %2396 = vmatpush1.bf16.msra.mxu0 0
  %2397 = vmatprep.subr.bf16.mxu0 %v1048
  %2398 = vmatpush1.bf16.msra.mxu0 %v1045
  %2399 = vmatprep.subr.bf16.mxu0 0
  %2400 = vmatpush2.bf16.msra.mxu0 0
  %2401 = vmatprep.subr.bf16.mxu0 0
  %2402 = vmatpush2.bf16.msra.mxu0 0
  %2403 = vmatprep.subr.bf16.mxu0 0
  %2404 = vmatpush2.bf16.msra.mxu0 0
  %2405 = vmatprep.subr.bf16.mxu0 0
  %2406 = vmatpush2.bf16.msra.mxu0 0
  %2407 = vmatprep.subr.bf16.mxu0 0
  %2408 = vmatpush2.bf16.msra.mxu0 0
  %2409 = vmatprep.subr.bf16.mxu0 0
  %2410 = vmatpush2.bf16.msra.mxu0 0
  %2411 = vmatprep.subr.bf16.mxu0 0
  %2412 = vmatpush2.bf16.msra.mxu0 0
  %2413 = vmatprep.subr.bf16.mxu0 0
  %2414 = vmatpush2.bf16.msra.mxu0 0
  %2415 = vmatprep.mubr.bf16.mxu0 0
  %2416 = vmatmul.mubr.bf16.gmra.mxu0 %v852
  %v2417 = vpop.f32.mrf.mxu0
  %v2418 = vadd.f32 0.0, %v2417
  %v2419 = vpop.f32.mrf.mxu0
  %v2420 = vadd.f32 0.0, %v2419
  %v2421 = vpop.f32.mrf.mxu0
  %v2422 = vadd.f32 0.0, %v2421
  %v2423 = vpop.f32.mrf.mxu0
  %v2424 = vadd.f32 0.0, %v2423
  %2425 = vdwg.mxu0
  %v2427 = vsel %vm850, %v460, 0
  %2429 = vmatprep.subr.bf16.mxu0 0
  %2430 = vmatpush1.bf16.msra.mxu0 0
  %2431 = vmatprep.subr.bf16.mxu0 0
  %2432 = vmatpush1.bf16.msra.mxu0 0
  %2433 = vmatprep.subr.bf16.mxu0 0
  %2434 = vmatpush1.bf16.msra.mxu0 0
  %2435 = vmatprep.subr.bf16.mxu0 0
  %2436 = vmatpush1.bf16.msra.mxu0 0
  %2437 = vmatprep.subr.bf16.mxu0 0
  %2438 = vmatpush1.bf16.msra.mxu0 0
  %2439 = vmatprep.subr.bf16.mxu0 0
  %2440 = vmatpush1.bf16.msra.mxu0 0
  %2441 = vmatprep.subr.bf16.mxu0 0
  %2442 = vmatpush1.bf16.msra.mxu0 0
  %2443 = vmatprep.subr.bf16.mxu0 %v862
  %2444 = vmatpush1.bf16.msra.mxu0 %v859
  %2445 = vmatprep.subr.bf16.mxu0 0
  %2446 = vmatpush2.bf16.msra.mxu0 0
  %2447 = vmatprep.subr.bf16.mxu0 0
  %2448 = vmatpush2.bf16.msra.mxu0 0
  %2449 = vmatprep.subr.bf16.mxu0 0
  %2450 = vmatpush2.bf16.msra.mxu0 0
  %2451 = vmatprep.subr.bf16.mxu0 0
  %2452 = vmatpush2.bf16.msra.mxu0 0
  %2453 = vmatprep.subr.bf16.mxu0 0
  %2454 = vmatpush2.bf16.msra.mxu0 0
  %2455 = vmatprep.subr.bf16.mxu0 0
  %2456 = vmatpush2.bf16.msra.mxu0 0
  %2457 = vmatprep.subr.bf16.mxu0 0
  %2458 = vmatpush2.bf16.msra.mxu0 0
  %2459 = vmatprep.subr.bf16.mxu0 0
  %2460 = vmatpush2.bf16.msra.mxu0 0
  %2461 = vmatprep.mubr.bf16.mxu0 0
  %2462 = vmatmul.mubr.bf16.gmra.mxu0 %v2427
  %v2463 = vpop.f32.mrf.mxu0
  %v2464 = vadd.f32 %v1085, %v2463
  %v2465 = vpop.f32.mrf.mxu0
  %v2466 = vadd.f32 %v1087, %v2465
  %v2467 = vpop.f32.mrf.mxu0
  %v2468 = vadd.f32 %v1089, %v2467
  %v2469 = vpop.f32.mrf.mxu0
  %v2470 = vadd.f32 %v1091, %v2469
  %2471 = vdwg.mxu0
  %2472 = vmatprep.subr.bf16.mxu0 0
  %2473 = vmatpush1.bf16.msra.mxu0 0
  %2474 = vmatprep.subr.bf16.mxu0 0
  %2475 = vmatpush1.bf16.msra.mxu0 0
  %2476 = vmatprep.subr.bf16.mxu0 0
  %2477 = vmatpush1.bf16.msra.mxu0 0
  %2478 = vmatprep.subr.bf16.mxu0 0
  %2479 = vmatpush1.bf16.msra.mxu0 0
  %2480 = vmatprep.subr.bf16.mxu0 0
  %2481 = vmatpush1.bf16.msra.mxu0 0
  %2482 = vmatprep.subr.bf16.mxu0 0
  %2483 = vmatpush1.bf16.msra.mxu0 0
  %2484 = vmatprep.subr.bf16.mxu0 0
  %2485 = vmatpush1.bf16.msra.mxu0 0
  %2486 = vmatprep.subr.bf16.mxu0 %v868
  %2487 = vmatpush1.bf16.msra.mxu0 %v865
  %2488 = vmatprep.subr.bf16.mxu0 0
  %2489 = vmatpush2.bf16.msra.mxu0 0
  %2490 = vmatprep.subr.bf16.mxu0 0
  %2491 = vmatpush2.bf16.msra.mxu0 0
  %2492 = vmatprep.subr.bf16.mxu0 0
  %2493 = vmatpush2.bf16.msra.mxu0 0
  %2494 = vmatprep.subr.bf16.mxu0 0
  %2495 = vmatpush2.bf16.msra.mxu0 0
  %2496 = vmatprep.subr.bf16.mxu0 0
  %2497 = vmatpush2.bf16.msra.mxu0 0
  %2498 = vmatprep.subr.bf16.mxu0 0
  %2499 = vmatpush2.bf16.msra.mxu0 0
  %2500 = vmatprep.subr.bf16.mxu0 0
  %2501 = vmatpush2.bf16.msra.mxu0 0
  %2502 = vmatprep.subr.bf16.mxu0 0
  %2503 = vmatpush2.bf16.msra.mxu0 0
  %2504 = vmatprep.mubr.bf16.mxu0 0
  %2505 = vmatmul.mubr.bf16.gmra.mxu0 %v2427
  %v2506 = vpop.f32.mrf.mxu0
  %v2507 = vadd.f32 %v1128, %v2506
  %v2508 = vpop.f32.mrf.mxu0
  %v2509 = vadd.f32 %v1130, %v2508
  %v2510 = vpop.f32.mrf.mxu0
  %v2511 = vadd.f32 %v1132, %v2510
  %v2512 = vpop.f32.mrf.mxu0
  %v2513 = vadd.f32 %v1134, %v2512
  %2514 = vdwg.mxu0
  %2515 = vmatprep.subr.bf16.mxu0 0
  %2516 = vmatpush1.bf16.msra.mxu0 0
  %2517 = vmatprep.subr.bf16.mxu0 0
  %2518 = vmatpush1.bf16.msra.mxu0 0
  %2519 = vmatprep.subr.bf16.mxu0 0
  %2520 = vmatpush1.bf16.msra.mxu0 0
  %2521 = vmatprep.subr.bf16.mxu0 0
  %2522 = vmatpush1.bf16.msra.mxu0 0
  %2523 = vmatprep.subr.bf16.mxu0 0
  %2524 = vmatpush1.bf16.msra.mxu0 0
  %2525 = vmatprep.subr.bf16.mxu0 0
  %2526 = vmatpush1.bf16.msra.mxu0 0
  %2527 = vmatprep.subr.bf16.mxu0 0
  %2528 = vmatpush1.bf16.msra.mxu0 0
  %2529 = vmatprep.subr.bf16.mxu0 %v874
  %2530 = vmatpush1.bf16.msra.mxu0 %v871
  %2531 = vmatprep.subr.bf16.mxu0 0
  %2532 = vmatpush2.bf16.msra.mxu0 0
  %2533 = vmatprep.subr.bf16.mxu0 0
  %2534 = vmatpush2.bf16.msra.mxu0 0
  %2535 = vmatprep.subr.bf16.mxu0 0
  %2536 = vmatpush2.bf16.msra.mxu0 0
  %2537 = vmatprep.subr.bf16.mxu0 0
  %2538 = vmatpush2.bf16.msra.mxu0 0
  %2539 = vmatprep.subr.bf16.mxu0 0
  %2540 = vmatpush2.bf16.msra.mxu0 0
  %2541 = vmatprep.subr.bf16.mxu0 0
  %2542 = vmatpush2.bf16.msra.mxu0 0
  %2543 = vmatprep.subr.bf16.mxu0 0
  %2544 = vmatpush2.bf16.msra.mxu0 0
  %2545 = vmatprep.subr.bf16.mxu0 0
  %2546 = vmatpush2.bf16.msra.mxu0 0
  %2547 = vmatprep.mubr.bf16.mxu0 0
  %2548 = vmatmul.mubr.bf16.gmra.mxu0 %v2427
  %v2549 = vpop.f32.mrf.mxu0
  %v2550 = vadd.f32 %v1171, %v2549
  %v2551 = vpop.f32.mrf.mxu0
  %v2552 = vadd.f32 %v1173, %v2551
  %v2553 = vpop.f32.mrf.mxu0
  %v2554 = vadd.f32 %v1175, %v2553
  %v2555 = vpop.f32.mrf.mxu0
  %v2556 = vadd.f32 %v1177, %v2555
  %2557 = vdwg.mxu0
  %2558 = vmatprep.subr.bf16.mxu0 0
  %2559 = vmatpush1.bf16.msra.mxu0 0
  %2560 = vmatprep.subr.bf16.mxu0 0
  %2561 = vmatpush1.bf16.msra.mxu0 0
  %2562 = vmatprep.subr.bf16.mxu0 0
  %2563 = vmatpush1.bf16.msra.mxu0 0
  %2564 = vmatprep.subr.bf16.mxu0 0
  %2565 = vmatpush1.bf16.msra.mxu0 0
  %2566 = vmatprep.subr.bf16.mxu0 0
  %2567 = vmatpush1.bf16.msra.mxu0 0
  %2568 = vmatprep.subr.bf16.mxu0 0
  %2569 = vmatpush1.bf16.msra.mxu0 0
  %2570 = vmatprep.subr.bf16.mxu0 0
  %2571 = vmatpush1.bf16.msra.mxu0 0
  %2572 = vmatprep.subr.bf16.mxu0 %v880
  %2573 = vmatpush1.bf16.msra.mxu0 %v877
  %2574 = vmatprep.subr.bf16.mxu0 0
  %2575 = vmatpush2.bf16.msra.mxu0 0
  %2576 = vmatprep.subr.bf16.mxu0 0
  %2577 = vmatpush2.bf16.msra.mxu0 0
  %2578 = vmatprep.subr.bf16.mxu0 0
  %2579 = vmatpush2.bf16.msra.mxu0 0
  %2580 = vmatprep.subr.bf16.mxu0 0
  %2581 = vmatpush2.bf16.msra.mxu0 0
  %2582 = vmatprep.subr.bf16.mxu0 0
  %2583 = vmatpush2.bf16.msra.mxu0 0
  %2584 = vmatprep.subr.bf16.mxu0 0
  %2585 = vmatpush2.bf16.msra.mxu0 0
  %2586 = vmatprep.subr.bf16.mxu0 0
  %2587 = vmatpush2.bf16.msra.mxu0 0
  %2588 = vmatprep.subr.bf16.mxu0 0
  %2589 = vmatpush2.bf16.msra.mxu0 0
  %2590 = vmatprep.mubr.bf16.mxu0 0
  %2591 = vmatmul.mubr.bf16.gmra.mxu0 %v2427
  %v2592 = vpop.f32.mrf.mxu0
  %v2593 = vadd.f32 %v1214, %v2592
  %v2594 = vpop.f32.mrf.mxu0
  %v2595 = vadd.f32 %v1216, %v2594
  %v2596 = vpop.f32.mrf.mxu0
  %v2597 = vadd.f32 %v1218, %v2596
  %v2598 = vpop.f32.mrf.mxu0
  %v2599 = vadd.f32 %v1220, %v2598
  %2600 = vdwg.mxu0
  %2601 = vmatprep.subr.bf16.mxu0 0
  %2602 = vmatpush1.bf16.msra.mxu0 0
  %2603 = vmatprep.subr.bf16.mxu0 0
  %2604 = vmatpush1.bf16.msra.mxu0 0
  %2605 = vmatprep.subr.bf16.mxu0 0
  %2606 = vmatpush1.bf16.msra.mxu0 0
  %2607 = vmatprep.subr.bf16.mxu0 0
  %2608 = vmatpush1.bf16.msra.mxu0 0
  %2609 = vmatprep.subr.bf16.mxu0 0
  %2610 = vmatpush1.bf16.msra.mxu0 0
  %2611 = vmatprep.subr.bf16.mxu0 0
  %2612 = vmatpush1.bf16.msra.mxu0 0
  %2613 = vmatprep.subr.bf16.mxu0 0
  %2614 = vmatpush1.bf16.msra.mxu0 0
  %2615 = vmatprep.subr.bf16.mxu0 %v886
  %2616 = vmatpush1.bf16.msra.mxu0 %v883
  %2617 = vmatprep.subr.bf16.mxu0 0
  %2618 = vmatpush2.bf16.msra.mxu0 0
  %2619 = vmatprep.subr.bf16.mxu0 0
  %2620 = vmatpush2.bf16.msra.mxu0 0
  %2621 = vmatprep.subr.bf16.mxu0 0
  %2622 = vmatpush2.bf16.msra.mxu0 0
  %2623 = vmatprep.subr.bf16.mxu0 0
  %2624 = vmatpush2.bf16.msra.mxu0 0
  %2625 = vmatprep.subr.bf16.mxu0 0
  %2626 = vmatpush2.bf16.msra.mxu0 0
  %2627 = vmatprep.subr.bf16.mxu0 0
  %2628 = vmatpush2.bf16.msra.mxu0 0
  %2629 = vmatprep.subr.bf16.mxu0 0
  %2630 = vmatpush2.bf16.msra.mxu0 0
  %2631 = vmatprep.subr.bf16.mxu0 0
  %2632 = vmatpush2.bf16.msra.mxu0 0
  %2633 = vmatprep.mubr.bf16.mxu0 0
  %2634 = vmatmul.mubr.bf16.gmra.mxu0 %v2427
  %v2635 = vpop.f32.mrf.mxu0
  %v2636 = vadd.f32 %v1257, %v2635
  %v2637 = vpop.f32.mrf.mxu0
  %v2638 = vadd.f32 %v1259, %v2637
  %v2639 = vpop.f32.mrf.mxu0
  %v2640 = vadd.f32 %v1261, %v2639
  %v2641 = vpop.f32.mrf.mxu0
  %v2642 = vadd.f32 %v1263, %v2641
  %2643 = vdwg.mxu0
  %2644 = vmatprep.subr.bf16.mxu0 0
  %2645 = vmatpush1.bf16.msra.mxu0 0
  %2646 = vmatprep.subr.bf16.mxu0 0
  %2647 = vmatpush1.bf16.msra.mxu0 0
  %2648 = vmatprep.subr.bf16.mxu0 0
  %2649 = vmatpush1.bf16.msra.mxu0 0
  %2650 = vmatprep.subr.bf16.mxu0 0
  %2651 = vmatpush1.bf16.msra.mxu0 0
  %2652 = vmatprep.subr.bf16.mxu0 0
  %2653 = vmatpush1.bf16.msra.mxu0 0
  %2654 = vmatprep.subr.bf16.mxu0 0
  %2655 = vmatpush1.bf16.msra.mxu0 0
  %2656 = vmatprep.subr.bf16.mxu0 0
  %2657 = vmatpush1.bf16.msra.mxu0 0
  %2658 = vmatprep.subr.bf16.mxu0 %v892
  %2659 = vmatpush1.bf16.msra.mxu0 %v889
  %2660 = vmatprep.subr.bf16.mxu0 0
  %2661 = vmatpush2.bf16.msra.mxu0 0
  %2662 = vmatprep.subr.bf16.mxu0 0
  %2663 = vmatpush2.bf16.msra.mxu0 0
  %2664 = vmatprep.subr.bf16.mxu0 0
  %2665 = vmatpush2.bf16.msra.mxu0 0
  %2666 = vmatprep.subr.bf16.mxu0 0
  %2667 = vmatpush2.bf16.msra.mxu0 0
  %2668 = vmatprep.subr.bf16.mxu0 0
  %2669 = vmatpush2.bf16.msra.mxu0 0
  %2670 = vmatprep.subr.bf16.mxu0 0
  %2671 = vmatpush2.bf16.msra.mxu0 0
  %2672 = vmatprep.subr.bf16.mxu0 0
  %2673 = vmatpush2.bf16.msra.mxu0 0
  %2674 = vmatprep.subr.bf16.mxu0 0
  %2675 = vmatpush2.bf16.msra.mxu0 0
  %2676 = vmatprep.mubr.bf16.mxu0 0
  %2677 = vmatmul.mubr.bf16.gmra.mxu0 %v2427
  %v2678 = vpop.f32.mrf.mxu0
  %v2679 = vadd.f32 %v1300, %v2678
  %v2680 = vpop.f32.mrf.mxu0
  %v2681 = vadd.f32 %v1302, %v2680
  %v2682 = vpop.f32.mrf.mxu0
  %v2683 = vadd.f32 %v1304, %v2682
  %v2684 = vpop.f32.mrf.mxu0
  %v2685 = vadd.f32 %v1306, %v2684
  %2686 = vdwg.mxu0
  %2687 = vmatprep.subr.bf16.mxu0 0
  %2688 = vmatpush1.bf16.msra.mxu0 0
  %2689 = vmatprep.subr.bf16.mxu0 0
  %2690 = vmatpush1.bf16.msra.mxu0 0
  %2691 = vmatprep.subr.bf16.mxu0 0
  %2692 = vmatpush1.bf16.msra.mxu0 0
  %2693 = vmatprep.subr.bf16.mxu0 0
  %2694 = vmatpush1.bf16.msra.mxu0 0
  %2695 = vmatprep.subr.bf16.mxu0 0
  %2696 = vmatpush1.bf16.msra.mxu0 0
  %2697 = vmatprep.subr.bf16.mxu0 0
  %2698 = vmatpush1.bf16.msra.mxu0 0
  %2699 = vmatprep.subr.bf16.mxu0 0
  %2700 = vmatpush1.bf16.msra.mxu0 0
  %2701 = vmatprep.subr.bf16.mxu0 %v898
  %2702 = vmatpush1.bf16.msra.mxu0 %v895
  %2703 = vmatprep.subr.bf16.mxu0 0
  %2704 = vmatpush2.bf16.msra.mxu0 0
  %2705 = vmatprep.subr.bf16.mxu0 0
  %2706 = vmatpush2.bf16.msra.mxu0 0
  %2707 = vmatprep.subr.bf16.mxu0 0
  %2708 = vmatpush2.bf16.msra.mxu0 0
  %2709 = vmatprep.subr.bf16.mxu0 0
  %2710 = vmatpush2.bf16.msra.mxu0 0
  %2711 = vmatprep.subr.bf16.mxu0 0
  %2712 = vmatpush2.bf16.msra.mxu0 0
  %2713 = vmatprep.subr.bf16.mxu0 0
  %2714 = vmatpush2.bf16.msra.mxu0 0
  %2715 = vmatprep.subr.bf16.mxu0 0
  %2716 = vmatpush2.bf16.msra.mxu0 0
  %2717 = vmatprep.subr.bf16.mxu0 0
  %2718 = vmatpush2.bf16.msra.mxu0 0
  %2719 = vmatprep.mubr.bf16.mxu0 0
  %2720 = vmatmul.mubr.bf16.gmra.mxu0 %v2427
  %v2721 = vpop.f32.mrf.mxu0
  %v2722 = vadd.f32 %v1343, %v2721
  %v2723 = vpop.f32.mrf.mxu0
  %v2724 = vadd.f32 %v1345, %v2723
  %v2725 = vpop.f32.mrf.mxu0
  %v2726 = vadd.f32 %v1347, %v2725
  %v2727 = vpop.f32.mrf.mxu0
  %v2728 = vadd.f32 %v1349, %v2727
  %2729 = vdwg.mxu0
  %2730 = vmatprep.subr.bf16.mxu0 0
  %2731 = vmatpush1.bf16.msra.mxu0 0
  %2732 = vmatprep.subr.bf16.mxu0 0
  %2733 = vmatpush1.bf16.msra.mxu0 0
  %2734 = vmatprep.subr.bf16.mxu0 0
  %2735 = vmatpush1.bf16.msra.mxu0 0
  %2736 = vmatprep.subr.bf16.mxu0 0
  %2737 = vmatpush1.bf16.msra.mxu0 0
  %2738 = vmatprep.subr.bf16.mxu0 0
  %2739 = vmatpush1.bf16.msra.mxu0 0
  %2740 = vmatprep.subr.bf16.mxu0 0
  %2741 = vmatpush1.bf16.msra.mxu0 0
  %2742 = vmatprep.subr.bf16.mxu0 0
  %2743 = vmatpush1.bf16.msra.mxu0 0
  %2744 = vmatprep.subr.bf16.mxu0 %v904
  %2745 = vmatpush1.bf16.msra.mxu0 %v901
  %2746 = vmatprep.subr.bf16.mxu0 0
  %2747 = vmatpush2.bf16.msra.mxu0 0
  %2748 = vmatprep.subr.bf16.mxu0 0
  %2749 = vmatpush2.bf16.msra.mxu0 0
  %2750 = vmatprep.subr.bf16.mxu0 0
  %2751 = vmatpush2.bf16.msra.mxu0 0
  %2752 = vmatprep.subr.bf16.mxu0 0
  %2753 = vmatpush2.bf16.msra.mxu0 0
  %2754 = vmatprep.subr.bf16.mxu0 0
  %2755 = vmatpush2.bf16.msra.mxu0 0
  %2756 = vmatprep.subr.bf16.mxu0 0
  %2757 = vmatpush2.bf16.msra.mxu0 0
  %2758 = vmatprep.subr.bf16.mxu0 0
  %2759 = vmatpush2.bf16.msra.mxu0 0
  %2760 = vmatprep.subr.bf16.mxu0 0
  %2761 = vmatpush2.bf16.msra.mxu0 0
  %2762 = vmatprep.mubr.bf16.mxu0 0
  %2763 = vmatmul.mubr.bf16.gmra.mxu0 %v2427
  %v2764 = vpop.f32.mrf.mxu0
  %v2765 = vadd.f32 %v1386, %v2764
  %v2766 = vpop.f32.mrf.mxu0
  %v2767 = vadd.f32 %v1388, %v2766
  %v2768 = vpop.f32.mrf.mxu0
  %v2769 = vadd.f32 %v1390, %v2768
  %v2770 = vpop.f32.mrf.mxu0
  %v2771 = vadd.f32 %v1392, %v2770
  %2772 = vdwg.mxu0
  %2773 = vmatprep.subr.bf16.mxu0 0
  %2774 = vmatpush1.bf16.msra.mxu0 0
  %2775 = vmatprep.subr.bf16.mxu0 0
  %2776 = vmatpush1.bf16.msra.mxu0 0
  %2777 = vmatprep.subr.bf16.mxu0 0
  %2778 = vmatpush1.bf16.msra.mxu0 0
  %2779 = vmatprep.subr.bf16.mxu0 0
  %2780 = vmatpush1.bf16.msra.mxu0 0
  %2781 = vmatprep.subr.bf16.mxu0 0
  %2782 = vmatpush1.bf16.msra.mxu0 0
  %2783 = vmatprep.subr.bf16.mxu0 0
  %2784 = vmatpush1.bf16.msra.mxu0 0
  %2785 = vmatprep.subr.bf16.mxu0 0
  %2786 = vmatpush1.bf16.msra.mxu0 0
  %2787 = vmatprep.subr.bf16.mxu0 %v910
  %2788 = vmatpush1.bf16.msra.mxu0 %v907
  %2789 = vmatprep.subr.bf16.mxu0 0
  %2790 = vmatpush2.bf16.msra.mxu0 0
  %2791 = vmatprep.subr.bf16.mxu0 0
  %2792 = vmatpush2.bf16.msra.mxu0 0
  %2793 = vmatprep.subr.bf16.mxu0 0
  %2794 = vmatpush2.bf16.msra.mxu0 0
  %2795 = vmatprep.subr.bf16.mxu0 0
  %2796 = vmatpush2.bf16.msra.mxu0 0
  %2797 = vmatprep.subr.bf16.mxu0 0
  %2798 = vmatpush2.bf16.msra.mxu0 0
  %2799 = vmatprep.subr.bf16.mxu0 0
  %2800 = vmatpush2.bf16.msra.mxu0 0
  %2801 = vmatprep.subr.bf16.mxu0 0
  %2802 = vmatpush2.bf16.msra.mxu0 0
  %2803 = vmatprep.subr.bf16.mxu0 0
  %2804 = vmatpush2.bf16.msra.mxu0 0
  %2805 = vmatprep.mubr.bf16.mxu0 0
  %2806 = vmatmul.mubr.bf16.gmra.mxu0 %v2427
  %v2807 = vpop.f32.mrf.mxu0
  %v2808 = vadd.f32 %v1429, %v2807
  %v2809 = vpop.f32.mrf.mxu0
  %v2810 = vadd.f32 %v1431, %v2809
  %v2811 = vpop.f32.mrf.mxu0
  %v2812 = vadd.f32 %v1433, %v2811
  %v2813 = vpop.f32.mrf.mxu0
  %v2814 = vadd.f32 %v1435, %v2813
  %2815 = vdwg.mxu0
  %2816 = vmatprep.subr.bf16.mxu0 0
  %2817 = vmatpush1.bf16.msra.mxu0 0
  %2818 = vmatprep.subr.bf16.mxu0 0
  %2819 = vmatpush1.bf16.msra.mxu0 0
  %2820 = vmatprep.subr.bf16.mxu0 0
  %2821 = vmatpush1.bf16.msra.mxu0 0
  %2822 = vmatprep.subr.bf16.mxu0 0
  %2823 = vmatpush1.bf16.msra.mxu0 0
  %2824 = vmatprep.subr.bf16.mxu0 0
  %2825 = vmatpush1.bf16.msra.mxu0 0
  %2826 = vmatprep.subr.bf16.mxu0 0
  %2827 = vmatpush1.bf16.msra.mxu0 0
  %2828 = vmatprep.subr.bf16.mxu0 0
  %2829 = vmatpush1.bf16.msra.mxu0 0
  %2830 = vmatprep.subr.bf16.mxu0 %v916
  %2831 = vmatpush1.bf16.msra.mxu0 %v913
  %2832 = vmatprep.subr.bf16.mxu0 0
  %2833 = vmatpush2.bf16.msra.mxu0 0
  %2834 = vmatprep.subr.bf16.mxu0 0
  %2835 = vmatpush2.bf16.msra.mxu0 0
  %2836 = vmatprep.subr.bf16.mxu0 0
  %2837 = vmatpush2.bf16.msra.mxu0 0
  %2838 = vmatprep.subr.bf16.mxu0 0
  %2839 = vmatpush2.bf16.msra.mxu0 0
  %2840 = vmatprep.subr.bf16.mxu0 0
  %2841 = vmatpush2.bf16.msra.mxu0 0
  %2842 = vmatprep.subr.bf16.mxu0 0
  %2843 = vmatpush2.bf16.msra.mxu0 0
  %2844 = vmatprep.subr.bf16.mxu0 0
  %2845 = vmatpush2.bf16.msra.mxu0 0
  %2846 = vmatprep.subr.bf16.mxu0 0
  %2847 = vmatpush2.bf16.msra.mxu0 0
  %2848 = vmatprep.mubr.bf16.mxu0 0
  %2849 = vmatmul.mubr.bf16.gmra.mxu0 %v2427
  %v2850 = vpop.f32.mrf.mxu0
  %v2851 = vadd.f32 %v1472, %v2850
  %v2852 = vpop.f32.mrf.mxu0
  %v2853 = vadd.f32 %v1474, %v2852
  %v2854 = vpop.f32.mrf.mxu0
  %v2855 = vadd.f32 %v1476, %v2854
  %v2856 = vpop.f32.mrf.mxu0
  %v2857 = vadd.f32 %v1478, %v2856
  %2858 = vdwg.mxu0
  %2859 = vmatprep.subr.bf16.mxu0 0
  %2860 = vmatpush1.bf16.msra.mxu0 0
  %2861 = vmatprep.subr.bf16.mxu0 0
  %2862 = vmatpush1.bf16.msra.mxu0 0
  %2863 = vmatprep.subr.bf16.mxu0 0
  %2864 = vmatpush1.bf16.msra.mxu0 0
  %2865 = vmatprep.subr.bf16.mxu0 0
  %2866 = vmatpush1.bf16.msra.mxu0 0
  %2867 = vmatprep.subr.bf16.mxu0 0
  %2868 = vmatpush1.bf16.msra.mxu0 0
  %2869 = vmatprep.subr.bf16.mxu0 0
  %2870 = vmatpush1.bf16.msra.mxu0 0
  %2871 = vmatprep.subr.bf16.mxu0 0
  %2872 = vmatpush1.bf16.msra.mxu0 0
  %2873 = vmatprep.subr.bf16.mxu0 %v922
  %2874 = vmatpush1.bf16.msra.mxu0 %v919
  %2875 = vmatprep.subr.bf16.mxu0 0
  %2876 = vmatpush2.bf16.msra.mxu0 0
  %2877 = vmatprep.subr.bf16.mxu0 0
  %2878 = vmatpush2.bf16.msra.mxu0 0
  %2879 = vmatprep.subr.bf16.mxu0 0
  %2880 = vmatpush2.bf16.msra.mxu0 0
  %2881 = vmatprep.subr.bf16.mxu0 0
  %2882 = vmatpush2.bf16.msra.mxu0 0
  %2883 = vmatprep.subr.bf16.mxu0 0
  %2884 = vmatpush2.bf16.msra.mxu0 0
  %2885 = vmatprep.subr.bf16.mxu0 0
  %2886 = vmatpush2.bf16.msra.mxu0 0
  %2887 = vmatprep.subr.bf16.mxu0 0
  %2888 = vmatpush2.bf16.msra.mxu0 0
  %2889 = vmatprep.subr.bf16.mxu0 0
  %2890 = vmatpush2.bf16.msra.mxu0 0
  %2891 = vmatprep.mubr.bf16.mxu0 0
  %2892 = vmatmul.mubr.bf16.gmra.mxu0 %v2427
  %v2893 = vpop.f32.mrf.mxu0
  %v2894 = vadd.f32 %v1515, %v2893
  %v2895 = vpop.f32.mrf.mxu0
  %v2896 = vadd.f32 %v1517, %v2895
  %v2897 = vpop.f32.mrf.mxu0
  %v2898 = vadd.f32 %v1519, %v2897
  %v2899 = vpop.f32.mrf.mxu0
  %v2900 = vadd.f32 %v1521, %v2899
  %2901 = vdwg.mxu0
  %2902 = vmatprep.subr.bf16.mxu0 0
  %2903 = vmatpush1.bf16.msra.mxu0 0
  %2904 = vmatprep.subr.bf16.mxu0 0
  %2905 = vmatpush1.bf16.msra.mxu0 0
  %2906 = vmatprep.subr.bf16.mxu0 0
  %2907 = vmatpush1.bf16.msra.mxu0 0
  %2908 = vmatprep.subr.bf16.mxu0 0
  %2909 = vmatpush1.bf16.msra.mxu0 0
  %2910 = vmatprep.subr.bf16.mxu0 0
  %2911 = vmatpush1.bf16.msra.mxu0 0
  %2912 = vmatprep.subr.bf16.mxu0 0
  %2913 = vmatpush1.bf16.msra.mxu0 0
  %2914 = vmatprep.subr.bf16.mxu0 0
  %2915 = vmatpush1.bf16.msra.mxu0 0
  %2916 = vmatprep.subr.bf16.mxu0 %v928
  %2917 = vmatpush1.bf16.msra.mxu0 %v925
  %2918 = vmatprep.subr.bf16.mxu0 0
  %2919 = vmatpush2.bf16.msra.mxu0 0
  %2920 = vmatprep.subr.bf16.mxu0 0
  %2921 = vmatpush2.bf16.msra.mxu0 0
  %2922 = vmatprep.subr.bf16.mxu0 0
  %2923 = vmatpush2.bf16.msra.mxu0 0
  %2924 = vmatprep.subr.bf16.mxu0 0
  %2925 = vmatpush2.bf16.msra.mxu0 0
  %2926 = vmatprep.subr.bf16.mxu0 0
  %2927 = vmatpush2.bf16.msra.mxu0 0
  %2928 = vmatprep.subr.bf16.mxu0 0
  %2929 = vmatpush2.bf16.msra.mxu0 0
  %2930 = vmatprep.subr.bf16.mxu0 0
  %2931 = vmatpush2.bf16.msra.mxu0 0
  %2932 = vmatprep.subr.bf16.mxu0 0
  %2933 = vmatpush2.bf16.msra.mxu0 0
  %2934 = vmatprep.mubr.bf16.mxu0 0
  %2935 = vmatmul.mubr.bf16.gmra.mxu0 %v2427
  %v2936 = vpop.f32.mrf.mxu0
  %v2937 = vadd.f32 %v1558, %v2936
  %v2938 = vpop.f32.mrf.mxu0
  %v2939 = vadd.f32 %v1560, %v2938
  %v2940 = vpop.f32.mrf.mxu0
  %v2941 = vadd.f32 %v1562, %v2940
  %v2942 = vpop.f32.mrf.mxu0
  %v2943 = vadd.f32 %v1564, %v2942
  %2944 = vdwg.mxu0
  %2945 = vmatprep.subr.bf16.mxu0 0
  %2946 = vmatpush1.bf16.msra.mxu0 0
  %2947 = vmatprep.subr.bf16.mxu0 0
  %2948 = vmatpush1.bf16.msra.mxu0 0
  %2949 = vmatprep.subr.bf16.mxu0 0
  %2950 = vmatpush1.bf16.msra.mxu0 0
  %2951 = vmatprep.subr.bf16.mxu0 0
  %2952 = vmatpush1.bf16.msra.mxu0 0
  %2953 = vmatprep.subr.bf16.mxu0 0
  %2954 = vmatpush1.bf16.msra.mxu0 0
  %2955 = vmatprep.subr.bf16.mxu0 0
  %2956 = vmatpush1.bf16.msra.mxu0 0
  %2957 = vmatprep.subr.bf16.mxu0 0
  %2958 = vmatpush1.bf16.msra.mxu0 0
  %2959 = vmatprep.subr.bf16.mxu0 %v934
  %2960 = vmatpush1.bf16.msra.mxu0 %v931
  %2961 = vmatprep.subr.bf16.mxu0 0
  %2962 = vmatpush2.bf16.msra.mxu0 0
  %2963 = vmatprep.subr.bf16.mxu0 0
  %2964 = vmatpush2.bf16.msra.mxu0 0
  %2965 = vmatprep.subr.bf16.mxu0 0
  %2966 = vmatpush2.bf16.msra.mxu0 0
  %2967 = vmatprep.subr.bf16.mxu0 0
  %2968 = vmatpush2.bf16.msra.mxu0 0
  %2969 = vmatprep.subr.bf16.mxu0 0
  %2970 = vmatpush2.bf16.msra.mxu0 0
  %2971 = vmatprep.subr.bf16.mxu0 0
  %2972 = vmatpush2.bf16.msra.mxu0 0
  %2973 = vmatprep.subr.bf16.mxu0 0
  %2974 = vmatpush2.bf16.msra.mxu0 0
  %2975 = vmatprep.subr.bf16.mxu0 0
  %2976 = vmatpush2.bf16.msra.mxu0 0
  %2977 = vmatprep.mubr.bf16.mxu0 0
  %2978 = vmatmul.mubr.bf16.gmra.mxu0 %v2427
  %v2979 = vpop.f32.mrf.mxu0
  %v2980 = vadd.f32 %v1601, %v2979
  %v2981 = vpop.f32.mrf.mxu0
  %v2982 = vadd.f32 %v1603, %v2981
  %v2983 = vpop.f32.mrf.mxu0
  %v2984 = vadd.f32 %v1605, %v2983
  %v2985 = vpop.f32.mrf.mxu0
  %v2986 = vadd.f32 %v1607, %v2985
  %2987 = vdwg.mxu0
  %2988 = vmatprep.subr.bf16.mxu0 0
  %2989 = vmatpush1.bf16.msra.mxu0 0
  %2990 = vmatprep.subr.bf16.mxu0 0
  %2991 = vmatpush1.bf16.msra.mxu0 0
  %2992 = vmatprep.subr.bf16.mxu0 0
  %2993 = vmatpush1.bf16.msra.mxu0 0
  %2994 = vmatprep.subr.bf16.mxu0 0
  %2995 = vmatpush1.bf16.msra.mxu0 0
  %2996 = vmatprep.subr.bf16.mxu0 0
  %2997 = vmatpush1.bf16.msra.mxu0 0
  %2998 = vmatprep.subr.bf16.mxu0 0
  %2999 = vmatpush1.bf16.msra.mxu0 0
  %3000 = vmatprep.subr.bf16.mxu0 0
  %3001 = vmatpush1.bf16.msra.mxu0 0
  %3002 = vmatprep.subr.bf16.mxu0 %v940
  %3003 = vmatpush1.bf16.msra.mxu0 %v937
  %3004 = vmatprep.subr.bf16.mxu0 0
  %3005 = vmatpush2.bf16.msra.mxu0 0
  %3006 = vmatprep.subr.bf16.mxu0 0
  %3007 = vmatpush2.bf16.msra.mxu0 0
  %3008 = vmatprep.subr.bf16.mxu0 0
  %3009 = vmatpush2.bf16.msra.mxu0 0
  %3010 = vmatprep.subr.bf16.mxu0 0
  %3011 = vmatpush2.bf16.msra.mxu0 0
  %3012 = vmatprep.subr.bf16.mxu0 0
  %3013 = vmatpush2.bf16.msra.mxu0 0
  %3014 = vmatprep.subr.bf16.mxu0 0
  %3015 = vmatpush2.bf16.msra.mxu0 0
  %3016 = vmatprep.subr.bf16.mxu0 0
  %3017 = vmatpush2.bf16.msra.mxu0 0
  %3018 = vmatprep.subr.bf16.mxu0 0
  %3019 = vmatpush2.bf16.msra.mxu0 0
  %3020 = vmatprep.mubr.bf16.mxu0 0
  %3021 = vmatmul.mubr.bf16.gmra.mxu0 %v2427
  %v3022 = vpop.f32.mrf.mxu0
  %v3023 = vadd.f32 %v1644, %v3022
  %v3024 = vpop.f32.mrf.mxu0
  %v3025 = vadd.f32 %v1646, %v3024
  %v3026 = vpop.f32.mrf.mxu0
  %v3027 = vadd.f32 %v1648, %v3026
  %v3028 = vpop.f32.mrf.mxu0
  %v3029 = vadd.f32 %v1650, %v3028
  %3030 = vdwg.mxu0
  %3031 = vmatprep.subr.bf16.mxu0 0
  %3032 = vmatpush1.bf16.msra.mxu0 0
  %3033 = vmatprep.subr.bf16.mxu0 0
  %3034 = vmatpush1.bf16.msra.mxu0 0
  %3035 = vmatprep.subr.bf16.mxu0 0
  %3036 = vmatpush1.bf16.msra.mxu0 0
  %3037 = vmatprep.subr.bf16.mxu0 0
  %3038 = vmatpush1.bf16.msra.mxu0 0
  %3039 = vmatprep.subr.bf16.mxu0 0
  %3040 = vmatpush1.bf16.msra.mxu0 0
  %3041 = vmatprep.subr.bf16.mxu0 0
  %3042 = vmatpush1.bf16.msra.mxu0 0
  %3043 = vmatprep.subr.bf16.mxu0 0
  %3044 = vmatpush1.bf16.msra.mxu0 0
  %3045 = vmatprep.subr.bf16.mxu0 %v946
  %3046 = vmatpush1.bf16.msra.mxu0 %v943
  %3047 = vmatprep.subr.bf16.mxu0 0
  %3048 = vmatpush2.bf16.msra.mxu0 0
  %3049 = vmatprep.subr.bf16.mxu0 0
  %3050 = vmatpush2.bf16.msra.mxu0 0
  %3051 = vmatprep.subr.bf16.mxu0 0
  %3052 = vmatpush2.bf16.msra.mxu0 0
  %3053 = vmatprep.subr.bf16.mxu0 0
  %3054 = vmatpush2.bf16.msra.mxu0 0
  %3055 = vmatprep.subr.bf16.mxu0 0
  %3056 = vmatpush2.bf16.msra.mxu0 0
  %3057 = vmatprep.subr.bf16.mxu0 0
  %3058 = vmatpush2.bf16.msra.mxu0 0
  %3059 = vmatprep.subr.bf16.mxu0 0
  %3060 = vmatpush2.bf16.msra.mxu0 0
  %3061 = vmatprep.subr.bf16.mxu0 0
  %3062 = vmatpush2.bf16.msra.mxu0 0
  %3063 = vmatprep.mubr.bf16.mxu0 0
  %3064 = vmatmul.mubr.bf16.gmra.mxu0 %v2427
  %v3065 = vpop.f32.mrf.mxu0
  %v3066 = vadd.f32 %v1687, %v3065
  %v3067 = vpop.f32.mrf.mxu0
  %v3068 = vadd.f32 %v1689, %v3067
  %v3069 = vpop.f32.mrf.mxu0
  %v3070 = vadd.f32 %v1691, %v3069
  %v3071 = vpop.f32.mrf.mxu0
  %v3072 = vadd.f32 %v1693, %v3071
  %3073 = vdwg.mxu0
  %3074 = vmatprep.subr.bf16.mxu0 0
  %3075 = vmatpush1.bf16.msra.mxu0 0
  %3076 = vmatprep.subr.bf16.mxu0 0
  %3077 = vmatpush1.bf16.msra.mxu0 0
  %3078 = vmatprep.subr.bf16.mxu0 0
  %3079 = vmatpush1.bf16.msra.mxu0 0
  %3080 = vmatprep.subr.bf16.mxu0 0
  %3081 = vmatpush1.bf16.msra.mxu0 0
  %3082 = vmatprep.subr.bf16.mxu0 0
  %3083 = vmatpush1.bf16.msra.mxu0 0
  %3084 = vmatprep.subr.bf16.mxu0 0
  %3085 = vmatpush1.bf16.msra.mxu0 0
  %3086 = vmatprep.subr.bf16.mxu0 0
  %3087 = vmatpush1.bf16.msra.mxu0 0
  %3088 = vmatprep.subr.bf16.mxu0 %v952
  %3089 = vmatpush1.bf16.msra.mxu0 %v949
  %3090 = vmatprep.subr.bf16.mxu0 0
  %3091 = vmatpush2.bf16.msra.mxu0 0
  %3092 = vmatprep.subr.bf16.mxu0 0
  %3093 = vmatpush2.bf16.msra.mxu0 0
  %3094 = vmatprep.subr.bf16.mxu0 0
  %3095 = vmatpush2.bf16.msra.mxu0 0
  %3096 = vmatprep.subr.bf16.mxu0 0
  %3097 = vmatpush2.bf16.msra.mxu0 0
  %3098 = vmatprep.subr.bf16.mxu0 0
  %3099 = vmatpush2.bf16.msra.mxu0 0
  %3100 = vmatprep.subr.bf16.mxu0 0
  %3101 = vmatpush2.bf16.msra.mxu0 0
  %3102 = vmatprep.subr.bf16.mxu0 0
  %3103 = vmatpush2.bf16.msra.mxu0 0
  %3104 = vmatprep.subr.bf16.mxu0 0
  %3105 = vmatpush2.bf16.msra.mxu0 0
  %3106 = vmatprep.mubr.bf16.mxu0 0
  %3107 = vmatmul.mubr.bf16.gmra.mxu0 %v2427
  %v3108 = vpop.f32.mrf.mxu0
  %v3109 = vadd.f32 %v1730, %v3108
  %v3110 = vpop.f32.mrf.mxu0
  %v3111 = vadd.f32 %v1732, %v3110
  %v3112 = vpop.f32.mrf.mxu0
  %v3113 = vadd.f32 %v1734, %v3112
  %v3114 = vpop.f32.mrf.mxu0
  %v3115 = vadd.f32 %v1736, %v3114
  %3116 = vdwg.mxu0
  %3117 = vmatprep.subr.bf16.mxu0 0
  %3118 = vmatpush1.bf16.msra.mxu0 0
  %3119 = vmatprep.subr.bf16.mxu0 0
  %3120 = vmatpush1.bf16.msra.mxu0 0
  %3121 = vmatprep.subr.bf16.mxu0 0
  %3122 = vmatpush1.bf16.msra.mxu0 0
  %3123 = vmatprep.subr.bf16.mxu0 0
  %3124 = vmatpush1.bf16.msra.mxu0 0
  %3125 = vmatprep.subr.bf16.mxu0 0
  %3126 = vmatpush1.bf16.msra.mxu0 0
  %3127 = vmatprep.subr.bf16.mxu0 0
  %3128 = vmatpush1.bf16.msra.mxu0 0
  %3129 = vmatprep.subr.bf16.mxu0 0
  %3130 = vmatpush1.bf16.msra.mxu0 0
  %3131 = vmatprep.subr.bf16.mxu0 %v958
  %3132 = vmatpush1.bf16.msra.mxu0 %v955
  %3133 = vmatprep.subr.bf16.mxu0 0
  %3134 = vmatpush2.bf16.msra.mxu0 0
  %3135 = vmatprep.subr.bf16.mxu0 0
  %3136 = vmatpush2.bf16.msra.mxu0 0
  %3137 = vmatprep.subr.bf16.mxu0 0
  %3138 = vmatpush2.bf16.msra.mxu0 0
  %3139 = vmatprep.subr.bf16.mxu0 0
  %3140 = vmatpush2.bf16.msra.mxu0 0
  %3141 = vmatprep.subr.bf16.mxu0 0
  %3142 = vmatpush2.bf16.msra.mxu0 0
  %3143 = vmatprep.subr.bf16.mxu0 0
  %3144 = vmatpush2.bf16.msra.mxu0 0
  %3145 = vmatprep.subr.bf16.mxu0 0
  %3146 = vmatpush2.bf16.msra.mxu0 0
  %3147 = vmatprep.subr.bf16.mxu0 0
  %3148 = vmatpush2.bf16.msra.mxu0 0
  %3149 = vmatprep.mubr.bf16.mxu0 0
  %3150 = vmatmul.mubr.bf16.gmra.mxu0 %v2427
  %v3151 = vpop.f32.mrf.mxu0
  %v3152 = vadd.f32 %v1773, %v3151
  %v3153 = vpop.f32.mrf.mxu0
  %v3154 = vadd.f32 %v1775, %v3153
  %v3155 = vpop.f32.mrf.mxu0
  %v3156 = vadd.f32 %v1777, %v3155
  %v3157 = vpop.f32.mrf.mxu0
  %v3158 = vadd.f32 %v1779, %v3157
  %3159 = vdwg.mxu0
  %3160 = vmatprep.subr.bf16.mxu0 0
  %3161 = vmatpush1.bf16.msra.mxu0 0
  %3162 = vmatprep.subr.bf16.mxu0 0
  %3163 = vmatpush1.bf16.msra.mxu0 0
  %3164 = vmatprep.subr.bf16.mxu0 0
  %3165 = vmatpush1.bf16.msra.mxu0 0
  %3166 = vmatprep.subr.bf16.mxu0 0
  %3167 = vmatpush1.bf16.msra.mxu0 0
  %3168 = vmatprep.subr.bf16.mxu0 0
  %3169 = vmatpush1.bf16.msra.mxu0 0
  %3170 = vmatprep.subr.bf16.mxu0 0
  %3171 = vmatpush1.bf16.msra.mxu0 0
  %3172 = vmatprep.subr.bf16.mxu0 0
  %3173 = vmatpush1.bf16.msra.mxu0 0
  %3174 = vmatprep.subr.bf16.mxu0 %v964
  %3175 = vmatpush1.bf16.msra.mxu0 %v961
  %3176 = vmatprep.subr.bf16.mxu0 0
  %3177 = vmatpush2.bf16.msra.mxu0 0
  %3178 = vmatprep.subr.bf16.mxu0 0
  %3179 = vmatpush2.bf16.msra.mxu0 0
  %3180 = vmatprep.subr.bf16.mxu0 0
  %3181 = vmatpush2.bf16.msra.mxu0 0
  %3182 = vmatprep.subr.bf16.mxu0 0
  %3183 = vmatpush2.bf16.msra.mxu0 0
  %3184 = vmatprep.subr.bf16.mxu0 0
  %3185 = vmatpush2.bf16.msra.mxu0 0
  %3186 = vmatprep.subr.bf16.mxu0 0
  %3187 = vmatpush2.bf16.msra.mxu0 0
  %3188 = vmatprep.subr.bf16.mxu0 0
  %3189 = vmatpush2.bf16.msra.mxu0 0
  %3190 = vmatprep.subr.bf16.mxu0 0
  %3191 = vmatpush2.bf16.msra.mxu0 0
  %3192 = vmatprep.mubr.bf16.mxu0 0
  %3193 = vmatmul.mubr.bf16.gmra.mxu0 %v2427
  %v3194 = vpop.f32.mrf.mxu0
  %v3195 = vadd.f32 %v1816, %v3194
  %v3196 = vpop.f32.mrf.mxu0
  %v3197 = vadd.f32 %v1818, %v3196
  %v3198 = vpop.f32.mrf.mxu0
  %v3199 = vadd.f32 %v1820, %v3198
  %v3200 = vpop.f32.mrf.mxu0
  %v3201 = vadd.f32 %v1822, %v3200
  %3202 = vdwg.mxu0
  %3203 = vmatprep.subr.bf16.mxu0 0
  %3204 = vmatpush1.bf16.msra.mxu0 0
  %3205 = vmatprep.subr.bf16.mxu0 0
  %3206 = vmatpush1.bf16.msra.mxu0 0
  %3207 = vmatprep.subr.bf16.mxu0 0
  %3208 = vmatpush1.bf16.msra.mxu0 0
  %3209 = vmatprep.subr.bf16.mxu0 0
  %3210 = vmatpush1.bf16.msra.mxu0 0
  %3211 = vmatprep.subr.bf16.mxu0 0
  %3212 = vmatpush1.bf16.msra.mxu0 0
  %3213 = vmatprep.subr.bf16.mxu0 0
  %3214 = vmatpush1.bf16.msra.mxu0 0
  %3215 = vmatprep.subr.bf16.mxu0 0
  %3216 = vmatpush1.bf16.msra.mxu0 0
  %3217 = vmatprep.subr.bf16.mxu0 %v970
  %3218 = vmatpush1.bf16.msra.mxu0 %v967
  %3219 = vmatprep.subr.bf16.mxu0 0
  %3220 = vmatpush2.bf16.msra.mxu0 0
  %3221 = vmatprep.subr.bf16.mxu0 0
  %3222 = vmatpush2.bf16.msra.mxu0 0
  %3223 = vmatprep.subr.bf16.mxu0 0
  %3224 = vmatpush2.bf16.msra.mxu0 0
  %3225 = vmatprep.subr.bf16.mxu0 0
  %3226 = vmatpush2.bf16.msra.mxu0 0
  %3227 = vmatprep.subr.bf16.mxu0 0
  %3228 = vmatpush2.bf16.msra.mxu0 0
  %3229 = vmatprep.subr.bf16.mxu0 0
  %3230 = vmatpush2.bf16.msra.mxu0 0
  %3231 = vmatprep.subr.bf16.mxu0 0
  %3232 = vmatpush2.bf16.msra.mxu0 0
  %3233 = vmatprep.subr.bf16.mxu0 0
  %3234 = vmatpush2.bf16.msra.mxu0 0
  %3235 = vmatprep.mubr.bf16.mxu0 0
  %3236 = vmatmul.mubr.bf16.gmra.mxu0 %v2427
  %v3237 = vpop.f32.mrf.mxu0
  %v3238 = vadd.f32 %v1859, %v3237
  %v3239 = vpop.f32.mrf.mxu0
  %v3240 = vadd.f32 %v1861, %v3239
  %v3241 = vpop.f32.mrf.mxu0
  %v3242 = vadd.f32 %v1863, %v3241
  %v3243 = vpop.f32.mrf.mxu0
  %v3244 = vadd.f32 %v1865, %v3243
  %3245 = vdwg.mxu0
  %3246 = vmatprep.subr.bf16.mxu0 0
  %3247 = vmatpush1.bf16.msra.mxu0 0
  %3248 = vmatprep.subr.bf16.mxu0 0
  %3249 = vmatpush1.bf16.msra.mxu0 0
  %3250 = vmatprep.subr.bf16.mxu0 0
  %3251 = vmatpush1.bf16.msra.mxu0 0
  %3252 = vmatprep.subr.bf16.mxu0 0
  %3253 = vmatpush1.bf16.msra.mxu0 0
  %3254 = vmatprep.subr.bf16.mxu0 0
  %3255 = vmatpush1.bf16.msra.mxu0 0
  %3256 = vmatprep.subr.bf16.mxu0 0
  %3257 = vmatpush1.bf16.msra.mxu0 0
  %3258 = vmatprep.subr.bf16.mxu0 0
  %3259 = vmatpush1.bf16.msra.mxu0 0
  %3260 = vmatprep.subr.bf16.mxu0 %v976
  %3261 = vmatpush1.bf16.msra.mxu0 %v973
  %3262 = vmatprep.subr.bf16.mxu0 0
  %3263 = vmatpush2.bf16.msra.mxu0 0
  %3264 = vmatprep.subr.bf16.mxu0 0
  %3265 = vmatpush2.bf16.msra.mxu0 0
  %3266 = vmatprep.subr.bf16.mxu0 0
  %3267 = vmatpush2.bf16.msra.mxu0 0
  %3268 = vmatprep.subr.bf16.mxu0 0
  %3269 = vmatpush2.bf16.msra.mxu0 0
  %3270 = vmatprep.subr.bf16.mxu0 0
  %3271 = vmatpush2.bf16.msra.mxu0 0
  %3272 = vmatprep.subr.bf16.mxu0 0
  %3273 = vmatpush2.bf16.msra.mxu0 0
  %3274 = vmatprep.subr.bf16.mxu0 0
  %3275 = vmatpush2.bf16.msra.mxu0 0
  %3276 = vmatprep.subr.bf16.mxu0 0
  %3277 = vmatpush2.bf16.msra.mxu0 0
  %3278 = vmatprep.mubr.bf16.mxu0 0
  %3279 = vmatmul.mubr.bf16.gmra.mxu0 %v2427
  %v3280 = vpop.f32.mrf.mxu0
  %v3281 = vadd.f32 %v1902, %v3280
  %v3282 = vpop.f32.mrf.mxu0
  %v3283 = vadd.f32 %v1904, %v3282
  %v3284 = vpop.f32.mrf.mxu0
  %v3285 = vadd.f32 %v1906, %v3284
  %v3286 = vpop.f32.mrf.mxu0
  %v3287 = vadd.f32 %v1908, %v3286
  %3288 = vdwg.mxu0
  %3289 = vmatprep.subr.bf16.mxu0 0
  %3290 = vmatpush1.bf16.msra.mxu0 0
  %3291 = vmatprep.subr.bf16.mxu0 0
  %3292 = vmatpush1.bf16.msra.mxu0 0
  %3293 = vmatprep.subr.bf16.mxu0 0
  %3294 = vmatpush1.bf16.msra.mxu0 0
  %3295 = vmatprep.subr.bf16.mxu0 0
  %3296 = vmatpush1.bf16.msra.mxu0 0
  %3297 = vmatprep.subr.bf16.mxu0 0
  %3298 = vmatpush1.bf16.msra.mxu0 0
  %3299 = vmatprep.subr.bf16.mxu0 0
  %3300 = vmatpush1.bf16.msra.mxu0 0
  %3301 = vmatprep.subr.bf16.mxu0 0
  %3302 = vmatpush1.bf16.msra.mxu0 0
  %3303 = vmatprep.subr.bf16.mxu0 %v982
  %3304 = vmatpush1.bf16.msra.mxu0 %v979
  %3305 = vmatprep.subr.bf16.mxu0 0
  %3306 = vmatpush2.bf16.msra.mxu0 0
  %3307 = vmatprep.subr.bf16.mxu0 0
  %3308 = vmatpush2.bf16.msra.mxu0 0
  %3309 = vmatprep.subr.bf16.mxu0 0
  %3310 = vmatpush2.bf16.msra.mxu0 0
  %3311 = vmatprep.subr.bf16.mxu0 0
  %3312 = vmatpush2.bf16.msra.mxu0 0
  %3313 = vmatprep.subr.bf16.mxu0 0
  %3314 = vmatpush2.bf16.msra.mxu0 0
  %3315 = vmatprep.subr.bf16.mxu0 0
  %3316 = vmatpush2.bf16.msra.mxu0 0
  %3317 = vmatprep.subr.bf16.mxu0 0
  %3318 = vmatpush2.bf16.msra.mxu0 0
  %3319 = vmatprep.subr.bf16.mxu0 0
  %3320 = vmatpush2.bf16.msra.mxu0 0
  %3321 = vmatprep.mubr.bf16.mxu0 0
  %3322 = vmatmul.mubr.bf16.gmra.mxu0 %v2427
  %v3323 = vpop.f32.mrf.mxu0
  %v3324 = vadd.f32 %v1945, %v3323
  %v3325 = vpop.f32.mrf.mxu0
  %v3326 = vadd.f32 %v1947, %v3325
  %v3327 = vpop.f32.mrf.mxu0
  %v3328 = vadd.f32 %v1949, %v3327
  %v3329 = vpop.f32.mrf.mxu0
  %v3330 = vadd.f32 %v1951, %v3329
  %3331 = vdwg.mxu0
  %3332 = vmatprep.subr.bf16.mxu0 0
  %3333 = vmatpush1.bf16.msra.mxu0 0
  %3334 = vmatprep.subr.bf16.mxu0 0
  %3335 = vmatpush1.bf16.msra.mxu0 0
  %3336 = vmatprep.subr.bf16.mxu0 0
  %3337 = vmatpush1.bf16.msra.mxu0 0
  %3338 = vmatprep.subr.bf16.mxu0 0
  %3339 = vmatpush1.bf16.msra.mxu0 0
  %3340 = vmatprep.subr.bf16.mxu0 0
  %3341 = vmatpush1.bf16.msra.mxu0 0
  %3342 = vmatprep.subr.bf16.mxu0 0
  %3343 = vmatpush1.bf16.msra.mxu0 0
  %3344 = vmatprep.subr.bf16.mxu0 0
  %3345 = vmatpush1.bf16.msra.mxu0 0
  %3346 = vmatprep.subr.bf16.mxu0 %v988
  %3347 = vmatpush1.bf16.msra.mxu0 %v985
  %3348 = vmatprep.subr.bf16.mxu0 0
  %3349 = vmatpush2.bf16.msra.mxu0 0
  %3350 = vmatprep.subr.bf16.mxu0 0
  %3351 = vmatpush2.bf16.msra.mxu0 0
  %3352 = vmatprep.subr.bf16.mxu0 0
  %3353 = vmatpush2.bf16.msra.mxu0 0
  %3354 = vmatprep.subr.bf16.mxu0 0
  %3355 = vmatpush2.bf16.msra.mxu0 0
  %3356 = vmatprep.subr.bf16.mxu0 0
  %3357 = vmatpush2.bf16.msra.mxu0 0
  %3358 = vmatprep.subr.bf16.mxu0 0
  %3359 = vmatpush2.bf16.msra.mxu0 0
  %3360 = vmatprep.subr.bf16.mxu0 0
  %3361 = vmatpush2.bf16.msra.mxu0 0
  %3362 = vmatprep.subr.bf16.mxu0 0
  %3363 = vmatpush2.bf16.msra.mxu0 0
  %3364 = vmatprep.mubr.bf16.mxu0 0
  %3365 = vmatmul.mubr.bf16.gmra.mxu0 %v2427
  %v3366 = vpop.f32.mrf.mxu0
  %v3367 = vadd.f32 %v1988, %v3366
  %v3368 = vpop.f32.mrf.mxu0
  %v3369 = vadd.f32 %v1990, %v3368
  %v3370 = vpop.f32.mrf.mxu0
  %v3371 = vadd.f32 %v1992, %v3370
  %v3372 = vpop.f32.mrf.mxu0
  %v3373 = vadd.f32 %v1994, %v3372
  %3374 = vdwg.mxu0
  %3375 = vmatprep.subr.bf16.mxu0 0
  %3376 = vmatpush1.bf16.msra.mxu0 0
  %3377 = vmatprep.subr.bf16.mxu0 0
  %3378 = vmatpush1.bf16.msra.mxu0 0
  %3379 = vmatprep.subr.bf16.mxu0 0
  %3380 = vmatpush1.bf16.msra.mxu0 0
  %3381 = vmatprep.subr.bf16.mxu0 0
  %3382 = vmatpush1.bf16.msra.mxu0 0
  %3383 = vmatprep.subr.bf16.mxu0 0
  %3384 = vmatpush1.bf16.msra.mxu0 0
  %3385 = vmatprep.subr.bf16.mxu0 0
  %3386 = vmatpush1.bf16.msra.mxu0 0
  %3387 = vmatprep.subr.bf16.mxu0 0
  %3388 = vmatpush1.bf16.msra.mxu0 0
  %3389 = vmatprep.subr.bf16.mxu0 %v994
  %3390 = vmatpush1.bf16.msra.mxu0 %v991
  %3391 = vmatprep.subr.bf16.mxu0 0
  %3392 = vmatpush2.bf16.msra.mxu0 0
  %3393 = vmatprep.subr.bf16.mxu0 0
  %3394 = vmatpush2.bf16.msra.mxu0 0
  %3395 = vmatprep.subr.bf16.mxu0 0
  %3396 = vmatpush2.bf16.msra.mxu0 0
  %3397 = vmatprep.subr.bf16.mxu0 0
  %3398 = vmatpush2.bf16.msra.mxu0 0
  %3399 = vmatprep.subr.bf16.mxu0 0
  %3400 = vmatpush2.bf16.msra.mxu0 0
  %3401 = vmatprep.subr.bf16.mxu0 0
  %3402 = vmatpush2.bf16.msra.mxu0 0
  %3403 = vmatprep.subr.bf16.mxu0 0
  %3404 = vmatpush2.bf16.msra.mxu0 0
  %3405 = vmatprep.subr.bf16.mxu0 0
  %3406 = vmatpush2.bf16.msra.mxu0 0
  %3407 = vmatprep.mubr.bf16.mxu0 0
  %3408 = vmatmul.mubr.bf16.gmra.mxu0 %v2427
  %v3409 = vpop.f32.mrf.mxu0
  %v3410 = vadd.f32 %v2031, %v3409
  %v3411 = vpop.f32.mrf.mxu0
  %v3412 = vadd.f32 %v2033, %v3411
  %v3413 = vpop.f32.mrf.mxu0
  %v3414 = vadd.f32 %v2035, %v3413
  %v3415 = vpop.f32.mrf.mxu0
  %v3416 = vadd.f32 %v2037, %v3415
  %3417 = vdwg.mxu0
  %3418 = vmatprep.subr.bf16.mxu0 0
  %3419 = vmatpush1.bf16.msra.mxu0 0
  %3420 = vmatprep.subr.bf16.mxu0 0
  %3421 = vmatpush1.bf16.msra.mxu0 0
  %3422 = vmatprep.subr.bf16.mxu0 0
  %3423 = vmatpush1.bf16.msra.mxu0 0
  %3424 = vmatprep.subr.bf16.mxu0 0
  %3425 = vmatpush1.bf16.msra.mxu0 0
  %3426 = vmatprep.subr.bf16.mxu0 0
  %3427 = vmatpush1.bf16.msra.mxu0 0
  %3428 = vmatprep.subr.bf16.mxu0 0
  %3429 = vmatpush1.bf16.msra.mxu0 0
  %3430 = vmatprep.subr.bf16.mxu0 0
  %3431 = vmatpush1.bf16.msra.mxu0 0
  %3432 = vmatprep.subr.bf16.mxu0 %v1000
  %3433 = vmatpush1.bf16.msra.mxu0 %v997
  %3434 = vmatprep.subr.bf16.mxu0 0
  %3435 = vmatpush2.bf16.msra.mxu0 0
  %3436 = vmatprep.subr.bf16.mxu0 0
  %3437 = vmatpush2.bf16.msra.mxu0 0
  %3438 = vmatprep.subr.bf16.mxu0 0
  %3439 = vmatpush2.bf16.msra.mxu0 0
  %3440 = vmatprep.subr.bf16.mxu0 0
  %3441 = vmatpush2.bf16.msra.mxu0 0
  %3442 = vmatprep.subr.bf16.mxu0 0
  %3443 = vmatpush2.bf16.msra.mxu0 0
  %3444 = vmatprep.subr.bf16.mxu0 0
  %3445 = vmatpush2.bf16.msra.mxu0 0
  %3446 = vmatprep.subr.bf16.mxu0 0
  %3447 = vmatpush2.bf16.msra.mxu0 0
  %3448 = vmatprep.subr.bf16.mxu0 0
  %3449 = vmatpush2.bf16.msra.mxu0 0
  %3450 = vmatprep.mubr.bf16.mxu0 0
  %3451 = vmatmul.mubr.bf16.gmra.mxu0 %v2427
  %v3452 = vpop.f32.mrf.mxu0
  %v3453 = vadd.f32 %v2074, %v3452
  %v3454 = vpop.f32.mrf.mxu0
  %v3455 = vadd.f32 %v2076, %v3454
  %v3456 = vpop.f32.mrf.mxu0
  %v3457 = vadd.f32 %v2078, %v3456
  %v3458 = vpop.f32.mrf.mxu0
  %v3459 = vadd.f32 %v2080, %v3458
  %3460 = vdwg.mxu0
  %3461 = vmatprep.subr.bf16.mxu0 0
  %3462 = vmatpush1.bf16.msra.mxu0 0
  %3463 = vmatprep.subr.bf16.mxu0 0
  %3464 = vmatpush1.bf16.msra.mxu0 0
  %3465 = vmatprep.subr.bf16.mxu0 0
  %3466 = vmatpush1.bf16.msra.mxu0 0
  %3467 = vmatprep.subr.bf16.mxu0 0
  %3468 = vmatpush1.bf16.msra.mxu0 0
  %3469 = vmatprep.subr.bf16.mxu0 0
  %3470 = vmatpush1.bf16.msra.mxu0 0
  %3471 = vmatprep.subr.bf16.mxu0 0
  %3472 = vmatpush1.bf16.msra.mxu0 0
  %3473 = vmatprep.subr.bf16.mxu0 0
  %3474 = vmatpush1.bf16.msra.mxu0 0
  %3475 = vmatprep.subr.bf16.mxu0 %v1006
  %3476 = vmatpush1.bf16.msra.mxu0 %v1003
  %3477 = vmatprep.subr.bf16.mxu0 0
  %3478 = vmatpush2.bf16.msra.mxu0 0
  %3479 = vmatprep.subr.bf16.mxu0 0
  %3480 = vmatpush2.bf16.msra.mxu0 0
  %3481 = vmatprep.subr.bf16.mxu0 0
  %3482 = vmatpush2.bf16.msra.mxu0 0
  %3483 = vmatprep.subr.bf16.mxu0 0
  %3484 = vmatpush2.bf16.msra.mxu0 0
  %3485 = vmatprep.subr.bf16.mxu0 0
  %3486 = vmatpush2.bf16.msra.mxu0 0
  %3487 = vmatprep.subr.bf16.mxu0 0
  %3488 = vmatpush2.bf16.msra.mxu0 0
  %3489 = vmatprep.subr.bf16.mxu0 0
  %3490 = vmatpush2.bf16.msra.mxu0 0
  %3491 = vmatprep.subr.bf16.mxu0 0
  %3492 = vmatpush2.bf16.msra.mxu0 0
  %3493 = vmatprep.mubr.bf16.mxu0 0
  %3494 = vmatmul.mubr.bf16.gmra.mxu0 %v2427
  %v3495 = vpop.f32.mrf.mxu0
  %v3496 = vadd.f32 %v2117, %v3495
  %v3497 = vpop.f32.mrf.mxu0
  %v3498 = vadd.f32 %v2119, %v3497
  %v3499 = vpop.f32.mrf.mxu0
  %v3500 = vadd.f32 %v2121, %v3499
  %v3501 = vpop.f32.mrf.mxu0
  %v3502 = vadd.f32 %v2123, %v3501
  %3503 = vdwg.mxu0
  %3504 = vmatprep.subr.bf16.mxu0 0
  %3505 = vmatpush1.bf16.msra.mxu0 0
  %3506 = vmatprep.subr.bf16.mxu0 0
  %3507 = vmatpush1.bf16.msra.mxu0 0
  %3508 = vmatprep.subr.bf16.mxu0 0
  %3509 = vmatpush1.bf16.msra.mxu0 0
  %3510 = vmatprep.subr.bf16.mxu0 0
  %3511 = vmatpush1.bf16.msra.mxu0 0
  %3512 = vmatprep.subr.bf16.mxu0 0
  %3513 = vmatpush1.bf16.msra.mxu0 0
  %3514 = vmatprep.subr.bf16.mxu0 0
  %3515 = vmatpush1.bf16.msra.mxu0 0
  %3516 = vmatprep.subr.bf16.mxu0 0
  %3517 = vmatpush1.bf16.msra.mxu0 0
  %3518 = vmatprep.subr.bf16.mxu0 %v1012
  %3519 = vmatpush1.bf16.msra.mxu0 %v1009
  %3520 = vmatprep.subr.bf16.mxu0 0
  %3521 = vmatpush2.bf16.msra.mxu0 0
  %3522 = vmatprep.subr.bf16.mxu0 0
  %3523 = vmatpush2.bf16.msra.mxu0 0
  %3524 = vmatprep.subr.bf16.mxu0 0
  %3525 = vmatpush2.bf16.msra.mxu0 0
  %3526 = vmatprep.subr.bf16.mxu0 0
  %3527 = vmatpush2.bf16.msra.mxu0 0
  %3528 = vmatprep.subr.bf16.mxu0 0
  %3529 = vmatpush2.bf16.msra.mxu0 0
  %3530 = vmatprep.subr.bf16.mxu0 0
  %3531 = vmatpush2.bf16.msra.mxu0 0
  %3532 = vmatprep.subr.bf16.mxu0 0
  %3533 = vmatpush2.bf16.msra.mxu0 0
  %3534 = vmatprep.subr.bf16.mxu0 0
  %3535 = vmatpush2.bf16.msra.mxu0 0
  %3536 = vmatprep.mubr.bf16.mxu0 0
  %3537 = vmatmul.mubr.bf16.gmra.mxu0 %v2427
  %v3538 = vpop.f32.mrf.mxu0
  %v3539 = vadd.f32 %v2160, %v3538
  %v3540 = vpop.f32.mrf.mxu0
  %v3541 = vadd.f32 %v2162, %v3540
  %v3542 = vpop.f32.mrf.mxu0
  %v3543 = vadd.f32 %v2164, %v3542
  %v3544 = vpop.f32.mrf.mxu0
  %v3545 = vadd.f32 %v2166, %v3544
  %3546 = vdwg.mxu0
  %3547 = vmatprep.subr.bf16.mxu0 0
  %3548 = vmatpush1.bf16.msra.mxu0 0
  %3549 = vmatprep.subr.bf16.mxu0 0
  %3550 = vmatpush1.bf16.msra.mxu0 0
  %3551 = vmatprep.subr.bf16.mxu0 0
  %3552 = vmatpush1.bf16.msra.mxu0 0
  %3553 = vmatprep.subr.bf16.mxu0 0
  %3554 = vmatpush1.bf16.msra.mxu0 0
  %3555 = vmatprep.subr.bf16.mxu0 0
  %3556 = vmatpush1.bf16.msra.mxu0 0
  %3557 = vmatprep.subr.bf16.mxu0 0
  %3558 = vmatpush1.bf16.msra.mxu0 0
  %3559 = vmatprep.subr.bf16.mxu0 0
  %3560 = vmatpush1.bf16.msra.mxu0 0
  %3561 = vmatprep.subr.bf16.mxu0 %v1018
  %3562 = vmatpush1.bf16.msra.mxu0 %v1015
  %3563 = vmatprep.subr.bf16.mxu0 0
  %3564 = vmatpush2.bf16.msra.mxu0 0
  %3565 = vmatprep.subr.bf16.mxu0 0
  %3566 = vmatpush2.bf16.msra.mxu0 0
  %3567 = vmatprep.subr.bf16.mxu0 0
  %3568 = vmatpush2.bf16.msra.mxu0 0
  %3569 = vmatprep.subr.bf16.mxu0 0
  %3570 = vmatpush2.bf16.msra.mxu0 0
  %3571 = vmatprep.subr.bf16.mxu0 0
  %3572 = vmatpush2.bf16.msra.mxu0 0
  %3573 = vmatprep.subr.bf16.mxu0 0
  %3574 = vmatpush2.bf16.msra.mxu0 0
  %3575 = vmatprep.subr.bf16.mxu0 0
  %3576 = vmatpush2.bf16.msra.mxu0 0
  %3577 = vmatprep.subr.bf16.mxu0 0
  %3578 = vmatpush2.bf16.msra.mxu0 0
  %3579 = vmatprep.mubr.bf16.mxu0 0
  %3580 = vmatmul.mubr.bf16.gmra.mxu0 %v2427
  %v3581 = vpop.f32.mrf.mxu0
  %v3582 = vadd.f32 %v2203, %v3581
  %v3583 = vpop.f32.mrf.mxu0
  %v3584 = vadd.f32 %v2205, %v3583
  %v3585 = vpop.f32.mrf.mxu0
  %v3586 = vadd.f32 %v2207, %v3585
  %v3587 = vpop.f32.mrf.mxu0
  %v3588 = vadd.f32 %v2209, %v3587
  %3589 = vdwg.mxu0
  %3590 = vmatprep.subr.bf16.mxu0 0
  %3591 = vmatpush1.bf16.msra.mxu0 0
  %3592 = vmatprep.subr.bf16.mxu0 0
  %3593 = vmatpush1.bf16.msra.mxu0 0
  %3594 = vmatprep.subr.bf16.mxu0 0
  %3595 = vmatpush1.bf16.msra.mxu0 0
  %3596 = vmatprep.subr.bf16.mxu0 0
  %3597 = vmatpush1.bf16.msra.mxu0 0
  %3598 = vmatprep.subr.bf16.mxu0 0
  %3599 = vmatpush1.bf16.msra.mxu0 0
  %3600 = vmatprep.subr.bf16.mxu0 0
  %3601 = vmatpush1.bf16.msra.mxu0 0
  %3602 = vmatprep.subr.bf16.mxu0 0
  %3603 = vmatpush1.bf16.msra.mxu0 0
  %3604 = vmatprep.subr.bf16.mxu0 %v1024
  %3605 = vmatpush1.bf16.msra.mxu0 %v1021
  %3606 = vmatprep.subr.bf16.mxu0 0
  %3607 = vmatpush2.bf16.msra.mxu0 0
  %3608 = vmatprep.subr.bf16.mxu0 0
  %3609 = vmatpush2.bf16.msra.mxu0 0
  %3610 = vmatprep.subr.bf16.mxu0 0
  %3611 = vmatpush2.bf16.msra.mxu0 0
  %3612 = vmatprep.subr.bf16.mxu0 0
  %3613 = vmatpush2.bf16.msra.mxu0 0
  %3614 = vmatprep.subr.bf16.mxu0 0
  %3615 = vmatpush2.bf16.msra.mxu0 0
  %3616 = vmatprep.subr.bf16.mxu0 0
  %3617 = vmatpush2.bf16.msra.mxu0 0
  %3618 = vmatprep.subr.bf16.mxu0 0
  %3619 = vmatpush2.bf16.msra.mxu0 0
  %3620 = vmatprep.subr.bf16.mxu0 0
  %3621 = vmatpush2.bf16.msra.mxu0 0
  %3622 = vmatprep.mubr.bf16.mxu0 0
  %3623 = vmatmul.mubr.bf16.gmra.mxu0 %v2427
  %v3624 = vpop.f32.mrf.mxu0
  %v3625 = vadd.f32 %v2246, %v3624
  %v3626 = vpop.f32.mrf.mxu0
  %v3627 = vadd.f32 %v2248, %v3626
  %v3628 = vpop.f32.mrf.mxu0
  %v3629 = vadd.f32 %v2250, %v3628
  %v3630 = vpop.f32.mrf.mxu0
  %v3631 = vadd.f32 %v2252, %v3630
  %3632 = vdwg.mxu0
  %3633 = vmatprep.subr.bf16.mxu0 0
  %3634 = vmatpush1.bf16.msra.mxu0 0
  %3635 = vmatprep.subr.bf16.mxu0 0
  %3636 = vmatpush1.bf16.msra.mxu0 0
  %3637 = vmatprep.subr.bf16.mxu0 0
  %3638 = vmatpush1.bf16.msra.mxu0 0
  %3639 = vmatprep.subr.bf16.mxu0 0
  %3640 = vmatpush1.bf16.msra.mxu0 0
  %3641 = vmatprep.subr.bf16.mxu0 0
  %3642 = vmatpush1.bf16.msra.mxu0 0
  %3643 = vmatprep.subr.bf16.mxu0 0
  %3644 = vmatpush1.bf16.msra.mxu0 0
  %3645 = vmatprep.subr.bf16.mxu0 0
  %3646 = vmatpush1.bf16.msra.mxu0 0
  %3647 = vmatprep.subr.bf16.mxu0 %v1030
  %3648 = vmatpush1.bf16.msra.mxu0 %v1027
  %3649 = vmatprep.subr.bf16.mxu0 0
  %3650 = vmatpush2.bf16.msra.mxu0 0
  %3651 = vmatprep.subr.bf16.mxu0 0
  %3652 = vmatpush2.bf16.msra.mxu0 0
  %3653 = vmatprep.subr.bf16.mxu0 0
  %3654 = vmatpush2.bf16.msra.mxu0 0
  %3655 = vmatprep.subr.bf16.mxu0 0
  %3656 = vmatpush2.bf16.msra.mxu0 0
  %3657 = vmatprep.subr.bf16.mxu0 0
  %3658 = vmatpush2.bf16.msra.mxu0 0
  %3659 = vmatprep.subr.bf16.mxu0 0
  %3660 = vmatpush2.bf16.msra.mxu0 0
  %3661 = vmatprep.subr.bf16.mxu0 0
  %3662 = vmatpush2.bf16.msra.mxu0 0
  %3663 = vmatprep.subr.bf16.mxu0 0
  %3664 = vmatpush2.bf16.msra.mxu0 0
  %3665 = vmatprep.mubr.bf16.mxu0 0
  %3666 = vmatmul.mubr.bf16.gmra.mxu0 %v2427
  %v3667 = vpop.f32.mrf.mxu0
  %v3668 = vadd.f32 %v2289, %v3667
  %v3669 = vpop.f32.mrf.mxu0
  %v3670 = vadd.f32 %v2291, %v3669
  %v3671 = vpop.f32.mrf.mxu0
  %v3672 = vadd.f32 %v2293, %v3671
  %v3673 = vpop.f32.mrf.mxu0
  %v3674 = vadd.f32 %v2295, %v3673
  %3675 = vdwg.mxu0
  %3676 = vmatprep.subr.bf16.mxu0 0
  %3677 = vmatpush1.bf16.msra.mxu0 0
  %3678 = vmatprep.subr.bf16.mxu0 0
  %3679 = vmatpush1.bf16.msra.mxu0 0
  %3680 = vmatprep.subr.bf16.mxu0 0
  %3681 = vmatpush1.bf16.msra.mxu0 0
  %3682 = vmatprep.subr.bf16.mxu0 0
  %3683 = vmatpush1.bf16.msra.mxu0 0
  %3684 = vmatprep.subr.bf16.mxu0 0
  %3685 = vmatpush1.bf16.msra.mxu0 0
  %3686 = vmatprep.subr.bf16.mxu0 0
  %3687 = vmatpush1.bf16.msra.mxu0 0
  %3688 = vmatprep.subr.bf16.mxu0 0
  %3689 = vmatpush1.bf16.msra.mxu0 0
  %3690 = vmatprep.subr.bf16.mxu0 %v1036
  %3691 = vmatpush1.bf16.msra.mxu0 %v1033
  %3692 = vmatprep.subr.bf16.mxu0 0
  %3693 = vmatpush2.bf16.msra.mxu0 0
  %3694 = vmatprep.subr.bf16.mxu0 0
  %3695 = vmatpush2.bf16.msra.mxu0 0
  %3696 = vmatprep.subr.bf16.mxu0 0
  %3697 = vmatpush2.bf16.msra.mxu0 0
  %3698 = vmatprep.subr.bf16.mxu0 0
  %3699 = vmatpush2.bf16.msra.mxu0 0
  %3700 = vmatprep.subr.bf16.mxu0 0
  %3701 = vmatpush2.bf16.msra.mxu0 0
  %3702 = vmatprep.subr.bf16.mxu0 0
  %3703 = vmatpush2.bf16.msra.mxu0 0
  %3704 = vmatprep.subr.bf16.mxu0 0
  %3705 = vmatpush2.bf16.msra.mxu0 0
  %3706 = vmatprep.subr.bf16.mxu0 0
  %3707 = vmatpush2.bf16.msra.mxu0 0
  %3708 = vmatprep.mubr.bf16.mxu0 0
  %3709 = vmatmul.mubr.bf16.gmra.mxu0 %v2427
  %v3710 = vpop.f32.mrf.mxu0
  %v3711 = vadd.f32 %v2332, %v3710
  %v3712 = vpop.f32.mrf.mxu0
  %v3713 = vadd.f32 %v2334, %v3712
  %v3714 = vpop.f32.mrf.mxu0
  %v3715 = vadd.f32 %v2336, %v3714
  %v3716 = vpop.f32.mrf.mxu0
  %v3717 = vadd.f32 %v2338, %v3716
  %3718 = vdwg.mxu0
  %3719 = vmatprep.subr.bf16.mxu0 0
  %3720 = vmatpush1.bf16.msra.mxu0 0
  %3721 = vmatprep.subr.bf16.mxu0 0
  %3722 = vmatpush1.bf16.msra.mxu0 0
  %3723 = vmatprep.subr.bf16.mxu0 0
  %3724 = vmatpush1.bf16.msra.mxu0 0
  %3725 = vmatprep.subr.bf16.mxu0 0
  %3726 = vmatpush1.bf16.msra.mxu0 0
  %3727 = vmatprep.subr.bf16.mxu0 0
  %3728 = vmatpush1.bf16.msra.mxu0 0
  %3729 = vmatprep.subr.bf16.mxu0 0
  %3730 = vmatpush1.bf16.msra.mxu0 0
  %3731 = vmatprep.subr.bf16.mxu0 0
  %3732 = vmatpush1.bf16.msra.mxu0 0
  %3733 = vmatprep.subr.bf16.mxu0 %v1042
  %3734 = vmatpush1.bf16.msra.mxu0 %v1039
  %3735 = vmatprep.subr.bf16.mxu0 0
  %3736 = vmatpush2.bf16.msra.mxu0 0
  %3737 = vmatprep.subr.bf16.mxu0 0
  %3738 = vmatpush2.bf16.msra.mxu0 0
  %3739 = vmatprep.subr.bf16.mxu0 0
  %3740 = vmatpush2.bf16.msra.mxu0 0
  %3741 = vmatprep.subr.bf16.mxu0 0
  %3742 = vmatpush2.bf16.msra.mxu0 0
  %3743 = vmatprep.subr.bf16.mxu0 0
  %3744 = vmatpush2.bf16.msra.mxu0 0
  %3745 = vmatprep.subr.bf16.mxu0 0
  %3746 = vmatpush2.bf16.msra.mxu0 0
  %3747 = vmatprep.subr.bf16.mxu0 0
  %3748 = vmatpush2.bf16.msra.mxu0 0
  %3749 = vmatprep.subr.bf16.mxu0 0
  %3750 = vmatpush2.bf16.msra.mxu0 0
  %3751 = vmatprep.mubr.bf16.mxu0 0
  %3752 = vmatmul.mubr.bf16.gmra.mxu0 %v2427
  %v3753 = vpop.f32.mrf.mxu0
  %v3754 = vadd.f32 %v2375, %v3753
  %v3755 = vpop.f32.mrf.mxu0
  %v3756 = vadd.f32 %v2377, %v3755
  %v3757 = vpop.f32.mrf.mxu0
  %v3758 = vadd.f32 %v2379, %v3757
  %v3759 = vpop.f32.mrf.mxu0
  %v3760 = vadd.f32 %v2381, %v3759
  %3761 = vdwg.mxu0
  %3762 = vmatprep.subr.bf16.mxu0 0
  %3763 = vmatpush1.bf16.msra.mxu0 0
  %3764 = vmatprep.subr.bf16.mxu0 0
  %3765 = vmatpush1.bf16.msra.mxu0 0
  %3766 = vmatprep.subr.bf16.mxu0 0
  %3767 = vmatpush1.bf16.msra.mxu0 0
  %3768 = vmatprep.subr.bf16.mxu0 0
  %3769 = vmatpush1.bf16.msra.mxu0 0
  %3770 = vmatprep.subr.bf16.mxu0 0
  %3771 = vmatpush1.bf16.msra.mxu0 0
  %3772 = vmatprep.subr.bf16.mxu0 0
  %3773 = vmatpush1.bf16.msra.mxu0 0
  %3774 = vmatprep.subr.bf16.mxu0 0
  %3775 = vmatpush1.bf16.msra.mxu0 0
  %3776 = vmatprep.subr.bf16.mxu0 %v1048
  %3777 = vmatpush1.bf16.msra.mxu0 %v1045
  %3778 = vmatprep.subr.bf16.mxu0 0
  %3779 = vmatpush2.bf16.msra.mxu0 0
  %3780 = vmatprep.subr.bf16.mxu0 0
  %3781 = vmatpush2.bf16.msra.mxu0 0
  %3782 = vmatprep.subr.bf16.mxu0 0
  %3783 = vmatpush2.bf16.msra.mxu0 0
  %3784 = vmatprep.subr.bf16.mxu0 0
  %3785 = vmatpush2.bf16.msra.mxu0 0
  %3786 = vmatprep.subr.bf16.mxu0 0
  %3787 = vmatpush2.bf16.msra.mxu0 0
  %3788 = vmatprep.subr.bf16.mxu0 0
  %3789 = vmatpush2.bf16.msra.mxu0 0
  %3790 = vmatprep.subr.bf16.mxu0 0
  %3791 = vmatpush2.bf16.msra.mxu0 0
  %3792 = vmatprep.subr.bf16.mxu0 0
  %3793 = vmatpush2.bf16.msra.mxu0 0
  %3794 = vmatprep.mubr.bf16.mxu0 0
  %3795 = vmatmul.mubr.bf16.gmra.mxu0 %v2427
  %v3796 = vpop.f32.mrf.mxu0
  %v3797 = vadd.f32 %v2418, %v3796
  %v3798 = vpop.f32.mrf.mxu0
  %v3799 = vadd.f32 %v2420, %v3798
  %v3800 = vpop.f32.mrf.mxu0
  %v3801 = vadd.f32 %v2422, %v3800
  %v3802 = vpop.f32.mrf.mxu0
  %v3803 = vadd.f32 %v2424, %v3802
  %3804 = vdwg.mxu0
  %v3806 = vand.u32 %v786, %v857
  %v3809 = vand.u32 %v787, %v857
  %v3812 = vand.u32 %v788, %v857
  %v3815 = vand.u32 %v789, %v857
  %v3818 = vand.u32 %v790, %v857
  %v3821 = vand.u32 %v791, %v857
  %v3824 = vand.u32 %v792, %v857
  %v3827 = vand.u32 %v793, %v857
  %v3830 = vand.u32 %v794, %v857
  %v3833 = vand.u32 %v795, %v857
  %v3836 = vand.u32 %v796, %v857
  %v3839 = vand.u32 %v797, %v857
  %v3842 = vand.u32 %v798, %v857
  %v3845 = vand.u32 %v799, %v857
  %v3848 = vand.u32 %v800, %v857
  %v3851 = vand.u32 %v801, %v857
  %v3854 = vand.u32 %v802, %v857
  %v3857 = vand.u32 %v803, %v857
  %v3860 = vand.u32 %v804, %v857
  %v3863 = vand.u32 %v805, %v857
  %v3866 = vand.u32 %v806, %v857
  %v3869 = vand.u32 %v807, %v857
  %v3872 = vand.u32 %v808, %v857
  %v3875 = vand.u32 %v809, %v857
  %v3878 = vand.u32 %v810, %v857
  %v3881 = vand.u32 %v811, %v857
  %v3884 = vand.u32 %v812, %v857
  %v3887 = vand.u32 %v813, %v857
  %v3890 = vand.u32 %v814, %v857
  %v3893 = vand.u32 %v815, %v857
  %v3896 = vand.u32 %v816, %v857
  %v3899 = vand.u32 %v817, %v857
  %v3902 = vand.u32 %v818, %v857
  %v3905 = vand.u32 %v819, %v857
  %v3908 = vand.u32 %v820, %v857
  %v3911 = vand.u32 %v821, %v857
  %v3914 = vand.u32 %v822, %v857
  %v3917 = vand.u32 %v823, %v857
  %v3920 = vand.u32 %v824, %v857
  %v3923 = vand.u32 %v825, %v857
  %v3926 = vand.u32 %v826, %v857
  %v3929 = vand.u32 %v827, %v857
  %v3932 = vand.u32 %v828, %v857
  %v3935 = vand.u32 %v829, %v857
  %v3938 = vand.u32 %v830, %v857
  %v3941 = vand.u32 %v831, %v857
  %v3944 = vand.u32 %v832, %v857
  %v3947 = vand.u32 %v833, %v857
  %v3950 = vand.u32 %v834, %v857
  %v3953 = vand.u32 %v835, %v857
  %v3956 = vand.u32 %v836, %v857
  %v3959 = vand.u32 %v837, %v857
  %v3962 = vand.u32 %v838, %v857
  %v3965 = vand.u32 %v839, %v857
  %v3968 = vand.u32 %v840, %v857
  %v3971 = vand.u32 %v841, %v857
  %v3974 = vand.u32 %v842, %v857
  %v3977 = vand.u32 %v843, %v857
  %v3980 = vand.u32 %v844, %v857
  %v3983 = vand.u32 %v845, %v857
  %v3986 = vand.u32 %v846, %v857
  %v3989 = vand.u32 %v847, %v857
  %v3992 = vand.u32 %v848, %v857
  %v3995 = vand.u32 %v849, %v857
  %3997 = vmatprep.subr.bf16.mxu0 0
  %3998 = vmatpush1.bf16.msra.mxu0 0
  %3999 = vmatprep.subr.bf16.mxu0 0
  %4000 = vmatpush1.bf16.msra.mxu0 0
  %4001 = vmatprep.subr.bf16.mxu0 0
  %4002 = vmatpush1.bf16.msra.mxu0 0
  %4003 = vmatprep.subr.bf16.mxu0 0
  %4004 = vmatpush1.bf16.msra.mxu0 0
  %4005 = vmatprep.subr.bf16.mxu0 0
  %4006 = vmatpush1.bf16.msra.mxu0 0
  %4007 = vmatprep.subr.bf16.mxu0 0
  %4008 = vmatpush1.bf16.msra.mxu0 0
  %4009 = vmatprep.subr.bf16.mxu0 0
  %4010 = vmatpush1.bf16.msra.mxu0 0
  %4011 = vmatprep.subr.bf16.mxu0 %v3809
  %4012 = vmatpush1.bf16.msra.mxu0 %v3806
  %4013 = vmatprep.subr.bf16.mxu0 0
  %4014 = vmatpush2.bf16.msra.mxu0 0
  %4015 = vmatprep.subr.bf16.mxu0 0
  %4016 = vmatpush2.bf16.msra.mxu0 0
  %4017 = vmatprep.subr.bf16.mxu0 0
  %4018 = vmatpush2.bf16.msra.mxu0 0
  %4019 = vmatprep.subr.bf16.mxu0 0
  %4020 = vmatpush2.bf16.msra.mxu0 0
  %4021 = vmatprep.subr.bf16.mxu0 0
  %4022 = vmatpush2.bf16.msra.mxu0 0
  %4023 = vmatprep.subr.bf16.mxu0 0
  %4024 = vmatpush2.bf16.msra.mxu0 0
  %4025 = vmatprep.subr.bf16.mxu0 0
  %4026 = vmatpush2.bf16.msra.mxu0 0
  %4027 = vmatprep.subr.bf16.mxu0 0
  %4028 = vmatpush2.bf16.msra.mxu0 0
  %4029 = vmatprep.mubr.bf16.mxu0 0
  %4030 = vmatmul.mubr.bf16.gmra.mxu0 %v2427
  %v4031 = vpop.f32.mrf.mxu0
  %v4032 = vadd.f32 0.0, %v4031
  %v4033 = vpop.f32.mrf.mxu0
  %v4034 = vadd.f32 0.0, %v4033
  %v4035 = vpop.f32.mrf.mxu0
  %v4036 = vadd.f32 0.0, %v4035
  %v4037 = vpop.f32.mrf.mxu0
  %v4038 = vadd.f32 0.0, %v4037
  %4039 = vdwg.mxu0
  %4040 = vmatprep.subr.bf16.mxu0 0
  %4041 = vmatpush1.bf16.msra.mxu0 0
  %4042 = vmatprep.subr.bf16.mxu0 0
  %4043 = vmatpush1.bf16.msra.mxu0 0
  %4044 = vmatprep.subr.bf16.mxu0 0
  %4045 = vmatpush1.bf16.msra.mxu0 0
  %4046 = vmatprep.subr.bf16.mxu0 0
  %4047 = vmatpush1.bf16.msra.mxu0 0
  %4048 = vmatprep.subr.bf16.mxu0 0
  %4049 = vmatpush1.bf16.msra.mxu0 0
  %4050 = vmatprep.subr.bf16.mxu0 0
  %4051 = vmatpush1.bf16.msra.mxu0 0
  %4052 = vmatprep.subr.bf16.mxu0 0
  %4053 = vmatpush1.bf16.msra.mxu0 0
  %4054 = vmatprep.subr.bf16.mxu0 %v3815
  %4055 = vmatpush1.bf16.msra.mxu0 %v3812
  %4056 = vmatprep.subr.bf16.mxu0 0
  %4057 = vmatpush2.bf16.msra.mxu0 0
  %4058 = vmatprep.subr.bf16.mxu0 0
  %4059 = vmatpush2.bf16.msra.mxu0 0
  %4060 = vmatprep.subr.bf16.mxu0 0
  %4061 = vmatpush2.bf16.msra.mxu0 0
  %4062 = vmatprep.subr.bf16.mxu0 0
  %4063 = vmatpush2.bf16.msra.mxu0 0
  %4064 = vmatprep.subr.bf16.mxu0 0
  %4065 = vmatpush2.bf16.msra.mxu0 0
  %4066 = vmatprep.subr.bf16.mxu0 0
  %4067 = vmatpush2.bf16.msra.mxu0 0
  %4068 = vmatprep.subr.bf16.mxu0 0
  %4069 = vmatpush2.bf16.msra.mxu0 0
  %4070 = vmatprep.subr.bf16.mxu0 0
  %4071 = vmatpush2.bf16.msra.mxu0 0
  %4072 = vmatprep.mubr.bf16.mxu0 0
  %4073 = vmatmul.mubr.bf16.gmra.mxu0 %v2427
  %v4074 = vpop.f32.mrf.mxu0
  %v4075 = vadd.f32 0.0, %v4074
  %v4076 = vpop.f32.mrf.mxu0
  %v4077 = vadd.f32 0.0, %v4076
  %v4078 = vpop.f32.mrf.mxu0
  %v4079 = vadd.f32 0.0, %v4078
  %v4080 = vpop.f32.mrf.mxu0
  %v4081 = vadd.f32 0.0, %v4080
  %4082 = vdwg.mxu0
  %4083 = vmatprep.subr.bf16.mxu0 0
  %4084 = vmatpush1.bf16.msra.mxu0 0
  %4085 = vmatprep.subr.bf16.mxu0 0
  %4086 = vmatpush1.bf16.msra.mxu0 0
  %4087 = vmatprep.subr.bf16.mxu0 0
  %4088 = vmatpush1.bf16.msra.mxu0 0
  %4089 = vmatprep.subr.bf16.mxu0 0
  %4090 = vmatpush1.bf16.msra.mxu0 0
  %4091 = vmatprep.subr.bf16.mxu0 0
  %4092 = vmatpush1.bf16.msra.mxu0 0
  %4093 = vmatprep.subr.bf16.mxu0 0
  %4094 = vmatpush1.bf16.msra.mxu0 0
  %4095 = vmatprep.subr.bf16.mxu0 0
  %4096 = vmatpush1.bf16.msra.mxu0 0
  %4097 = vmatprep.subr.bf16.mxu0 %v3821
  %4098 = vmatpush1.bf16.msra.mxu0 %v3818
  %4099 = vmatprep.subr.bf16.mxu0 0
  %4100 = vmatpush2.bf16.msra.mxu0 0
  %4101 = vmatprep.subr.bf16.mxu0 0
  %4102 = vmatpush2.bf16.msra.mxu0 0
  %4103 = vmatprep.subr.bf16.mxu0 0
  %4104 = vmatpush2.bf16.msra.mxu0 0
  %4105 = vmatprep.subr.bf16.mxu0 0
  %4106 = vmatpush2.bf16.msra.mxu0 0
  %4107 = vmatprep.subr.bf16.mxu0 0
  %4108 = vmatpush2.bf16.msra.mxu0 0
  %4109 = vmatprep.subr.bf16.mxu0 0
  %4110 = vmatpush2.bf16.msra.mxu0 0
  %4111 = vmatprep.subr.bf16.mxu0 0
  %4112 = vmatpush2.bf16.msra.mxu0 0
  %4113 = vmatprep.subr.bf16.mxu0 0
  %4114 = vmatpush2.bf16.msra.mxu0 0
  %4115 = vmatprep.mubr.bf16.mxu0 0
  %4116 = vmatmul.mubr.bf16.gmra.mxu0 %v2427
  %v4117 = vpop.f32.mrf.mxu0
  %v4118 = vadd.f32 0.0, %v4117
  %v4119 = vpop.f32.mrf.mxu0
  %v4120 = vadd.f32 0.0, %v4119
  %v4121 = vpop.f32.mrf.mxu0
  %v4122 = vadd.f32 0.0, %v4121
  %v4123 = vpop.f32.mrf.mxu0
  %v4124 = vadd.f32 0.0, %v4123
  %4125 = vdwg.mxu0
  %4126 = vmatprep.subr.bf16.mxu0 0
  %4127 = vmatpush1.bf16.msra.mxu0 0
  %4128 = vmatprep.subr.bf16.mxu0 0
  %4129 = vmatpush1.bf16.msra.mxu0 0
  %4130 = vmatprep.subr.bf16.mxu0 0
  %4131 = vmatpush1.bf16.msra.mxu0 0
  %4132 = vmatprep.subr.bf16.mxu0 0
  %4133 = vmatpush1.bf16.msra.mxu0 0
  %4134 = vmatprep.subr.bf16.mxu0 0
  %4135 = vmatpush1.bf16.msra.mxu0 0
  %4136 = vmatprep.subr.bf16.mxu0 0
  %4137 = vmatpush1.bf16.msra.mxu0 0
  %4138 = vmatprep.subr.bf16.mxu0 0
  %4139 = vmatpush1.bf16.msra.mxu0 0
  %4140 = vmatprep.subr.bf16.mxu0 %v3827
  %4141 = vmatpush1.bf16.msra.mxu0 %v3824
  %4142 = vmatprep.subr.bf16.mxu0 0
  %4143 = vmatpush2.bf16.msra.mxu0 0
  %4144 = vmatprep.subr.bf16.mxu0 0
  %4145 = vmatpush2.bf16.msra.mxu0 0
  %4146 = vmatprep.subr.bf16.mxu0 0
  %4147 = vmatpush2.bf16.msra.mxu0 0
  %4148 = vmatprep.subr.bf16.mxu0 0
  %4149 = vmatpush2.bf16.msra.mxu0 0
  %4150 = vmatprep.subr.bf16.mxu0 0
  %4151 = vmatpush2.bf16.msra.mxu0 0
  %4152 = vmatprep.subr.bf16.mxu0 0
  %4153 = vmatpush2.bf16.msra.mxu0 0
  %4154 = vmatprep.subr.bf16.mxu0 0
  %4155 = vmatpush2.bf16.msra.mxu0 0
  %4156 = vmatprep.subr.bf16.mxu0 0
  %4157 = vmatpush2.bf16.msra.mxu0 0
  %4158 = vmatprep.mubr.bf16.mxu0 0
  %4159 = vmatmul.mubr.bf16.gmra.mxu0 %v2427
  %v4160 = vpop.f32.mrf.mxu0
  %v4161 = vadd.f32 0.0, %v4160
  %v4162 = vpop.f32.mrf.mxu0
  %v4163 = vadd.f32 0.0, %v4162
  %v4164 = vpop.f32.mrf.mxu0
  %v4165 = vadd.f32 0.0, %v4164
  %v4166 = vpop.f32.mrf.mxu0
  %v4167 = vadd.f32 0.0, %v4166
  %4168 = vdwg.mxu0
  %4169 = vmatprep.subr.bf16.mxu0 0
  %4170 = vmatpush1.bf16.msra.mxu0 0
  %4171 = vmatprep.subr.bf16.mxu0 0
  %4172 = vmatpush1.bf16.msra.mxu0 0
  %4173 = vmatprep.subr.bf16.mxu0 0
  %4174 = vmatpush1.bf16.msra.mxu0 0
  %4175 = vmatprep.subr.bf16.mxu0 0
  %4176 = vmatpush1.bf16.msra.mxu0 0
  %4177 = vmatprep.subr.bf16.mxu0 0
  %4178 = vmatpush1.bf16.msra.mxu0 0
  %4179 = vmatprep.subr.bf16.mxu0 0
  %4180 = vmatpush1.bf16.msra.mxu0 0
  %4181 = vmatprep.subr.bf16.mxu0 0
  %4182 = vmatpush1.bf16.msra.mxu0 0
  %4183 = vmatprep.subr.bf16.mxu0 %v3833
  %4184 = vmatpush1.bf16.msra.mxu0 %v3830
  %4185 = vmatprep.subr.bf16.mxu0 0
  %4186 = vmatpush2.bf16.msra.mxu0 0
  %4187 = vmatprep.subr.bf16.mxu0 0
  %4188 = vmatpush2.bf16.msra.mxu0 0
  %4189 = vmatprep.subr.bf16.mxu0 0
  %4190 = vmatpush2.bf16.msra.mxu0 0
  %4191 = vmatprep.subr.bf16.mxu0 0
  %4192 = vmatpush2.bf16.msra.mxu0 0
  %4193 = vmatprep.subr.bf16.mxu0 0
  %4194 = vmatpush2.bf16.msra.mxu0 0
  %4195 = vmatprep.subr.bf16.mxu0 0
  %4196 = vmatpush2.bf16.msra.mxu0 0
  %4197 = vmatprep.subr.bf16.mxu0 0
  %4198 = vmatpush2.bf16.msra.mxu0 0
  %4199 = vmatprep.subr.bf16.mxu0 0
  %4200 = vmatpush2.bf16.msra.mxu0 0
  %4201 = vmatprep.mubr.bf16.mxu0 0
  %4202 = vmatmul.mubr.bf16.gmra.mxu0 %v2427
  %v4203 = vpop.f32.mrf.mxu0
  %v4204 = vadd.f32 0.0, %v4203
  %v4205 = vpop.f32.mrf.mxu0
  %v4206 = vadd.f32 0.0, %v4205
  %v4207 = vpop.f32.mrf.mxu0
  %v4208 = vadd.f32 0.0, %v4207
  %v4209 = vpop.f32.mrf.mxu0
  %v4210 = vadd.f32 0.0, %v4209
  %4211 = vdwg.mxu0
  %4212 = vmatprep.subr.bf16.mxu0 0
  %4213 = vmatpush1.bf16.msra.mxu0 0
  %4214 = vmatprep.subr.bf16.mxu0 0
  %4215 = vmatpush1.bf16.msra.mxu0 0
  %4216 = vmatprep.subr.bf16.mxu0 0
  %4217 = vmatpush1.bf16.msra.mxu0 0
  %4218 = vmatprep.subr.bf16.mxu0 0
  %4219 = vmatpush1.bf16.msra.mxu0 0
  %4220 = vmatprep.subr.bf16.mxu0 0
  %4221 = vmatpush1.bf16.msra.mxu0 0
  %4222 = vmatprep.subr.bf16.mxu0 0
  %4223 = vmatpush1.bf16.msra.mxu0 0
  %4224 = vmatprep.subr.bf16.mxu0 0
  %4225 = vmatpush1.bf16.msra.mxu0 0
  %4226 = vmatprep.subr.bf16.mxu0 %v3839
  %4227 = vmatpush1.bf16.msra.mxu0 %v3836
  %4228 = vmatprep.subr.bf16.mxu0 0
  %4229 = vmatpush2.bf16.msra.mxu0 0
  %4230 = vmatprep.subr.bf16.mxu0 0
  %4231 = vmatpush2.bf16.msra.mxu0 0
  %4232 = vmatprep.subr.bf16.mxu0 0
  %4233 = vmatpush2.bf16.msra.mxu0 0
  %4234 = vmatprep.subr.bf16.mxu0 0
  %4235 = vmatpush2.bf16.msra.mxu0 0
  %4236 = vmatprep.subr.bf16.mxu0 0
  %4237 = vmatpush2.bf16.msra.mxu0 0
  %4238 = vmatprep.subr.bf16.mxu0 0
  %4239 = vmatpush2.bf16.msra.mxu0 0
  %4240 = vmatprep.subr.bf16.mxu0 0
  %4241 = vmatpush2.bf16.msra.mxu0 0
  %4242 = vmatprep.subr.bf16.mxu0 0
  %4243 = vmatpush2.bf16.msra.mxu0 0
  %4244 = vmatprep.mubr.bf16.mxu0 0
  %4245 = vmatmul.mubr.bf16.gmra.mxu0 %v2427
  %v4246 = vpop.f32.mrf.mxu0
  %v4247 = vadd.f32 0.0, %v4246
  %v4248 = vpop.f32.mrf.mxu0
  %v4249 = vadd.f32 0.0, %v4248
  %v4250 = vpop.f32.mrf.mxu0
  %v4251 = vadd.f32 0.0, %v4250
  %v4252 = vpop.f32.mrf.mxu0
  %v4253 = vadd.f32 0.0, %v4252
  %4254 = vdwg.mxu0
  %4255 = vmatprep.subr.bf16.mxu0 0
  %4256 = vmatpush1.bf16.msra.mxu0 0
  %4257 = vmatprep.subr.bf16.mxu0 0
  %4258 = vmatpush1.bf16.msra.mxu0 0
  %4259 = vmatprep.subr.bf16.mxu0 0
  %4260 = vmatpush1.bf16.msra.mxu0 0
  %4261 = vmatprep.subr.bf16.mxu0 0
  %4262 = vmatpush1.bf16.msra.mxu0 0
  %4263 = vmatprep.subr.bf16.mxu0 0
  %4264 = vmatpush1.bf16.msra.mxu0 0
  %4265 = vmatprep.subr.bf16.mxu0 0
  %4266 = vmatpush1.bf16.msra.mxu0 0
  %4267 = vmatprep.subr.bf16.mxu0 0
  %4268 = vmatpush1.bf16.msra.mxu0 0
  %4269 = vmatprep.subr.bf16.mxu0 %v3845
  %4270 = vmatpush1.bf16.msra.mxu0 %v3842
  %4271 = vmatprep.subr.bf16.mxu0 0
  %4272 = vmatpush2.bf16.msra.mxu0 0
  %4273 = vmatprep.subr.bf16.mxu0 0
  %4274 = vmatpush2.bf16.msra.mxu0 0
  %4275 = vmatprep.subr.bf16.mxu0 0
  %4276 = vmatpush2.bf16.msra.mxu0 0
  %4277 = vmatprep.subr.bf16.mxu0 0
  %4278 = vmatpush2.bf16.msra.mxu0 0
  %4279 = vmatprep.subr.bf16.mxu0 0
  %4280 = vmatpush2.bf16.msra.mxu0 0
  %4281 = vmatprep.subr.bf16.mxu0 0
  %4282 = vmatpush2.bf16.msra.mxu0 0
  %4283 = vmatprep.subr.bf16.mxu0 0
  %4284 = vmatpush2.bf16.msra.mxu0 0
  %4285 = vmatprep.subr.bf16.mxu0 0
  %4286 = vmatpush2.bf16.msra.mxu0 0
  %4287 = vmatprep.mubr.bf16.mxu0 0
  %4288 = vmatmul.mubr.bf16.gmra.mxu0 %v2427
  %v4289 = vpop.f32.mrf.mxu0
  %v4290 = vadd.f32 0.0, %v4289
  %v4291 = vpop.f32.mrf.mxu0
  %v4292 = vadd.f32 0.0, %v4291
  %v4293 = vpop.f32.mrf.mxu0
  %v4294 = vadd.f32 0.0, %v4293
  %v4295 = vpop.f32.mrf.mxu0
  %v4296 = vadd.f32 0.0, %v4295
  %4297 = vdwg.mxu0
  %4298 = vmatprep.subr.bf16.mxu0 0
  %4299 = vmatpush1.bf16.msra.mxu0 0
  %4300 = vmatprep.subr.bf16.mxu0 0
  %4301 = vmatpush1.bf16.msra.mxu0 0
  %4302 = vmatprep.subr.bf16.mxu0 0
  %4303 = vmatpush1.bf16.msra.mxu0 0
  %4304 = vmatprep.subr.bf16.mxu0 0
  %4305 = vmatpush1.bf16.msra.mxu0 0
  %4306 = vmatprep.subr.bf16.mxu0 0
  %4307 = vmatpush1.bf16.msra.mxu0 0
  %4308 = vmatprep.subr.bf16.mxu0 0
  %4309 = vmatpush1.bf16.msra.mxu0 0
  %4310 = vmatprep.subr.bf16.mxu0 0
  %4311 = vmatpush1.bf16.msra.mxu0 0
  %4312 = vmatprep.subr.bf16.mxu0 %v3851
  %4313 = vmatpush1.bf16.msra.mxu0 %v3848
  %4314 = vmatprep.subr.bf16.mxu0 0
  %4315 = vmatpush2.bf16.msra.mxu0 0
  %4316 = vmatprep.subr.bf16.mxu0 0
  %4317 = vmatpush2.bf16.msra.mxu0 0
  %4318 = vmatprep.subr.bf16.mxu0 0
  %4319 = vmatpush2.bf16.msra.mxu0 0
  %4320 = vmatprep.subr.bf16.mxu0 0
  %4321 = vmatpush2.bf16.msra.mxu0 0
  %4322 = vmatprep.subr.bf16.mxu0 0
  %4323 = vmatpush2.bf16.msra.mxu0 0
  %4324 = vmatprep.subr.bf16.mxu0 0
  %4325 = vmatpush2.bf16.msra.mxu0 0
  %4326 = vmatprep.subr.bf16.mxu0 0
  %4327 = vmatpush2.bf16.msra.mxu0 0
  %4328 = vmatprep.subr.bf16.mxu0 0
  %4329 = vmatpush2.bf16.msra.mxu0 0
  %4330 = vmatprep.mubr.bf16.mxu0 0
  %4331 = vmatmul.mubr.bf16.gmra.mxu0 %v2427
  %v4332 = vpop.f32.mrf.mxu0
  %v4333 = vadd.f32 0.0, %v4332
  %v4334 = vpop.f32.mrf.mxu0
  %v4335 = vadd.f32 0.0, %v4334
  %v4336 = vpop.f32.mrf.mxu0
  %v4337 = vadd.f32 0.0, %v4336
  %v4338 = vpop.f32.mrf.mxu0
  %v4339 = vadd.f32 0.0, %v4338
  %4340 = vdwg.mxu0
  %4341 = vmatprep.subr.bf16.mxu0 0
  %4342 = vmatpush1.bf16.msra.mxu0 0
  %4343 = vmatprep.subr.bf16.mxu0 0
  %4344 = vmatpush1.bf16.msra.mxu0 0
  %4345 = vmatprep.subr.bf16.mxu0 0
  %4346 = vmatpush1.bf16.msra.mxu0 0
  %4347 = vmatprep.subr.bf16.mxu0 0
  %4348 = vmatpush1.bf16.msra.mxu0 0
  %4349 = vmatprep.subr.bf16.mxu0 0
  %4350 = vmatpush1.bf16.msra.mxu0 0
  %4351 = vmatprep.subr.bf16.mxu0 0
  %4352 = vmatpush1.bf16.msra.mxu0 0
  %4353 = vmatprep.subr.bf16.mxu0 0
  %4354 = vmatpush1.bf16.msra.mxu0 0
  %4355 = vmatprep.subr.bf16.mxu0 %v3857
  %4356 = vmatpush1.bf16.msra.mxu0 %v3854
  %4357 = vmatprep.subr.bf16.mxu0 0
  %4358 = vmatpush2.bf16.msra.mxu0 0
  %4359 = vmatprep.subr.bf16.mxu0 0
  %4360 = vmatpush2.bf16.msra.mxu0 0
  %4361 = vmatprep.subr.bf16.mxu0 0
  %4362 = vmatpush2.bf16.msra.mxu0 0
  %4363 = vmatprep.subr.bf16.mxu0 0
  %4364 = vmatpush2.bf16.msra.mxu0 0
  %4365 = vmatprep.subr.bf16.mxu0 0
  %4366 = vmatpush2.bf16.msra.mxu0 0
  %4367 = vmatprep.subr.bf16.mxu0 0
  %4368 = vmatpush2.bf16.msra.mxu0 0
  %4369 = vmatprep.subr.bf16.mxu0 0
  %4370 = vmatpush2.bf16.msra.mxu0 0
  %4371 = vmatprep.subr.bf16.mxu0 0
  %4372 = vmatpush2.bf16.msra.mxu0 0
  %4373 = vmatprep.mubr.bf16.mxu0 0
  %4374 = vmatmul.mubr.bf16.gmra.mxu0 %v2427
  %v4375 = vpop.f32.mrf.mxu0
  %v4376 = vadd.f32 0.0, %v4375
  %v4377 = vpop.f32.mrf.mxu0
  %v4378 = vadd.f32 0.0, %v4377
  %v4379 = vpop.f32.mrf.mxu0
  %v4380 = vadd.f32 0.0, %v4379
  %v4381 = vpop.f32.mrf.mxu0
  %v4382 = vadd.f32 0.0, %v4381
  %4383 = vdwg.mxu0
  %4384 = vmatprep.subr.bf16.mxu0 0
  %4385 = vmatpush1.bf16.msra.mxu0 0
  %4386 = vmatprep.subr.bf16.mxu0 0
  %4387 = vmatpush1.bf16.msra.mxu0 0
  %4388 = vmatprep.subr.bf16.mxu0 0
  %4389 = vmatpush1.bf16.msra.mxu0 0
  %4390 = vmatprep.subr.bf16.mxu0 0
  %4391 = vmatpush1.bf16.msra.mxu0 0
  %4392 = vmatprep.subr.bf16.mxu0 0
  %4393 = vmatpush1.bf16.msra.mxu0 0
  %4394 = vmatprep.subr.bf16.mxu0 0
  %4395 = vmatpush1.bf16.msra.mxu0 0
  %4396 = vmatprep.subr.bf16.mxu0 0
  %4397 = vmatpush1.bf16.msra.mxu0 0
  %4398 = vmatprep.subr.bf16.mxu0 %v3863
  %4399 = vmatpush1.bf16.msra.mxu0 %v3860
  %4400 = vmatprep.subr.bf16.mxu0 0
  %4401 = vmatpush2.bf16.msra.mxu0 0
  %4402 = vmatprep.subr.bf16.mxu0 0
  %4403 = vmatpush2.bf16.msra.mxu0 0
  %4404 = vmatprep.subr.bf16.mxu0 0
  %4405 = vmatpush2.bf16.msra.mxu0 0
  %4406 = vmatprep.subr.bf16.mxu0 0
  %4407 = vmatpush2.bf16.msra.mxu0 0
  %4408 = vmatprep.subr.bf16.mxu0 0
  %4409 = vmatpush2.bf16.msra.mxu0 0
  %4410 = vmatprep.subr.bf16.mxu0 0
  %4411 = vmatpush2.bf16.msra.mxu0 0
  %4412 = vmatprep.subr.bf16.mxu0 0
  %4413 = vmatpush2.bf16.msra.mxu0 0
  %4414 = vmatprep.subr.bf16.mxu0 0
  %4415 = vmatpush2.bf16.msra.mxu0 0
  %4416 = vmatprep.mubr.bf16.mxu0 0
  %4417 = vmatmul.mubr.bf16.gmra.mxu0 %v2427
  %v4418 = vpop.f32.mrf.mxu0
  %v4419 = vadd.f32 0.0, %v4418
  %v4420 = vpop.f32.mrf.mxu0
  %v4421 = vadd.f32 0.0, %v4420
  %v4422 = vpop.f32.mrf.mxu0
  %v4423 = vadd.f32 0.0, %v4422
  %v4424 = vpop.f32.mrf.mxu0
  %v4425 = vadd.f32 0.0, %v4424
  %4426 = vdwg.mxu0
  %4427 = vmatprep.subr.bf16.mxu0 0
  %4428 = vmatpush1.bf16.msra.mxu0 0
  %4429 = vmatprep.subr.bf16.mxu0 0
  %4430 = vmatpush1.bf16.msra.mxu0 0
  %4431 = vmatprep.subr.bf16.mxu0 0
  %4432 = vmatpush1.bf16.msra.mxu0 0
  %4433 = vmatprep.subr.bf16.mxu0 0
  %4434 = vmatpush1.bf16.msra.mxu0 0
  %4435 = vmatprep.subr.bf16.mxu0 0
  %4436 = vmatpush1.bf16.msra.mxu0 0
  %4437 = vmatprep.subr.bf16.mxu0 0
  %4438 = vmatpush1.bf16.msra.mxu0 0
  %4439 = vmatprep.subr.bf16.mxu0 0
  %4440 = vmatpush1.bf16.msra.mxu0 0
  %4441 = vmatprep.subr.bf16.mxu0 %v3869
  %4442 = vmatpush1.bf16.msra.mxu0 %v3866
  %4443 = vmatprep.subr.bf16.mxu0 0
  %4444 = vmatpush2.bf16.msra.mxu0 0
  %4445 = vmatprep.subr.bf16.mxu0 0
  %4446 = vmatpush2.bf16.msra.mxu0 0
  %4447 = vmatprep.subr.bf16.mxu0 0
  %4448 = vmatpush2.bf16.msra.mxu0 0
  %4449 = vmatprep.subr.bf16.mxu0 0
  %4450 = vmatpush2.bf16.msra.mxu0 0
  %4451 = vmatprep.subr.bf16.mxu0 0
  %4452 = vmatpush2.bf16.msra.mxu0 0
  %4453 = vmatprep.subr.bf16.mxu0 0
  %4454 = vmatpush2.bf16.msra.mxu0 0
  %4455 = vmatprep.subr.bf16.mxu0 0
  %4456 = vmatpush2.bf16.msra.mxu0 0
  %4457 = vmatprep.subr.bf16.mxu0 0
  %4458 = vmatpush2.bf16.msra.mxu0 0
  %4459 = vmatprep.mubr.bf16.mxu0 0
  %4460 = vmatmul.mubr.bf16.gmra.mxu0 %v2427
  %v4461 = vpop.f32.mrf.mxu0
  %v4462 = vadd.f32 0.0, %v4461
  %v4463 = vpop.f32.mrf.mxu0
  %v4464 = vadd.f32 0.0, %v4463
  %v4465 = vpop.f32.mrf.mxu0
  %v4466 = vadd.f32 0.0, %v4465
  %v4467 = vpop.f32.mrf.mxu0
  %v4468 = vadd.f32 0.0, %v4467
  %4469 = vdwg.mxu0
  %4470 = vmatprep.subr.bf16.mxu0 0
  %4471 = vmatpush1.bf16.msra.mxu0 0
  %4472 = vmatprep.subr.bf16.mxu0 0
  %4473 = vmatpush1.bf16.msra.mxu0 0
  %4474 = vmatprep.subr.bf16.mxu0 0
  %4475 = vmatpush1.bf16.msra.mxu0 0
  %4476 = vmatprep.subr.bf16.mxu0 0
  %4477 = vmatpush1.bf16.msra.mxu0 0
  %4478 = vmatprep.subr.bf16.mxu0 0
  %4479 = vmatpush1.bf16.msra.mxu0 0
  %4480 = vmatprep.subr.bf16.mxu0 0
  %4481 = vmatpush1.bf16.msra.mxu0 0
  %4482 = vmatprep.subr.bf16.mxu0 0
  %4483 = vmatpush1.bf16.msra.mxu0 0
  %4484 = vmatprep.subr.bf16.mxu0 %v3875
  %4485 = vmatpush1.bf16.msra.mxu0 %v3872
  %4486 = vmatprep.subr.bf16.mxu0 0
  %4487 = vmatpush2.bf16.msra.mxu0 0
  %4488 = vmatprep.subr.bf16.mxu0 0
  %4489 = vmatpush2.bf16.msra.mxu0 0
  %4490 = vmatprep.subr.bf16.mxu0 0
  %4491 = vmatpush2.bf16.msra.mxu0 0
  %4492 = vmatprep.subr.bf16.mxu0 0
  %4493 = vmatpush2.bf16.msra.mxu0 0
  %4494 = vmatprep.subr.bf16.mxu0 0
  %4495 = vmatpush2.bf16.msra.mxu0 0
  %4496 = vmatprep.subr.bf16.mxu0 0
  %4497 = vmatpush2.bf16.msra.mxu0 0
  %4498 = vmatprep.subr.bf16.mxu0 0
  %4499 = vmatpush2.bf16.msra.mxu0 0
  %4500 = vmatprep.subr.bf16.mxu0 0
  %4501 = vmatpush2.bf16.msra.mxu0 0
  %4502 = vmatprep.mubr.bf16.mxu0 0
  %4503 = vmatmul.mubr.bf16.gmra.mxu0 %v2427
  %v4504 = vpop.f32.mrf.mxu0
  %v4505 = vadd.f32 0.0, %v4504
  %v4506 = vpop.f32.mrf.mxu0
  %v4507 = vadd.f32 0.0, %v4506
  %v4508 = vpop.f32.mrf.mxu0
  %v4509 = vadd.f32 0.0, %v4508
  %v4510 = vpop.f32.mrf.mxu0
  %v4511 = vadd.f32 0.0, %v4510
  %4512 = vdwg.mxu0
  %4513 = vmatprep.subr.bf16.mxu0 0
  %4514 = vmatpush1.bf16.msra.mxu0 0
  %4515 = vmatprep.subr.bf16.mxu0 0
  %4516 = vmatpush1.bf16.msra.mxu0 0
  %4517 = vmatprep.subr.bf16.mxu0 0
  %4518 = vmatpush1.bf16.msra.mxu0 0
  %4519 = vmatprep.subr.bf16.mxu0 0
  %4520 = vmatpush1.bf16.msra.mxu0 0
  %4521 = vmatprep.subr.bf16.mxu0 0
  %4522 = vmatpush1.bf16.msra.mxu0 0
  %4523 = vmatprep.subr.bf16.mxu0 0
  %4524 = vmatpush1.bf16.msra.mxu0 0
  %4525 = vmatprep.subr.bf16.mxu0 0
  %4526 = vmatpush1.bf16.msra.mxu0 0
  %4527 = vmatprep.subr.bf16.mxu0 %v3881
  %4528 = vmatpush1.bf16.msra.mxu0 %v3878
  %4529 = vmatprep.subr.bf16.mxu0 0
  %4530 = vmatpush2.bf16.msra.mxu0 0
  %4531 = vmatprep.subr.bf16.mxu0 0
  %4532 = vmatpush2.bf16.msra.mxu0 0
  %4533 = vmatprep.subr.bf16.mxu0 0
  %4534 = vmatpush2.bf16.msra.mxu0 0
  %4535 = vmatprep.subr.bf16.mxu0 0
  %4536 = vmatpush2.bf16.msra.mxu0 0
  %4537 = vmatprep.subr.bf16.mxu0 0
  %4538 = vmatpush2.bf16.msra.mxu0 0
  %4539 = vmatprep.subr.bf16.mxu0 0
  %4540 = vmatpush2.bf16.msra.mxu0 0
  %4541 = vmatprep.subr.bf16.mxu0 0
  %4542 = vmatpush2.bf16.msra.mxu0 0
  %4543 = vmatprep.subr.bf16.mxu0 0
  %4544 = vmatpush2.bf16.msra.mxu0 0
  %4545 = vmatprep.mubr.bf16.mxu0 0
  %4546 = vmatmul.mubr.bf16.gmra.mxu0 %v2427
  %v4547 = vpop.f32.mrf.mxu0
  %v4548 = vadd.f32 0.0, %v4547
  %v4549 = vpop.f32.mrf.mxu0
  %v4550 = vadd.f32 0.0, %v4549
  %v4551 = vpop.f32.mrf.mxu0
  %v4552 = vadd.f32 0.0, %v4551
  %v4553 = vpop.f32.mrf.mxu0
  %v4554 = vadd.f32 0.0, %v4553
  %4555 = vdwg.mxu0
  %4556 = vmatprep.subr.bf16.mxu0 0
  %4557 = vmatpush1.bf16.msra.mxu0 0
  %4558 = vmatprep.subr.bf16.mxu0 0
  %4559 = vmatpush1.bf16.msra.mxu0 0
  %4560 = vmatprep.subr.bf16.mxu0 0
  %4561 = vmatpush1.bf16.msra.mxu0 0
  %4562 = vmatprep.subr.bf16.mxu0 0
  %4563 = vmatpush1.bf16.msra.mxu0 0
  %4564 = vmatprep.subr.bf16.mxu0 0
  %4565 = vmatpush1.bf16.msra.mxu0 0
  %4566 = vmatprep.subr.bf16.mxu0 0
  %4567 = vmatpush1.bf16.msra.mxu0 0
  %4568 = vmatprep.subr.bf16.mxu0 0
  %4569 = vmatpush1.bf16.msra.mxu0 0
  %4570 = vmatprep.subr.bf16.mxu0 %v3887
  %4571 = vmatpush1.bf16.msra.mxu0 %v3884
  %4572 = vmatprep.subr.bf16.mxu0 0
  %4573 = vmatpush2.bf16.msra.mxu0 0
  %4574 = vmatprep.subr.bf16.mxu0 0
  %4575 = vmatpush2.bf16.msra.mxu0 0
  %4576 = vmatprep.subr.bf16.mxu0 0
  %4577 = vmatpush2.bf16.msra.mxu0 0
  %4578 = vmatprep.subr.bf16.mxu0 0
  %4579 = vmatpush2.bf16.msra.mxu0 0
  %4580 = vmatprep.subr.bf16.mxu0 0
  %4581 = vmatpush2.bf16.msra.mxu0 0
  %4582 = vmatprep.subr.bf16.mxu0 0
  %4583 = vmatpush2.bf16.msra.mxu0 0
  %4584 = vmatprep.subr.bf16.mxu0 0
  %4585 = vmatpush2.bf16.msra.mxu0 0
  %4586 = vmatprep.subr.bf16.mxu0 0
  %4587 = vmatpush2.bf16.msra.mxu0 0
  %4588 = vmatprep.mubr.bf16.mxu0 0
  %4589 = vmatmul.mubr.bf16.gmra.mxu0 %v2427
  %v4590 = vpop.f32.mrf.mxu0
  %v4591 = vadd.f32 0.0, %v4590
  %v4592 = vpop.f32.mrf.mxu0
  %v4593 = vadd.f32 0.0, %v4592
  %v4594 = vpop.f32.mrf.mxu0
  %v4595 = vadd.f32 0.0, %v4594
  %v4596 = vpop.f32.mrf.mxu0
  %v4597 = vadd.f32 0.0, %v4596
  %4598 = vdwg.mxu0
  %4599 = vmatprep.subr.bf16.mxu0 0
  %4600 = vmatpush1.bf16.msra.mxu0 0
  %4601 = vmatprep.subr.bf16.mxu0 0
  %4602 = vmatpush1.bf16.msra.mxu0 0
  %4603 = vmatprep.subr.bf16.mxu0 0
  %4604 = vmatpush1.bf16.msra.mxu0 0
  %4605 = vmatprep.subr.bf16.mxu0 0
  %4606 = vmatpush1.bf16.msra.mxu0 0
  %4607 = vmatprep.subr.bf16.mxu0 0
  %4608 = vmatpush1.bf16.msra.mxu0 0
  %4609 = vmatprep.subr.bf16.mxu0 0
  %4610 = vmatpush1.bf16.msra.mxu0 0
  %4611 = vmatprep.subr.bf16.mxu0 0
  %4612 = vmatpush1.bf16.msra.mxu0 0
  %4613 = vmatprep.subr.bf16.mxu0 %v3893
  %4614 = vmatpush1.bf16.msra.mxu0 %v3890
  %4615 = vmatprep.subr.bf16.mxu0 0
  %4616 = vmatpush2.bf16.msra.mxu0 0
  %4617 = vmatprep.subr.bf16.mxu0 0
  %4618 = vmatpush2.bf16.msra.mxu0 0
  %4619 = vmatprep.subr.bf16.mxu0 0
  %4620 = vmatpush2.bf16.msra.mxu0 0
  %4621 = vmatprep.subr.bf16.mxu0 0
  %4622 = vmatpush2.bf16.msra.mxu0 0
  %4623 = vmatprep.subr.bf16.mxu0 0
  %4624 = vmatpush2.bf16.msra.mxu0 0
  %4625 = vmatprep.subr.bf16.mxu0 0
  %4626 = vmatpush2.bf16.msra.mxu0 0
  %4627 = vmatprep.subr.bf16.mxu0 0
  %4628 = vmatpush2.bf16.msra.mxu0 0
  %4629 = vmatprep.subr.bf16.mxu0 0
  %4630 = vmatpush2.bf16.msra.mxu0 0
  %4631 = vmatprep.mubr.bf16.mxu0 0
  %4632 = vmatmul.mubr.bf16.gmra.mxu0 %v2427
  %v4633 = vpop.f32.mrf.mxu0
  %v4634 = vadd.f32 0.0, %v4633
  %v4635 = vpop.f32.mrf.mxu0
  %v4636 = vadd.f32 0.0, %v4635
  %v4637 = vpop.f32.mrf.mxu0
  %v4638 = vadd.f32 0.0, %v4637
  %v4639 = vpop.f32.mrf.mxu0
  %v4640 = vadd.f32 0.0, %v4639
  %4641 = vdwg.mxu0
  %4642 = vmatprep.subr.bf16.mxu0 0
  %4643 = vmatpush1.bf16.msra.mxu0 0
  %4644 = vmatprep.subr.bf16.mxu0 0
  %4645 = vmatpush1.bf16.msra.mxu0 0
  %4646 = vmatprep.subr.bf16.mxu0 0
  %4647 = vmatpush1.bf16.msra.mxu0 0
  %4648 = vmatprep.subr.bf16.mxu0 0
  %4649 = vmatpush1.bf16.msra.mxu0 0
  %4650 = vmatprep.subr.bf16.mxu0 0
  %4651 = vmatpush1.bf16.msra.mxu0 0
  %4652 = vmatprep.subr.bf16.mxu0 0
  %4653 = vmatpush1.bf16.msra.mxu0 0
  %4654 = vmatprep.subr.bf16.mxu0 0
  %4655 = vmatpush1.bf16.msra.mxu0 0
  %4656 = vmatprep.subr.bf16.mxu0 %v3899
  %4657 = vmatpush1.bf16.msra.mxu0 %v3896
  %4658 = vmatprep.subr.bf16.mxu0 0
  %4659 = vmatpush2.bf16.msra.mxu0 0
  %4660 = vmatprep.subr.bf16.mxu0 0
  %4661 = vmatpush2.bf16.msra.mxu0 0
  %4662 = vmatprep.subr.bf16.mxu0 0
  %4663 = vmatpush2.bf16.msra.mxu0 0
  %4664 = vmatprep.subr.bf16.mxu0 0
  %4665 = vmatpush2.bf16.msra.mxu0 0
  %4666 = vmatprep.subr.bf16.mxu0 0
  %4667 = vmatpush2.bf16.msra.mxu0 0
  %4668 = vmatprep.subr.bf16.mxu0 0
  %4669 = vmatpush2.bf16.msra.mxu0 0
  %4670 = vmatprep.subr.bf16.mxu0 0
  %4671 = vmatpush2.bf16.msra.mxu0 0
  %4672 = vmatprep.subr.bf16.mxu0 0
  %4673 = vmatpush2.bf16.msra.mxu0 0
  %4674 = vmatprep.mubr.bf16.mxu0 0
  %4675 = vmatmul.mubr.bf16.gmra.mxu0 %v2427
  %v4676 = vpop.f32.mrf.mxu0
  %v4677 = vadd.f32 0.0, %v4676
  %v4678 = vpop.f32.mrf.mxu0
  %v4679 = vadd.f32 0.0, %v4678
  %v4680 = vpop.f32.mrf.mxu0
  %v4681 = vadd.f32 0.0, %v4680
  %v4682 = vpop.f32.mrf.mxu0
  %v4683 = vadd.f32 0.0, %v4682
  %4684 = vdwg.mxu0
  %4685 = vmatprep.subr.bf16.mxu0 0
  %4686 = vmatpush1.bf16.msra.mxu0 0
  %4687 = vmatprep.subr.bf16.mxu0 0
  %4688 = vmatpush1.bf16.msra.mxu0 0
  %4689 = vmatprep.subr.bf16.mxu0 0
  %4690 = vmatpush1.bf16.msra.mxu0 0
  %4691 = vmatprep.subr.bf16.mxu0 0
  %4692 = vmatpush1.bf16.msra.mxu0 0
  %4693 = vmatprep.subr.bf16.mxu0 0
  %4694 = vmatpush1.bf16.msra.mxu0 0
  %4695 = vmatprep.subr.bf16.mxu0 0
  %4696 = vmatpush1.bf16.msra.mxu0 0
  %4697 = vmatprep.subr.bf16.mxu0 0
  %4698 = vmatpush1.bf16.msra.mxu0 0
  %4699 = vmatprep.subr.bf16.mxu0 %v3905
  %4700 = vmatpush1.bf16.msra.mxu0 %v3902
  %4701 = vmatprep.subr.bf16.mxu0 0
  %4702 = vmatpush2.bf16.msra.mxu0 0
  %4703 = vmatprep.subr.bf16.mxu0 0
  %4704 = vmatpush2.bf16.msra.mxu0 0
  %4705 = vmatprep.subr.bf16.mxu0 0
  %4706 = vmatpush2.bf16.msra.mxu0 0
  %4707 = vmatprep.subr.bf16.mxu0 0
  %4708 = vmatpush2.bf16.msra.mxu0 0
  %4709 = vmatprep.subr.bf16.mxu0 0
  %4710 = vmatpush2.bf16.msra.mxu0 0
  %4711 = vmatprep.subr.bf16.mxu0 0
  %4712 = vmatpush2.bf16.msra.mxu0 0
  %4713 = vmatprep.subr.bf16.mxu0 0
  %4714 = vmatpush2.bf16.msra.mxu0 0
  %4715 = vmatprep.subr.bf16.mxu0 0
  %4716 = vmatpush2.bf16.msra.mxu0 0
  %4717 = vmatprep.mubr.bf16.mxu0 0
  %4718 = vmatmul.mubr.bf16.gmra.mxu0 %v2427
  %v4719 = vpop.f32.mrf.mxu0
  %v4720 = vadd.f32 0.0, %v4719
  %v4721 = vpop.f32.mrf.mxu0
  %v4722 = vadd.f32 0.0, %v4721
  %v4723 = vpop.f32.mrf.mxu0
  %v4724 = vadd.f32 0.0, %v4723
  %v4725 = vpop.f32.mrf.mxu0
  %v4726 = vadd.f32 0.0, %v4725
  %4727 = vdwg.mxu0
  %4728 = vmatprep.subr.bf16.mxu0 0
  %4729 = vmatpush1.bf16.msra.mxu0 0
  %4730 = vmatprep.subr.bf16.mxu0 0
  %4731 = vmatpush1.bf16.msra.mxu0 0
  %4732 = vmatprep.subr.bf16.mxu0 0
  %4733 = vmatpush1.bf16.msra.mxu0 0
  %4734 = vmatprep.subr.bf16.mxu0 0
  %4735 = vmatpush1.bf16.msra.mxu0 0
  %4736 = vmatprep.subr.bf16.mxu0 0
  %4737 = vmatpush1.bf16.msra.mxu0 0
  %4738 = vmatprep.subr.bf16.mxu0 0
  %4739 = vmatpush1.bf16.msra.mxu0 0
  %4740 = vmatprep.subr.bf16.mxu0 0
  %4741 = vmatpush1.bf16.msra.mxu0 0
  %4742 = vmatprep.subr.bf16.mxu0 %v3911
  %4743 = vmatpush1.bf16.msra.mxu0 %v3908
  %4744 = vmatprep.subr.bf16.mxu0 0
  %4745 = vmatpush2.bf16.msra.mxu0 0
  %4746 = vmatprep.subr.bf16.mxu0 0
  %4747 = vmatpush2.bf16.msra.mxu0 0
  %4748 = vmatprep.subr.bf16.mxu0 0
  %4749 = vmatpush2.bf16.msra.mxu0 0
  %4750 = vmatprep.subr.bf16.mxu0 0
  %4751 = vmatpush2.bf16.msra.mxu0 0
  %4752 = vmatprep.subr.bf16.mxu0 0
  %4753 = vmatpush2.bf16.msra.mxu0 0
  %4754 = vmatprep.subr.bf16.mxu0 0
  %4755 = vmatpush2.bf16.msra.mxu0 0
  %4756 = vmatprep.subr.bf16.mxu0 0
  %4757 = vmatpush2.bf16.msra.mxu0 0
  %4758 = vmatprep.subr.bf16.mxu0 0
  %4759 = vmatpush2.bf16.msra.mxu0 0
  %4760 = vmatprep.mubr.bf16.mxu0 0
  %4761 = vmatmul.mubr.bf16.gmra.mxu0 %v2427
  %v4762 = vpop.f32.mrf.mxu0
  %v4763 = vadd.f32 0.0, %v4762
  %v4764 = vpop.f32.mrf.mxu0
  %v4765 = vadd.f32 0.0, %v4764
  %v4766 = vpop.f32.mrf.mxu0
  %v4767 = vadd.f32 0.0, %v4766
  %v4768 = vpop.f32.mrf.mxu0
  %v4769 = vadd.f32 0.0, %v4768
  %4770 = vdwg.mxu0
  %4771 = vmatprep.subr.bf16.mxu0 0
  %4772 = vmatpush1.bf16.msra.mxu0 0
  %4773 = vmatprep.subr.bf16.mxu0 0
  %4774 = vmatpush1.bf16.msra.mxu0 0
  %4775 = vmatprep.subr.bf16.mxu0 0
  %4776 = vmatpush1.bf16.msra.mxu0 0
  %4777 = vmatprep.subr.bf16.mxu0 0
  %4778 = vmatpush1.bf16.msra.mxu0 0
  %4779 = vmatprep.subr.bf16.mxu0 0
  %4780 = vmatpush1.bf16.msra.mxu0 0
  %4781 = vmatprep.subr.bf16.mxu0 0
  %4782 = vmatpush1.bf16.msra.mxu0 0
  %4783 = vmatprep.subr.bf16.mxu0 0
  %4784 = vmatpush1.bf16.msra.mxu0 0
  %4785 = vmatprep.subr.bf16.mxu0 %v3917
  %4786 = vmatpush1.bf16.msra.mxu0 %v3914
  %4787 = vmatprep.subr.bf16.mxu0 0
  %4788 = vmatpush2.bf16.msra.mxu0 0
  %4789 = vmatprep.subr.bf16.mxu0 0
  %4790 = vmatpush2.bf16.msra.mxu0 0
  %4791 = vmatprep.subr.bf16.mxu0 0
  %4792 = vmatpush2.bf16.msra.mxu0 0
  %4793 = vmatprep.subr.bf16.mxu0 0
  %4794 = vmatpush2.bf16.msra.mxu0 0
  %4795 = vmatprep.subr.bf16.mxu0 0
  %4796 = vmatpush2.bf16.msra.mxu0 0
  %4797 = vmatprep.subr.bf16.mxu0 0
  %4798 = vmatpush2.bf16.msra.mxu0 0
  %4799 = vmatprep.subr.bf16.mxu0 0
  %4800 = vmatpush2.bf16.msra.mxu0 0
  %4801 = vmatprep.subr.bf16.mxu0 0
  %4802 = vmatpush2.bf16.msra.mxu0 0
  %4803 = vmatprep.mubr.bf16.mxu0 0
  %4804 = vmatmul.mubr.bf16.gmra.mxu0 %v2427
  %v4805 = vpop.f32.mrf.mxu0
  %v4806 = vadd.f32 0.0, %v4805
  %v4807 = vpop.f32.mrf.mxu0
  %v4808 = vadd.f32 0.0, %v4807
  %v4809 = vpop.f32.mrf.mxu0
  %v4810 = vadd.f32 0.0, %v4809
  %v4811 = vpop.f32.mrf.mxu0
  %v4812 = vadd.f32 0.0, %v4811
  %4813 = vdwg.mxu0
  %4814 = vmatprep.subr.bf16.mxu0 0
  %4815 = vmatpush1.bf16.msra.mxu0 0
  %4816 = vmatprep.subr.bf16.mxu0 0
  %4817 = vmatpush1.bf16.msra.mxu0 0
  %4818 = vmatprep.subr.bf16.mxu0 0
  %4819 = vmatpush1.bf16.msra.mxu0 0
  %4820 = vmatprep.subr.bf16.mxu0 0
  %4821 = vmatpush1.bf16.msra.mxu0 0
  %4822 = vmatprep.subr.bf16.mxu0 0
  %4823 = vmatpush1.bf16.msra.mxu0 0
  %4824 = vmatprep.subr.bf16.mxu0 0
  %4825 = vmatpush1.bf16.msra.mxu0 0
  %4826 = vmatprep.subr.bf16.mxu0 0
  %4827 = vmatpush1.bf16.msra.mxu0 0
  %4828 = vmatprep.subr.bf16.mxu0 %v3923
  %4829 = vmatpush1.bf16.msra.mxu0 %v3920
  %4830 = vmatprep.subr.bf16.mxu0 0
  %4831 = vmatpush2.bf16.msra.mxu0 0
  %4832 = vmatprep.subr.bf16.mxu0 0
  %4833 = vmatpush2.bf16.msra.mxu0 0
  %4834 = vmatprep.subr.bf16.mxu0 0
  %4835 = vmatpush2.bf16.msra.mxu0 0
  %4836 = vmatprep.subr.bf16.mxu0 0
  %4837 = vmatpush2.bf16.msra.mxu0 0
  %4838 = vmatprep.subr.bf16.mxu0 0
  %4839 = vmatpush2.bf16.msra.mxu0 0
  %4840 = vmatprep.subr.bf16.mxu0 0
  %4841 = vmatpush2.bf16.msra.mxu0 0
  %4842 = vmatprep.subr.bf16.mxu0 0
  %4843 = vmatpush2.bf16.msra.mxu0 0
  %4844 = vmatprep.subr.bf16.mxu0 0
  %4845 = vmatpush2.bf16.msra.mxu0 0
  %4846 = vmatprep.mubr.bf16.mxu0 0
  %4847 = vmatmul.mubr.bf16.gmra.mxu0 %v2427
  %v4848 = vpop.f32.mrf.mxu0
  %v4849 = vadd.f32 0.0, %v4848
  %v4850 = vpop.f32.mrf.mxu0
  %v4851 = vadd.f32 0.0, %v4850
  %v4852 = vpop.f32.mrf.mxu0
  %v4853 = vadd.f32 0.0, %v4852
  %v4854 = vpop.f32.mrf.mxu0
  %v4855 = vadd.f32 0.0, %v4854
  %4856 = vdwg.mxu0
  %4857 = vmatprep.subr.bf16.mxu0 0
  %4858 = vmatpush1.bf16.msra.mxu0 0
  %4859 = vmatprep.subr.bf16.mxu0 0
  %4860 = vmatpush1.bf16.msra.mxu0 0
  %4861 = vmatprep.subr.bf16.mxu0 0
  %4862 = vmatpush1.bf16.msra.mxu0 0
  %4863 = vmatprep.subr.bf16.mxu0 0
  %4864 = vmatpush1.bf16.msra.mxu0 0
  %4865 = vmatprep.subr.bf16.mxu0 0
  %4866 = vmatpush1.bf16.msra.mxu0 0
  %4867 = vmatprep.subr.bf16.mxu0 0
  %4868 = vmatpush1.bf16.msra.mxu0 0
  %4869 = vmatprep.subr.bf16.mxu0 0
  %4870 = vmatpush1.bf16.msra.mxu0 0
  %4871 = vmatprep.subr.bf16.mxu0 %v3929
  %4872 = vmatpush1.bf16.msra.mxu0 %v3926
  %4873 = vmatprep.subr.bf16.mxu0 0
  %4874 = vmatpush2.bf16.msra.mxu0 0
  %4875 = vmatprep.subr.bf16.mxu0 0
  %4876 = vmatpush2.bf16.msra.mxu0 0
  %4877 = vmatprep.subr.bf16.mxu0 0
  %4878 = vmatpush2.bf16.msra.mxu0 0
  %4879 = vmatprep.subr.bf16.mxu0 0
  %4880 = vmatpush2.bf16.msra.mxu0 0
  %4881 = vmatprep.subr.bf16.mxu0 0
  %4882 = vmatpush2.bf16.msra.mxu0 0
  %4883 = vmatprep.subr.bf16.mxu0 0
  %4884 = vmatpush2.bf16.msra.mxu0 0
  %4885 = vmatprep.subr.bf16.mxu0 0
  %4886 = vmatpush2.bf16.msra.mxu0 0
  %4887 = vmatprep.subr.bf16.mxu0 0
  %4888 = vmatpush2.bf16.msra.mxu0 0
  %4889 = vmatprep.mubr.bf16.mxu0 0
  %4890 = vmatmul.mubr.bf16.gmra.mxu0 %v2427
  %v4891 = vpop.f32.mrf.mxu0
  %v4892 = vadd.f32 0.0, %v4891
  %v4893 = vpop.f32.mrf.mxu0
  %v4894 = vadd.f32 0.0, %v4893
  %v4895 = vpop.f32.mrf.mxu0
  %v4896 = vadd.f32 0.0, %v4895
  %v4897 = vpop.f32.mrf.mxu0
  %v4898 = vadd.f32 0.0, %v4897
  %4899 = vdwg.mxu0
  %4900 = vmatprep.subr.bf16.mxu0 0
  %4901 = vmatpush1.bf16.msra.mxu0 0
  %4902 = vmatprep.subr.bf16.mxu0 0
  %4903 = vmatpush1.bf16.msra.mxu0 0
  %4904 = vmatprep.subr.bf16.mxu0 0
  %4905 = vmatpush1.bf16.msra.mxu0 0
  %4906 = vmatprep.subr.bf16.mxu0 0
  %4907 = vmatpush1.bf16.msra.mxu0 0
  %4908 = vmatprep.subr.bf16.mxu0 0
  %4909 = vmatpush1.bf16.msra.mxu0 0
  %4910 = vmatprep.subr.bf16.mxu0 0
  %4911 = vmatpush1.bf16.msra.mxu0 0
  %4912 = vmatprep.subr.bf16.mxu0 0
  %4913 = vmatpush1.bf16.msra.mxu0 0
  %4914 = vmatprep.subr.bf16.mxu0 %v3935
  %4915 = vmatpush1.bf16.msra.mxu0 %v3932
  %4916 = vmatprep.subr.bf16.mxu0 0
  %4917 = vmatpush2.bf16.msra.mxu0 0
  %4918 = vmatprep.subr.bf16.mxu0 0
  %4919 = vmatpush2.bf16.msra.mxu0 0
  %4920 = vmatprep.subr.bf16.mxu0 0
  %4921 = vmatpush2.bf16.msra.mxu0 0
  %4922 = vmatprep.subr.bf16.mxu0 0
  %4923 = vmatpush2.bf16.msra.mxu0 0
  %4924 = vmatprep.subr.bf16.mxu0 0
  %4925 = vmatpush2.bf16.msra.mxu0 0
  %4926 = vmatprep.subr.bf16.mxu0 0
  %4927 = vmatpush2.bf16.msra.mxu0 0
  %4928 = vmatprep.subr.bf16.mxu0 0
  %4929 = vmatpush2.bf16.msra.mxu0 0
  %4930 = vmatprep.subr.bf16.mxu0 0
  %4931 = vmatpush2.bf16.msra.mxu0 0
  %4932 = vmatprep.mubr.bf16.mxu0 0
  %4933 = vmatmul.mubr.bf16.gmra.mxu0 %v2427
  %v4934 = vpop.f32.mrf.mxu0
  %v4935 = vadd.f32 0.0, %v4934
  %v4936 = vpop.f32.mrf.mxu0
  %v4937 = vadd.f32 0.0, %v4936
  %v4938 = vpop.f32.mrf.mxu0
  %v4939 = vadd.f32 0.0, %v4938
  %v4940 = vpop.f32.mrf.mxu0
  %v4941 = vadd.f32 0.0, %v4940
  %4942 = vdwg.mxu0
  %4943 = vmatprep.subr.bf16.mxu0 0
  %4944 = vmatpush1.bf16.msra.mxu0 0
  %4945 = vmatprep.subr.bf16.mxu0 0
  %4946 = vmatpush1.bf16.msra.mxu0 0
  %4947 = vmatprep.subr.bf16.mxu0 0
  %4948 = vmatpush1.bf16.msra.mxu0 0
  %4949 = vmatprep.subr.bf16.mxu0 0
  %4950 = vmatpush1.bf16.msra.mxu0 0
  %4951 = vmatprep.subr.bf16.mxu0 0
  %4952 = vmatpush1.bf16.msra.mxu0 0
  %4953 = vmatprep.subr.bf16.mxu0 0
  %4954 = vmatpush1.bf16.msra.mxu0 0
  %4955 = vmatprep.subr.bf16.mxu0 0
  %4956 = vmatpush1.bf16.msra.mxu0 0
  %4957 = vmatprep.subr.bf16.mxu0 %v3941
  %4958 = vmatpush1.bf16.msra.mxu0 %v3938
  %4959 = vmatprep.subr.bf16.mxu0 0
  %4960 = vmatpush2.bf16.msra.mxu0 0
  %4961 = vmatprep.subr.bf16.mxu0 0
  %4962 = vmatpush2.bf16.msra.mxu0 0
  %4963 = vmatprep.subr.bf16.mxu0 0
  %4964 = vmatpush2.bf16.msra.mxu0 0
  %4965 = vmatprep.subr.bf16.mxu0 0
  %4966 = vmatpush2.bf16.msra.mxu0 0
  %4967 = vmatprep.subr.bf16.mxu0 0
  %4968 = vmatpush2.bf16.msra.mxu0 0
  %4969 = vmatprep.subr.bf16.mxu0 0
  %4970 = vmatpush2.bf16.msra.mxu0 0
  %4971 = vmatprep.subr.bf16.mxu0 0
  %4972 = vmatpush2.bf16.msra.mxu0 0
  %4973 = vmatprep.subr.bf16.mxu0 0
  %4974 = vmatpush2.bf16.msra.mxu0 0
  %4975 = vmatprep.mubr.bf16.mxu0 0
  %4976 = vmatmul.mubr.bf16.gmra.mxu0 %v2427
  %v4977 = vpop.f32.mrf.mxu0
  %v4978 = vadd.f32 0.0, %v4977
  %v4979 = vpop.f32.mrf.mxu0
  %v4980 = vadd.f32 0.0, %v4979
  %v4981 = vpop.f32.mrf.mxu0
  %v4982 = vadd.f32 0.0, %v4981
  %v4983 = vpop.f32.mrf.mxu0
  %v4984 = vadd.f32 0.0, %v4983
  %4985 = vdwg.mxu0
  %4986 = vmatprep.subr.bf16.mxu0 0
  %4987 = vmatpush1.bf16.msra.mxu0 0
  %4988 = vmatprep.subr.bf16.mxu0 0
  %4989 = vmatpush1.bf16.msra.mxu0 0
  %4990 = vmatprep.subr.bf16.mxu0 0
  %4991 = vmatpush1.bf16.msra.mxu0 0
  %4992 = vmatprep.subr.bf16.mxu0 0
  %4993 = vmatpush1.bf16.msra.mxu0 0
  %4994 = vmatprep.subr.bf16.mxu0 0
  %4995 = vmatpush1.bf16.msra.mxu0 0
  %4996 = vmatprep.subr.bf16.mxu0 0
  %4997 = vmatpush1.bf16.msra.mxu0 0
  %4998 = vmatprep.subr.bf16.mxu0 0
  %4999 = vmatpush1.bf16.msra.mxu0 0
  %5000 = vmatprep.subr.bf16.mxu0 %v3947
  %5001 = vmatpush1.bf16.msra.mxu0 %v3944
  %5002 = vmatprep.subr.bf16.mxu0 0
  %5003 = vmatpush2.bf16.msra.mxu0 0
  %5004 = vmatprep.subr.bf16.mxu0 0
  %5005 = vmatpush2.bf16.msra.mxu0 0
  %5006 = vmatprep.subr.bf16.mxu0 0
  %5007 = vmatpush2.bf16.msra.mxu0 0
  %5008 = vmatprep.subr.bf16.mxu0 0
  %5009 = vmatpush2.bf16.msra.mxu0 0
  %5010 = vmatprep.subr.bf16.mxu0 0
  %5011 = vmatpush2.bf16.msra.mxu0 0
  %5012 = vmatprep.subr.bf16.mxu0 0
  %5013 = vmatpush2.bf16.msra.mxu0 0
  %5014 = vmatprep.subr.bf16.mxu0 0
  %5015 = vmatpush2.bf16.msra.mxu0 0
  %5016 = vmatprep.subr.bf16.mxu0 0
  %5017 = vmatpush2.bf16.msra.mxu0 0
  %5018 = vmatprep.mubr.bf16.mxu0 0
  %5019 = vmatmul.mubr.bf16.gmra.mxu0 %v2427
  %v5020 = vpop.f32.mrf.mxu0
  %v5021 = vadd.f32 0.0, %v5020
  %v5022 = vpop.f32.mrf.mxu0
  %v5023 = vadd.f32 0.0, %v5022
  %v5024 = vpop.f32.mrf.mxu0
  %v5025 = vadd.f32 0.0, %v5024
  %v5026 = vpop.f32.mrf.mxu0
  %v5027 = vadd.f32 0.0, %v5026
  %5028 = vdwg.mxu0
  %5029 = vmatprep.subr.bf16.mxu0 0
  %5030 = vmatpush1.bf16.msra.mxu0 0
  %5031 = vmatprep.subr.bf16.mxu0 0
  %5032 = vmatpush1.bf16.msra.mxu0 0
  %5033 = vmatprep.subr.bf16.mxu0 0
  %5034 = vmatpush1.bf16.msra.mxu0 0
  %5035 = vmatprep.subr.bf16.mxu0 0
  %5036 = vmatpush1.bf16.msra.mxu0 0
  %5037 = vmatprep.subr.bf16.mxu0 0
  %5038 = vmatpush1.bf16.msra.mxu0 0
  %5039 = vmatprep.subr.bf16.mxu0 0
  %5040 = vmatpush1.bf16.msra.mxu0 0
  %5041 = vmatprep.subr.bf16.mxu0 0
  %5042 = vmatpush1.bf16.msra.mxu0 0
  %5043 = vmatprep.subr.bf16.mxu0 %v3953
  %5044 = vmatpush1.bf16.msra.mxu0 %v3950
  %5045 = vmatprep.subr.bf16.mxu0 0
  %5046 = vmatpush2.bf16.msra.mxu0 0
  %5047 = vmatprep.subr.bf16.mxu0 0
  %5048 = vmatpush2.bf16.msra.mxu0 0
  %5049 = vmatprep.subr.bf16.mxu0 0
  %5050 = vmatpush2.bf16.msra.mxu0 0
  %5051 = vmatprep.subr.bf16.mxu0 0
  %5052 = vmatpush2.bf16.msra.mxu0 0
  %5053 = vmatprep.subr.bf16.mxu0 0
  %5054 = vmatpush2.bf16.msra.mxu0 0
  %5055 = vmatprep.subr.bf16.mxu0 0
  %5056 = vmatpush2.bf16.msra.mxu0 0
  %5057 = vmatprep.subr.bf16.mxu0 0
  %5058 = vmatpush2.bf16.msra.mxu0 0
  %5059 = vmatprep.subr.bf16.mxu0 0
  %5060 = vmatpush2.bf16.msra.mxu0 0
  %5061 = vmatprep.mubr.bf16.mxu0 0
  %5062 = vmatmul.mubr.bf16.gmra.mxu0 %v2427
  %v5063 = vpop.f32.mrf.mxu0
  %v5064 = vadd.f32 0.0, %v5063
  %v5065 = vpop.f32.mrf.mxu0
  %v5066 = vadd.f32 0.0, %v5065
  %v5067 = vpop.f32.mrf.mxu0
  %v5068 = vadd.f32 0.0, %v5067
  %v5069 = vpop.f32.mrf.mxu0
  %v5070 = vadd.f32 0.0, %v5069
  %5071 = vdwg.mxu0
  %5072 = vmatprep.subr.bf16.mxu0 0
  %5073 = vmatpush1.bf16.msra.mxu0 0
  %5074 = vmatprep.subr.bf16.mxu0 0
  %5075 = vmatpush1.bf16.msra.mxu0 0
  %5076 = vmatprep.subr.bf16.mxu0 0
  %5077 = vmatpush1.bf16.msra.mxu0 0
  %5078 = vmatprep.subr.bf16.mxu0 0
  %5079 = vmatpush1.bf16.msra.mxu0 0
  %5080 = vmatprep.subr.bf16.mxu0 0
  %5081 = vmatpush1.bf16.msra.mxu0 0
  %5082 = vmatprep.subr.bf16.mxu0 0
  %5083 = vmatpush1.bf16.msra.mxu0 0
  %5084 = vmatprep.subr.bf16.mxu0 0
  %5085 = vmatpush1.bf16.msra.mxu0 0
  %5086 = vmatprep.subr.bf16.mxu0 %v3959
  %5087 = vmatpush1.bf16.msra.mxu0 %v3956
  %5088 = vmatprep.subr.bf16.mxu0 0
  %5089 = vmatpush2.bf16.msra.mxu0 0
  %5090 = vmatprep.subr.bf16.mxu0 0
  %5091 = vmatpush2.bf16.msra.mxu0 0
  %5092 = vmatprep.subr.bf16.mxu0 0
  %5093 = vmatpush2.bf16.msra.mxu0 0
  %5094 = vmatprep.subr.bf16.mxu0 0
  %5095 = vmatpush2.bf16.msra.mxu0 0
  %5096 = vmatprep.subr.bf16.mxu0 0
  %5097 = vmatpush2.bf16.msra.mxu0 0
  %5098 = vmatprep.subr.bf16.mxu0 0
  %5099 = vmatpush2.bf16.msra.mxu0 0
  %5100 = vmatprep.subr.bf16.mxu0 0
  %5101 = vmatpush2.bf16.msra.mxu0 0
  %5102 = vmatprep.subr.bf16.mxu0 0
  %5103 = vmatpush2.bf16.msra.mxu0 0
  %5104 = vmatprep.mubr.bf16.mxu0 0
  %5105 = vmatmul.mubr.bf16.gmra.mxu0 %v2427
  %v5106 = vpop.f32.mrf.mxu0
  %v5107 = vadd.f32 0.0, %v5106
  %v5108 = vpop.f32.mrf.mxu0
  %v5109 = vadd.f32 0.0, %v5108
  %v5110 = vpop.f32.mrf.mxu0
  %v5111 = vadd.f32 0.0, %v5110
  %v5112 = vpop.f32.mrf.mxu0
  %v5113 = vadd.f32 0.0, %v5112
  %5114 = vdwg.mxu0
  %5115 = vmatprep.subr.bf16.mxu0 0
  %5116 = vmatpush1.bf16.msra.mxu0 0
  %5117 = vmatprep.subr.bf16.mxu0 0
  %5118 = vmatpush1.bf16.msra.mxu0 0
  %5119 = vmatprep.subr.bf16.mxu0 0
  %5120 = vmatpush1.bf16.msra.mxu0 0
  %5121 = vmatprep.subr.bf16.mxu0 0
  %5122 = vmatpush1.bf16.msra.mxu0 0
  %5123 = vmatprep.subr.bf16.mxu0 0
  %5124 = vmatpush1.bf16.msra.mxu0 0
  %5125 = vmatprep.subr.bf16.mxu0 0
  %5126 = vmatpush1.bf16.msra.mxu0 0
  %5127 = vmatprep.subr.bf16.mxu0 0
  %5128 = vmatpush1.bf16.msra.mxu0 0
  %5129 = vmatprep.subr.bf16.mxu0 %v3965
  %5130 = vmatpush1.bf16.msra.mxu0 %v3962
  %5131 = vmatprep.subr.bf16.mxu0 0
  %5132 = vmatpush2.bf16.msra.mxu0 0
  %5133 = vmatprep.subr.bf16.mxu0 0
  %5134 = vmatpush2.bf16.msra.mxu0 0
  %5135 = vmatprep.subr.bf16.mxu0 0
  %5136 = vmatpush2.bf16.msra.mxu0 0
  %5137 = vmatprep.subr.bf16.mxu0 0
  %5138 = vmatpush2.bf16.msra.mxu0 0
  %5139 = vmatprep.subr.bf16.mxu0 0
  %5140 = vmatpush2.bf16.msra.mxu0 0
  %5141 = vmatprep.subr.bf16.mxu0 0
  %5142 = vmatpush2.bf16.msra.mxu0 0
  %5143 = vmatprep.subr.bf16.mxu0 0
  %5144 = vmatpush2.bf16.msra.mxu0 0
  %5145 = vmatprep.subr.bf16.mxu0 0
  %5146 = vmatpush2.bf16.msra.mxu0 0
  %5147 = vmatprep.mubr.bf16.mxu0 0
  %5148 = vmatmul.mubr.bf16.gmra.mxu0 %v2427
  %v5149 = vpop.f32.mrf.mxu0
  %v5150 = vadd.f32 0.0, %v5149
  %v5151 = vpop.f32.mrf.mxu0
  %v5152 = vadd.f32 0.0, %v5151
  %v5153 = vpop.f32.mrf.mxu0
  %v5154 = vadd.f32 0.0, %v5153
  %v5155 = vpop.f32.mrf.mxu0
  %v5156 = vadd.f32 0.0, %v5155
  %5157 = vdwg.mxu0
  %5158 = vmatprep.subr.bf16.mxu0 0
  %5159 = vmatpush1.bf16.msra.mxu0 0
  %5160 = vmatprep.subr.bf16.mxu0 0
  %5161 = vmatpush1.bf16.msra.mxu0 0
  %5162 = vmatprep.subr.bf16.mxu0 0
  %5163 = vmatpush1.bf16.msra.mxu0 0
  %5164 = vmatprep.subr.bf16.mxu0 0
  %5165 = vmatpush1.bf16.msra.mxu0 0
  %5166 = vmatprep.subr.bf16.mxu0 0
  %5167 = vmatpush1.bf16.msra.mxu0 0
  %5168 = vmatprep.subr.bf16.mxu0 0
  %5169 = vmatpush1.bf16.msra.mxu0 0
  %5170 = vmatprep.subr.bf16.mxu0 0
  %5171 = vmatpush1.bf16.msra.mxu0 0
  %5172 = vmatprep.subr.bf16.mxu0 %v3971
  %5173 = vmatpush1.bf16.msra.mxu0 %v3968
  %5174 = vmatprep.subr.bf16.mxu0 0
  %5175 = vmatpush2.bf16.msra.mxu0 0
  %5176 = vmatprep.subr.bf16.mxu0 0
  %5177 = vmatpush2.bf16.msra.mxu0 0
  %5178 = vmatprep.subr.bf16.mxu0 0
  %5179 = vmatpush2.bf16.msra.mxu0 0
  %5180 = vmatprep.subr.bf16.mxu0 0
  %5181 = vmatpush2.bf16.msra.mxu0 0
  %5182 = vmatprep.subr.bf16.mxu0 0
  %5183 = vmatpush2.bf16.msra.mxu0 0
  %5184 = vmatprep.subr.bf16.mxu0 0
  %5185 = vmatpush2.bf16.msra.mxu0 0
  %5186 = vmatprep.subr.bf16.mxu0 0
  %5187 = vmatpush2.bf16.msra.mxu0 0
  %5188 = vmatprep.subr.bf16.mxu0 0
  %5189 = vmatpush2.bf16.msra.mxu0 0
  %5190 = vmatprep.mubr.bf16.mxu0 0
  %5191 = vmatmul.mubr.bf16.gmra.mxu0 %v2427
  %v5192 = vpop.f32.mrf.mxu0
  %v5193 = vadd.f32 0.0, %v5192
  %v5194 = vpop.f32.mrf.mxu0
  %v5195 = vadd.f32 0.0, %v5194
  %v5196 = vpop.f32.mrf.mxu0
  %v5197 = vadd.f32 0.0, %v5196
  %v5198 = vpop.f32.mrf.mxu0
  %v5199 = vadd.f32 0.0, %v5198
  %5200 = vdwg.mxu0
  %5201 = vmatprep.subr.bf16.mxu0 0
  %5202 = vmatpush1.bf16.msra.mxu0 0
  %5203 = vmatprep.subr.bf16.mxu0 0
  %5204 = vmatpush1.bf16.msra.mxu0 0
  %5205 = vmatprep.subr.bf16.mxu0 0
  %5206 = vmatpush1.bf16.msra.mxu0 0
  %5207 = vmatprep.subr.bf16.mxu0 0
  %5208 = vmatpush1.bf16.msra.mxu0 0
  %5209 = vmatprep.subr.bf16.mxu0 0
  %5210 = vmatpush1.bf16.msra.mxu0 0
  %5211 = vmatprep.subr.bf16.mxu0 0
  %5212 = vmatpush1.bf16.msra.mxu0 0
  %5213 = vmatprep.subr.bf16.mxu0 0
  %5214 = vmatpush1.bf16.msra.mxu0 0
  %5215 = vmatprep.subr.bf16.mxu0 %v3977
  %5216 = vmatpush1.bf16.msra.mxu0 %v3974
  %5217 = vmatprep.subr.bf16.mxu0 0
  %5218 = vmatpush2.bf16.msra.mxu0 0
  %5219 = vmatprep.subr.bf16.mxu0 0
  %5220 = vmatpush2.bf16.msra.mxu0 0
  %5221 = vmatprep.subr.bf16.mxu0 0
  %5222 = vmatpush2.bf16.msra.mxu0 0
  %5223 = vmatprep.subr.bf16.mxu0 0
  %5224 = vmatpush2.bf16.msra.mxu0 0
  %5225 = vmatprep.subr.bf16.mxu0 0
  %5226 = vmatpush2.bf16.msra.mxu0 0
  %5227 = vmatprep.subr.bf16.mxu0 0
  %5228 = vmatpush2.bf16.msra.mxu0 0
  %5229 = vmatprep.subr.bf16.mxu0 0
  %5230 = vmatpush2.bf16.msra.mxu0 0
  %5231 = vmatprep.subr.bf16.mxu0 0
  %5232 = vmatpush2.bf16.msra.mxu0 0
  %5233 = vmatprep.mubr.bf16.mxu0 0
  %5234 = vmatmul.mubr.bf16.gmra.mxu0 %v2427
  %v5235 = vpop.f32.mrf.mxu0
  %v5236 = vadd.f32 0.0, %v5235
  %v5237 = vpop.f32.mrf.mxu0
  %v5238 = vadd.f32 0.0, %v5237
  %v5239 = vpop.f32.mrf.mxu0
  %v5240 = vadd.f32 0.0, %v5239
  %v5241 = vpop.f32.mrf.mxu0
  %v5242 = vadd.f32 0.0, %v5241
  %5243 = vdwg.mxu0
  %5244 = vmatprep.subr.bf16.mxu0 0
  %5245 = vmatpush1.bf16.msra.mxu0 0
  %5246 = vmatprep.subr.bf16.mxu0 0
  %5247 = vmatpush1.bf16.msra.mxu0 0
  %5248 = vmatprep.subr.bf16.mxu0 0
  %5249 = vmatpush1.bf16.msra.mxu0 0
  %5250 = vmatprep.subr.bf16.mxu0 0
  %5251 = vmatpush1.bf16.msra.mxu0 0
  %5252 = vmatprep.subr.bf16.mxu0 0
  %5253 = vmatpush1.bf16.msra.mxu0 0
  %5254 = vmatprep.subr.bf16.mxu0 0
  %5255 = vmatpush1.bf16.msra.mxu0 0
  %5256 = vmatprep.subr.bf16.mxu0 0
  %5257 = vmatpush1.bf16.msra.mxu0 0
  %5258 = vmatprep.subr.bf16.mxu0 %v3983
  %5259 = vmatpush1.bf16.msra.mxu0 %v3980
  %5260 = vmatprep.subr.bf16.mxu0 0
  %5261 = vmatpush2.bf16.msra.mxu0 0
  %5262 = vmatprep.subr.bf16.mxu0 0
  %5263 = vmatpush2.bf16.msra.mxu0 0
  %5264 = vmatprep.subr.bf16.mxu0 0
  %5265 = vmatpush2.bf16.msra.mxu0 0
  %5266 = vmatprep.subr.bf16.mxu0 0
  %5267 = vmatpush2.bf16.msra.mxu0 0
  %5268 = vmatprep.subr.bf16.mxu0 0
  %5269 = vmatpush2.bf16.msra.mxu0 0
  %5270 = vmatprep.subr.bf16.mxu0 0
  %5271 = vmatpush2.bf16.msra.mxu0 0
  %5272 = vmatprep.subr.bf16.mxu0 0
  %5273 = vmatpush2.bf16.msra.mxu0 0
  %5274 = vmatprep.subr.bf16.mxu0 0
  %5275 = vmatpush2.bf16.msra.mxu0 0
  %5276 = vmatprep.mubr.bf16.mxu0 0
  %5277 = vmatmul.mubr.bf16.gmra.mxu0 %v2427
  %v5278 = vpop.f32.mrf.mxu0
  %v5279 = vadd.f32 0.0, %v5278
  %v5280 = vpop.f32.mrf.mxu0
  %v5281 = vadd.f32 0.0, %v5280
  %v5282 = vpop.f32.mrf.mxu0
  %v5283 = vadd.f32 0.0, %v5282
  %v5284 = vpop.f32.mrf.mxu0
  %v5285 = vadd.f32 0.0, %v5284
  %5286 = vdwg.mxu0
  %5287 = vmatprep.subr.bf16.mxu0 0
  %5288 = vmatpush1.bf16.msra.mxu0 0
  %5289 = vmatprep.subr.bf16.mxu0 0
  %5290 = vmatpush1.bf16.msra.mxu0 0
  %5291 = vmatprep.subr.bf16.mxu0 0
  %5292 = vmatpush1.bf16.msra.mxu0 0
  %5293 = vmatprep.subr.bf16.mxu0 0
  %5294 = vmatpush1.bf16.msra.mxu0 0
  %5295 = vmatprep.subr.bf16.mxu0 0
  %5296 = vmatpush1.bf16.msra.mxu0 0
  %5297 = vmatprep.subr.bf16.mxu0 0
  %5298 = vmatpush1.bf16.msra.mxu0 0
  %5299 = vmatprep.subr.bf16.mxu0 0
  %5300 = vmatpush1.bf16.msra.mxu0 0
  %5301 = vmatprep.subr.bf16.mxu0 %v3989
  %5302 = vmatpush1.bf16.msra.mxu0 %v3986
  %5303 = vmatprep.subr.bf16.mxu0 0
  %5304 = vmatpush2.bf16.msra.mxu0 0
  %5305 = vmatprep.subr.bf16.mxu0 0
  %5306 = vmatpush2.bf16.msra.mxu0 0
  %5307 = vmatprep.subr.bf16.mxu0 0
  %5308 = vmatpush2.bf16.msra.mxu0 0
  %5309 = vmatprep.subr.bf16.mxu0 0
  %5310 = vmatpush2.bf16.msra.mxu0 0
  %5311 = vmatprep.subr.bf16.mxu0 0
  %5312 = vmatpush2.bf16.msra.mxu0 0
  %5313 = vmatprep.subr.bf16.mxu0 0
  %5314 = vmatpush2.bf16.msra.mxu0 0
  %5315 = vmatprep.subr.bf16.mxu0 0
  %5316 = vmatpush2.bf16.msra.mxu0 0
  %5317 = vmatprep.subr.bf16.mxu0 0
  %5318 = vmatpush2.bf16.msra.mxu0 0
  %5319 = vmatprep.mubr.bf16.mxu0 0
  %5320 = vmatmul.mubr.bf16.gmra.mxu0 %v2427
  %v5321 = vpop.f32.mrf.mxu0
  %v5322 = vadd.f32 0.0, %v5321
  %v5323 = vpop.f32.mrf.mxu0
  %v5324 = vadd.f32 0.0, %v5323
  %v5325 = vpop.f32.mrf.mxu0
  %v5326 = vadd.f32 0.0, %v5325
  %v5327 = vpop.f32.mrf.mxu0
  %v5328 = vadd.f32 0.0, %v5327
  %5329 = vdwg.mxu0
  %5330 = vmatprep.subr.bf16.mxu0 0
  %5331 = vmatpush1.bf16.msra.mxu0 0
  %5332 = vmatprep.subr.bf16.mxu0 0
  %5333 = vmatpush1.bf16.msra.mxu0 0
  %5334 = vmatprep.subr.bf16.mxu0 0
  %5335 = vmatpush1.bf16.msra.mxu0 0
  %5336 = vmatprep.subr.bf16.mxu0 0
  %5337 = vmatpush1.bf16.msra.mxu0 0
  %5338 = vmatprep.subr.bf16.mxu0 0
  %5339 = vmatpush1.bf16.msra.mxu0 0
  %5340 = vmatprep.subr.bf16.mxu0 0
  %5341 = vmatpush1.bf16.msra.mxu0 0
  %5342 = vmatprep.subr.bf16.mxu0 0
  %5343 = vmatpush1.bf16.msra.mxu0 0
  %5344 = vmatprep.subr.bf16.mxu0 %v3995
  %5345 = vmatpush1.bf16.msra.mxu0 %v3992
  %5346 = vmatprep.subr.bf16.mxu0 0
  %5347 = vmatpush2.bf16.msra.mxu0 0
  %5348 = vmatprep.subr.bf16.mxu0 0
  %5349 = vmatpush2.bf16.msra.mxu0 0
  %5350 = vmatprep.subr.bf16.mxu0 0
  %5351 = vmatpush2.bf16.msra.mxu0 0
  %5352 = vmatprep.subr.bf16.mxu0 0
  %5353 = vmatpush2.bf16.msra.mxu0 0
  %5354 = vmatprep.subr.bf16.mxu0 0
  %5355 = vmatpush2.bf16.msra.mxu0 0
  %5356 = vmatprep.subr.bf16.mxu0 0
  %5357 = vmatpush2.bf16.msra.mxu0 0
  %5358 = vmatprep.subr.bf16.mxu0 0
  %5359 = vmatpush2.bf16.msra.mxu0 0
  %5360 = vmatprep.subr.bf16.mxu0 0
  %5361 = vmatpush2.bf16.msra.mxu0 0
  %5362 = vmatprep.mubr.bf16.mxu0 0
  %5363 = vmatmul.mubr.bf16.gmra.mxu0 %v2427
  %v5364 = vpop.f32.mrf.mxu0
  %v5365 = vadd.f32 0.0, %v5364
  %v5366 = vpop.f32.mrf.mxu0
  %v5367 = vadd.f32 0.0, %v5366
  %v5368 = vpop.f32.mrf.mxu0
  %v5369 = vadd.f32 0.0, %v5368
  %v5370 = vpop.f32.mrf.mxu0
  %v5371 = vadd.f32 0.0, %v5370
  %5372 = vdwg.mxu0
  %v5373 = vadd.f32 %v2464, %v4032
  %v5374 = vadd.f32 %v2466, %v4034
  %v5375 = vadd.f32 %v2507, %v4075
  %v5376 = vadd.f32 %v2509, %v4077
  %v5377 = vadd.f32 %v2550, %v4118
  %v5378 = vadd.f32 %v2552, %v4120
  %v5379 = vadd.f32 %v2593, %v4161
  %v5380 = vadd.f32 %v2595, %v4163
  %v5381 = vadd.f32 %v2636, %v4204
  %v5382 = vadd.f32 %v2638, %v4206
  %v5383 = vadd.f32 %v2679, %v4247
  %v5384 = vadd.f32 %v2681, %v4249
  %v5385 = vadd.f32 %v2722, %v4290
  %v5386 = vadd.f32 %v2724, %v4292
  %v5387 = vadd.f32 %v2765, %v4333
  %v5388 = vadd.f32 %v2767, %v4335
  %v5389 = vadd.f32 %v2808, %v4376
  %v5390 = vadd.f32 %v2810, %v4378
  %v5391 = vadd.f32 %v2851, %v4419
  %v5392 = vadd.f32 %v2853, %v4421
  %v5393 = vadd.f32 %v2894, %v4462
  %v5394 = vadd.f32 %v2896, %v4464
  %v5395 = vadd.f32 %v2937, %v4505
  %v5396 = vadd.f32 %v2939, %v4507
  %v5397 = vadd.f32 %v2980, %v4548
  %v5398 = vadd.f32 %v2982, %v4550
  %v5399 = vadd.f32 %v3023, %v4591
  %v5400 = vadd.f32 %v3025, %v4593
  %v5401 = vadd.f32 %v3066, %v4634
  %v5402 = vadd.f32 %v3068, %v4636
  %v5403 = vadd.f32 %v3109, %v4677
  %v5404 = vadd.f32 %v3111, %v4679
  %v5405 = vadd.f32 %v3152, %v4720
  %v5406 = vadd.f32 %v3154, %v4722
  %v5407 = vadd.f32 %v3195, %v4763
  %v5408 = vadd.f32 %v3197, %v4765
  %v5409 = vadd.f32 %v3238, %v4806
  %v5410 = vadd.f32 %v3240, %v4808
  %v5411 = vadd.f32 %v3281, %v4849
  %v5412 = vadd.f32 %v3283, %v4851
  %v5413 = vadd.f32 %v3324, %v4892
  %v5414 = vadd.f32 %v3326, %v4894
  %v5415 = vadd.f32 %v3367, %v4935
  %v5416 = vadd.f32 %v3369, %v4937
  %v5417 = vadd.f32 %v3410, %v4978
  %v5418 = vadd.f32 %v3412, %v4980
  %v5419 = vadd.f32 %v3453, %v5021
  %v5420 = vadd.f32 %v3455, %v5023
  %v5421 = vadd.f32 %v3496, %v5064
  %v5422 = vadd.f32 %v3498, %v5066
  %v5423 = vadd.f32 %v3539, %v5107
  %v5424 = vadd.f32 %v3541, %v5109
  %v5425 = vadd.f32 %v3582, %v5150
  %v5426 = vadd.f32 %v3584, %v5152
  %v5427 = vadd.f32 %v3625, %v5193
  %v5428 = vadd.f32 %v3627, %v5195
  %v5429 = vadd.f32 %v3668, %v5236
  %v5430 = vadd.f32 %v3670, %v5238
  %v5431 = vadd.f32 %v3711, %v5279
  %v5432 = vadd.f32 %v3713, %v5281
  %v5433 = vadd.f32 %v3754, %v5322
  %v5434 = vadd.f32 %v3756, %v5324
  %v5435 = vadd.f32 %v3797, %v5365
  %v5436 = vadd.f32 %v3799, %v5367
  %v5437 = vadd.f32 %v2468, %v4036
  %v5438 = vadd.f32 %v2470, %v4038
  %v5439 = vadd.f32 %v2511, %v4079
  %v5440 = vadd.f32 %v2513, %v4081
  %v5441 = vadd.f32 %v2554, %v4122
  %v5442 = vadd.f32 %v2556, %v4124
  %v5443 = vadd.f32 %v2597, %v4165
  %v5444 = vadd.f32 %v2599, %v4167
  %v5445 = vadd.f32 %v2640, %v4208
  %v5446 = vadd.f32 %v2642, %v4210
  %v5447 = vadd.f32 %v2683, %v4251
  %v5448 = vadd.f32 %v2685, %v4253
  %v5449 = vadd.f32 %v2726, %v4294
  %v5450 = vadd.f32 %v2728, %v4296
  %v5451 = vadd.f32 %v2769, %v4337
  %v5452 = vadd.f32 %v2771, %v4339
  %v5453 = vadd.f32 %v2812, %v4380
  %v5454 = vadd.f32 %v2814, %v4382
  %v5455 = vadd.f32 %v2855, %v4423
  %v5456 = vadd.f32 %v2857, %v4425
  %v5457 = vadd.f32 %v2898, %v4466
  %v5458 = vadd.f32 %v2900, %v4468
  %v5459 = vadd.f32 %v2941, %v4509
  %v5460 = vadd.f32 %v2943, %v4511
  %v5461 = vadd.f32 %v2984, %v4552
  %v5462 = vadd.f32 %v2986, %v4554
  %v5463 = vadd.f32 %v3027, %v4595
  %v5464 = vadd.f32 %v3029, %v4597
  %v5465 = vadd.f32 %v3070, %v4638
  %v5466 = vadd.f32 %v3072, %v4640
  %v5467 = vadd.f32 %v3113, %v4681
  %v5468 = vadd.f32 %v3115, %v4683
  %v5469 = vadd.f32 %v3156, %v4724
  %v5470 = vadd.f32 %v3158, %v4726
  %v5471 = vadd.f32 %v3199, %v4767
  %v5472 = vadd.f32 %v3201, %v4769
  %v5473 = vadd.f32 %v3242, %v4810
  %v5474 = vadd.f32 %v3244, %v4812
  %v5475 = vadd.f32 %v3285, %v4853
  %v5476 = vadd.f32 %v3287, %v4855
  %v5477 = vadd.f32 %v3328, %v4896
  %v5478 = vadd.f32 %v3330, %v4898
  %v5479 = vadd.f32 %v3371, %v4939
  %v5480 = vadd.f32 %v3373, %v4941
  %v5481 = vadd.f32 %v3414, %v4982
  %v5482 = vadd.f32 %v3416, %v4984
  %v5483 = vadd.f32 %v3457, %v5025
  %v5484 = vadd.f32 %v3459, %v5027
  %v5485 = vadd.f32 %v3500, %v5068
  %v5486 = vadd.f32 %v3502, %v5070
  %v5487 = vadd.f32 %v3543, %v5111
  %v5488 = vadd.f32 %v3545, %v5113
  %v5489 = vadd.f32 %v3586, %v5154
  %v5490 = vadd.f32 %v3588, %v5156
  %v5491 = vadd.f32 %v3629, %v5197
  %v5492 = vadd.f32 %v3631, %v5199
  %v5493 = vadd.f32 %v3672, %v5240
  %v5494 = vadd.f32 %v3674, %v5242
  %v5495 = vadd.f32 %v3715, %v5283
  %v5496 = vadd.f32 %v3717, %v5285
  %v5497 = vadd.f32 %v3758, %v5326
  %v5498 = vadd.f32 %v3760, %v5328
  %v5499 = vadd.f32 %v3801, %v5369
  %v5500 = vadd.f32 %v3803, %v5371
  %v5501 = vld [vmem:[%s2] sm:$0xff]
  %v5502 = vld [vmem:[%s2 + $0x8] sm:$0xff]
  %5504 = vset.pattern.permute.xlu0 0
  %5505 = vperm.xlu0 %5504, %v5501
  %v5506 = vpop.permute.xlu0 %5505
  %5509 = vset.pattern.permute.xlu0 0
  %5510 = vperm.xlu0 %5509, %v5502
  %v5511 = vpop.permute.xlu0 %5510
  %v5513 = vadd.f32 %v5373, %v5506
  %v5514 = vadd.f32 %v5374, %v5506
  %v5515 = vadd.f32 %v5375, %v5506
  %v5516 = vadd.f32 %v5376, %v5506
  %v5517 = vadd.f32 %v5377, %v5506
  %v5518 = vadd.f32 %v5378, %v5506
  %v5519 = vadd.f32 %v5379, %v5506
  %v5520 = vadd.f32 %v5380, %v5506
  %v5521 = vadd.f32 %v5381, %v5506
  %v5522 = vadd.f32 %v5382, %v5506
  %v5523 = vadd.f32 %v5383, %v5506
  %v5524 = vadd.f32 %v5384, %v5506
  %v5525 = vadd.f32 %v5385, %v5506
  %v5526 = vadd.f32 %v5386, %v5506
  %v5527 = vadd.f32 %v5387, %v5506
  %v5528 = vadd.f32 %v5388, %v5506
  %v5529 = vadd.f32 %v5389, %v5506
  %v5530 = vadd.f32 %v5390, %v5506
  %v5531 = vadd.f32 %v5391, %v5506
  %v5532 = vadd.f32 %v5392, %v5506
  %v5533 = vadd.f32 %v5393, %v5506
  %v5534 = vadd.f32 %v5394, %v5506
  %v5535 = vadd.f32 %v5395, %v5506
  %v5536 = vadd.f32 %v5396, %v5506
  %v5537 = vadd.f32 %v5397, %v5506
  %v5538 = vadd.f32 %v5398, %v5506
  %v5539 = vadd.f32 %v5399, %v5506
  %v5540 = vadd.f32 %v5400, %v5506
  %v5541 = vadd.f32 %v5401, %v5506
  %v5542 = vadd.f32 %v5402, %v5506
  %v5543 = vadd.f32 %v5403, %v5506
  %v5544 = vadd.f32 %v5404, %v5506
  %v5545 = vadd.f32 %v5405, %v5506
  %v5546 = vadd.f32 %v5406, %v5506
  %v5547 = vadd.f32 %v5407, %v5506
  %v5548 = vadd.f32 %v5408, %v5506
  %v5549 = vadd.f32 %v5409, %v5506
  %v5550 = vadd.f32 %v5410, %v5506
  %v5551 = vadd.f32 %v5411, %v5506
  %v5552 = vadd.f32 %v5412, %v5506
  %v5553 = vadd.f32 %v5413, %v5506
  %v5554 = vadd.f32 %v5414, %v5506
  %v5555 = vadd.f32 %v5415, %v5506
  %v5556 = vadd.f32 %v5416, %v5506
  %v5557 = vadd.f32 %v5417, %v5506
  %v5558 = vadd.f32 %v5418, %v5506
  %v5559 = vadd.f32 %v5419, %v5506
  %v5560 = vadd.f32 %v5420, %v5506
  %v5561 = vadd.f32 %v5421, %v5506
  %v5562 = vadd.f32 %v5422, %v5506
  %v5563 = vadd.f32 %v5423, %v5506
  %v5564 = vadd.f32 %v5424, %v5506
  %v5565 = vadd.f32 %v5425, %v5506
  %v5566 = vadd.f32 %v5426, %v5506
  %v5567 = vadd.f32 %v5427, %v5506
  %v5568 = vadd.f32 %v5428, %v5506
  %v5569 = vadd.f32 %v5429, %v5506
  %v5570 = vadd.f32 %v5430, %v5506
  %v5571 = vadd.f32 %v5431, %v5506
  %v5572 = vadd.f32 %v5432, %v5506
  %v5573 = vadd.f32 %v5433, %v5506
  %v5574 = vadd.f32 %v5434, %v5506
  %v5575 = vadd.f32 %v5435, %v5506
  %v5576 = vadd.f32 %v5436, %v5506
  %v5577 = vadd.f32 %v5437, %v5511
  %v5578 = vadd.f32 %v5438, %v5511
  %v5579 = vadd.f32 %v5439, %v5511
  %v5580 = vadd.f32 %v5440, %v5511
  %v5581 = vadd.f32 %v5441, %v5511
  %v5582 = vadd.f32 %v5442, %v5511
  %v5583 = vadd.f32 %v5443, %v5511
  %v5584 = vadd.f32 %v5444, %v5511
  %v5585 = vadd.f32 %v5445, %v5511
  %v5586 = vadd.f32 %v5446, %v5511
  %v5587 = vadd.f32 %v5447, %v5511
  %v5588 = vadd.f32 %v5448, %v5511
  %v5589 = vadd.f32 %v5449, %v5511
  %v5590 = vadd.f32 %v5450, %v5511
  %v5591 = vadd.f32 %v5451, %v5511
  %v5592 = vadd.f32 %v5452, %v5511
  %v5593 = vadd.f32 %v5453, %v5511
  %v5594 = vadd.f32 %v5454, %v5511
  %v5595 = vadd.f32 %v5455, %v5511
  %v5596 = vadd.f32 %v5456, %v5511
  %v5597 = vadd.f32 %v5457, %v5511
  %v5598 = vadd.f32 %v5458, %v5511
  %v5599 = vadd.f32 %v5459, %v5511
  %v5600 = vadd.f32 %v5460, %v5511
  %v5601 = vadd.f32 %v5461, %v5511
  %v5602 = vadd.f32 %v5462, %v5511
  %v5603 = vadd.f32 %v5463, %v5511
  %v5604 = vadd.f32 %v5464, %v5511
  %v5605 = vadd.f32 %v5465, %v5511
  %v5606 = vadd.f32 %v5466, %v5511
  %v5607 = vadd.f32 %v5467, %v5511
  %v5608 = vadd.f32 %v5468, %v5511
  %v5609 = vadd.f32 %v5469, %v5511
  %v5610 = vadd.f32 %v5470, %v5511
  %v5611 = vadd.f32 %v5471, %v5511
  %v5612 = vadd.f32 %v5472, %v5511
  %v5613 = vadd.f32 %v5473, %v5511
  %v5614 = vadd.f32 %v5474, %v5511
  %v5615 = vadd.f32 %v5475, %v5511
  %v5616 = vadd.f32 %v5476, %v5511
  %v5617 = vadd.f32 %v5477, %v5511
  %v5618 = vadd.f32 %v5478, %v5511
  %v5619 = vadd.f32 %v5479, %v5511
  %v5620 = vadd.f32 %v5480, %v5511
  %v5621 = vadd.f32 %v5481, %v5511
  %v5622 = vadd.f32 %v5482, %v5511
  %v5623 = vadd.f32 %v5483, %v5511
  %v5624 = vadd.f32 %v5484, %v5511
  %v5625 = vadd.f32 %v5485, %v5511
  %v5626 = vadd.f32 %v5486, %v5511
  %v5627 = vadd.f32 %v5487, %v5511
  %v5628 = vadd.f32 %v5488, %v5511
  %v5629 = vadd.f32 %v5489, %v5511
  %v5630 = vadd.f32 %v5490, %v5511
  %v5631 = vadd.f32 %v5491, %v5511
  %v5632 = vadd.f32 %v5492, %v5511
  %v5633 = vadd.f32 %v5493, %v5511
  %v5634 = vadd.f32 %v5494, %v5511
  %v5635 = vadd.f32 %v5495, %v5511
  %v5636 = vadd.f32 %v5496, %v5511
  %v5637 = vadd.f32 %v5497, %v5511
  %v5638 = vadd.f32 %v5498, %v5511
  %v5639 = vadd.f32 %v5499, %v5511
  %v5640 = vadd.f32 %v5500, %v5511
  %v5641 = vmax.f32 %v5513, 0.0
  %v5642 = vmax.f32 %v5514, 0.0
  %v5643 = vmax.f32 %v5515, 0.0
  %v5644 = vmax.f32 %v5516, 0.0
  %v5645 = vmax.f32 %v5517, 0.0
  %v5646 = vmax.f32 %v5518, 0.0
  %v5647 = vmax.f32 %v5519, 0.0
  %v5648 = vmax.f32 %v5520, 0.0
  %v5649 = vmax.f32 %v5521, 0.0
  %v5650 = vmax.f32 %v5522, 0.0
  %v5651 = vmax.f32 %v5523, 0.0
  %v5652 = vmax.f32 %v5524, 0.0
  %v5653 = vmax.f32 %v5525, 0.0
  %v5654 = vmax.f32 %v5526, 0.0
  %v5655 = vmax.f32 %v5527, 0.0
  %v5656 = vmax.f32 %v5528, 0.0
  %v5657 = vmax.f32 %v5529, 0.0
  %v5658 = vmax.f32 %v5530, 0.0
  %v5659 = vmax.f32 %v5531, 0.0
  %v5660 = vmax.f32 %v5532, 0.0
  %v5661 = vmax.f32 %v5533, 0.0
  %v5662 = vmax.f32 %v5534, 0.0
  %v5663 = vmax.f32 %v5535, 0.0
  %v5664 = vmax.f32 %v5536, 0.0
  %v5665 = vmax.f32 %v5537, 0.0
  %v5666 = vmax.f32 %v5538, 0.0
  %v5667 = vmax.f32 %v5539, 0.0
  %v5668 = vmax.f32 %v5540, 0.0
  %v5669 = vmax.f32 %v5541, 0.0
  %v5670 = vmax.f32 %v5542, 0.0
  %v5671 = vmax.f32 %v5543, 0.0
  %v5672 = vmax.f32 %v5544, 0.0
  %v5673 = vmax.f32 %v5545, 0.0
  %v5674 = vmax.f32 %v5546, 0.0
  %v5675 = vmax.f32 %v5547, 0.0
  %v5676 = vmax.f32 %v5548, 0.0
  %v5677 = vmax.f32 %v5549, 0.0
  %v5678 = vmax.f32 %v5550, 0.0
  %v5679 = vmax.f32 %v5551, 0.0
  %v5680 = vmax.f32 %v5552, 0.0
  %v5681 = vmax.f32 %v5553, 0.0
  %v5682 = vmax.f32 %v5554, 0.0
  %v5683 = vmax.f32 %v5555, 0.0
  %v5684 = vmax.f32 %v5556, 0.0
  %v5685 = vmax.f32 %v5557, 0.0
  %v5686 = vmax.f32 %v5558, 0.0
  %v5687 = vmax.f32 %v5559, 0.0
  %v5688 = vmax.f32 %v5560, 0.0
  %v5689 = vmax.f32 %v5561, 0.0
  %v5690 = vmax.f32 %v5562, 0.0
  %v5691 = vmax.f32 %v5563, 0.0
  %v5692 = vmax.f32 %v5564, 0.0
  %v5693 = vmax.f32 %v5565, 0.0
  %v5694 = vmax.f32 %v5566, 0.0
  %v5695 = vmax.f32 %v5567, 0.0
  %v5696 = vmax.f32 %v5568, 0.0
  %v5697 = vmax.f32 %v5569, 0.0
  %v5698 = vmax.f32 %v5570, 0.0
  %v5699 = vmax.f32 %v5571, 0.0
  %v5700 = vmax.f32 %v5572, 0.0
  %v5701 = vmax.f32 %v5573, 0.0
  %v5702 = vmax.f32 %v5574, 0.0
  %v5703 = vmax.f32 %v5575, 0.0
  %v5704 = vmax.f32 %v5576, 0.0
  %v5705 = vmax.f32 %v5577, 0.0
  %v5706 = vmax.f32 %v5578, 0.0
  %v5707 = vmax.f32 %v5579, 0.0
  %v5708 = vmax.f32 %v5580, 0.0
  %v5709 = vmax.f32 %v5581, 0.0
  %v5710 = vmax.f32 %v5582, 0.0
  %v5711 = vmax.f32 %v5583, 0.0
  %v5712 = vmax.f32 %v5584, 0.0
  %v5713 = vmax.f32 %v5585, 0.0
  %v5714 = vmax.f32 %v5586, 0.0
  %v5715 = vmax.f32 %v5587, 0.0
  %v5716 = vmax.f32 %v5588, 0.0
  %v5717 = vmax.f32 %v5589, 0.0
  %v5718 = vmax.f32 %v5590, 0.0
  %v5719 = vmax.f32 %v5591, 0.0
  %v5720 = vmax.f32 %v5592, 0.0
  %v5721 = vmax.f32 %v5593, 0.0
  %v5722 = vmax.f32 %v5594, 0.0
  %v5723 = vmax.f32 %v5595, 0.0
  %v5724 = vmax.f32 %v5596, 0.0
  %v5725 = vmax.f32 %v5597, 0.0
  %v5726 = vmax.f32 %v5598, 0.0
  %v5727 = vmax.f32 %v5599, 0.0
  %v5728 = vmax.f32 %v5600, 0.0
  %v5729 = vmax.f32 %v5601, 0.0
  %v5730 = vmax.f32 %v5602, 0.0
  %v5731 = vmax.f32 %v5603, 0.0
  %v5732 = vmax.f32 %v5604, 0.0
  %v5733 = vmax.f32 %v5605, 0.0
  %v5734 = vmax.f32 %v5606, 0.0
  %v5735 = vmax.f32 %v5607, 0.0
  %v5736 = vmax.f32 %v5608, 0.0
  %v5737 = vmax.f32 %v5609, 0.0
  %v5738 = vmax.f32 %v5610, 0.0
  %v5739 = vmax.f32 %v5611, 0.0
  %v5740 = vmax.f32 %v5612, 0.0
  %v5741 = vmax.f32 %v5613, 0.0
  %v5742 = vmax.f32 %v5614, 0.0
  %v5743 = vmax.f32 %v5615, 0.0
  %v5744 = vmax.f32 %v5616, 0.0
  %v5745 = vmax.f32 %v5617, 0.0
  %v5746 = vmax.f32 %v5618, 0.0
  %v5747 = vmax.f32 %v5619, 0.0
  %v5748 = vmax.f32 %v5620, 0.0
  %v5749 = vmax.f32 %v5621, 0.0
  %v5750 = vmax.f32 %v5622, 0.0
  %v5751 = vmax.f32 %v5623, 0.0
  %v5752 = vmax.f32 %v5624, 0.0
  %v5753 = vmax.f32 %v5625, 0.0
  %v5754 = vmax.f32 %v5626, 0.0
  %v5755 = vmax.f32 %v5627, 0.0
  %v5756 = vmax.f32 %v5628, 0.0
  %v5757 = vmax.f32 %v5629, 0.0
  %v5758 = vmax.f32 %v5630, 0.0
  %v5759 = vmax.f32 %v5631, 0.0
  %v5760 = vmax.f32 %v5632, 0.0
  %v5761 = vmax.f32 %v5633, 0.0
  %v5762 = vmax.f32 %v5634, 0.0
  %v5763 = vmax.f32 %v5635, 0.0
  %v5764 = vmax.f32 %v5636, 0.0
  %v5765 = vmax.f32 %v5637, 0.0
  %v5766 = vmax.f32 %v5638, 0.0
  %v5767 = vmax.f32 %v5639, 0.0
  %v5768 = vmax.f32 %v5640, 0.0
  %v5769 = vmax.f32 %v5641, %v5649
  %v5770 = vmax.f32 %v5642, %v5650
  %v5771 = vmax.f32 %v5643, %v5651
  %v5772 = vmax.f32 %v5644, %v5652
  %v5773 = vmax.f32 %v5645, %v5653
  %v5774 = vmax.f32 %v5646, %v5654
  %v5775 = vmax.f32 %v5647, %v5655
  %v5776 = vmax.f32 %v5648, %v5656
  %v5777 = vmax.f32 %v5705, %v5713
  %v5778 = vmax.f32 %v5706, %v5714
  %v5779 = vmax.f32 %v5707, %v5715
  %v5780 = vmax.f32 %v5708, %v5716
  %v5781 = vmax.f32 %v5709, %v5717
  %v5782 = vmax.f32 %v5710, %v5718
  %v5783 = vmax.f32 %v5711, %v5719
  %v5784 = vmax.f32 %v5712, %v5720
  %v5785 = vmax.f32 %v5769, %v5770
  %v5786 = vmax.f32 %v5777, %v5778
  %v5787 = vmax.f32 %v5771, %v5772
  %v5788 = vmax.f32 %v5779, %v5780
  %v5789 = vmax.f32 %v5773, %v5774
  %v5790 = vmax.f32 %v5781, %v5782
  %v5791 = vmax.f32 %v5775, %v5776
  %v5792 = vmax.f32 %v5783, %v5784
  %v5793 = vmax.f32 %v5657, %v5665
  %v5794 = vmax.f32 %v5658, %v5666
  %v5795 = vmax.f32 %v5659, %v5667
  %v5796 = vmax.f32 %v5660, %v5668
  %v5797 = vmax.f32 %v5661, %v5669
  %v5798 = vmax.f32 %v5662, %v5670
  %v5799 = vmax.f32 %v5663, %v5671
  %v5800 = vmax.f32 %v5664, %v5672
  %v5801 = vmax.f32 %v5721, %v5729
  %v5802 = vmax.f32 %v5722, %v5730
  %v5803 = vmax.f32 %v5723, %v5731
  %v5804 = vmax.f32 %v5724, %v5732
  %v5805 = vmax.f32 %v5725, %v5733
  %v5806 = vmax.f32 %v5726, %v5734
  %v5807 = vmax.f32 %v5727, %v5735
  %v5808 = vmax.f32 %v5728, %v5736
  %v5809 = vmax.f32 %v5793, %v5794
  %v5810 = vmax.f32 %v5801, %v5802
  %v5811 = vmax.f32 %v5795, %v5796
  %v5812 = vmax.f32 %v5803, %v5804
  %v5813 = vmax.f32 %v5797, %v5798
  %v5814 = vmax.f32 %v5805, %v5806
  %v5815 = vmax.f32 %v5799, %v5800
  %v5816 = vmax.f32 %v5807, %v5808
  %v5817 = vmax.f32 %v5673, %v5681
  %v5818 = vmax.f32 %v5674, %v5682
  %v5819 = vmax.f32 %v5675, %v5683
  %v5820 = vmax.f32 %v5676, %v5684
  %v5821 = vmax.f32 %v5677, %v5685
  %v5822 = vmax.f32 %v5678, %v5686
  %v5823 = vmax.f32 %v5679, %v5687
  %v5824 = vmax.f32 %v5680, %v5688
  %v5825 = vmax.f32 %v5737, %v5745
  %v5826 = vmax.f32 %v5738, %v5746
  %v5827 = vmax.f32 %v5739, %v5747
  %v5828 = vmax.f32 %v5740, %v5748
  %v5829 = vmax.f32 %v5741, %v5749
  %v5830 = vmax.f32 %v5742, %v5750
  %v5831 = vmax.f32 %v5743, %v5751
  %v5832 = vmax.f32 %v5744, %v5752
  %v5833 = vmax.f32 %v5817, %v5818
  %v5834 = vmax.f32 %v5825, %v5826
  %v5835 = vmax.f32 %v5819, %v5820
  %v5836 = vmax.f32 %v5827, %v5828
  %v5837 = vmax.f32 %v5821, %v5822
  %v5838 = vmax.f32 %v5829, %v5830
  %v5839 = vmax.f32 %v5823, %v5824
  %v5840 = vmax.f32 %v5831, %v5832
  %v5841 = vmax.f32 %v5689, %v5697
  %v5842 = vmax.f32 %v5690, %v5698
  %v5843 = vmax.f32 %v5691, %v5699
  %v5844 = vmax.f32 %v5692, %v5700
  %v5845 = vmax.f32 %v5693, %v5701
  %v5846 = vmax.f32 %v5694, %v5702
  %v5847 = vmax.f32 %v5695, %v5703
  %v5848 = vmax.f32 %v5696, %v5704
  %v5849 = vmax.f32 %v5753, %v5761
  %v5850 = vmax.f32 %v5754, %v5762
  %v5851 = vmax.f32 %v5755, %v5763
  %v5852 = vmax.f32 %v5756, %v5764
  %v5853 = vmax.f32 %v5757, %v5765
  %v5854 = vmax.f32 %v5758, %v5766
  %v5855 = vmax.f32 %v5759, %v5767
  %v5856 = vmax.f32 %v5760, %v5768
  %v5857 = vmax.f32 %v5841, %v5842
  %v5858 = vmax.f32 %v5849, %v5850
  %v5859 = vmax.f32 %v5843, %v5844
  %v5860 = vmax.f32 %v5851, %v5852
  %v5861 = vmax.f32 %v5845, %v5846
  %v5862 = vmax.f32 %v5853, %v5854
  %v5863 = vmax.f32 %v5847, %v5848
  %v5864 = vmax.f32 %v5855, %v5856
  %5865 = vst [vmem:[#allocation3] sm:$0xff] 0.0
  %5866 = vst [vmem:[#allocation3 + $0x8] sm:$0xff] 0.0
  %5867 = vst [vmem:[#allocation3 + $0x10] sm:$0xff] 0.0
  %5868 = vst [vmem:[#allocation3 + $0x18] sm:$0xff] 0.0
  %5869 = vst [vmem:[#allocation3 + $0x80] sm:$0xff] 0.0
  %5870 = vst [vmem:[#allocation3 + $0x88] sm:$0xff] 0.0
  %5871 = vst [vmem:[#allocation3 + $0x90] sm:$0xff] 0.0
  %5872 = vst [vmem:[#allocation3 + $0x98] sm:$0xff] 0.0
  %5873 = vst [vmem:[#allocation3 + $0x20] sm:$0xff] 0.0
  %5874 = vst [vmem:[#allocation3 + $0xa0] sm:$0xff] 0.0
  %5875 = vst [vmem:[#allocation3 + $0x28] sm:$0xff] %v5785
  %5876 = vst [vmem:[#allocation3 + $0x30] sm:$0xff] %v5787
  %5877 = vst [vmem:[#allocation3 + $0x38] sm:$0xff] %v5789
  %5878 = vst [vmem:[#allocation3 + $0xa8] sm:$0xff] %v5786
  %5879 = vst [vmem:[#allocation3 + $0xb0] sm:$0xff] %v5788
  %5880 = vst [vmem:[#allocation3 + $0xb8] sm:$0xff] %v5790
  %5881 = vst [vmem:[#allocation3 + $0x40] sm:$0xff] 0.0
  %5882 = vst [vmem:[#allocation3 + $0xc0] sm:$0xff] 0.0
  %5883 = vst [vmem:[#allocation3 + $0x48] sm:$0xff] %v5809
  %5884 = vst [vmem:[#allocation3 + $0x50] sm:$0xff] %v5811
  %5885 = vst [vmem:[#allocation3 + $0x58] sm:$0xff] %v5813
  %5886 = vst [vmem:[#allocation3 + $0xc8] sm:$0xff] %v5810
  %5887 = vst [vmem:[#allocation3 + $0xd0] sm:$0xff] %v5812
  %5888 = vst [vmem:[#allocation3 + $0xd8] sm:$0xff] %v5814
  %5889 = vst [vmem:[#allocation3 + $0x60] sm:$0xff] 0.0
  %5890 = vst [vmem:[#allocation3 + $0xe0] sm:$0xff] 0.0
  %5891 = vst [vmem:[#allocation3 + $0x68] sm:$0xff] %v5833
  %5892 = vst [vmem:[#allocation3 + $0x70] sm:$0xff] %v5835
  %5893 = vst [vmem:[#allocation3 + $0x78] sm:$0xff] %v5837
  %5894 = vst [vmem:[#allocation3 + $0xe8] sm:$0xff] %v5834
  %5895 = vst [vmem:[#allocation3 + $0xf0] sm:$0xff] %v5836
  %5896 = vst [vmem:[#allocation3 + $0xf8] sm:$0xff] %v5838
  %5897 = vst [vmem:[#allocation3 + $0x100] sm:$0xff] 0.0
  %5898 = vst [vmem:[#allocation3 + $0x108] sm:$0xff] 0.0
  %5899 = vst [vmem:[#allocation3 + $0x110] sm:$0xff] 0.0
  %5900 = vst [vmem:[#allocation3 + $0x118] sm:$0xff] 0.0
  %5901 = vst [vmem:[#allocation3 + $0x180] sm:$0xff] 0.0
  %5902 = vst [vmem:[#allocation3 + $0x188] sm:$0xff] 0.0
  %5903 = vst [vmem:[#allocation3 + $0x190] sm:$0xff] 0.0
  %5904 = vst [vmem:[#allocation3 + $0x198] sm:$0xff] 0.0
  %5905 = vst [vmem:[#allocation3 + $0x120] sm:$0xff] %v5785
  %5906 = vst [vmem:[#allocation3 + $0x128] sm:$0xff] %v5787
  %5907 = vst [vmem:[#allocation3 + $0x130] sm:$0xff] %v5789
  %5908 = vst [vmem:[#allocation3 + $0x138] sm:$0xff] %v5791
  %5909 = vst [vmem:[#allocation3 + $0x1a0] sm:$0xff] %v5786
  %5910 = vst [vmem:[#allocation3 + $0x1a8] sm:$0xff] %v5788
  %5911 = vst [vmem:[#allocation3 + $0x1b0] sm:$0xff] %v5790
  %5912 = vst [vmem:[#allocation3 + $0x1b8] sm:$0xff] %v5792
  %5913 = vst [vmem:[#allocation3 + $0x140] sm:$0xff] %v5809
  %5914 = vst [vmem:[#allocation3 + $0x148] sm:$0xff] %v5811
  %5915 = vst [vmem:[#allocation3 + $0x150] sm:$0xff] %v5813
  %5916 = vst [vmem:[#allocation3 + $0x158] sm:$0xff] %v5815
  %5917 = vst [vmem:[#allocation3 + $0x1c0] sm:$0xff] %v5810
  %5918 = vst [vmem:[#allocation3 + $0x1c8] sm:$0xff] %v5812
  %5919 = vst [vmem:[#allocation3 + $0x1d0] sm:$0xff] %v5814
  %5920 = vst [vmem:[#allocation3 + $0x1d8] sm:$0xff] %v5816
  %5921 = vst [vmem:[#allocation3 + $0x160] sm:$0xff] %v5833
  %5922 = vst [vmem:[#allocation3 + $0x168] sm:$0xff] %v5835
  %5923 = vst [vmem:[#allocation3 + $0x170] sm:$0xff] %v5837
  %5924 = vst [vmem:[#allocation3 + $0x178] sm:$0xff] %v5839
  %5925 = vst [vmem:[#allocation3 + $0x1e0] sm:$0xff] %v5834
  %5926 = vst [vmem:[#allocation3 + $0x1e8] sm:$0xff] %v5836
  %5927 = vst [vmem:[#allocation3 + $0x1f0] sm:$0xff] %v5838
  %5928 = vst [vmem:[#allocation3 + $0x1f8] sm:$0xff] %v5840
  %5929 = vst [vmem:[#allocation3 + $0x200] sm:$0xff] 0.0
  %5930 = vst [vmem:[#allocation3 + $0x208] sm:$0xff] 0.0
  %5931 = vst [vmem:[#allocation3 + $0x210] sm:$0xff] 0.0
  %5932 = vst [vmem:[#allocation3 + $0x218] sm:$0xff] 0.0
  %5933 = vst [vmem:[#allocation3 + $0x280] sm:$0xff] 0.0
  %5934 = vst [vmem:[#allocation3 + $0x288] sm:$0xff] 0.0
  %5935 = vst [vmem:[#allocation3 + $0x290] sm:$0xff] 0.0
  %5936 = vst [vmem:[#allocation3 + $0x298] sm:$0xff] 0.0
  %5937 = vst [vmem:[#allocation3 + $0x220] sm:$0xff] %v5787
  %5938 = vst [vmem:[#allocation3 + $0x228] sm:$0xff] %v5789
  %5939 = vst [vmem:[#allocation3 + $0x230] sm:$0xff] %v5791
  %5940 = vst [vmem:[#allocation3 + $0x2a0] sm:$0xff] %v5788
  %5941 = vst [vmem:[#allocation3 + $0x2a8] sm:$0xff] %v5790
  %5942 = vst [vmem:[#allocation3 + $0x2b0] sm:$0xff] %v5792
  %5943 = vst [vmem:[#allocation3 + $0x238] sm:$0xff] 0.0
  %5944 = vst [vmem:[#allocation3 + $0x2b8] sm:$0xff] 0.0
  %5945 = vst [vmem:[#allocation3 + $0x240] sm:$0xff] %v5811
  %5946 = vst [vmem:[#allocation3 + $0x248] sm:$0xff] %v5813
  %5947 = vst [vmem:[#allocation3 + $0x250] sm:$0xff] %v5815
  %5948 = vst [vmem:[#allocation3 + $0x2c0] sm:$0xff] %v5812
  %5949 = vst [vmem:[#allocation3 + $0x2c8] sm:$0xff] %v5814
  %5950 = vst [vmem:[#allocation3 + $0x2d0] sm:$0xff] %v5816
  %5951 = vst [vmem:[#allocation3 + $0x258] sm:$0xff] 0.0
  %5952 = vst [vmem:[#allocation3 + $0x2d8] sm:$0xff] 0.0
  %5953 = vst [vmem:[#allocation3 + $0x260] sm:$0xff] %v5835
  %5954 = vst [vmem:[#allocation3 + $0x268] sm:$0xff] %v5837
  %5955 = vst [vmem:[#allocation3 + $0x270] sm:$0xff] %v5839
  %5956 = vst [vmem:[#allocation3 + $0x2e0] sm:$0xff] %v5836
  %5957 = vst [vmem:[#allocation3 + $0x2e8] sm:$0xff] %v5838
  %5958 = vst [vmem:[#allocation3 + $0x2f0] sm:$0xff] %v5840
  %5959 = vst [vmem:[#allocation3 + $0x278] sm:$0xff] 0.0
  %5960 = vst [vmem:[#allocation3 + $0x2f8] sm:$0xff] 0.0
  %5961 = vst [vmem:[#allocation3 + $0x300] sm:$0xff] 0.0
  %5962 = vst [vmem:[#allocation3 + $0x380] sm:$0xff] 0.0
  %5963 = vst [vmem:[#allocation3 + $0x308] sm:$0xff] %v5785
  %5964 = vst [vmem:[#allocation3 + $0x310] sm:$0xff] %v5787
  %5965 = vst [vmem:[#allocation3 + $0x318] sm:$0xff] %v5789
  %5966 = vst [vmem:[#allocation3 + $0x388] sm:$0xff] %v5786
  %5967 = vst [vmem:[#allocation3 + $0x390] sm:$0xff] %v5788
  %5968 = vst [vmem:[#allocation3 + $0x398] sm:$0xff] %v5790
  %5969 = vst [vmem:[#allocation3 + $0x320] sm:$0xff] 0.0
  %5970 = vst [vmem:[#allocation3 + $0x3a0] sm:$0xff] 0.0
  %5971 = vst [vmem:[#allocation3 + $0x328] sm:$0xff] %v5809
  %5972 = vst [vmem:[#allocation3 + $0x330] sm:$0xff] %v5811
  %5973 = vst [vmem:[#allocation3 + $0x338] sm:$0xff] %v5813
  %5974 = vst [vmem:[#allocation3 + $0x3a8] sm:$0xff] %v5810
  %5975 = vst [vmem:[#allocation3 + $0x3b0] sm:$0xff] %v5812
  %5976 = vst [vmem:[#allocation3 + $0x3b8] sm:$0xff] %v5814
  %5977 = vst [vmem:[#allocation3 + $0x340] sm:$0xff] 0.0
  %5978 = vst [vmem:[#allocation3 + $0x3c0] sm:$0xff] 0.0
  %5979 = vst [vmem:[#allocation3 + $0x348] sm:$0xff] %v5833
  %5980 = vst [vmem:[#allocation3 + $0x350] sm:$0xff] %v5835
  %5981 = vst [vmem:[#allocation3 + $0x358] sm:$0xff] %v5837
  %5982 = vst [vmem:[#allocation3 + $0x3c8] sm:$0xff] %v5834
  %5983 = vst [vmem:[#allocation3 + $0x3d0] sm:$0xff] %v5836
  %5984 = vst [vmem:[#allocation3 + $0x3d8] sm:$0xff] %v5838
  %5985 = vst [vmem:[#allocation3 + $0x360] sm:$0xff] 0.0
  %5986 = vst [vmem:[#allocation3 + $0x3e0] sm:$0xff] 0.0
  %5987 = vst [vmem:[#allocation3 + $0x368] sm:$0xff] %v5857
  %5988 = vst [vmem:[#allocation3 + $0x370] sm:$0xff] %v5859
  %5989 = vst [vmem:[#allocation3 + $0x378] sm:$0xff] %v5861
  %5990 = vst [vmem:[#allocation3 + $0x3e8] sm:$0xff] %v5858
  %5991 = vst [vmem:[#allocation3 + $0x3f0] sm:$0xff] %v5860
  %5992 = vst [vmem:[#allocation3 + $0x3f8] sm:$0xff] %v5862
  %5993 = vst [vmem:[#allocation3 + $0x400] sm:$0xff] %v5785
  %5994 = vst [vmem:[#allocation3 + $0x408] sm:$0xff] %v5787
  %5995 = vst [vmem:[#allocation3 + $0x410] sm:$0xff] %v5789
  %5996 = vst [vmem:[#allocation3 + $0x418] sm:$0xff] %v5791
  %5997 = vst [vmem:[#allocation3 + $0x480] sm:$0xff] %v5786
  %5998 = vst [vmem:[#allocation3 + $0x488] sm:$0xff] %v5788
  %5999 = vst [vmem:[#allocation3 + $0x490] sm:$0xff] %v5790
  %6000 = vst [vmem:[#allocation3 + $0x498] sm:$0xff] %v5792
  %6001 = vst [vmem:[#allocation3 + $0x420] sm:$0xff] %v5809
  %6002 = vst [vmem:[#allocation3 + $0x428] sm:$0xff] %v5811
  %6003 = vst [vmem:[#allocation3 + $0x430] sm:$0xff] %v5813
  %6004 = vst [vmem:[#allocation3 + $0x438] sm:$0xff] %v5815
  %6005 = vst [vmem:[#allocation3 + $0x4a0] sm:$0xff] %v5810
  %6006 = vst [vmem:[#allocation3 + $0x4a8] sm:$0xff] %v5812
  %6007 = vst [vmem:[#allocation3 + $0x4b0] sm:$0xff] %v5814
  %6008 = vst [vmem:[#allocation3 + $0x4b8] sm:$0xff] %v5816
  %6009 = vst [vmem:[#allocation3 + $0x440] sm:$0xff] %v5833
  %6010 = vst [vmem:[#allocation3 + $0x448] sm:$0xff] %v5835
  %6011 = vst [vmem:[#allocation3 + $0x450] sm:$0xff] %v5837
  %6012 = vst [vmem:[#allocation3 + $0x458] sm:$0xff] %v5839
  %6013 = vst [vmem:[#allocation3 + $0x4c0] sm:$0xff] %v5834
  %6014 = vst [vmem:[#allocation3 + $0x4c8] sm:$0xff] %v5836
  %6015 = vst [vmem:[#allocation3 + $0x4d0] sm:$0xff] %v5838
  %6016 = vst [vmem:[#allocation3 + $0x4d8] sm:$0xff] %v5840
  %6017 = vst [vmem:[#allocation3 + $0x460] sm:$0xff] %v5857
  %6018 = vst [vmem:[#allocation3 + $0x468] sm:$0xff] %v5859
  %6019 = vst [vmem:[#allocation3 + $0x470] sm:$0xff] %v5861
  %6020 = vst [vmem:[#allocation3 + $0x478] sm:$0xff] %v5863
  %6021 = vst [vmem:[#allocation3 + $0x4e0] sm:$0xff] %v5858
  %6022 = vst [vmem:[#allocation3 + $0x4e8] sm:$0xff] %v5860
  %6023 = vst [vmem:[#allocation3 + $0x4f0] sm:$0xff] %v5862
  %6024 = vst [vmem:[#allocation3 + $0x4f8] sm:$0xff] %v5864
  %6025 = vst [vmem:[#allocation3 + $0x500] sm:$0xff] %v5787
  %6026 = vst [vmem:[#allocation3 + $0x508] sm:$0xff] %v5789
  %6027 = vst [vmem:[#allocation3 + $0x510] sm:$0xff] %v5791
  %6028 = vst [vmem:[#allocation3 + $0x580] sm:$0xff] %v5788
  %6029 = vst [vmem:[#allocation3 + $0x588] sm:$0xff] %v5790
  %6030 = vst [vmem:[#allocation3 + $0x590] sm:$0xff] %v5792
  %6031 = vst [vmem:[#allocation3 + $0x518] sm:$0xff] 0.0
  %6032 = vst [vmem:[#allocation3 + $0x598] sm:$0xff] 0.0
  %6033 = vst [vmem:[#allocation3 + $0x520] sm:$0xff] %v5811
  %6034 = vst [vmem:[#allocation3 + $0x528] sm:$0xff] %v5813
  %6035 = vst [vmem:[#allocation3 + $0x530] sm:$0xff] %v5815
  %6036 = vst [vmem:[#allocation3 + $0x5a0] sm:$0xff] %v5812
  %6037 = vst [vmem:[#allocation3 + $0x5a8] sm:$0xff] %v5814
  %6038 = vst [vmem:[#allocation3 + $0x5b0] sm:$0xff] %v5816
  %6039 = vst [vmem:[#allocation3 + $0x538] sm:$0xff] 0.0
  %6040 = vst [vmem:[#allocation3 + $0x5b8] sm:$0xff] 0.0
  %6041 = vst [vmem:[#allocation3 + $0x540] sm:$0xff] %v5835
  %6042 = vst [vmem:[#allocation3 + $0x548] sm:$0xff] %v5837
  %6043 = vst [vmem:[#allocation3 + $0x550] sm:$0xff] %v5839
  %6044 = vst [vmem:[#allocation3 + $0x5c0] sm:$0xff] %v5836
  %6045 = vst [vmem:[#allocation3 + $0x5c8] sm:$0xff] %v5838
  %6046 = vst [vmem:[#allocation3 + $0x5d0] sm:$0xff] %v5840
  %6047 = vst [vmem:[#allocation3 + $0x558] sm:$0xff] 0.0
  %6048 = vst [vmem:[#allocation3 + $0x5d8] sm:$0xff] 0.0
  %6049 = vst [vmem:[#allocation3 + $0x560] sm:$0xff] %v5859
  %6050 = vst [vmem:[#allocation3 + $0x568] sm:$0xff] %v5861
  %6051 = vst [vmem:[#allocation3 + $0x570] sm:$0xff] %v5863
  %6052 = vst [vmem:[#allocation3 + $0x5e0] sm:$0xff] %v5860
  %6053 = vst [vmem:[#allocation3 + $0x5e8] sm:$0xff] %v5862
  %6054 = vst [vmem:[#allocation3 + $0x5f0] sm:$0xff] %v5864
  %6055 = vst [vmem:[#allocation3 + $0x578] sm:$0xff] 0.0
  %6056 = vst [vmem:[#allocation3 + $0x5f8] sm:$0xff] 0.0
  %6057 = vst [vmem:[#allocation3 + $0x600] sm:$0xff] 0.0
  %6058 = vst [vmem:[#allocation3 + $0x680] sm:$0xff] 0.0
  %6059 = vst [vmem:[#allocation3 + $0x608] sm:$0xff] %v5809
  %6060 = vst [vmem:[#allocation3 + $0x610] sm:$0xff] %v5811
  %6061 = vst [vmem:[#allocation3 + $0x618] sm:$0xff] %v5813
  %6062 = vst [vmem:[#allocation3 + $0x688] sm:$0xff] %v5810
  %6063 = vst [vmem:[#allocation3 + $0x690] sm:$0xff] %v5812
  %6064 = vst [vmem:[#allocation3 + $0x698] sm:$0xff] %v5814
  %6065 = vst [vmem:[#allocation3 + $0x620] sm:$0xff] 0.0
  %6066 = vst [vmem:[#allocation3 + $0x6a0] sm:$0xff] 0.0
  %6067 = vst [vmem:[#allocation3 + $0x628] sm:$0xff] %v5833
  %6068 = vst [vmem:[#allocation3 + $0x630] sm:$0xff] %v5835
  %6069 = vst [vmem:[#allocation3 + $0x638] sm:$0xff] %v5837
  %6070 = vst [vmem:[#allocation3 + $0x6a8] sm:$0xff] %v5834
  %6071 = vst [vmem:[#allocation3 + $0x6b0] sm:$0xff] %v5836
  %6072 = vst [vmem:[#allocation3 + $0x6b8] sm:$0xff] %v5838
  %6073 = vst [vmem:[#allocation3 + $0x640] sm:$0xff] 0.0
  %6074 = vst [vmem:[#allocation3 + $0x6c0] sm:$0xff] 0.0
  %6075 = vst [vmem:[#allocation3 + $0x648] sm:$0xff] %v5857
  %6076 = vst [vmem:[#allocation3 + $0x650] sm:$0xff] %v5859
  %6077 = vst [vmem:[#allocation3 + $0x658] sm:$0xff] %v5861
  %6078 = vst [vmem:[#allocation3 + $0x6c8] sm:$0xff] %v5858
  %6079 = vst [vmem:[#allocation3 + $0x6d0] sm:$0xff] %v5860
  %6080 = vst [vmem:[#allocation3 + $0x6d8] sm:$0xff] %v5862
  %6081 = vst [vmem:[#allocation3 + $0x660] sm:$0xff] 0.0
  %6082 = vst [vmem:[#allocation3 + $0x668] sm:$0xff] 0.0
  %6083 = vst [vmem:[#allocation3 + $0x670] sm:$0xff] 0.0
  %6084 = vst [vmem:[#allocation3 + $0x678] sm:$0xff] 0.0
  %6085 = vst [vmem:[#allocation3 + $0x6e0] sm:$0xff] 0.0
  %6086 = vst [vmem:[#allocation3 + $0x6e8] sm:$0xff] 0.0
  %6087 = vst [vmem:[#allocation3 + $0x6f0] sm:$0xff] 0.0
  %6088 = vst [vmem:[#allocation3 + $0x6f8] sm:$0xff] 0.0
  %6089 = vst [vmem:[#allocation3 + $0x700] sm:$0xff] %v5809
  %6090 = vst [vmem:[#allocation3 + $0x708] sm:$0xff] %v5811
  %6091 = vst [vmem:[#allocation3 + $0x710] sm:$0xff] %v5813
  %6092 = vst [vmem:[#allocation3 + $0x718] sm:$0xff] %v5815
  %6093 = vst [vmem:[#allocation3 + $0x780] sm:$0xff] %v5810
  %6094 = vst [vmem:[#allocation3 + $0x788] sm:$0xff] %v5812
  %6095 = vst [vmem:[#allocation3 + $0x790] sm:$0xff] %v5814
  %6096 = vst [vmem:[#allocation3 + $0x798] sm:$0xff] %v5816
  %6097 = vst [vmem:[#allocation3 + $0x720] sm:$0xff] %v5833
  %6098 = vst [vmem:[#allocation3 + $0x728] sm:$0xff] %v5835
  %6099 = vst [vmem:[#allocation3 + $0x730] sm:$0xff] %v5837
  %6100 = vst [vmem:[#allocation3 + $0x738] sm:$0xff] %v5839
  %6101 = vst [vmem:[#allocation3 + $0x7a0] sm:$0xff] %v5834
  %6102 = vst [vmem:[#allocation3 + $0x7a8] sm:$0xff] %v5836
  %6103 = vst [vmem:[#allocation3 + $0x7b0] sm:$0xff] %v5838
  %6104 = vst [vmem:[#allocation3 + $0x7b8] sm:$0xff] %v5840
  %6105 = vst [vmem:[#allocation3 + $0x740] sm:$0xff] %v5857
  %6106 = vst [vmem:[#allocation3 + $0x748] sm:$0xff] %v5859
  %6107 = vst [vmem:[#allocation3 + $0x750] sm:$0xff] %v5861
  %6108 = vst [vmem:[#allocation3 + $0x758] sm:$0xff] %v5863
  %6109 = vst [vmem:[#allocation3 + $0x7c0] sm:$0xff] %v5858
  %6110 = vst [vmem:[#allocation3 + $0x7c8] sm:$0xff] %v5860
  %6111 = vst [vmem:[#allocation3 + $0x7d0] sm:$0xff] %v5862
  %6112 = vst [vmem:[#allocation3 + $0x7d8] sm:$0xff] %v5864
  %6113 = vst [vmem:[#allocation3 + $0x760] sm:$0xff] 0.0
  %6114 = vst [vmem:[#allocation3 + $0x768] sm:$0xff] 0.0
  %6115 = vst [vmem:[#allocation3 + $0x770] sm:$0xff] 0.0
  %6116 = vst [vmem:[#allocation3 + $0x778] sm:$0xff] 0.0
  %6117 = vst [vmem:[#allocation3 + $0x7e0] sm:$0xff] 0.0
  %6118 = vst [vmem:[#allocation3 + $0x7e8] sm:$0xff] 0.0
  %6119 = vst [vmem:[#allocation3 + $0x7f0] sm:$0xff] 0.0
  %6120 = vst [vmem:[#allocation3 + $0x7f8] sm:$0xff] 0.0
  %6121 = vst [vmem:[#allocation3 + $0x800] sm:$0xff] %v5811
  %6122 = vst [vmem:[#allocation3 + $0x808] sm:$0xff] %v5813
  %6123 = vst [vmem:[#allocation3 + $0x810] sm:$0xff] %v5815
  %6124 = vst [vmem:[#allocation3 + $0x880] sm:$0xff] %v5812
  %6125 = vst [vmem:[#allocation3 + $0x888] sm:$0xff] %v5814
  %6126 = vst [vmem:[#allocation3 + $0x890] sm:$0xff] %v5816
  %6127 = vst [vmem:[#allocation3 + $0x818] sm:$0xff] 0.0
  %6128 = vst [vmem:[#allocation3 + $0x898] sm:$0xff] 0.0
  %6129 = vst [vmem:[#allocation3 + $0x820] sm:$0xff] %v5835
  %6130 = vst [vmem:[#allocation3 + $0x828] sm:$0xff] %v5837
  %6131 = vst [vmem:[#allocation3 + $0x830] sm:$0xff] %v5839
  %6132 = vst [vmem:[#allocation3 + $0x8a0] sm:$0xff] %v5836
  %6133 = vst [vmem:[#allocation3 + $0x8a8] sm:$0xff] %v5838
  %6134 = vst [vmem:[#allocation3 + $0x8b0] sm:$0xff] %v5840
  %6135 = vst [vmem:[#allocation3 + $0x838] sm:$0xff] 0.0
  %6136 = vst [vmem:[#allocation3 + $0x8b8] sm:$0xff] 0.0
  %6137 = vst [vmem:[#allocation3 + $0x840] sm:$0xff] %v5859
  %6138 = vst [vmem:[#allocation3 + $0x848] sm:$0xff] %v5861
  %6139 = vst [vmem:[#allocation3 + $0x850] sm:$0xff] %v5863
  %6140 = vst [vmem:[#allocation3 + $0x8c0] sm:$0xff] %v5860
  %6141 = vst [vmem:[#allocation3 + $0x8c8] sm:$0xff] %v5862
  %6142 = vst [vmem:[#allocation3 + $0x8d0] sm:$0xff] %v5864
  %6143 = vst [vmem:[#allocation3 + $0x858] sm:$0xff] 0.0
  %6144 = vst [vmem:[#allocation3 + $0x8d8] sm:$0xff] 0.0
  %6145 = vst [vmem:[#allocation3 + $0x860] sm:$0xff] 0.0
  %6146 = vst [vmem:[#allocation3 + $0x868] sm:$0xff] 0.0
  %6147 = vst [vmem:[#allocation3 + $0x870] sm:$0xff] 0.0
  %6148 = vst [vmem:[#allocation3 + $0x878] sm:$0xff] 0.0
  %6149 = vst [vmem:[#allocation3 + $0x8e0] sm:$0xff] 0.0
  %6150 = vst [vmem:[#allocation3 + $0x8e8] sm:$0xff] 0.0
  %6151 = vst [vmem:[#allocation3 + $0x8f0] sm:$0xff] 0.0
  %6152 = vst [vmem:[#allocation3 + $0x8f8] sm:$0xff] 0.0
  %v6153 = vld [vmem:[%s3] sm:$0xff]
  %v6154 = vld [vmem:[#allocation3] sm:$0xff]
  %v6155 = vld [vmem:[#allocation3 + $0x8] sm:$0xff]
  %v6156 = vld [vmem:[#allocation3 + $0x10] sm:$0xff]
  %v6157 = vld [vmem:[#allocation3 + $0x18] sm:$0xff]
  %v6158 = vld [vmem:[#allocation3 + $0x20] sm:$0xff]
  %v6159 = vld [vmem:[#allocation3 + $0x28] sm:$0xff]
  %v6160 = vld [vmem:[#allocation3 + $0x30] sm:$0xff]
  %v6161 = vld [vmem:[#allocation3 + $0x38] sm:$0xff]
  %v6162 = vld [vmem:[#allocation3 + $0x40] sm:$0xff]
  %v6163 = vld [vmem:[#allocation3 + $0x48] sm:$0xff]
  %v6164 = vld [vmem:[#allocation3 + $0x50] sm:$0xff]
  %v6165 = vld [vmem:[#allocation3 + $0x58] sm:$0xff]
  %v6166 = vld [vmem:[#allocation3 + $0x60] sm:$0xff]
  %v6167 = vld [vmem:[#allocation3 + $0x68] sm:$0xff]
  %v6168 = vld [vmem:[#allocation3 + $0x70] sm:$0xff]
  %v6169 = vld [vmem:[#allocation3 + $0x78] sm:$0xff]
  %v6170 = vld [vmem:[#allocation3 + $0x80] sm:$0xff]
  %v6171 = vld [vmem:[#allocation3 + $0x88] sm:$0xff]
  %v6172 = vld [vmem:[#allocation3 + $0x90] sm:$0xff]
  %v6173 = vld [vmem:[#allocation3 + $0x98] sm:$0xff]
  %v6174 = vld [vmem:[#allocation3 + $0xa0] sm:$0xff]
  %v6175 = vld [vmem:[#allocation3 + $0xa8] sm:$0xff]
  %v6176 = vld [vmem:[#allocation3 + $0xb0] sm:$0xff]
  %v6177 = vld [vmem:[#allocation3 + $0xb8] sm:$0xff]
  %v6178 = vld [vmem:[#allocation3 + $0xc0] sm:$0xff]
  %v6179 = vld [vmem:[#allocation3 + $0xc8] sm:$0xff]
  %v6180 = vld [vmem:[#allocation3 + $0xd0] sm:$0xff]
  %v6181 = vld [vmem:[#allocation3 + $0xd8] sm:$0xff]
  %v6182 = vld [vmem:[#allocation3 + $0xe0] sm:$0xff]
  %v6183 = vld [vmem:[#allocation3 + $0xe8] sm:$0xff]
  %v6184 = vld [vmem:[#allocation3 + $0xf0] sm:$0xff]
  %v6185 = vld [vmem:[#allocation3 + $0xf8] sm:$0xff]
  %v6186 = vld [vmem:[#allocation3 + $0x100] sm:$0xff]
  %v6187 = vld [vmem:[#allocation3 + $0x108] sm:$0xff]
  %v6188 = vld [vmem:[#allocation3 + $0x110] sm:$0xff]
  %v6189 = vld [vmem:[#allocation3 + $0x118] sm:$0xff]
  %v6190 = vld [vmem:[#allocation3 + $0x120] sm:$0xff]
  %v6191 = vld [vmem:[#allocation3 + $0x128] sm:$0xff]
  %v6192 = vld [vmem:[#allocation3 + $0x130] sm:$0xff]
  %v6193 = vld [vmem:[#allocation3 + $0x138] sm:$0xff]
  %v6194 = vld [vmem:[#allocation3 + $0x140] sm:$0xff]
  %v6195 = vld [vmem:[#allocation3 + $0x148] sm:$0xff]
  %v6196 = vld [vmem:[#allocation3 + $0x150] sm:$0xff]
  %v6197 = vld [vmem:[#allocation3 + $0x158] sm:$0xff]
  %v6198 = vld [vmem:[#allocation3 + $0x160] sm:$0xff]
  %v6199 = vld [vmem:[#allocation3 + $0x168] sm:$0xff]
  %v6200 = vld [vmem:[#allocation3 + $0x170] sm:$0xff]
  %v6201 = vld [vmem:[#allocation3 + $0x178] sm:$0xff]
  %v6202 = vld [vmem:[#allocation3 + $0x180] sm:$0xff]
  %v6203 = vld [vmem:[#allocation3 + $0x188] sm:$0xff]
  %v6204 = vld [vmem:[#allocation3 + $0x190] sm:$0xff]
  %v6205 = vld [vmem:[#allocation3 + $0x198] sm:$0xff]
  %v6206 = vld [vmem:[#allocation3 + $0x1a0] sm:$0xff]
  %v6207 = vld [vmem:[#allocation3 + $0x1a8] sm:$0xff]
  %v6208 = vld [vmem:[#allocation3 + $0x1b0] sm:$0xff]
  %v6209 = vld [vmem:[#allocation3 + $0x1b8] sm:$0xff]
  %v6210 = vld [vmem:[#allocation3 + $0x1c0] sm:$0xff]
  %v6211 = vld [vmem:[#allocation3 + $0x1c8] sm:$0xff]
  %v6212 = vld [vmem:[#allocation3 + $0x1d0] sm:$0xff]
  %v6213 = vld [vmem:[#allocation3 + $0x1d8] sm:$0xff]
  %v6214 = vld [vmem:[#allocation3 + $0x1e0] sm:$0xff]
  %v6215 = vld [vmem:[#allocation3 + $0x1e8] sm:$0xff]
  %v6216 = vld [vmem:[#allocation3 + $0x1f0] sm:$0xff]
  %v6217 = vld [vmem:[#allocation3 + $0x1f8] sm:$0xff]
  %v6218 = vld [vmem:[#allocation3 + $0x200] sm:$0xff]
  %v6219 = vld [vmem:[#allocation3 + $0x208] sm:$0xff]
  %v6220 = vld [vmem:[#allocation3 + $0x210] sm:$0xff]
  %v6221 = vld [vmem:[#allocation3 + $0x218] sm:$0xff]
  %v6222 = vld [vmem:[#allocation3 + $0x220] sm:$0xff]
  %v6223 = vld [vmem:[#allocation3 + $0x228] sm:$0xff]
  %v6224 = vld [vmem:[#allocation3 + $0x230] sm:$0xff]
  %v6225 = vld [vmem:[#allocation3 + $0x238] sm:$0xff]
  %v6226 = vld [vmem:[#allocation3 + $0x240] sm:$0xff]
  %v6227 = vld [vmem:[#allocation3 + $0x248] sm:$0xff]
  %v6228 = vld [vmem:[#allocation3 + $0x250] sm:$0xff]
  %v6229 = vld [vmem:[#allocation3 + $0x258] sm:$0xff]
  %v6230 = vld [vmem:[#allocation3 + $0x260] sm:$0xff]
  %v6231 = vld [vmem:[#allocation3 + $0x268] sm:$0xff]
  %v6232 = vld [vmem:[#allocation3 + $0x270] sm:$0xff]
  %v6233 = vld [vmem:[#allocation3 + $0x278] sm:$0xff]
  %v6234 = vld [vmem:[#allocation3 + $0x280] sm:$0xff]
  %v6235 = vld [vmem:[#allocation3 + $0x288] sm:$0xff]
  %v6236 = vld [vmem:[#allocation3 + $0x290] sm:$0xff]
  %v6237 = vld [vmem:[#allocation3 + $0x298] sm:$0xff]
  %v6238 = vld [vmem:[#allocation3 + $0x2a0] sm:$0xff]
  %v6239 = vld [vmem:[#allocation3 + $0x2a8] sm:$0xff]
  %v6240 = vld [vmem:[#allocation3 + $0x2b0] sm:$0xff]
  %v6241 = vld [vmem:[#allocation3 + $0x2b8] sm:$0xff]
  %v6242 = vld [vmem:[#allocation3 + $0x2c0] sm:$0xff]
  %v6243 = vld [vmem:[#allocation3 + $0x2c8] sm:$0xff]
  %v6244 = vld [vmem:[#allocation3 + $0x2d0] sm:$0xff]
  %v6245 = vld [vmem:[#allocation3 + $0x2d8] sm:$0xff]
  %v6246 = vld [vmem:[#allocation3 + $0x2e0] sm:$0xff]
  %v6247 = vld [vmem:[#allocation3 + $0x2e8] sm:$0xff]
  %v6248 = vld [vmem:[#allocation3 + $0x2f0] sm:$0xff]
  %v6249 = vld [vmem:[#allocation3 + $0x2f8] sm:$0xff]
  %v6250 = vld [vmem:[#allocation3 + $0x300] sm:$0xff]
  %v6251 = vld [vmem:[#allocation3 + $0x308] sm:$0xff]
  %v6252 = vld [vmem:[#allocation3 + $0x310] sm:$0xff]
  %v6253 = vld [vmem:[#allocation3 + $0x318] sm:$0xff]
  %v6254 = vld [vmem:[#allocation3 + $0x320] sm:$0xff]
  %v6255 = vld [vmem:[#allocation3 + $0x328] sm:$0xff]
  %v6256 = vld [vmem:[#allocation3 + $0x330] sm:$0xff]
  %v6257 = vld [vmem:[#allocation3 + $0x338] sm:$0xff]
  %v6258 = vld [vmem:[#allocation3 + $0x340] sm:$0xff]
  %v6259 = vld [vmem:[#allocation3 + $0x348] sm:$0xff]
  %v6260 = vld [vmem:[#allocation3 + $0x350] sm:$0xff]
  %v6261 = vld [vmem:[#allocation3 + $0x358] sm:$0xff]
  %v6262 = vld [vmem:[#allocation3 + $0x360] sm:$0xff]
  %v6263 = vld [vmem:[#allocation3 + $0x368] sm:$0xff]
  %v6264 = vld [vmem:[#allocation3 + $0x370] sm:$0xff]
  %v6265 = vld [vmem:[#allocation3 + $0x378] sm:$0xff]
  %v6266 = vld [vmem:[#allocation3 + $0x380] sm:$0xff]
  %v6267 = vld [vmem:[#allocation3 + $0x388] sm:$0xff]
  %v6268 = vld [vmem:[#allocation3 + $0x390] sm:$0xff]
  %v6269 = vld [vmem:[#allocation3 + $0x398] sm:$0xff]
  %v6270 = vld [vmem:[#allocation3 + $0x3a0] sm:$0xff]
  %v6271 = vld [vmem:[#allocation3 + $0x3a8] sm:$0xff]
  %v6272 = vld [vmem:[#allocation3 + $0x3b0] sm:$0xff]
  %v6273 = vld [vmem:[#allocation3 + $0x3b8] sm:$0xff]
  %v6274 = vld [vmem:[#allocation3 + $0x3c0] sm:$0xff]
  %v6275 = vld [vmem:[#allocation3 + $0x3c8] sm:$0xff]
  %v6276 = vld [vmem:[#allocation3 + $0x3d0] sm:$0xff]
  %v6277 = vld [vmem:[#allocation3 + $0x3d8] sm:$0xff]
  %v6278 = vld [vmem:[#allocation3 + $0x3e0] sm:$0xff]
  %v6279 = vld [vmem:[#allocation3 + $0x3e8] sm:$0xff]
  %v6280 = vld [vmem:[#allocation3 + $0x3f0] sm:$0xff]
  %v6281 = vld [vmem:[#allocation3 + $0x3f8] sm:$0xff]
  %v6282 = vld [vmem:[#allocation3 + $0x400] sm:$0xff]
  %v6283 = vld [vmem:[#allocation3 + $0x408] sm:$0xff]
  %v6284 = vld [vmem:[#allocation3 + $0x410] sm:$0xff]
  %v6285 = vld [vmem:[#allocation3 + $0x418] sm:$0xff]
  %v6286 = vld [vmem:[#allocation3 + $0x420] sm:$0xff]
  %v6287 = vld [vmem:[#allocation3 + $0x428] sm:$0xff]
  %v6288 = vld [vmem:[#allocation3 + $0x430] sm:$0xff]
  %v6289 = vld [vmem:[#allocation3 + $0x438] sm:$0xff]
  %v6290 = vld [vmem:[#allocation3 + $0x440] sm:$0xff]
  %v6291 = vld [vmem:[#allocation3 + $0x448] sm:$0xff]
  %v6292 = vld [vmem:[#allocation3 + $0x450] sm:$0xff]
  %v6293 = vld [vmem:[#allocation3 + $0x458] sm:$0xff]
  %v6294 = vld [vmem:[#allocation3 + $0x460] sm:$0xff]
  %v6295 = vld [vmem:[#allocation3 + $0x468] sm:$0xff]
  %v6296 = vld [vmem:[#allocation3 + $0x470] sm:$0xff]
  %v6297 = vld [vmem:[#allocation3 + $0x478] sm:$0xff]
  %v6298 = vld [vmem:[#allocation3 + $0x480] sm:$0xff]
  %v6299 = vld [vmem:[#allocation3 + $0x488] sm:$0xff]
  %v6300 = vld [vmem:[#allocation3 + $0x490] sm:$0xff]
  %v6301 = vld [vmem:[#allocation3 + $0x498] sm:$0xff]
  %v6302 = vld [vmem:[#allocation3 + $0x4a0] sm:$0xff]
  %v6303 = vld [vmem:[#allocation3 + $0x4a8] sm:$0xff]
  %v6304 = vld [vmem:[#allocation3 + $0x4b0] sm:$0xff]
  %v6305 = vld [vmem:[#allocation3 + $0x4b8] sm:$0xff]
  %v6306 = vld [vmem:[#allocation3 + $0x4c0] sm:$0xff]
  %v6307 = vld [vmem:[#allocation3 + $0x4c8] sm:$0xff]
  %v6308 = vld [vmem:[#allocation3 + $0x4d0] sm:$0xff]
  %v6309 = vld [vmem:[#allocation3 + $0x4d8] sm:$0xff]
  %v6310 = vld [vmem:[#allocation3 + $0x4e0] sm:$0xff]
  %v6311 = vld [vmem:[#allocation3 + $0x4e8] sm:$0xff]
  %v6312 = vld [vmem:[#allocation3 + $0x4f0] sm:$0xff]
  %v6313 = vld [vmem:[#allocation3 + $0x4f8] sm:$0xff]
  %v6314 = vld [vmem:[#allocation3 + $0x500] sm:$0xff]
  %v6315 = vld [vmem:[#allocation3 + $0x508] sm:$0xff]
  %v6316 = vld [vmem:[#allocation3 + $0x510] sm:$0xff]
  %v6317 = vld [vmem:[#allocation3 + $0x518] sm:$0xff]
  %v6318 = vld [vmem:[#allocation3 + $0x520] sm:$0xff]
  %v6319 = vld [vmem:[#allocation3 + $0x528] sm:$0xff]
  %v6320 = vld [vmem:[#allocation3 + $0x530] sm:$0xff]
  %v6321 = vld [vmem:[#allocation3 + $0x538] sm:$0xff]
  %v6322 = vld [vmem:[#allocation3 + $0x540] sm:$0xff]
  %v6323 = vld [vmem:[#allocation3 + $0x548] sm:$0xff]
  %v6324 = vld [vmem:[#allocation3 + $0x550] sm:$0xff]
  %v6325 = vld [vmem:[#allocation3 + $0x558] sm:$0xff]
  %v6326 = vld [vmem:[#allocation3 + $0x560] sm:$0xff]
  %v6327 = vld [vmem:[#allocation3 + $0x568] sm:$0xff]
  %v6328 = vld [vmem:[#allocation3 + $0x570] sm:$0xff]
  %v6329 = vld [vmem:[#allocation3 + $0x578] sm:$0xff]
  %v6330 = vld [vmem:[#allocation3 + $0x580] sm:$0xff]
  %v6331 = vld [vmem:[#allocation3 + $0x588] sm:$0xff]
  %v6332 = vld [vmem:[#allocation3 + $0x590] sm:$0xff]
  %v6333 = vld [vmem:[#allocation3 + $0x598] sm:$0xff]
  %v6334 = vld [vmem:[#allocation3 + $0x5a0] sm:$0xff]
  %v6335 = vld [vmem:[#allocation3 + $0x5a8] sm:$0xff]
  %v6336 = vld [vmem:[#allocation3 + $0x5b0] sm:$0xff]
  %v6337 = vld [vmem:[#allocation3 + $0x5b8] sm:$0xff]
  %v6338 = vld [vmem:[#allocation3 + $0x5c0] sm:$0xff]
  %v6339 = vld [vmem:[#allocation3 + $0x5c8] sm:$0xff]
  %v6340 = vld [vmem:[#allocation3 + $0x5d0] sm:$0xff]
  %v6341 = vld [vmem:[#allocation3 + $0x5d8] sm:$0xff]
  %v6342 = vld [vmem:[#allocation3 + $0x5e0] sm:$0xff]
  %v6343 = vld [vmem:[#allocation3 + $0x5e8] sm:$0xff]
  %v6344 = vld [vmem:[#allocation3 + $0x5f0] sm:$0xff]
  %v6345 = vld [vmem:[#allocation3 + $0x5f8] sm:$0xff]
  %v6346 = vld [vmem:[#allocation3 + $0x600] sm:$0xff]
  %v6347 = vld [vmem:[#allocation3 + $0x608] sm:$0xff]
  %v6348 = vld [vmem:[#allocation3 + $0x610] sm:$0xff]
  %v6349 = vld [vmem:[#allocation3 + $0x618] sm:$0xff]
  %v6350 = vld [vmem:[#allocation3 + $0x620] sm:$0xff]
  %v6351 = vld [vmem:[#allocation3 + $0x628] sm:$0xff]
  %v6352 = vld [vmem:[#allocation3 + $0x630] sm:$0xff]
  %v6353 = vld [vmem:[#allocation3 + $0x638] sm:$0xff]
  %v6354 = vld [vmem:[#allocation3 + $0x640] sm:$0xff]
  %v6355 = vld [vmem:[#allocation3 + $0x648] sm:$0xff]
  %v6356 = vld [vmem:[#allocation3 + $0x650] sm:$0xff]
  %v6357 = vld [vmem:[#allocation3 + $0x658] sm:$0xff]
  %v6358 = vld [vmem:[#allocation3 + $0x660] sm:$0xff]
  %v6359 = vld [vmem:[#allocation3 + $0x668] sm:$0xff]
  %v6360 = vld [vmem:[#allocation3 + $0x670] sm:$0xff]
  %v6361 = vld [vmem:[#allocation3 + $0x678] sm:$0xff]
  %v6362 = vld [vmem:[#allocation3 + $0x680] sm:$0xff]
  %v6363 = vld [vmem:[#allocation3 + $0x688] sm:$0xff]
  %v6364 = vld [vmem:[#allocation3 + $0x690] sm:$0xff]
  %v6365 = vld [vmem:[#allocation3 + $0x698] sm:$0xff]
  %v6366 = vld [vmem:[#allocation3 + $0x6a0] sm:$0xff]
  %v6367 = vld [vmem:[#allocation3 + $0x6a8] sm:$0xff]
  %v6368 = vld [vmem:[#allocation3 + $0x6b0] sm:$0xff]
  %v6369 = vld [vmem:[#allocation3 + $0x6b8] sm:$0xff]
  %v6370 = vld [vmem:[#allocation3 + $0x6c0] sm:$0xff]
  %v6371 = vld [vmem:[#allocation3 + $0x6c8] sm:$0xff]
  %v6372 = vld [vmem:[#allocation3 + $0x6d0] sm:$0xff]
  %v6373 = vld [vmem:[#allocation3 + $0x6d8] sm:$0xff]
  %v6374 = vld [vmem:[#allocation3 + $0x6e0] sm:$0xff]
  %v6375 = vld [vmem:[#allocation3 + $0x6e8] sm:$0xff]
  %v6376 = vld [vmem:[#allocation3 + $0x6f0] sm:$0xff]
  %v6377 = vld [vmem:[#allocation3 + $0x6f8] sm:$0xff]
  %v6378 = vld [vmem:[#allocation3 + $0x700] sm:$0xff]
  %v6379 = vld [vmem:[#allocation3 + $0x708] sm:$0xff]
  %v6380 = vld [vmem:[#allocation3 + $0x710] sm:$0xff]
  %v6381 = vld [vmem:[#allocation3 + $0x718] sm:$0xff]
  %v6382 = vld [vmem:[#allocation3 + $0x720] sm:$0xff]
  %v6383 = vld [vmem:[#allocation3 + $0x728] sm:$0xff]
  %v6384 = vld [vmem:[#allocation3 + $0x730] sm:$0xff]
  %v6385 = vld [vmem:[#allocation3 + $0x738] sm:$0xff]
  %v6386 = vld [vmem:[#allocation3 + $0x740] sm:$0xff]
  %v6387 = vld [vmem:[#allocation3 + $0x748] sm:$0xff]
  %v6388 = vld [vmem:[#allocation3 + $0x750] sm:$0xff]
  %v6389 = vld [vmem:[#allocation3 + $0x758] sm:$0xff]
  %v6390 = vld [vmem:[#allocation3 + $0x760] sm:$0xff]
  %v6391 = vld [vmem:[#allocation3 + $0x768] sm:$0xff]
  %v6392 = vld [vmem:[#allocation3 + $0x770] sm:$0xff]
  %v6393 = vld [vmem:[#allocation3 + $0x778] sm:$0xff]
  %v6394 = vld [vmem:[#allocation3 + $0x780] sm:$0xff]
  %v6395 = vld [vmem:[#allocation3 + $0x788] sm:$0xff]
  %v6396 = vld [vmem:[#allocation3 + $0x790] sm:$0xff]
  %v6397 = vld [vmem:[#allocation3 + $0x798] sm:$0xff]
  %v6398 = vld [vmem:[#allocation3 + $0x7a0] sm:$0xff]
  %v6399 = vld [vmem:[#allocation3 + $0x7a8] sm:$0xff]
  %v6400 = vld [vmem:[#allocation3 + $0x7b0] sm:$0xff]
  %v6401 = vld [vmem:[#allocation3 + $0x7b8] sm:$0xff]
  %v6402 = vld [vmem:[#allocation3 + $0x7c0] sm:$0xff]
  %v6403 = vld [vmem:[#allocation3 + $0x7c8] sm:$0xff]
  %v6404 = vld [vmem:[#allocation3 + $0x7d0] sm:$0xff]
  %v6405 = vld [vmem:[#allocation3 + $0x7d8] sm:$0xff]
  %v6406 = vld [vmem:[#allocation3 + $0x7e0] sm:$0xff]
  %v6407 = vld [vmem:[#allocation3 + $0x7e8] sm:$0xff]
  %v6408 = vld [vmem:[#allocation3 + $0x7f0] sm:$0xff]
  %v6409 = vld [vmem:[#allocation3 + $0x7f8] sm:$0xff]
  %v6410 = vld [vmem:[#allocation3 + $0x800] sm:$0xff]
  %v6411 = vld [vmem:[#allocation3 + $0x808] sm:$0xff]
  %v6412 = vld [vmem:[#allocation3 + $0x810] sm:$0xff]
  %v6413 = vld [vmem:[#allocation3 + $0x818] sm:$0xff]
  %v6414 = vld [vmem:[#allocation3 + $0x820] sm:$0xff]
  %v6415 = vld [vmem:[#allocation3 + $0x828] sm:$0xff]
  %v6416 = vld [vmem:[#allocation3 + $0x830] sm:$0xff]
  %v6417 = vld [vmem:[#allocation3 + $0x838] sm:$0xff]
  %v6418 = vld [vmem:[#allocation3 + $0x840] sm:$0xff]
  %v6419 = vld [vmem:[#allocation3 + $0x848] sm:$0xff]
  %v6420 = vld [vmem:[#allocation3 + $0x850] sm:$0xff]
  %v6421 = vld [vmem:[#allocation3 + $0x858] sm:$0xff]
  %v6422 = vld [vmem:[#allocation3 + $0x860] sm:$0xff]
  %v6423 = vld [vmem:[#allocation3 + $0x868] sm:$0xff]
  %v6424 = vld [vmem:[#allocation3 + $0x870] sm:$0xff]
  %v6425 = vld [vmem:[#allocation3 + $0x878] sm:$0xff]
  %v6426 = vld [vmem:[#allocation3 + $0x880] sm:$0xff]
  %v6427 = vld [vmem:[#allocation3 + $0x888] sm:$0xff]
  %v6428 = vld [vmem:[#allocation3 + $0x890] sm:$0xff]
  %v6429 = vld [vmem:[#allocation3 + $0x898] sm:$0xff]
  %v6430 = vld [vmem:[#allocation3 + $0x8a0] sm:$0xff]
  %v6431 = vld [vmem:[#allocation3 + $0x8a8] sm:$0xff]
  %v6432 = vld [vmem:[#allocation3 + $0x8b0] sm:$0xff]
  %v6433 = vld [vmem:[#allocation3 + $0x8b8] sm:$0xff]
  %v6434 = vld [vmem:[#allocation3 + $0x8c0] sm:$0xff]
  %v6435 = vld [vmem:[#allocation3 + $0x8c8] sm:$0xff]
  %v6436 = vld [vmem:[#allocation3 + $0x8d0] sm:$0xff]
  %v6437 = vld [vmem:[#allocation3 + $0x8d8] sm:$0xff]
  %v6438 = vld [vmem:[#allocation3 + $0x8e0] sm:$0xff]
  %v6439 = vld [vmem:[#allocation3 + $0x8e8] sm:$0xff]
  %v6440 = vld [vmem:[#allocation3 + $0x8f0] sm:$0xff]
  %v6441 = vld [vmem:[#allocation3 + $0x8f8] sm:$0xff]
  %v6443 = vcombine.high %v6153, %v6153
  %v6445 = vpack.c.bf16 %v6153, %v6153
  %v6446 = vpack.c.bf16 %v6443, %v6443
  %v6447 = vunpack.c.l.bf16 %v6445
  %v6448 = vunpack.c.l.bf16 %v6446
  %v6451 = vcombine.low %v6447, %v6448
  %v6453 = vsub.f32 %v6153, %v6451
  %v6455 = vcombine.high %v6453, %v6453
  %v6457 = vpack.c.bf16 %v6453, %v6453
  %v6458 = vpack.c.bf16 %v6455, %v6455
  %v6459 = vpack.c.bf16 %v6170, %v6154
  %v6460 = vpack.c.bf16 %v6171, %v6155
  %v6461 = vpack.c.bf16 %v6172, %v6156
  %v6462 = vpack.c.bf16 %v6173, %v6157
  %v6463 = vpack.c.bf16 %v6174, %v6158
  %v6464 = vpack.c.bf16 %v6175, %v6159
  %v6465 = vpack.c.bf16 %v6176, %v6160
  %v6466 = vpack.c.bf16 %v6177, %v6161
  %v6467 = vpack.c.bf16 %v6178, %v6162
  %v6468 = vpack.c.bf16 %v6179, %v6163
  %v6469 = vpack.c.bf16 %v6180, %v6164
  %v6470 = vpack.c.bf16 %v6181, %v6165
  %v6471 = vpack.c.bf16 %v6182, %v6166
  %v6472 = vpack.c.bf16 %v6183, %v6167
  %v6473 = vpack.c.bf16 %v6184, %v6168
  %v6474 = vpack.c.bf16 %v6185, %v6169
  %v6475 = vpack.c.bf16 %v6202, %v6186
  %v6476 = vpack.c.bf16 %v6203, %v6187
  %v6477 = vpack.c.bf16 %v6204, %v6188
  %v6478 = vpack.c.bf16 %v6205, %v6189
  %v6479 = vpack.c.bf16 %v6206, %v6190
  %v6480 = vpack.c.bf16 %v6207, %v6191
  %v6481 = vpack.c.bf16 %v6208, %v6192
  %v6482 = vpack.c.bf16 %v6209, %v6193
  %v6483 = vpack.c.bf16 %v6210, %v6194
  %v6484 = vpack.c.bf16 %v6211, %v6195
  %v6485 = vpack.c.bf16 %v6212, %v6196
  %v6486 = vpack.c.bf16 %v6213, %v6197
  %v6487 = vpack.c.bf16 %v6214, %v6198
  %v6488 = vpack.c.bf16 %v6215, %v6199
  %v6489 = vpack.c.bf16 %v6216, %v6200
  %v6490 = vpack.c.bf16 %v6217, %v6201
  %v6491 = vpack.c.bf16 %v6234, %v6218
  %v6492 = vpack.c.bf16 %v6235, %v6219
  %v6493 = vpack.c.bf16 %v6236, %v6220
  %v6494 = vpack.c.bf16 %v6237, %v6221
  %v6495 = vpack.c.bf16 %v6238, %v6222
  %v6496 = vpack.c.bf16 %v6239, %v6223
  %v6497 = vpack.c.bf16 %v6240, %v6224
  %v6498 = vpack.c.bf16 %v6241, %v6225
  %v6499 = vpack.c.bf16 %v6242, %v6226
  %v6500 = vpack.c.bf16 %v6243, %v6227
  %v6501 = vpack.c.bf16 %v6244, %v6228
  %v6502 = vpack.c.bf16 %v6245, %v6229
  %v6503 = vpack.c.bf16 %v6246, %v6230
  %v6504 = vpack.c.bf16 %v6247, %v6231
  %v6505 = vpack.c.bf16 %v6248, %v6232
  %v6506 = vpack.c.bf16 %v6249, %v6233
  %v6507 = vpack.c.bf16 %v6266, %v6250
  %v6508 = vpack.c.bf16 %v6267, %v6251
  %v6509 = vpack.c.bf16 %v6268, %v6252
  %v6510 = vpack.c.bf16 %v6269, %v6253
  %v6511 = vpack.c.bf16 %v6270, %v6254
  %v6512 = vpack.c.bf16 %v6271, %v6255
  %v6513 = vpack.c.bf16 %v6272, %v6256
  %v6514 = vpack.c.bf16 %v6273, %v6257
  %v6515 = vpack.c.bf16 %v6274, %v6258
  %v6516 = vpack.c.bf16 %v6275, %v6259
  %v6517 = vpack.c.bf16 %v6276, %v6260
  %v6518 = vpack.c.bf16 %v6277, %v6261
  %v6519 = vpack.c.bf16 %v6278, %v6262
  %v6520 = vpack.c.bf16 %v6279, %v6263
  %v6521 = vpack.c.bf16 %v6280, %v6264
  %v6522 = vpack.c.bf16 %v6281, %v6265
  %v6523 = vpack.c.bf16 %v6298, %v6282
  %v6524 = vpack.c.bf16 %v6299, %v6283
  %v6525 = vpack.c.bf16 %v6300, %v6284
  %v6526 = vpack.c.bf16 %v6301, %v6285
  %v6527 = vpack.c.bf16 %v6302, %v6286
  %v6528 = vpack.c.bf16 %v6303, %v6287
  %v6529 = vpack.c.bf16 %v6304, %v6288
  %v6530 = vpack.c.bf16 %v6305, %v6289
  %v6531 = vpack.c.bf16 %v6306, %v6290
  %v6532 = vpack.c.bf16 %v6307, %v6291
  %v6533 = vpack.c.bf16 %v6308, %v6292
  %v6534 = vpack.c.bf16 %v6309, %v6293
  %v6535 = vpack.c.bf16 %v6310, %v6294
  %v6536 = vpack.c.bf16 %v6311, %v6295
  %v6537 = vpack.c.bf16 %v6312, %v6296
  %v6538 = vpack.c.bf16 %v6313, %v6297
  %v6539 = vpack.c.bf16 %v6330, %v6314
  %v6540 = vpack.c.bf16 %v6331, %v6315
  %v6541 = vpack.c.bf16 %v6332, %v6316
  %v6542 = vpack.c.bf16 %v6333, %v6317
  %v6543 = vpack.c.bf16 %v6334, %v6318
  %v6544 = vpack.c.bf16 %v6335, %v6319
  %v6545 = vpack.c.bf16 %v6336, %v6320
  %v6546 = vpack.c.bf16 %v6337, %v6321
  %v6547 = vpack.c.bf16 %v6338, %v6322
  %v6548 = vpack.c.bf16 %v6339, %v6323
  %v6549 = vpack.c.bf16 %v6340, %v6324
  %v6550 = vpack.c.bf16 %v6341, %v6325
  %v6551 = vpack.c.bf16 %v6342, %v6326
  %v6552 = vpack.c.bf16 %v6343, %v6327
  %v6553 = vpack.c.bf16 %v6344, %v6328
  %v6554 = vpack.c.bf16 %v6345, %v6329
  %v6555 = vpack.c.bf16 %v6362, %v6346
  %v6556 = vpack.c.bf16 %v6363, %v6347
  %v6557 = vpack.c.bf16 %v6364, %v6348
  %v6558 = vpack.c.bf16 %v6365, %v6349
  %v6559 = vpack.c.bf16 %v6366, %v6350
  %v6560 = vpack.c.bf16 %v6367, %v6351
  %v6561 = vpack.c.bf16 %v6368, %v6352
  %v6562 = vpack.c.bf16 %v6369, %v6353
  %v6563 = vpack.c.bf16 %v6370, %v6354
  %v6564 = vpack.c.bf16 %v6371, %v6355
  %v6565 = vpack.c.bf16 %v6372, %v6356
  %v6566 = vpack.c.bf16 %v6373, %v6357
  %v6567 = vpack.c.bf16 %v6374, %v6358
  %v6568 = vpack.c.bf16 %v6375, %v6359
  %v6569 = vpack.c.bf16 %v6376, %v6360
  %v6570 = vpack.c.bf16 %v6377, %v6361
  %v6571 = vpack.c.bf16 %v6394, %v6378
  %v6572 = vpack.c.bf16 %v6395, %v6379
  %v6573 = vpack.c.bf16 %v6396, %v6380
  %v6574 = vpack.c.bf16 %v6397, %v6381
  %v6575 = vpack.c.bf16 %v6398, %v6382
  %v6576 = vpack.c.bf16 %v6399, %v6383
  %v6577 = vpack.c.bf16 %v6400, %v6384
  %v6578 = vpack.c.bf16 %v6401, %v6385
  %v6579 = vpack.c.bf16 %v6402, %v6386
  %v6580 = vpack.c.bf16 %v6403, %v6387
  %v6581 = vpack.c.bf16 %v6404, %v6388
  %v6582 = vpack.c.bf16 %v6405, %v6389
  %v6583 = vpack.c.bf16 %v6406, %v6390
  %v6584 = vpack.c.bf16 %v6407, %v6391
  %v6585 = vpack.c.bf16 %v6408, %v6392
  %v6586 = vpack.c.bf16 %v6409, %v6393
  %v6587 = vpack.c.bf16 %v6426, %v6410
  %v6588 = vpack.c.bf16 %v6427, %v6411
  %v6589 = vpack.c.bf16 %v6428, %v6412
  %v6590 = vpack.c.bf16 %v6429, %v6413
  %v6591 = vpack.c.bf16 %v6430, %v6414
  %v6592 = vpack.c.bf16 %v6431, %v6415
  %v6593 = vpack.c.bf16 %v6432, %v6416
  %v6594 = vpack.c.bf16 %v6433, %v6417
  %v6595 = vpack.c.bf16 %v6434, %v6418
  %v6596 = vpack.c.bf16 %v6435, %v6419
  %v6597 = vpack.c.bf16 %v6436, %v6420
  %v6598 = vpack.c.bf16 %v6437, %v6421
  %v6599 = vpack.c.bf16 %v6438, %v6422
  %v6600 = vpack.c.bf16 %v6439, %v6423
  %v6601 = vpack.c.bf16 %v6440, %v6424
  %v6602 = vpack.c.bf16 %v6441, %v6425
  %v6603 = vunpack.c.l.bf16 %v6459
  %v6604 = vunpack.c.l.bf16 %v6460
  %v6605 = vunpack.c.l.bf16 %v6461
  %v6606 = vunpack.c.l.bf16 %v6462
  %v6607 = vunpack.c.l.bf16 %v6463
  %v6608 = vunpack.c.l.bf16 %v6464
  %v6609 = vunpack.c.l.bf16 %v6465
  %v6610 = vunpack.c.l.bf16 %v6466
  %v6611 = vunpack.c.l.bf16 %v6467
  %v6612 = vunpack.c.l.bf16 %v6468
  %v6613 = vunpack.c.l.bf16 %v6469
  %v6614 = vunpack.c.l.bf16 %v6470
  %v6615 = vunpack.c.l.bf16 %v6471
  %v6616 = vunpack.c.l.bf16 %v6472
  %v6617 = vunpack.c.l.bf16 %v6473
  %v6618 = vunpack.c.l.bf16 %v6474
  %v6619 = vunpack.c.h.bf16 %v6459
  %v6620 = vunpack.c.h.bf16 %v6460
  %v6621 = vunpack.c.h.bf16 %v6461
  %v6622 = vunpack.c.h.bf16 %v6462
  %v6623 = vunpack.c.h.bf16 %v6463
  %v6624 = vunpack.c.h.bf16 %v6464
  %v6625 = vunpack.c.h.bf16 %v6465
  %v6626 = vunpack.c.h.bf16 %v6466
  %v6627 = vunpack.c.h.bf16 %v6467
  %v6628 = vunpack.c.h.bf16 %v6468
  %v6629 = vunpack.c.h.bf16 %v6469
  %v6630 = vunpack.c.h.bf16 %v6470
  %v6631 = vunpack.c.h.bf16 %v6471
  %v6632 = vunpack.c.h.bf16 %v6472
  %v6633 = vunpack.c.h.bf16 %v6473
  %v6634 = vunpack.c.h.bf16 %v6474
  %v6635 = vunpack.c.l.bf16 %v6475
  %v6636 = vunpack.c.l.bf16 %v6476
  %v6637 = vunpack.c.l.bf16 %v6477
  %v6638 = vunpack.c.l.bf16 %v6478
  %v6639 = vunpack.c.l.bf16 %v6479
  %v6640 = vunpack.c.l.bf16 %v6480
  %v6641 = vunpack.c.l.bf16 %v6481
  %v6642 = vunpack.c.l.bf16 %v6482
  %v6643 = vunpack.c.l.bf16 %v6483
  %v6644 = vunpack.c.l.bf16 %v6484
  %v6645 = vunpack.c.l.bf16 %v6485
  %v6646 = vunpack.c.l.bf16 %v6486
  %v6647 = vunpack.c.l.bf16 %v6487
  %v6648 = vunpack.c.l.bf16 %v6488
  %v6649 = vunpack.c.l.bf16 %v6489
  %v6650 = vunpack.c.l.bf16 %v6490
  %v6651 = vunpack.c.h.bf16 %v6475
  %v6652 = vunpack.c.h.bf16 %v6476
  %v6653 = vunpack.c.h.bf16 %v6477
  %v6654 = vunpack.c.h.bf16 %v6478
  %v6655 = vunpack.c.h.bf16 %v6479
  %v6656 = vunpack.c.h.bf16 %v6480
  %v6657 = vunpack.c.h.bf16 %v6481
  %v6658 = vunpack.c.h.bf16 %v6482
  %v6659 = vunpack.c.h.bf16 %v6483
  %v6660 = vunpack.c.h.bf16 %v6484
  %v6661 = vunpack.c.h.bf16 %v6485
  %v6662 = vunpack.c.h.bf16 %v6486
  %v6663 = vunpack.c.h.bf16 %v6487
  %v6664 = vunpack.c.h.bf16 %v6488
  %v6665 = vunpack.c.h.bf16 %v6489
  %v6666 = vunpack.c.h.bf16 %v6490
  %v6667 = vunpack.c.l.bf16 %v6491
  %v6668 = vunpack.c.l.bf16 %v6492
  %v6669 = vunpack.c.l.bf16 %v6493
  %v6670 = vunpack.c.l.bf16 %v6494
  %v6671 = vunpack.c.l.bf16 %v6495
  %v6672 = vunpack.c.l.bf16 %v6496
  %v6673 = vunpack.c.l.bf16 %v6497
  %v6674 = vunpack.c.l.bf16 %v6498
  %v6675 = vunpack.c.l.bf16 %v6499
  %v6676 = vunpack.c.l.bf16 %v6500
  %v6677 = vunpack.c.l.bf16 %v6501
  %v6678 = vunpack.c.l.bf16 %v6502
  %v6679 = vunpack.c.l.bf16 %v6503
  %v6680 = vunpack.c.l.bf16 %v6504
  %v6681 = vunpack.c.l.bf16 %v6505
  %v6682 = vunpack.c.l.bf16 %v6506
  %v6683 = vunpack.c.h.bf16 %v6491
  %v6684 = vunpack.c.h.bf16 %v6492
  %v6685 = vunpack.c.h.bf16 %v6493
  %v6686 = vunpack.c.h.bf16 %v6494
  %v6687 = vunpack.c.h.bf16 %v6495
  %v6688 = vunpack.c.h.bf16 %v6496
  %v6689 = vunpack.c.h.bf16 %v6497
  %v6690 = vunpack.c.h.bf16 %v6498
  %v6691 = vunpack.c.h.bf16 %v6499
  %v6692 = vunpack.c.h.bf16 %v6500
  %v6693 = vunpack.c.h.bf16 %v6501
  %v6694 = vunpack.c.h.bf16 %v6502
  %v6695 = vunpack.c.h.bf16 %v6503
  %v6696 = vunpack.c.h.bf16 %v6504
  %v6697 = vunpack.c.h.bf16 %v6505
  %v6698 = vunpack.c.h.bf16 %v6506
  %v6699 = vunpack.c.l.bf16 %v6507
  %v6700 = vunpack.c.l.bf16 %v6508
  %v6701 = vunpack.c.l.bf16 %v6509
  %v6702 = vunpack.c.l.bf16 %v6510
  %v6703 = vunpack.c.l.bf16 %v6511
  %v6704 = vunpack.c.l.bf16 %v6512
  %v6705 = vunpack.c.l.bf16 %v6513
  %v6706 = vunpack.c.l.bf16 %v6514
  %v6707 = vunpack.c.l.bf16 %v6515
  %v6708 = vunpack.c.l.bf16 %v6516
  %v6709 = vunpack.c.l.bf16 %v6517
  %v6710 = vunpack.c.l.bf16 %v6518
  %v6711 = vunpack.c.l.bf16 %v6519
  %v6712 = vunpack.c.l.bf16 %v6520
  %v6713 = vunpack.c.l.bf16 %v6521
  %v6714 = vunpack.c.l.bf16 %v6522
  %v6715 = vunpack.c.h.bf16 %v6507
  %v6716 = vunpack.c.h.bf16 %v6508
  %v6717 = vunpack.c.h.bf16 %v6509
  %v6718 = vunpack.c.h.bf16 %v6510
  %v6719 = vunpack.c.h.bf16 %v6511
  %v6720 = vunpack.c.h.bf16 %v6512
  %v6721 = vunpack.c.h.bf16 %v6513
  %v6722 = vunpack.c.h.bf16 %v6514
  %v6723 = vunpack.c.h.bf16 %v6515
  %v6724 = vunpack.c.h.bf16 %v6516
  %v6725 = vunpack.c.h.bf16 %v6517
  %v6726 = vunpack.c.h.bf16 %v6518
  %v6727 = vunpack.c.h.bf16 %v6519
  %v6728 = vunpack.c.h.bf16 %v6520
  %v6729 = vunpack.c.h.bf16 %v6521
  %v6730 = vunpack.c.h.bf16 %v6522
  %v6731 = vunpack.c.l.bf16 %v6523
  %v6732 = vunpack.c.l.bf16 %v6524
  %v6733 = vunpack.c.l.bf16 %v6525
  %v6734 = vunpack.c.l.bf16 %v6526
  %v6735 = vunpack.c.l.bf16 %v6527
  %v6736 = vunpack.c.l.bf16 %v6528
  %v6737 = vunpack.c.l.bf16 %v6529
  %v6738 = vunpack.c.l.bf16 %v6530
  %v6739 = vunpack.c.l.bf16 %v6531
  %v6740 = vunpack.c.l.bf16 %v6532
  %v6741 = vunpack.c.l.bf16 %v6533
  %v6742 = vunpack.c.l.bf16 %v6534
  %v6743 = vunpack.c.l.bf16 %v6535
  %v6744 = vunpack.c.l.bf16 %v6536
  %v6745 = vunpack.c.l.bf16 %v6537
  %v6746 = vunpack.c.l.bf16 %v6538
  %v6747 = vunpack.c.h.bf16 %v6523
  %v6748 = vunpack.c.h.bf16 %v6524
  %v6749 = vunpack.c.h.bf16 %v6525
  %v6750 = vunpack.c.h.bf16 %v6526
  %v6751 = vunpack.c.h.bf16 %v6527
  %v6752 = vunpack.c.h.bf16 %v6528
  %v6753 = vunpack.c.h.bf16 %v6529
  %v6754 = vunpack.c.h.bf16 %v6530
  %v6755 = vunpack.c.h.bf16 %v6531
  %v6756 = vunpack.c.h.bf16 %v6532
  %v6757 = vunpack.c.h.bf16 %v6533
  %v6758 = vunpack.c.h.bf16 %v6534
  %v6759 = vunpack.c.h.bf16 %v6535
  %v6760 = vunpack.c.h.bf16 %v6536
  %v6761 = vunpack.c.h.bf16 %v6537
  %v6762 = vunpack.c.h.bf16 %v6538
  %v6763 = vunpack.c.l.bf16 %v6539
  %v6764 = vunpack.c.l.bf16 %v6540
  %v6765 = vunpack.c.l.bf16 %v6541
  %v6766 = vunpack.c.l.bf16 %v6542
  %v6767 = vunpack.c.l.bf16 %v6543
  %v6768 = vunpack.c.l.bf16 %v6544
  %v6769 = vunpack.c.l.bf16 %v6545
  %v6770 = vunpack.c.l.bf16 %v6546
  %v6771 = vunpack.c.l.bf16 %v6547
  %v6772 = vunpack.c.l.bf16 %v6548
  %v6773 = vunpack.c.l.bf16 %v6549
  %v6774 = vunpack.c.l.bf16 %v6550
  %v6775 = vunpack.c.l.bf16 %v6551
  %v6776 = vunpack.c.l.bf16 %v6552
  %v6777 = vunpack.c.l.bf16 %v6553
  %v6778 = vunpack.c.l.bf16 %v6554
  %v6779 = vunpack.c.h.bf16 %v6539
  %v6780 = vunpack.c.h.bf16 %v6540
  %v6781 = vunpack.c.h.bf16 %v6541
  %v6782 = vunpack.c.h.bf16 %v6542
  %v6783 = vunpack.c.h.bf16 %v6543
  %v6784 = vunpack.c.h.bf16 %v6544
  %v6785 = vunpack.c.h.bf16 %v6545
  %v6786 = vunpack.c.h.bf16 %v6546
  %v6787 = vunpack.c.h.bf16 %v6547
  %v6788 = vunpack.c.h.bf16 %v6548
  %v6789 = vunpack.c.h.bf16 %v6549
  %v6790 = vunpack.c.h.bf16 %v6550
  %v6791 = vunpack.c.h.bf16 %v6551
  %v6792 = vunpack.c.h.bf16 %v6552
  %v6793 = vunpack.c.h.bf16 %v6553
  %v6794 = vunpack.c.h.bf16 %v6554
  %v6795 = vunpack.c.l.bf16 %v6555
  %v6796 = vunpack.c.l.bf16 %v6556
  %v6797 = vunpack.c.l.bf16 %v6557
  %v6798 = vunpack.c.l.bf16 %v6558
  %v6799 = vunpack.c.l.bf16 %v6559
  %v6800 = vunpack.c.l.bf16 %v6560
  %v6801 = vunpack.c.l.bf16 %v6561
  %v6802 = vunpack.c.l.bf16 %v6562
  %v6803 = vunpack.c.l.bf16 %v6563
  %v6804 = vunpack.c.l.bf16 %v6564
  %v6805 = vunpack.c.l.bf16 %v6565
  %v6806 = vunpack.c.l.bf16 %v6566
  %v6807 = vunpack.c.l.bf16 %v6567
  %v6808 = vunpack.c.l.bf16 %v6568
  %v6809 = vunpack.c.l.bf16 %v6569
  %v6810 = vunpack.c.l.bf16 %v6570
  %v6811 = vunpack.c.h.bf16 %v6555
  %v6812 = vunpack.c.h.bf16 %v6556
  %v6813 = vunpack.c.h.bf16 %v6557
  %v6814 = vunpack.c.h.bf16 %v6558
  %v6815 = vunpack.c.h.bf16 %v6559
  %v6816 = vunpack.c.h.bf16 %v6560
  %v6817 = vunpack.c.h.bf16 %v6561
  %v6818 = vunpack.c.h.bf16 %v6562
  %v6819 = vunpack.c.h.bf16 %v6563
  %v6820 = vunpack.c.h.bf16 %v6564
  %v6821 = vunpack.c.h.bf16 %v6565
  %v6822 = vunpack.c.h.bf16 %v6566
  %v6823 = vunpack.c.h.bf16 %v6567
  %v6824 = vunpack.c.h.bf16 %v6568
  %v6825 = vunpack.c.h.bf16 %v6569
  %v6826 = vunpack.c.h.bf16 %v6570
  %v6827 = vunpack.c.l.bf16 %v6571
  %v6828 = vunpack.c.l.bf16 %v6572
  %v6829 = vunpack.c.l.bf16 %v6573
  %v6830 = vunpack.c.l.bf16 %v6574
  %v6831 = vunpack.c.l.bf16 %v6575
  %v6832 = vunpack.c.l.bf16 %v6576
  %v6833 = vunpack.c.l.bf16 %v6577
  %v6834 = vunpack.c.l.bf16 %v6578
  %v6835 = vunpack.c.l.bf16 %v6579
  %v6836 = vunpack.c.l.bf16 %v6580
  %v6837 = vunpack.c.l.bf16 %v6581
  %v6838 = vunpack.c.l.bf16 %v6582
  %v6839 = vunpack.c.l.bf16 %v6583
  %v6840 = vunpack.c.l.bf16 %v6584
  %v6841 = vunpack.c.l.bf16 %v6585
  %v6842 = vunpack.c.l.bf16 %v6586
  %v6843 = vunpack.c.h.bf16 %v6571
  %v6844 = vunpack.c.h.bf16 %v6572
  %v6845 = vunpack.c.h.bf16 %v6573
  %v6846 = vunpack.c.h.bf16 %v6574
  %v6847 = vunpack.c.h.bf16 %v6575
  %v6848 = vunpack.c.h.bf16 %v6576
  %v6849 = vunpack.c.h.bf16 %v6577
  %v6850 = vunpack.c.h.bf16 %v6578
  %v6851 = vunpack.c.h.bf16 %v6579
  %v6852 = vunpack.c.h.bf16 %v6580
  %v6853 = vunpack.c.h.bf16 %v6581
  %v6854 = vunpack.c.h.bf16 %v6582
  %v6855 = vunpack.c.h.bf16 %v6583
  %v6856 = vunpack.c.h.bf16 %v6584
  %v6857 = vunpack.c.h.bf16 %v6585
  %v6858 = vunpack.c.h.bf16 %v6586
  %v6859 = vunpack.c.l.bf16 %v6587
  %v6860 = vunpack.c.l.bf16 %v6588
  %v6861 = vunpack.c.l.bf16 %v6589
  %v6862 = vunpack.c.l.bf16 %v6590
  %v6863 = vunpack.c.l.bf16 %v6591
  %v6864 = vunpack.c.l.bf16 %v6592
  %v6865 = vunpack.c.l.bf16 %v6593
  %v6866 = vunpack.c.l.bf16 %v6594
  %v6867 = vunpack.c.l.bf16 %v6595
  %v6868 = vunpack.c.l.bf16 %v6596
  %v6869 = vunpack.c.l.bf16 %v6597
  %v6870 = vunpack.c.l.bf16 %v6598
  %v6871 = vunpack.c.l.bf16 %v6599
  %v6872 = vunpack.c.l.bf16 %v6600
  %v6873 = vunpack.c.l.bf16 %v6601
  %v6874 = vunpack.c.l.bf16 %v6602
  %v6875 = vunpack.c.h.bf16 %v6587
  %v6876 = vunpack.c.h.bf16 %v6588
  %v6877 = vunpack.c.h.bf16 %v6589
  %v6878 = vunpack.c.h.bf16 %v6590
  %v6879 = vunpack.c.h.bf16 %v6591
  %v6880 = vunpack.c.h.bf16 %v6592
  %v6881 = vunpack.c.h.bf16 %v6593
  %v6882 = vunpack.c.h.bf16 %v6594
  %v6883 = vunpack.c.h.bf16 %v6595
  %v6884 = vunpack.c.h.bf16 %v6596
  %v6885 = vunpack.c.h.bf16 %v6597
  %v6886 = vunpack.c.h.bf16 %v6598
  %v6887 = vunpack.c.h.bf16 %v6599
  %v6888 = vunpack.c.h.bf16 %v6600
  %v6889 = vunpack.c.h.bf16 %v6601
  %v6890 = vunpack.c.h.bf16 %v6602
  %v6891 = vsub.f32 %v6154, %v6603
  %v6892 = vsub.f32 %v6155, %v6604
  %v6893 = vsub.f32 %v6156, %v6605
  %v6894 = vsub.f32 %v6157, %v6606
  %v6895 = vsub.f32 %v6158, %v6607
  %v6896 = vsub.f32 %v6159, %v6608
  %v6897 = vsub.f32 %v6160, %v6609
  %v6898 = vsub.f32 %v6161, %v6610
  %v6899 = vsub.f32 %v6162, %v6611
  %v6900 = vsub.f32 %v6163, %v6612
  %v6901 = vsub.f32 %v6164, %v6613
  %v6902 = vsub.f32 %v6165, %v6614
  %v6903 = vsub.f32 %v6166, %v6615
  %v6904 = vsub.f32 %v6167, %v6616
  %v6905 = vsub.f32 %v6168, %v6617
  %v6906 = vsub.f32 %v6169, %v6618
  %v6907 = vsub.f32 %v6170, %v6619
  %v6908 = vsub.f32 %v6171, %v6620
  %v6909 = vsub.f32 %v6172, %v6621
  %v6910 = vsub.f32 %v6173, %v6622
  %v6911 = vsub.f32 %v6174, %v6623
  %v6912 = vsub.f32 %v6175, %v6624
  %v6913 = vsub.f32 %v6176, %v6625
  %v6914 = vsub.f32 %v6177, %v6626
  %v6915 = vsub.f32 %v6178, %v6627
  %v6916 = vsub.f32 %v6179, %v6628
  %v6917 = vsub.f32 %v6180, %v6629
  %v6918 = vsub.f32 %v6181, %v6630
  %v6919 = vsub.f32 %v6182, %v6631
  %v6920 = vsub.f32 %v6183, %v6632
  %v6921 = vsub.f32 %v6184, %v6633
  %v6922 = vsub.f32 %v6185, %v6634
  %v6923 = vsub.f32 %v6186, %v6635
  %v6924 = vsub.f32 %v6187, %v6636
  %v6925 = vsub.f32 %v6188, %v6637
  %v6926 = vsub.f32 %v6189, %v6638
  %v6927 = vsub.f32 %v6190, %v6639
  %v6928 = vsub.f32 %v6191, %v6640
  %v6929 = vsub.f32 %v6192, %v6641
  %v6930 = vsub.f32 %v6193, %v6642
  %v6931 = vsub.f32 %v6194, %v6643
  %v6932 = vsub.f32 %v6195, %v6644
  %v6933 = vsub.f32 %v6196, %v6645
  %v6934 = vsub.f32 %v6197, %v6646
  %v6935 = vsub.f32 %v6198, %v6647
  %v6936 = vsub.f32 %v6199, %v6648
  %v6937 = vsub.f32 %v6200, %v6649
  %v6938 = vsub.f32 %v6201, %v6650
  %v6939 = vsub.f32 %v6202, %v6651
  %v6940 = vsub.f32 %v6203, %v6652
  %v6941 = vsub.f32 %v6204, %v6653
  %v6942 = vsub.f32 %v6205, %v6654
  %v6943 = vsub.f32 %v6206, %v6655
  %v6944 = vsub.f32 %v6207, %v6656
  %v6945 = vsub.f32 %v6208, %v6657
  %v6946 = vsub.f32 %v6209, %v6658
  %v6947 = vsub.f32 %v6210, %v6659
  %v6948 = vsub.f32 %v6211, %v6660
  %v6949 = vsub.f32 %v6212, %v6661
  %v6950 = vsub.f32 %v6213, %v6662
  %v6951 = vsub.f32 %v6214, %v6663
  %v6952 = vsub.f32 %v6215, %v6664
  %v6953 = vsub.f32 %v6216, %v6665
  %v6954 = vsub.f32 %v6217, %v6666
  %v6955 = vsub.f32 %v6218, %v6667
  %v6956 = vsub.f32 %v6219, %v6668
  %v6957 = vsub.f32 %v6220, %v6669
  %v6958 = vsub.f32 %v6221, %v6670
  %v6959 = vsub.f32 %v6222, %v6671
  %v6960 = vsub.f32 %v6223, %v6672
  %v6961 = vsub.f32 %v6224, %v6673
  %v6962 = vsub.f32 %v6225, %v6674
  %v6963 = vsub.f32 %v6226, %v6675
  %v6964 = vsub.f32 %v6227, %v6676
  %v6965 = vsub.f32 %v6228, %v6677
  %v6966 = vsub.f32 %v6229, %v6678
  %v6967 = vsub.f32 %v6230, %v6679
  %v6968 = vsub.f32 %v6231, %v6680
  %v6969 = vsub.f32 %v6232, %v6681
  %v6970 = vsub.f32 %v6233, %v6682
  %v6971 = vsub.f32 %v6234, %v6683
  %v6972 = vsub.f32 %v6235, %v6684
  %v6973 = vsub.f32 %v6236, %v6685
  %v6974 = vsub.f32 %v6237, %v6686
  %v6975 = vsub.f32 %v6238, %v6687
  %v6976 = vsub.f32 %v6239, %v6688
  %v6977 = vsub.f32 %v6240, %v6689
  %v6978 = vsub.f32 %v6241, %v6690
  %v6979 = vsub.f32 %v6242, %v6691
  %v6980 = vsub.f32 %v6243, %v6692
  %v6981 = vsub.f32 %v6244, %v6693
  %v6982 = vsub.f32 %v6245, %v6694
  %v6983 = vsub.f32 %v6246, %v6695
  %v6984 = vsub.f32 %v6247, %v6696
  %v6985 = vsub.f32 %v6248, %v6697
  %v6986 = vsub.f32 %v6249, %v6698
  %v6987 = vsub.f32 %v6250, %v6699
  %v6988 = vsub.f32 %v6251, %v6700
  %v6989 = vsub.f32 %v6252, %v6701
  %v6990 = vsub.f32 %v6253, %v6702
  %v6991 = vsub.f32 %v6254, %v6703
  %v6992 = vsub.f32 %v6255, %v6704
  %v6993 = vsub.f32 %v6256, %v6705
  %v6994 = vsub.f32 %v6257, %v6706
  %v6995 = vsub.f32 %v6258, %v6707
  %v6996 = vsub.f32 %v6259, %v6708
  %v6997 = vsub.f32 %v6260, %v6709
  %v6998 = vsub.f32 %v6261, %v6710
  %v6999 = vsub.f32 %v6262, %v6711
  %v7000 = vsub.f32 %v6263, %v6712
  %v7001 = vsub.f32 %v6264, %v6713
  %v7002 = vsub.f32 %v6265, %v6714
  %v7003 = vsub.f32 %v6266, %v6715
  %v7004 = vsub.f32 %v6267, %v6716
  %v7005 = vsub.f32 %v6268, %v6717
  %v7006 = vsub.f32 %v6269, %v6718
  %v7007 = vsub.f32 %v6270, %v6719
  %v7008 = vsub.f32 %v6271, %v6720
  %v7009 = vsub.f32 %v6272, %v6721
  %v7010 = vsub.f32 %v6273, %v6722
  %v7011 = vsub.f32 %v6274, %v6723
  %v7012 = vsub.f32 %v6275, %v6724
  %v7013 = vsub.f32 %v6276, %v6725
  %v7014 = vsub.f32 %v6277, %v6726
  %v7015 = vsub.f32 %v6278, %v6727
  %v7016 = vsub.f32 %v6279, %v6728
  %v7017 = vsub.f32 %v6280, %v6729
  %v7018 = vsub.f32 %v6281, %v6730
  %v7019 = vsub.f32 %v6282, %v6731
  %v7020 = vsub.f32 %v6283, %v6732
  %v7021 = vsub.f32 %v6284, %v6733
  %v7022 = vsub.f32 %v6285, %v6734
  %v7023 = vsub.f32 %v6286, %v6735
  %v7024 = vsub.f32 %v6287, %v6736
  %v7025 = vsub.f32 %v6288, %v6737
  %v7026 = vsub.f32 %v6289, %v6738
  %v7027 = vsub.f32 %v6290, %v6739
  %v7028 = vsub.f32 %v6291, %v6740
  %v7029 = vsub.f32 %v6292, %v6741
  %v7030 = vsub.f32 %v6293, %v6742
  %v7031 = vsub.f32 %v6294, %v6743
  %v7032 = vsub.f32 %v6295, %v6744
  %v7033 = vsub.f32 %v6296, %v6745
  %v7034 = vsub.f32 %v6297, %v6746
  %v7035 = vsub.f32 %v6298, %v6747
  %v7036 = vsub.f32 %v6299, %v6748
  %v7037 = vsub.f32 %v6300, %v6749
  %v7038 = vsub.f32 %v6301, %v6750
  %v7039 = vsub.f32 %v6302, %v6751
  %v7040 = vsub.f32 %v6303, %v6752
  %v7041 = vsub.f32 %v6304, %v6753
  %v7042 = vsub.f32 %v6305, %v6754
  %v7043 = vsub.f32 %v6306, %v6755
  %v7044 = vsub.f32 %v6307, %v6756
  %v7045 = vsub.f32 %v6308, %v6757
  %v7046 = vsub.f32 %v6309, %v6758
  %v7047 = vsub.f32 %v6310, %v6759
  %v7048 = vsub.f32 %v6311, %v6760
  %v7049 = vsub.f32 %v6312, %v6761
  %v7050 = vsub.f32 %v6313, %v6762
  %v7051 = vsub.f32 %v6314, %v6763
  %v7052 = vsub.f32 %v6315, %v6764
  %v7053 = vsub.f32 %v6316, %v6765
  %v7054 = vsub.f32 %v6317, %v6766
  %v7055 = vsub.f32 %v6318, %v6767
  %v7056 = vsub.f32 %v6319, %v6768
  %v7057 = vsub.f32 %v6320, %v6769
  %v7058 = vsub.f32 %v6321, %v6770
  %v7059 = vsub.f32 %v6322, %v6771
  %v7060 = vsub.f32 %v6323, %v6772
  %v7061 = vsub.f32 %v6324, %v6773
  %v7062 = vsub.f32 %v6325, %v6774
  %v7063 = vsub.f32 %v6326, %v6775
  %v7064 = vsub.f32 %v6327, %v6776
  %v7065 = vsub.f32 %v6328, %v6777
  %v7066 = vsub.f32 %v6329, %v6778
  %v7067 = vsub.f32 %v6330, %v6779
  %v7068 = vsub.f32 %v6331, %v6780
  %v7069 = vsub.f32 %v6332, %v6781
  %v7070 = vsub.f32 %v6333, %v6782
  %v7071 = vsub.f32 %v6334, %v6783
  %v7072 = vsub.f32 %v6335, %v6784
  %v7073 = vsub.f32 %v6336, %v6785
  %v7074 = vsub.f32 %v6337, %v6786
  %v7075 = vsub.f32 %v6338, %v6787
  %v7076 = vsub.f32 %v6339, %v6788
  %v7077 = vsub.f32 %v6340, %v6789
  %v7078 = vsub.f32 %v6341, %v6790
  %v7079 = vsub.f32 %v6342, %v6791
  %v7080 = vsub.f32 %v6343, %v6792
  %v7081 = vsub.f32 %v6344, %v6793
  %v7082 = vsub.f32 %v6345, %v6794
  %v7083 = vsub.f32 %v6346, %v6795
  %v7084 = vsub.f32 %v6347, %v6796
  %v7085 = vsub.f32 %v6348, %v6797
  %v7086 = vsub.f32 %v6349, %v6798
  %v7087 = vsub.f32 %v6350, %v6799
  %v7088 = vsub.f32 %v6351, %v6800
  %v7089 = vsub.f32 %v6352, %v6801
  %v7090 = vsub.f32 %v6353, %v6802
  %v7091 = vsub.f32 %v6354, %v6803
  %v7092 = vsub.f32 %v6355, %v6804
  %v7093 = vsub.f32 %v6356, %v6805
  %v7094 = vsub.f32 %v6357, %v6806
  %v7095 = vsub.f32 %v6358, %v6807
  %v7096 = vsub.f32 %v6359, %v6808
  %v7097 = vsub.f32 %v6360, %v6809
  %v7098 = vsub.f32 %v6361, %v6810
  %v7099 = vsub.f32 %v6362, %v6811
  %v7100 = vsub.f32 %v6363, %v6812
  %v7101 = vsub.f32 %v6364, %v6813
  %v7102 = vsub.f32 %v6365, %v6814
  %v7103 = vsub.f32 %v6366, %v6815
  %v7104 = vsub.f32 %v6367, %v6816
  %v7105 = vsub.f32 %v6368, %v6817
  %v7106 = vsub.f32 %v6369, %v6818
  %v7107 = vsub.f32 %v6370, %v6819
  %v7108 = vsub.f32 %v6371, %v6820
  %v7109 = vsub.f32 %v6372, %v6821
  %v7110 = vsub.f32 %v6373, %v6822
  %v7111 = vsub.f32 %v6374, %v6823
  %v7112 = vsub.f32 %v6375, %v6824
  %v7113 = vsub.f32 %v6376, %v6825
  %v7114 = vsub.f32 %v6377, %v6826
  %v7115 = vsub.f32 %v6378, %v6827
  %v7116 = vsub.f32 %v6379, %v6828
  %v7117 = vsub.f32 %v6380, %v6829
  %v7118 = vsub.f32 %v6381, %v6830
  %v7119 = vsub.f32 %v6382, %v6831
  %v7120 = vsub.f32 %v6383, %v6832
  %v7121 = vsub.f32 %v6384, %v6833
  %v7122 = vsub.f32 %v6385, %v6834
  %v7123 = vsub.f32 %v6386, %v6835
  %v7124 = vsub.f32 %v6387, %v6836
  %v7125 = vsub.f32 %v6388, %v6837
  %v7126 = vsub.f32 %v6389, %v6838
  %v7127 = vsub.f32 %v6390, %v6839
  %v7128 = vsub.f32 %v6391, %v6840
  %v7129 = vsub.f32 %v6392, %v6841
  %v7130 = vsub.f32 %v6393, %v6842
  %v7131 = vsub.f32 %v6394, %v6843
  %v7132 = vsub.f32 %v6395, %v6844
  %v7133 = vsub.f32 %v6396, %v6845
  %v7134 = vsub.f32 %v6397, %v6846
  %v7135 = vsub.f32 %v6398, %v6847
  %v7136 = vsub.f32 %v6399, %v6848
  %v7137 = vsub.f32 %v6400, %v6849
  %v7138 = vsub.f32 %v6401, %v6850
  %v7139 = vsub.f32 %v6402, %v6851
  %v7140 = vsub.f32 %v6403, %v6852
  %v7141 = vsub.f32 %v6404, %v6853
  %v7142 = vsub.f32 %v6405, %v6854
  %v7143 = vsub.f32 %v6406, %v6855
  %v7144 = vsub.f32 %v6407, %v6856
  %v7145 = vsub.f32 %v6408, %v6857
  %v7146 = vsub.f32 %v6409, %v6858
  %v7147 = vsub.f32 %v6410, %v6859
  %v7148 = vsub.f32 %v6411, %v6860
  %v7149 = vsub.f32 %v6412, %v6861
  %v7150 = vsub.f32 %v6413, %v6862
  %v7151 = vsub.f32 %v6414, %v6863
  %v7152 = vsub.f32 %v6415, %v6864
  %v7153 = vsub.f32 %v6416, %v6865
  %v7154 = vsub.f32 %v6417, %v6866
  %v7155 = vsub.f32 %v6418, %v6867
  %v7156 = vsub.f32 %v6419, %v6868
  %v7157 = vsub.f32 %v6420, %v6869
  %v7158 = vsub.f32 %v6421, %v6870
  %v7159 = vsub.f32 %v6422, %v6871
  %v7160 = vsub.f32 %v6423, %v6872
  %v7161 = vsub.f32 %v6424, %v6873
  %v7162 = vsub.f32 %v6425, %v6874
  %v7163 = vsub.f32 %v6426, %v6875
  %v7164 = vsub.f32 %v6427, %v6876
  %v7165 = vsub.f32 %v6428, %v6877
  %v7166 = vsub.f32 %v6429, %v6878
  %v7167 = vsub.f32 %v6430, %v6879
  %v7168 = vsub.f32 %v6431, %v6880
  %v7169 = vsub.f32 %v6432, %v6881
  %v7170 = vsub.f32 %v6433, %v6882
  %v7171 = vsub.f32 %v6434, %v6883
  %v7172 = vsub.f32 %v6435, %v6884
  %v7173 = vsub.f32 %v6436, %v6885
  %v7174 = vsub.f32 %v6437, %v6886
  %v7175 = vsub.f32 %v6438, %v6887
  %v7176 = vsub.f32 %v6439, %v6888
  %v7177 = vsub.f32 %v6440, %v6889
  %v7178 = vsub.f32 %v6441, %v6890
  %v7179 = vpack.c.bf16 %v6907, %v6891
  %v7180 = vpack.c.bf16 %v6908, %v6892
  %v7181 = vpack.c.bf16 %v6909, %v6893
  %v7182 = vpack.c.bf16 %v6910, %v6894
  %v7183 = vpack.c.bf16 %v6911, %v6895
  %v7184 = vpack.c.bf16 %v6912, %v6896
  %v7185 = vpack.c.bf16 %v6913, %v6897
  %v7186 = vpack.c.bf16 %v6914, %v6898
  %v7187 = vpack.c.bf16 %v6915, %v6899
  %v7188 = vpack.c.bf16 %v6916, %v6900
  %v7189 = vpack.c.bf16 %v6917, %v6901
  %v7190 = vpack.c.bf16 %v6918, %v6902
  %v7191 = vpack.c.bf16 %v6919, %v6903
  %v7192 = vpack.c.bf16 %v6920, %v6904
  %v7193 = vpack.c.bf16 %v6921, %v6905
  %v7194 = vpack.c.bf16 %v6922, %v6906
  %v7195 = vpack.c.bf16 %v6939, %v6923
  %v7196 = vpack.c.bf16 %v6940, %v6924
  %v7197 = vpack.c.bf16 %v6941, %v6925
  %v7198 = vpack.c.bf16 %v6942, %v6926
  %v7199 = vpack.c.bf16 %v6943, %v6927
  %v7200 = vpack.c.bf16 %v6944, %v6928
  %v7201 = vpack.c.bf16 %v6945, %v6929
  %v7202 = vpack.c.bf16 %v6946, %v6930
  %v7203 = vpack.c.bf16 %v6947, %v6931
  %v7204 = vpack.c.bf16 %v6948, %v6932
  %v7205 = vpack.c.bf16 %v6949, %v6933
  %v7206 = vpack.c.bf16 %v6950, %v6934
  %v7207 = vpack.c.bf16 %v6951, %v6935
  %v7208 = vpack.c.bf16 %v6952, %v6936
  %v7209 = vpack.c.bf16 %v6953, %v6937
  %v7210 = vpack.c.bf16 %v6954, %v6938
  %v7211 = vpack.c.bf16 %v6971, %v6955
  %v7212 = vpack.c.bf16 %v6972, %v6956
  %v7213 = vpack.c.bf16 %v6973, %v6957
  %v7214 = vpack.c.bf16 %v6974, %v6958
  %v7215 = vpack.c.bf16 %v6975, %v6959
  %v7216 = vpack.c.bf16 %v6976, %v6960
  %v7217 = vpack.c.bf16 %v6977, %v6961
  %v7218 = vpack.c.bf16 %v6978, %v6962
  %v7219 = vpack.c.bf16 %v6979, %v6963
  %v7220 = vpack.c.bf16 %v6980, %v6964
  %v7221 = vpack.c.bf16 %v6981, %v6965
  %v7222 = vpack.c.bf16 %v6982, %v6966
  %v7223 = vpack.c.bf16 %v6983, %v6967
  %v7224 = vpack.c.bf16 %v6984, %v6968
  %v7225 = vpack.c.bf16 %v6985, %v6969
  %v7226 = vpack.c.bf16 %v6986, %v6970
  %v7227 = vpack.c.bf16 %v7003, %v6987
  %v7228 = vpack.c.bf16 %v7004, %v6988
  %v7229 = vpack.c.bf16 %v7005, %v6989
  %v7230 = vpack.c.bf16 %v7006, %v6990
  %v7231 = vpack.c.bf16 %v7007, %v6991
  %v7232 = vpack.c.bf16 %v7008, %v6992
  %v7233 = vpack.c.bf16 %v7009, %v6993
  %v7234 = vpack.c.bf16 %v7010, %v6994
  %v7235 = vpack.c.bf16 %v7011, %v6995
  %v7236 = vpack.c.bf16 %v7012, %v6996
  %v7237 = vpack.c.bf16 %v7013, %v6997
  %v7238 = vpack.c.bf16 %v7014, %v6998
  %v7239 = vpack.c.bf16 %v7015, %v6999
  %v7240 = vpack.c.bf16 %v7016, %v7000
  %v7241 = vpack.c.bf16 %v7017, %v7001
  %v7242 = vpack.c.bf16 %v7018, %v7002
  %v7243 = vpack.c.bf16 %v7035, %v7019
  %v7244 = vpack.c.bf16 %v7036, %v7020
  %v7245 = vpack.c.bf16 %v7037, %v7021
  %v7246 = vpack.c.bf16 %v7038, %v7022
  %v7247 = vpack.c.bf16 %v7039, %v7023
  %v7248 = vpack.c.bf16 %v7040, %v7024
  %v7249 = vpack.c.bf16 %v7041, %v7025
  %v7250 = vpack.c.bf16 %v7042, %v7026
  %v7251 = vpack.c.bf16 %v7043, %v7027
  %v7252 = vpack.c.bf16 %v7044, %v7028
  %v7253 = vpack.c.bf16 %v7045, %v7029
  %v7254 = vpack.c.bf16 %v7046, %v7030
  %v7255 = vpack.c.bf16 %v7047, %v7031
  %v7256 = vpack.c.bf16 %v7048, %v7032
  %v7257 = vpack.c.bf16 %v7049, %v7033
  %v7258 = vpack.c.bf16 %v7050, %v7034
  %v7259 = vpack.c.bf16 %v7067, %v7051
  %v7260 = vpack.c.bf16 %v7068, %v7052
  %v7261 = vpack.c.bf16 %v7069, %v7053
  %v7262 = vpack.c.bf16 %v7070, %v7054
  %v7263 = vpack.c.bf16 %v7071, %v7055
  %v7264 = vpack.c.bf16 %v7072, %v7056
  %v7265 = vpack.c.bf16 %v7073, %v7057
  %v7266 = vpack.c.bf16 %v7074, %v7058
  %v7267 = vpack.c.bf16 %v7075, %v7059
  %v7268 = vpack.c.bf16 %v7076, %v7060
  %v7269 = vpack.c.bf16 %v7077, %v7061
  %v7270 = vpack.c.bf16 %v7078, %v7062
  %v7271 = vpack.c.bf16 %v7079, %v7063
  %v7272 = vpack.c.bf16 %v7080, %v7064
  %v7273 = vpack.c.bf16 %v7081, %v7065
  %v7274 = vpack.c.bf16 %v7082, %v7066
  %v7275 = vpack.c.bf16 %v7099, %v7083
  %v7276 = vpack.c.bf16 %v7100, %v7084
  %v7277 = vpack.c.bf16 %v7101, %v7085
  %v7278 = vpack.c.bf16 %v7102, %v7086
  %v7279 = vpack.c.bf16 %v7103, %v7087
  %v7280 = vpack.c.bf16 %v7104, %v7088
  %v7281 = vpack.c.bf16 %v7105, %v7089
  %v7282 = vpack.c.bf16 %v7106, %v7090
  %v7283 = vpack.c.bf16 %v7107, %v7091
  %v7284 = vpack.c.bf16 %v7108, %v7092
  %v7285 = vpack.c.bf16 %v7109, %v7093
  %v7286 = vpack.c.bf16 %v7110, %v7094
  %v7287 = vpack.c.bf16 %v7111, %v7095
  %v7288 = vpack.c.bf16 %v7112, %v7096
  %v7289 = vpack.c.bf16 %v7113, %v7097
  %v7290 = vpack.c.bf16 %v7114, %v7098
  %v7291 = vpack.c.bf16 %v7131, %v7115
  %v7292 = vpack.c.bf16 %v7132, %v7116
  %v7293 = vpack.c.bf16 %v7133, %v7117
  %v7294 = vpack.c.bf16 %v7134, %v7118
  %v7295 = vpack.c.bf16 %v7135, %v7119
  %v7296 = vpack.c.bf16 %v7136, %v7120
  %v7297 = vpack.c.bf16 %v7137, %v7121
  %v7298 = vpack.c.bf16 %v7138, %v7122
  %v7299 = vpack.c.bf16 %v7139, %v7123
  %v7300 = vpack.c.bf16 %v7140, %v7124
  %v7301 = vpack.c.bf16 %v7141, %v7125
  %v7302 = vpack.c.bf16 %v7142, %v7126
  %v7303 = vpack.c.bf16 %v7143, %v7127
  %v7304 = vpack.c.bf16 %v7144, %v7128
  %v7305 = vpack.c.bf16 %v7145, %v7129
  %v7306 = vpack.c.bf16 %v7146, %v7130
  %v7307 = vpack.c.bf16 %v7163, %v7147
  %v7308 = vpack.c.bf16 %v7164, %v7148
  %v7309 = vpack.c.bf16 %v7165, %v7149
  %v7310 = vpack.c.bf16 %v7166, %v7150
  %v7311 = vpack.c.bf16 %v7167, %v7151
  %v7312 = vpack.c.bf16 %v7168, %v7152
  %v7313 = vpack.c.bf16 %v7169, %v7153
  %v7314 = vpack.c.bf16 %v7170, %v7154
  %v7315 = vpack.c.bf16 %v7171, %v7155
  %v7316 = vpack.c.bf16 %v7172, %v7156
  %v7317 = vpack.c.bf16 %v7173, %v7157
  %v7318 = vpack.c.bf16 %v7174, %v7158
  %v7319 = vpack.c.bf16 %v7175, %v7159
  %v7320 = vpack.c.bf16 %v7176, %v7160
  %v7321 = vpack.c.bf16 %v7177, %v7161
  %v7322 = vpack.c.bf16 %v7178, %v7162
  %vm7323 = vcmask 130048
  %v7325 = vsel %vm7323, %v6458, 0
  %7327 = vmatprep.subr.bf16.mxu0 %v6572
  %7328 = vmatpush1.bf16.msra.mxu0 %v6571
  %7329 = vmatprep.subr.bf16.mxu0 %v6556
  %7330 = vmatpush1.bf16.msra.mxu0 %v6555
  %7331 = vmatprep.subr.bf16.mxu0 %v6540
  %7332 = vmatpush1.bf16.msra.mxu0 %v6539
  %7333 = vmatprep.subr.bf16.mxu0 %v6524
  %7334 = vmatpush1.bf16.msra.mxu0 %v6523
  %7335 = vmatprep.subr.bf16.mxu0 %v6508
  %7336 = vmatpush1.bf16.msra.mxu0 %v6507
  %7337 = vmatprep.subr.bf16.mxu0 %v6492
  %7338 = vmatpush1.bf16.msra.mxu0 %v6491
  %7339 = vmatprep.subr.bf16.mxu0 %v6476
  %7340 = vmatpush1.bf16.msra.mxu0 %v6475
  %7341 = vmatprep.subr.bf16.mxu0 %v6460
  %7342 = vmatpush1.bf16.msra.mxu0 %v6459
  %7343 = vmatprep.subr.bf16.mxu0 0
  %7344 = vmatpush2.bf16.msra.mxu0 0
  %7345 = vmatprep.subr.bf16.mxu0 0
  %7346 = vmatpush2.bf16.msra.mxu0 0
  %7347 = vmatprep.subr.bf16.mxu0 0
  %7348 = vmatpush2.bf16.msra.mxu0 0
  %7349 = vmatprep.subr.bf16.mxu0 0
  %7350 = vmatpush2.bf16.msra.mxu0 0
  %7351 = vmatprep.subr.bf16.mxu0 0
  %7352 = vmatpush2.bf16.msra.mxu0 0
  %7353 = vmatprep.subr.bf16.mxu0 0
  %7354 = vmatpush2.bf16.msra.mxu0 0
  %7355 = vmatprep.subr.bf16.mxu0 0
  %7356 = vmatpush2.bf16.msra.mxu0 0
  %7357 = vmatprep.subr.bf16.mxu0 %v6588
  %7358 = vmatpush2.bf16.msra.mxu0 %v6587
  %7359 = vmatprep.mubr.bf16.mxu0 %v7325
  %7360 = vmatmul.mubr.bf16.gmra.mxu0 %v6457
  %v7361 = vpop.f32.mrf.mxu0
  %v7362 = vadd.f32 0.0, %v7361
  %v7363 = vpop.f32.mrf.mxu0
  %v7364 = vadd.f32 0.0, %v7363
  %v7365 = vpop.f32.mrf.mxu0
  %v7366 = vpop.f32.mrf.mxu0
  %7367 = vdwg.mxu0
  %7368 = vmatprep.subr.bf16.mxu0 %v6574
  %7369 = vmatpush1.bf16.msra.mxu0 %v6573
  %7370 = vmatprep.subr.bf16.mxu0 %v6558
  %7371 = vmatpush1.bf16.msra.mxu0 %v6557
  %7372 = vmatprep.subr.bf16.mxu0 %v6542
  %7373 = vmatpush1.bf16.msra.mxu0 %v6541
  %7374 = vmatprep.subr.bf16.mxu0 %v6526
  %7375 = vmatpush1.bf16.msra.mxu0 %v6525
  %7376 = vmatprep.subr.bf16.mxu0 %v6510
  %7377 = vmatpush1.bf16.msra.mxu0 %v6509
  %7378 = vmatprep.subr.bf16.mxu0 %v6494
  %7379 = vmatpush1.bf16.msra.mxu0 %v6493
  %7380 = vmatprep.subr.bf16.mxu0 %v6478
  %7381 = vmatpush1.bf16.msra.mxu0 %v6477
  %7382 = vmatprep.subr.bf16.mxu0 %v6462
  %7383 = vmatpush1.bf16.msra.mxu0 %v6461
  %7384 = vmatprep.subr.bf16.mxu0 0
  %7385 = vmatpush2.bf16.msra.mxu0 0
  %7386 = vmatprep.subr.bf16.mxu0 0
  %7387 = vmatpush2.bf16.msra.mxu0 0
  %7388 = vmatprep.subr.bf16.mxu0 0
  %7389 = vmatpush2.bf16.msra.mxu0 0
  %7390 = vmatprep.subr.bf16.mxu0 0
  %7391 = vmatpush2.bf16.msra.mxu0 0
  %7392 = vmatprep.subr.bf16.mxu0 0
  %7393 = vmatpush2.bf16.msra.mxu0 0
  %7394 = vmatprep.subr.bf16.mxu0 0
  %7395 = vmatpush2.bf16.msra.mxu0 0
  %7396 = vmatprep.subr.bf16.mxu0 0
  %7397 = vmatpush2.bf16.msra.mxu0 0
  %7398 = vmatprep.subr.bf16.mxu0 %v6590
  %7399 = vmatpush2.bf16.msra.mxu0 %v6589
  %7400 = vmatprep.mubr.bf16.mxu0 %v7325
  %7401 = vmatmul.mubr.bf16.gmra.mxu0 %v6457
  %v7402 = vpop.f32.mrf.mxu0
  %v7403 = vadd.f32 0.0, %v7402
  %v7404 = vpop.f32.mrf.mxu0
  %v7405 = vadd.f32 0.0, %v7404
  %v7406 = vpop.f32.mrf.mxu0
  %v7407 = vpop.f32.mrf.mxu0
  %7408 = vdwg.mxu0
  %7409 = vmatprep.subr.bf16.mxu0 %v6576
  %7410 = vmatpush1.bf16.msra.mxu0 %v6575
  %7411 = vmatprep.subr.bf16.mxu0 %v6560
  %7412 = vmatpush1.bf16.msra.mxu0 %v6559
  %7413 = vmatprep.subr.bf16.mxu0 %v6544
  %7414 = vmatpush1.bf16.msra.mxu0 %v6543
  %7415 = vmatprep.subr.bf16.mxu0 %v6528
  %7416 = vmatpush1.bf16.msra.mxu0 %v6527
  %7417 = vmatprep.subr.bf16.mxu0 %v6512
  %7418 = vmatpush1.bf16.msra.mxu0 %v6511
  %7419 = vmatprep.subr.bf16.mxu0 %v6496
  %7420 = vmatpush1.bf16.msra.mxu0 %v6495
  %7421 = vmatprep.subr.bf16.mxu0 %v6480
  %7422 = vmatpush1.bf16.msra.mxu0 %v6479
  %7423 = vmatprep.subr.bf16.mxu0 %v6464
  %7424 = vmatpush1.bf16.msra.mxu0 %v6463
  %7425 = vmatprep.subr.bf16.mxu0 0
  %7426 = vmatpush2.bf16.msra.mxu0 0
  %7427 = vmatprep.subr.bf16.mxu0 0
  %7428 = vmatpush2.bf16.msra.mxu0 0
  %7429 = vmatprep.subr.bf16.mxu0 0
  %7430 = vmatpush2.bf16.msra.mxu0 0
  %7431 = vmatprep.subr.bf16.mxu0 0
  %7432 = vmatpush2.bf16.msra.mxu0 0
  %7433 = vmatprep.subr.bf16.mxu0 0
  %7434 = vmatpush2.bf16.msra.mxu0 0
  %7435 = vmatprep.subr.bf16.mxu0 0
  %7436 = vmatpush2.bf16.msra.mxu0 0
  %7437 = vmatprep.subr.bf16.mxu0 0
  %7438 = vmatpush2.bf16.msra.mxu0 0
  %7439 = vmatprep.subr.bf16.mxu0 %v6592
  %7440 = vmatpush2.bf16.msra.mxu0 %v6591
  %7441 = vmatprep.mubr.bf16.mxu0 %v7325
  %7442 = vmatmul.mubr.bf16.gmra.mxu0 %v6457
  %v7443 = vpop.f32.mrf.mxu0
  %v7444 = vadd.f32 0.0, %v7443
  %v7445 = vpop.f32.mrf.mxu0
  %v7446 = vadd.f32 0.0, %v7445
  %v7447 = vpop.f32.mrf.mxu0
  %v7448 = vpop.f32.mrf.mxu0
  %7449 = vdwg.mxu0
  %7450 = vmatprep.subr.bf16.mxu0 %v6578
  %7451 = vmatpush1.bf16.msra.mxu0 %v6577
  %7452 = vmatprep.subr.bf16.mxu0 %v6562
  %7453 = vmatpush1.bf16.msra.mxu0 %v6561
  %7454 = vmatprep.subr.bf16.mxu0 %v6546
  %7455 = vmatpush1.bf16.msra.mxu0 %v6545
  %7456 = vmatprep.subr.bf16.mxu0 %v6530
  %7457 = vmatpush1.bf16.msra.mxu0 %v6529
  %7458 = vmatprep.subr.bf16.mxu0 %v6514
  %7459 = vmatpush1.bf16.msra.mxu0 %v6513
  %7460 = vmatprep.subr.bf16.mxu0 %v6498
  %7461 = vmatpush1.bf16.msra.mxu0 %v6497
  %7462 = vmatprep.subr.bf16.mxu0 %v6482
  %7463 = vmatpush1.bf16.msra.mxu0 %v6481
  %7464 = vmatprep.subr.bf16.mxu0 %v6466
  %7465 = vmatpush1.bf16.msra.mxu0 %v6465
  %7466 = vmatprep.subr.bf16.mxu0 0
  %7467 = vmatpush2.bf16.msra.mxu0 0
  %7468 = vmatprep.subr.bf16.mxu0 0
  %7469 = vmatpush2.bf16.msra.mxu0 0
  %7470 = vmatprep.subr.bf16.mxu0 0
  %7471 = vmatpush2.bf16.msra.mxu0 0
  %7472 = vmatprep.subr.bf16.mxu0 0
  %7473 = vmatpush2.bf16.msra.mxu0 0
  %7474 = vmatprep.subr.bf16.mxu0 0
  %7475 = vmatpush2.bf16.msra.mxu0 0
  %7476 = vmatprep.subr.bf16.mxu0 0
  %7477 = vmatpush2.bf16.msra.mxu0 0
  %7478 = vmatprep.subr.bf16.mxu0 0
  %7479 = vmatpush2.bf16.msra.mxu0 0
  %7480 = vmatprep.subr.bf16.mxu0 %v6594
  %7481 = vmatpush2.bf16.msra.mxu0 %v6593
  %7482 = vmatprep.mubr.bf16.mxu0 %v7325
  %7483 = vmatmul.mubr.bf16.gmra.mxu0 %v6457
  %v7484 = vpop.f32.mrf.mxu0
  %v7485 = vadd.f32 0.0, %v7484
  %v7486 = vpop.f32.mrf.mxu0
  %v7487 = vadd.f32 0.0, %v7486
  %v7488 = vpop.f32.mrf.mxu0
  %v7489 = vpop.f32.mrf.mxu0
  %7490 = vdwg.mxu0
  %7491 = vmatprep.subr.bf16.mxu0 %v6580
  %7492 = vmatpush1.bf16.msra.mxu0 %v6579
  %7493 = vmatprep.subr.bf16.mxu0 %v6564
  %7494 = vmatpush1.bf16.msra.mxu0 %v6563
  %7495 = vmatprep.subr.bf16.mxu0 %v6548
  %7496 = vmatpush1.bf16.msra.mxu0 %v6547
  %7497 = vmatprep.subr.bf16.mxu0 %v6532
  %7498 = vmatpush1.bf16.msra.mxu0 %v6531
  %7499 = vmatprep.subr.bf16.mxu0 %v6516
  %7500 = vmatpush1.bf16.msra.mxu0 %v6515
  %7501 = vmatprep.subr.bf16.mxu0 %v6500
  %7502 = vmatpush1.bf16.msra.mxu0 %v6499
  %7503 = vmatprep.subr.bf16.mxu0 %v6484
  %7504 = vmatpush1.bf16.msra.mxu0 %v6483
  %7505 = vmatprep.subr.bf16.mxu0 %v6468
  %7506 = vmatpush1.bf16.msra.mxu0 %v6467
  %7507 = vmatprep.subr.bf16.mxu0 0
  %7508 = vmatpush2.bf16.msra.mxu0 0
  %7509 = vmatprep.subr.bf16.mxu0 0
  %7510 = vmatpush2.bf16.msra.mxu0 0
  %7511 = vmatprep.subr.bf16.mxu0 0
  %7512 = vmatpush2.bf16.msra.mxu0 0
  %7513 = vmatprep.subr.bf16.mxu0 0
  %7514 = vmatpush2.bf16.msra.mxu0 0
  %7515 = vmatprep.subr.bf16.mxu0 0
  %7516 = vmatpush2.bf16.msra.mxu0 0
  %7517 = vmatprep.subr.bf16.mxu0 0
  %7518 = vmatpush2.bf16.msra.mxu0 0
  %7519 = vmatprep.subr.bf16.mxu0 0
  %7520 = vmatpush2.bf16.msra.mxu0 0
  %7521 = vmatprep.subr.bf16.mxu0 %v6596
  %7522 = vmatpush2.bf16.msra.mxu0 %v6595
  %7523 = vmatprep.mubr.bf16.mxu0 %v7325
  %7524 = vmatmul.mubr.bf16.gmra.mxu0 %v6457
  %v7525 = vpop.f32.mrf.mxu0
  %v7526 = vadd.f32 0.0, %v7525
  %v7527 = vpop.f32.mrf.mxu0
  %v7528 = vadd.f32 0.0, %v7527
  %v7529 = vpop.f32.mrf.mxu0
  %v7530 = vpop.f32.mrf.mxu0
  %7531 = vdwg.mxu0
  %7532 = vmatprep.subr.bf16.mxu0 %v6582
  %7533 = vmatpush1.bf16.msra.mxu0 %v6581
  %7534 = vmatprep.subr.bf16.mxu0 %v6566
  %7535 = vmatpush1.bf16.msra.mxu0 %v6565
  %7536 = vmatprep.subr.bf16.mxu0 %v6550
  %7537 = vmatpush1.bf16.msra.mxu0 %v6549
  %7538 = vmatprep.subr.bf16.mxu0 %v6534
  %7539 = vmatpush1.bf16.msra.mxu0 %v6533
  %7540 = vmatprep.subr.bf16.mxu0 %v6518
  %7541 = vmatpush1.bf16.msra.mxu0 %v6517
  %7542 = vmatprep.subr.bf16.mxu0 %v6502
  %7543 = vmatpush1.bf16.msra.mxu0 %v6501
  %7544 = vmatprep.subr.bf16.mxu0 %v6486
  %7545 = vmatpush1.bf16.msra.mxu0 %v6485
  %7546 = vmatprep.subr.bf16.mxu0 %v6470
  %7547 = vmatpush1.bf16.msra.mxu0 %v6469
  %7548 = vmatprep.subr.bf16.mxu0 0
  %7549 = vmatpush2.bf16.msra.mxu0 0
  %7550 = vmatprep.subr.bf16.mxu0 0
  %7551 = vmatpush2.bf16.msra.mxu0 0
  %7552 = vmatprep.subr.bf16.mxu0 0
  %7553 = vmatpush2.bf16.msra.mxu0 0
  %7554 = vmatprep.subr.bf16.mxu0 0
  %7555 = vmatpush2.bf16.msra.mxu0 0
  %7556 = vmatprep.subr.bf16.mxu0 0
  %7557 = vmatpush2.bf16.msra.mxu0 0
  %7558 = vmatprep.subr.bf16.mxu0 0
  %7559 = vmatpush2.bf16.msra.mxu0 0
  %7560 = vmatprep.subr.bf16.mxu0 0
  %7561 = vmatpush2.bf16.msra.mxu0 0
  %7562 = vmatprep.subr.bf16.mxu0 %v6598
  %7563 = vmatpush2.bf16.msra.mxu0 %v6597
  %7564 = vmatprep.mubr.bf16.mxu0 %v7325
  %7565 = vmatmul.mubr.bf16.gmra.mxu0 %v6457
  %v7566 = vpop.f32.mrf.mxu0
  %v7567 = vadd.f32 0.0, %v7566
  %v7568 = vpop.f32.mrf.mxu0
  %v7569 = vadd.f32 0.0, %v7568
  %v7570 = vpop.f32.mrf.mxu0
  %v7571 = vpop.f32.mrf.mxu0
  %7572 = vdwg.mxu0
  %7573 = vmatprep.subr.bf16.mxu0 %v6584
  %7574 = vmatpush1.bf16.msra.mxu0 %v6583
  %7575 = vmatprep.subr.bf16.mxu0 %v6568
  %7576 = vmatpush1.bf16.msra.mxu0 %v6567
  %7577 = vmatprep.subr.bf16.mxu0 %v6552
  %7578 = vmatpush1.bf16.msra.mxu0 %v6551
  %7579 = vmatprep.subr.bf16.mxu0 %v6536
  %7580 = vmatpush1.bf16.msra.mxu0 %v6535
  %7581 = vmatprep.subr.bf16.mxu0 %v6520
  %7582 = vmatpush1.bf16.msra.mxu0 %v6519
  %7583 = vmatprep.subr.bf16.mxu0 %v6504
  %7584 = vmatpush1.bf16.msra.mxu0 %v6503
  %7585 = vmatprep.subr.bf16.mxu0 %v6488
  %7586 = vmatpush1.bf16.msra.mxu0 %v6487
  %7587 = vmatprep.subr.bf16.mxu0 %v6472
  %7588 = vmatpush1.bf16.msra.mxu0 %v6471
  %7589 = vmatprep.subr.bf16.mxu0 0
  %7590 = vmatpush2.bf16.msra.mxu0 0
  %7591 = vmatprep.subr.bf16.mxu0 0
  %7592 = vmatpush2.bf16.msra.mxu0 0
  %7593 = vmatprep.subr.bf16.mxu0 0
  %7594 = vmatpush2.bf16.msra.mxu0 0
  %7595 = vmatprep.subr.bf16.mxu0 0
  %7596 = vmatpush2.bf16.msra.mxu0 0
  %7597 = vmatprep.subr.bf16.mxu0 0
  %7598 = vmatpush2.bf16.msra.mxu0 0
  %7599 = vmatprep.subr.bf16.mxu0 0
  %7600 = vmatpush2.bf16.msra.mxu0 0
  %7601 = vmatprep.subr.bf16.mxu0 0
  %7602 = vmatpush2.bf16.msra.mxu0 0
  %7603 = vmatprep.subr.bf16.mxu0 %v6600
  %7604 = vmatpush2.bf16.msra.mxu0 %v6599
  %7605 = vmatprep.mubr.bf16.mxu0 %v7325
  %7606 = vmatmul.mubr.bf16.gmra.mxu0 %v6457
  %v7607 = vpop.f32.mrf.mxu0
  %v7608 = vadd.f32 0.0, %v7607
  %v7609 = vpop.f32.mrf.mxu0
  %v7610 = vadd.f32 0.0, %v7609
  %v7611 = vpop.f32.mrf.mxu0
  %v7612 = vpop.f32.mrf.mxu0
  %7613 = vdwg.mxu0
  %7614 = vmatprep.subr.bf16.mxu0 %v6586
  %7615 = vmatpush1.bf16.msra.mxu0 %v6585
  %7616 = vmatprep.subr.bf16.mxu0 %v6570
  %7617 = vmatpush1.bf16.msra.mxu0 %v6569
  %7618 = vmatprep.subr.bf16.mxu0 %v6554
  %7619 = vmatpush1.bf16.msra.mxu0 %v6553
  %7620 = vmatprep.subr.bf16.mxu0 %v6538
  %7621 = vmatpush1.bf16.msra.mxu0 %v6537
  %7622 = vmatprep.subr.bf16.mxu0 %v6522
  %7623 = vmatpush1.bf16.msra.mxu0 %v6521
  %7624 = vmatprep.subr.bf16.mxu0 %v6506
  %7625 = vmatpush1.bf16.msra.mxu0 %v6505
  %7626 = vmatprep.subr.bf16.mxu0 %v6490
  %7627 = vmatpush1.bf16.msra.mxu0 %v6489
  %7628 = vmatprep.subr.bf16.mxu0 %v6474
  %7629 = vmatpush1.bf16.msra.mxu0 %v6473
  %7630 = vmatprep.subr.bf16.mxu0 0
  %7631 = vmatpush2.bf16.msra.mxu0 0
  %7632 = vmatprep.subr.bf16.mxu0 0
  %7633 = vmatpush2.bf16.msra.mxu0 0
  %7634 = vmatprep.subr.bf16.mxu0 0
  %7635 = vmatpush2.bf16.msra.mxu0 0
  %7636 = vmatprep.subr.bf16.mxu0 0
  %7637 = vmatpush2.bf16.msra.mxu0 0
  %7638 = vmatprep.subr.bf16.mxu0 0
  %7639 = vmatpush2.bf16.msra.mxu0 0
  %7640 = vmatprep.subr.bf16.mxu0 0
  %7641 = vmatpush2.bf16.msra.mxu0 0
  %7642 = vmatprep.subr.bf16.mxu0 0
  %7643 = vmatpush2.bf16.msra.mxu0 0
  %7644 = vmatprep.subr.bf16.mxu0 %v6602
  %7645 = vmatpush2.bf16.msra.mxu0 %v6601
  %7646 = vmatprep.mubr.bf16.mxu0 %v7325
  %7647 = vmatmul.mubr.bf16.gmra.mxu0 %v6457
  %v7648 = vpop.f32.mrf.mxu0
  %v7649 = vadd.f32 0.0, %v7648
  %v7650 = vpop.f32.mrf.mxu0
  %v7651 = vadd.f32 0.0, %v7650
  %v7652 = vpop.f32.mrf.mxu0
  %v7653 = vpop.f32.mrf.mxu0
  %7654 = vdwg.mxu0
  %v7656 = vsel %vm7323, %v6446, 0
  %7658 = vmatprep.subr.bf16.mxu0 %v6572
  %7659 = vmatpush1.bf16.msra.mxu0 %v6571
  %7660 = vmatprep.subr.bf16.mxu0 %v6556
  %7661 = vmatpush1.bf16.msra.mxu0 %v6555
  %7662 = vmatprep.subr.bf16.mxu0 %v6540
  %7663 = vmatpush1.bf16.msra.mxu0 %v6539
  %7664 = vmatprep.subr.bf16.mxu0 %v6524
  %7665 = vmatpush1.bf16.msra.mxu0 %v6523
  %7666 = vmatprep.subr.bf16.mxu0 %v6508
  %7667 = vmatpush1.bf16.msra.mxu0 %v6507
  %7668 = vmatprep.subr.bf16.mxu0 %v6492
  %7669 = vmatpush1.bf16.msra.mxu0 %v6491
  %7670 = vmatprep.subr.bf16.mxu0 %v6476
  %7671 = vmatpush1.bf16.msra.mxu0 %v6475
  %7672 = vmatprep.subr.bf16.mxu0 %v6460
  %7673 = vmatpush1.bf16.msra.mxu0 %v6459
  %7674 = vmatprep.subr.bf16.mxu0 0
  %7675 = vmatpush2.bf16.msra.mxu0 0
  %7676 = vmatprep.subr.bf16.mxu0 0
  %7677 = vmatpush2.bf16.msra.mxu0 0
  %7678 = vmatprep.subr.bf16.mxu0 0
  %7679 = vmatpush2.bf16.msra.mxu0 0
  %7680 = vmatprep.subr.bf16.mxu0 0
  %7681 = vmatpush2.bf16.msra.mxu0 0
  %7682 = vmatprep.subr.bf16.mxu0 0
  %7683 = vmatpush2.bf16.msra.mxu0 0
  %7684 = vmatprep.subr.bf16.mxu0 0
  %7685 = vmatpush2.bf16.msra.mxu0 0
  %7686 = vmatprep.subr.bf16.mxu0 0
  %7687 = vmatpush2.bf16.msra.mxu0 0
  %7688 = vmatprep.subr.bf16.mxu0 %v6588
  %7689 = vmatpush2.bf16.msra.mxu0 %v6587
  %7690 = vmatprep.mubr.bf16.mxu0 %v7656
  %7691 = vmatmul.mubr.bf16.gmra.mxu0 %v6445
  %v7692 = vpop.f32.mrf.mxu0
  %v7693 = vadd.f32 %v7362, %v7692
  %v7694 = vpop.f32.mrf.mxu0
  %v7695 = vadd.f32 %v7364, %v7694
  %v7696 = vpop.f32.mrf.mxu0
  %v7697 = vpop.f32.mrf.mxu0
  %7698 = vdwg.mxu0
  %7699 = vmatprep.subr.bf16.mxu0 %v6574
  %7700 = vmatpush1.bf16.msra.mxu0 %v6573
  %7701 = vmatprep.subr.bf16.mxu0 %v6558
  %7702 = vmatpush1.bf16.msra.mxu0 %v6557
  %7703 = vmatprep.subr.bf16.mxu0 %v6542
  %7704 = vmatpush1.bf16.msra.mxu0 %v6541
  %7705 = vmatprep.subr.bf16.mxu0 %v6526
  %7706 = vmatpush1.bf16.msra.mxu0 %v6525
  %7707 = vmatprep.subr.bf16.mxu0 %v6510
  %7708 = vmatpush1.bf16.msra.mxu0 %v6509
  %7709 = vmatprep.subr.bf16.mxu0 %v6494
  %7710 = vmatpush1.bf16.msra.mxu0 %v6493
  %7711 = vmatprep.subr.bf16.mxu0 %v6478
  %7712 = vmatpush1.bf16.msra.mxu0 %v6477
  %7713 = vmatprep.subr.bf16.mxu0 %v6462
  %7714 = vmatpush1.bf16.msra.mxu0 %v6461
  %7715 = vmatprep.subr.bf16.mxu0 0
  %7716 = vmatpush2.bf16.msra.mxu0 0
  %7717 = vmatprep.subr.bf16.mxu0 0
  %7718 = vmatpush2.bf16.msra.mxu0 0
  %7719 = vmatprep.subr.bf16.mxu0 0
  %7720 = vmatpush2.bf16.msra.mxu0 0
  %7721 = vmatprep.subr.bf16.mxu0 0
  %7722 = vmatpush2.bf16.msra.mxu0 0
  %7723 = vmatprep.subr.bf16.mxu0 0
  %7724 = vmatpush2.bf16.msra.mxu0 0
  %7725 = vmatprep.subr.bf16.mxu0 0
  %7726 = vmatpush2.bf16.msra.mxu0 0
  %7727 = vmatprep.subr.bf16.mxu0 0
  %7728 = vmatpush2.bf16.msra.mxu0 0
  %7729 = vmatprep.subr.bf16.mxu0 %v6590
  %7730 = vmatpush2.bf16.msra.mxu0 %v6589
  %7731 = vmatprep.mubr.bf16.mxu0 %v7656
  %7732 = vmatmul.mubr.bf16.gmra.mxu0 %v6445
  %v7733 = vpop.f32.mrf.mxu0
  %v7734 = vadd.f32 %v7403, %v7733
  %v7735 = vpop.f32.mrf.mxu0
  %v7736 = vadd.f32 %v7405, %v7735
  %v7737 = vpop.f32.mrf.mxu0
  %v7738 = vpop.f32.mrf.mxu0
  %7739 = vdwg.mxu0
  %7740 = vmatprep.subr.bf16.mxu0 %v6576
  %7741 = vmatpush1.bf16.msra.mxu0 %v6575
  %7742 = vmatprep.subr.bf16.mxu0 %v6560
  %7743 = vmatpush1.bf16.msra.mxu0 %v6559
  %7744 = vmatprep.subr.bf16.mxu0 %v6544
  %7745 = vmatpush1.bf16.msra.mxu0 %v6543
  %7746 = vmatprep.subr.bf16.mxu0 %v6528
  %7747 = vmatpush1.bf16.msra.mxu0 %v6527
  %7748 = vmatprep.subr.bf16.mxu0 %v6512
  %7749 = vmatpush1.bf16.msra.mxu0 %v6511
  %7750 = vmatprep.subr.bf16.mxu0 %v6496
  %7751 = vmatpush1.bf16.msra.mxu0 %v6495
  %7752 = vmatprep.subr.bf16.mxu0 %v6480
  %7753 = vmatpush1.bf16.msra.mxu0 %v6479
  %7754 = vmatprep.subr.bf16.mxu0 %v6464
  %7755 = vmatpush1.bf16.msra.mxu0 %v6463
  %7756 = vmatprep.subr.bf16.mxu0 0
  %7757 = vmatpush2.bf16.msra.mxu0 0
  %7758 = vmatprep.subr.bf16.mxu0 0
  %7759 = vmatpush2.bf16.msra.mxu0 0
  %7760 = vmatprep.subr.bf16.mxu0 0
  %7761 = vmatpush2.bf16.msra.mxu0 0
  %7762 = vmatprep.subr.bf16.mxu0 0
  %7763 = vmatpush2.bf16.msra.mxu0 0
  %7764 = vmatprep.subr.bf16.mxu0 0
  %7765 = vmatpush2.bf16.msra.mxu0 0
  %7766 = vmatprep.subr.bf16.mxu0 0
  %7767 = vmatpush2.bf16.msra.mxu0 0
  %7768 = vmatprep.subr.bf16.mxu0 0
  %7769 = vmatpush2.bf16.msra.mxu0 0
  %7770 = vmatprep.subr.bf16.mxu0 %v6592
  %7771 = vmatpush2.bf16.msra.mxu0 %v6591
  %7772 = vmatprep.mubr.bf16.mxu0 %v7656
  %7773 = vmatmul.mubr.bf16.gmra.mxu0 %v6445
  %v7774 = vpop.f32.mrf.mxu0
  %v7775 = vadd.f32 %v7444, %v7774
  %v7776 = vpop.f32.mrf.mxu0
  %v7777 = vadd.f32 %v7446, %v7776
  %v7778 = vpop.f32.mrf.mxu0
  %v7779 = vpop.f32.mrf.mxu0
  %7780 = vdwg.mxu0
  %7781 = vmatprep.subr.bf16.mxu0 %v6578
  %7782 = vmatpush1.bf16.msra.mxu0 %v6577
  %7783 = vmatprep.subr.bf16.mxu0 %v6562
  %7784 = vmatpush1.bf16.msra.mxu0 %v6561
  %7785 = vmatprep.subr.bf16.mxu0 %v6546
  %7786 = vmatpush1.bf16.msra.mxu0 %v6545
  %7787 = vmatprep.subr.bf16.mxu0 %v6530
  %7788 = vmatpush1.bf16.msra.mxu0 %v6529
  %7789 = vmatprep.subr.bf16.mxu0 %v6514
  %7790 = vmatpush1.bf16.msra.mxu0 %v6513
  %7791 = vmatprep.subr.bf16.mxu0 %v6498
  %7792 = vmatpush1.bf16.msra.mxu0 %v6497
  %7793 = vmatprep.subr.bf16.mxu0 %v6482
  %7794 = vmatpush1.bf16.msra.mxu0 %v6481
  %7795 = vmatprep.subr.bf16.mxu0 %v6466
  %7796 = vmatpush1.bf16.msra.mxu0 %v6465
  %7797 = vmatprep.subr.bf16.mxu0 0
  %7798 = vmatpush2.bf16.msra.mxu0 0
  %7799 = vmatprep.subr.bf16.mxu0 0
  %7800 = vmatpush2.bf16.msra.mxu0 0
  %7801 = vmatprep.subr.bf16.mxu0 0
  %7802 = vmatpush2.bf16.msra.mxu0 0
  %7803 = vmatprep.subr.bf16.mxu0 0
  %7804 = vmatpush2.bf16.msra.mxu0 0
  %7805 = vmatprep.subr.bf16.mxu0 0
  %7806 = vmatpush2.bf16.msra.mxu0 0
  %7807 = vmatprep.subr.bf16.mxu0 0
  %7808 = vmatpush2.bf16.msra.mxu0 0
  %7809 = vmatprep.subr.bf16.mxu0 0
  %7810 = vmatpush2.bf16.msra.mxu0 0
  %7811 = vmatprep.subr.bf16.mxu0 %v6594
  %7812 = vmatpush2.bf16.msra.mxu0 %v6593
  %7813 = vmatprep.mubr.bf16.mxu0 %v7656
  %7814 = vmatmul.mubr.bf16.gmra.mxu0 %v6445
  %v7815 = vpop.f32.mrf.mxu0
  %v7816 = vadd.f32 %v7485, %v7815
  %v7817 = vpop.f32.mrf.mxu0
  %v7818 = vadd.f32 %v7487, %v7817
  %v7819 = vpop.f32.mrf.mxu0
  %v7820 = vpop.f32.mrf.mxu0
  %7821 = vdwg.mxu0
  %7822 = vmatprep.subr.bf16.mxu0 %v6580
  %7823 = vmatpush1.bf16.msra.mxu0 %v6579
  %7824 = vmatprep.subr.bf16.mxu0 %v6564
  %7825 = vmatpush1.bf16.msra.mxu0 %v6563
  %7826 = vmatprep.subr.bf16.mxu0 %v6548
  %7827 = vmatpush1.bf16.msra.mxu0 %v6547
  %7828 = vmatprep.subr.bf16.mxu0 %v6532
  %7829 = vmatpush1.bf16.msra.mxu0 %v6531
  %7830 = vmatprep.subr.bf16.mxu0 %v6516
  %7831 = vmatpush1.bf16.msra.mxu0 %v6515
  %7832 = vmatprep.subr.bf16.mxu0 %v6500
  %7833 = vmatpush1.bf16.msra.mxu0 %v6499
  %7834 = vmatprep.subr.bf16.mxu0 %v6484
  %7835 = vmatpush1.bf16.msra.mxu0 %v6483
  %7836 = vmatprep.subr.bf16.mxu0 %v6468
  %7837 = vmatpush1.bf16.msra.mxu0 %v6467
  %7838 = vmatprep.subr.bf16.mxu0 0
  %7839 = vmatpush2.bf16.msra.mxu0 0
  %7840 = vmatprep.subr.bf16.mxu0 0
  %7841 = vmatpush2.bf16.msra.mxu0 0
  %7842 = vmatprep.subr.bf16.mxu0 0
  %7843 = vmatpush2.bf16.msra.mxu0 0
  %7844 = vmatprep.subr.bf16.mxu0 0
  %7845 = vmatpush2.bf16.msra.mxu0 0
  %7846 = vmatprep.subr.bf16.mxu0 0
  %7847 = vmatpush2.bf16.msra.mxu0 0
  %7848 = vmatprep.subr.bf16.mxu0 0
  %7849 = vmatpush2.bf16.msra.mxu0 0
  %7850 = vmatprep.subr.bf16.mxu0 0
  %7851 = vmatpush2.bf16.msra.mxu0 0
  %7852 = vmatprep.subr.bf16.mxu0 %v6596
  %7853 = vmatpush2.bf16.msra.mxu0 %v6595
  %7854 = vmatprep.mubr.bf16.mxu0 %v7656
  %7855 = vmatmul.mubr.bf16.gmra.mxu0 %v6445
  %v7856 = vpop.f32.mrf.mxu0
  %v7857 = vadd.f32 %v7526, %v7856
  %v7858 = vpop.f32.mrf.mxu0
  %v7859 = vadd.f32 %v7528, %v7858
  %v7860 = vpop.f32.mrf.mxu0
  %v7861 = vpop.f32.mrf.mxu0
  %7862 = vdwg.mxu0
  %7863 = vmatprep.subr.bf16.mxu0 %v6582
  %7864 = vmatpush1.bf16.msra.mxu0 %v6581
  %7865 = vmatprep.subr.bf16.mxu0 %v6566
  %7866 = vmatpush1.bf16.msra.mxu0 %v6565
  %7867 = vmatprep.subr.bf16.mxu0 %v6550
  %7868 = vmatpush1.bf16.msra.mxu0 %v6549
  %7869 = vmatprep.subr.bf16.mxu0 %v6534
  %7870 = vmatpush1.bf16.msra.mxu0 %v6533
  %7871 = vmatprep.subr.bf16.mxu0 %v6518
  %7872 = vmatpush1.bf16.msra.mxu0 %v6517
  %7873 = vmatprep.subr.bf16.mxu0 %v6502
  %7874 = vmatpush1.bf16.msra.mxu0 %v6501
  %7875 = vmatprep.subr.bf16.mxu0 %v6486
  %7876 = vmatpush1.bf16.msra.mxu0 %v6485
  %7877 = vmatprep.subr.bf16.mxu0 %v6470
  %7878 = vmatpush1.bf16.msra.mxu0 %v6469
  %7879 = vmatprep.subr.bf16.mxu0 0
  %7880 = vmatpush2.bf16.msra.mxu0 0
  %7881 = vmatprep.subr.bf16.mxu0 0
  %7882 = vmatpush2.bf16.msra.mxu0 0
  %7883 = vmatprep.subr.bf16.mxu0 0
  %7884 = vmatpush2.bf16.msra.mxu0 0
  %7885 = vmatprep.subr.bf16.mxu0 0
  %7886 = vmatpush2.bf16.msra.mxu0 0
  %7887 = vmatprep.subr.bf16.mxu0 0
  %7888 = vmatpush2.bf16.msra.mxu0 0
  %7889 = vmatprep.subr.bf16.mxu0 0
  %7890 = vmatpush2.bf16.msra.mxu0 0
  %7891 = vmatprep.subr.bf16.mxu0 0
  %7892 = vmatpush2.bf16.msra.mxu0 0
  %7893 = vmatprep.subr.bf16.mxu0 %v6598
  %7894 = vmatpush2.bf16.msra.mxu0 %v6597
  %7895 = vmatprep.mubr.bf16.mxu0 %v7656
  %7896 = vmatmul.mubr.bf16.gmra.mxu0 %v6445
  %v7897 = vpop.f32.mrf.mxu0
  %v7898 = vadd.f32 %v7567, %v7897
  %v7899 = vpop.f32.mrf.mxu0
  %v7900 = vadd.f32 %v7569, %v7899
  %v7901 = vpop.f32.mrf.mxu0
  %v7902 = vpop.f32.mrf.mxu0
  %7903 = vdwg.mxu0
  %7904 = vmatprep.subr.bf16.mxu0 %v6584
  %7905 = vmatpush1.bf16.msra.mxu0 %v6583
  %7906 = vmatprep.subr.bf16.mxu0 %v6568
  %7907 = vmatpush1.bf16.msra.mxu0 %v6567
  %7908 = vmatprep.subr.bf16.mxu0 %v6552
  %7909 = vmatpush1.bf16.msra.mxu0 %v6551
  %7910 = vmatprep.subr.bf16.mxu0 %v6536
  %7911 = vmatpush1.bf16.msra.mxu0 %v6535
  %7912 = vmatprep.subr.bf16.mxu0 %v6520
  %7913 = vmatpush1.bf16.msra.mxu0 %v6519
  %7914 = vmatprep.subr.bf16.mxu0 %v6504
  %7915 = vmatpush1.bf16.msra.mxu0 %v6503
  %7916 = vmatprep.subr.bf16.mxu0 %v6488
  %7917 = vmatpush1.bf16.msra.mxu0 %v6487
  %7918 = vmatprep.subr.bf16.mxu0 %v6472
  %7919 = vmatpush1.bf16.msra.mxu0 %v6471
  %7920 = vmatprep.subr.bf16.mxu0 0
  %7921 = vmatpush2.bf16.msra.mxu0 0
  %7922 = vmatprep.subr.bf16.mxu0 0
  %7923 = vmatpush2.bf16.msra.mxu0 0
  %7924 = vmatprep.subr.bf16.mxu0 0
  %7925 = vmatpush2.bf16.msra.mxu0 0
  %7926 = vmatprep.subr.bf16.mxu0 0
  %7927 = vmatpush2.bf16.msra.mxu0 0
  %7928 = vmatprep.subr.bf16.mxu0 0
  %7929 = vmatpush2.bf16.msra.mxu0 0
  %7930 = vmatprep.subr.bf16.mxu0 0
  %7931 = vmatpush2.bf16.msra.mxu0 0
  %7932 = vmatprep.subr.bf16.mxu0 0
  %7933 = vmatpush2.bf16.msra.mxu0 0
  %7934 = vmatprep.subr.bf16.mxu0 %v6600
  %7935 = vmatpush2.bf16.msra.mxu0 %v6599
  %7936 = vmatprep.mubr.bf16.mxu0 %v7656
  %7937 = vmatmul.mubr.bf16.gmra.mxu0 %v6445
  %v7938 = vpop.f32.mrf.mxu0
  %v7939 = vadd.f32 %v7608, %v7938
  %v7940 = vpop.f32.mrf.mxu0
  %v7941 = vadd.f32 %v7610, %v7940
  %v7942 = vpop.f32.mrf.mxu0
  %v7943 = vpop.f32.mrf.mxu0
  %7944 = vdwg.mxu0
  %7945 = vmatprep.subr.bf16.mxu0 %v6586
  %7946 = vmatpush1.bf16.msra.mxu0 %v6585
  %7947 = vmatprep.subr.bf16.mxu0 %v6570
  %7948 = vmatpush1.bf16.msra.mxu0 %v6569
  %7949 = vmatprep.subr.bf16.mxu0 %v6554
  %7950 = vmatpush1.bf16.msra.mxu0 %v6553
  %7951 = vmatprep.subr.bf16.mxu0 %v6538
  %7952 = vmatpush1.bf16.msra.mxu0 %v6537
  %7953 = vmatprep.subr.bf16.mxu0 %v6522
  %7954 = vmatpush1.bf16.msra.mxu0 %v6521
  %7955 = vmatprep.subr.bf16.mxu0 %v6506
  %7956 = vmatpush1.bf16.msra.mxu0 %v6505
  %7957 = vmatprep.subr.bf16.mxu0 %v6490
  %7958 = vmatpush1.bf16.msra.mxu0 %v6489
  %7959 = vmatprep.subr.bf16.mxu0 %v6474
  %7960 = vmatpush1.bf16.msra.mxu0 %v6473
  %7961 = vmatprep.subr.bf16.mxu0 0
  %7962 = vmatpush2.bf16.msra.mxu0 0
  %7963 = vmatprep.subr.bf16.mxu0 0
  %7964 = vmatpush2.bf16.msra.mxu0 0
  %7965 = vmatprep.subr.bf16.mxu0 0
  %7966 = vmatpush2.bf16.msra.mxu0 0
  %7967 = vmatprep.subr.bf16.mxu0 0
  %7968 = vmatpush2.bf16.msra.mxu0 0
  %7969 = vmatprep.subr.bf16.mxu0 0
  %7970 = vmatpush2.bf16.msra.mxu0 0
  %7971 = vmatprep.subr.bf16.mxu0 0
  %7972 = vmatpush2.bf16.msra.mxu0 0
  %7973 = vmatprep.subr.bf16.mxu0 0
  %7974 = vmatpush2.bf16.msra.mxu0 0
  %7975 = vmatprep.subr.bf16.mxu0 %v6602
  %7976 = vmatpush2.bf16.msra.mxu0 %v6601
  %7977 = vmatprep.mubr.bf16.mxu0 %v7656
  %7978 = vmatmul.mubr.bf16.gmra.mxu0 %v6445
  %v7979 = vpop.f32.mrf.mxu0
  %v7980 = vadd.f32 %v7649, %v7979
  %v7981 = vpop.f32.mrf.mxu0
  %v7982 = vadd.f32 %v7651, %v7981
  %v7983 = vpop.f32.mrf.mxu0
  %v7984 = vpop.f32.mrf.mxu0
  %7985 = vdwg.mxu0
  %7986 = vmatprep.subr.bf16.mxu0 %v7292
  %7987 = vmatpush1.bf16.msra.mxu0 %v7291
  %7988 = vmatprep.subr.bf16.mxu0 %v7276
  %7989 = vmatpush1.bf16.msra.mxu0 %v7275
  %7990 = vmatprep.subr.bf16.mxu0 %v7260
  %7991 = vmatpush1.bf16.msra.mxu0 %v7259
  %7992 = vmatprep.subr.bf16.mxu0 %v7244
  %7993 = vmatpush1.bf16.msra.mxu0 %v7243
  %7994 = vmatprep.subr.bf16.mxu0 %v7228
  %7995 = vmatpush1.bf16.msra.mxu0 %v7227
  %7996 = vmatprep.subr.bf16.mxu0 %v7212
  %7997 = vmatpush1.bf16.msra.mxu0 %v7211
  %7998 = vmatprep.subr.bf16.mxu0 %v7196
  %7999 = vmatpush1.bf16.msra.mxu0 %v7195
  %8000 = vmatprep.subr.bf16.mxu0 %v7180
  %8001 = vmatpush1.bf16.msra.mxu0 %v7179
  %8002 = vmatprep.subr.bf16.mxu0 0
  %8003 = vmatpush2.bf16.msra.mxu0 0
  %8004 = vmatprep.subr.bf16.mxu0 0
  %8005 = vmatpush2.bf16.msra.mxu0 0
  %8006 = vmatprep.subr.bf16.mxu0 0
  %8007 = vmatpush2.bf16.msra.mxu0 0
  %8008 = vmatprep.subr.bf16.mxu0 0
  %8009 = vmatpush2.bf16.msra.mxu0 0
  %8010 = vmatprep.subr.bf16.mxu0 0
  %8011 = vmatpush2.bf16.msra.mxu0 0
  %8012 = vmatprep.subr.bf16.mxu0 0
  %8013 = vmatpush2.bf16.msra.mxu0 0
  %8014 = vmatprep.subr.bf16.mxu0 0
  %8015 = vmatpush2.bf16.msra.mxu0 0
  %8016 = vmatprep.subr.bf16.mxu0 %v7308
  %8017 = vmatpush2.bf16.msra.mxu0 %v7307
  %8018 = vmatprep.mubr.bf16.mxu0 %v7656
  %8019 = vmatmul.mubr.bf16.gmra.mxu0 %v6445
  %v8020 = vpop.f32.mrf.mxu0
  %v8021 = vadd.f32 0.0, %v8020
  %v8022 = vpop.f32.mrf.mxu0
  %v8023 = vadd.f32 0.0, %v8022
  %v8024 = vpop.f32.mrf.mxu0
  %v8025 = vpop.f32.mrf.mxu0
  %8026 = vdwg.mxu0
  %8027 = vmatprep.subr.bf16.mxu0 %v7294
  %8028 = vmatpush1.bf16.msra.mxu0 %v7293
  %8029 = vmatprep.subr.bf16.mxu0 %v7278
  %8030 = vmatpush1.bf16.msra.mxu0 %v7277
  %8031 = vmatprep.subr.bf16.mxu0 %v7262
  %8032 = vmatpush1.bf16.msra.mxu0 %v7261
  %8033 = vmatprep.subr.bf16.mxu0 %v7246
  %8034 = vmatpush1.bf16.msra.mxu0 %v7245
  %8035 = vmatprep.subr.bf16.mxu0 %v7230
  %8036 = vmatpush1.bf16.msra.mxu0 %v7229
  %8037 = vmatprep.subr.bf16.mxu0 %v7214
  %8038 = vmatpush1.bf16.msra.mxu0 %v7213
  %8039 = vmatprep.subr.bf16.mxu0 %v7198
  %8040 = vmatpush1.bf16.msra.mxu0 %v7197
  %8041 = vmatprep.subr.bf16.mxu0 %v7182
  %8042 = vmatpush1.bf16.msra.mxu0 %v7181
  %8043 = vmatprep.subr.bf16.mxu0 0
  %8044 = vmatpush2.bf16.msra.mxu0 0
  %8045 = vmatprep.subr.bf16.mxu0 0
  %8046 = vmatpush2.bf16.msra.mxu0 0
  %8047 = vmatprep.subr.bf16.mxu0 0
  %8048 = vmatpush2.bf16.msra.mxu0 0
  %8049 = vmatprep.subr.bf16.mxu0 0
  %8050 = vmatpush2.bf16.msra.mxu0 0
  %8051 = vmatprep.subr.bf16.mxu0 0
  %8052 = vmatpush2.bf16.msra.mxu0 0
  %8053 = vmatprep.subr.bf16.mxu0 0
  %8054 = vmatpush2.bf16.msra.mxu0 0
  %8055 = vmatprep.subr.bf16.mxu0 0
  %8056 = vmatpush2.bf16.msra.mxu0 0
  %8057 = vmatprep.subr.bf16.mxu0 %v7310
  %8058 = vmatpush2.bf16.msra.mxu0 %v7309
  %8059 = vmatprep.mubr.bf16.mxu0 %v7656
  %8060 = vmatmul.mubr.bf16.gmra.mxu0 %v6445
  %v8061 = vpop.f32.mrf.mxu0
  %v8062 = vadd.f32 0.0, %v8061
  %v8063 = vpop.f32.mrf.mxu0
  %v8064 = vadd.f32 0.0, %v8063
  %v8065 = vpop.f32.mrf.mxu0
  %v8066 = vpop.f32.mrf.mxu0
  %8067 = vdwg.mxu0
  %8068 = vmatprep.subr.bf16.mxu0 %v7296
  %8069 = vmatpush1.bf16.msra.mxu0 %v7295
  %8070 = vmatprep.subr.bf16.mxu0 %v7280
  %8071 = vmatpush1.bf16.msra.mxu0 %v7279
  %8072 = vmatprep.subr.bf16.mxu0 %v7264
  %8073 = vmatpush1.bf16.msra.mxu0 %v7263
  %8074 = vmatprep.subr.bf16.mxu0 %v7248
  %8075 = vmatpush1.bf16.msra.mxu0 %v7247
  %8076 = vmatprep.subr.bf16.mxu0 %v7232
  %8077 = vmatpush1.bf16.msra.mxu0 %v7231
  %8078 = vmatprep.subr.bf16.mxu0 %v7216
  %8079 = vmatpush1.bf16.msra.mxu0 %v7215
  %8080 = vmatprep.subr.bf16.mxu0 %v7200
  %8081 = vmatpush1.bf16.msra.mxu0 %v7199
  %8082 = vmatprep.subr.bf16.mxu0 %v7184
  %8083 = vmatpush1.bf16.msra.mxu0 %v7183
  %8084 = vmatprep.subr.bf16.mxu0 0
  %8085 = vmatpush2.bf16.msra.mxu0 0
  %8086 = vmatprep.subr.bf16.mxu0 0
  %8087 = vmatpush2.bf16.msra.mxu0 0
  %8088 = vmatprep.subr.bf16.mxu0 0
  %8089 = vmatpush2.bf16.msra.mxu0 0
  %8090 = vmatprep.subr.bf16.mxu0 0
  %8091 = vmatpush2.bf16.msra.mxu0 0
  %8092 = vmatprep.subr.bf16.mxu0 0
  %8093 = vmatpush2.bf16.msra.mxu0 0
  %8094 = vmatprep.subr.bf16.mxu0 0
  %8095 = vmatpush2.bf16.msra.mxu0 0
  %8096 = vmatprep.subr.bf16.mxu0 0
  %8097 = vmatpush2.bf16.msra.mxu0 0
  %8098 = vmatprep.subr.bf16.mxu0 %v7312
  %8099 = vmatpush2.bf16.msra.mxu0 %v7311
  %8100 = vmatprep.mubr.bf16.mxu0 %v7656
  %8101 = vmatmul.mubr.bf16.gmra.mxu0 %v6445
  %v8102 = vpop.f32.mrf.mxu0
  %v8103 = vadd.f32 0.0, %v8102
  %v8104 = vpop.f32.mrf.mxu0
  %v8105 = vadd.f32 0.0, %v8104
  %v8106 = vpop.f32.mrf.mxu0
  %v8107 = vpop.f32.mrf.mxu0
  %8108 = vdwg.mxu0
  %8109 = vmatprep.subr.bf16.mxu0 %v7298
  %8110 = vmatpush1.bf16.msra.mxu0 %v7297
  %8111 = vmatprep.subr.bf16.mxu0 %v7282
  %8112 = vmatpush1.bf16.msra.mxu0 %v7281
  %8113 = vmatprep.subr.bf16.mxu0 %v7266
  %8114 = vmatpush1.bf16.msra.mxu0 %v7265
  %8115 = vmatprep.subr.bf16.mxu0 %v7250
  %8116 = vmatpush1.bf16.msra.mxu0 %v7249
  %8117 = vmatprep.subr.bf16.mxu0 %v7234
  %8118 = vmatpush1.bf16.msra.mxu0 %v7233
  %8119 = vmatprep.subr.bf16.mxu0 %v7218
  %8120 = vmatpush1.bf16.msra.mxu0 %v7217
  %8121 = vmatprep.subr.bf16.mxu0 %v7202
  %8122 = vmatpush1.bf16.msra.mxu0 %v7201
  %8123 = vmatprep.subr.bf16.mxu0 %v7186
  %8124 = vmatpush1.bf16.msra.mxu0 %v7185
  %8125 = vmatprep.subr.bf16.mxu0 0
  %8126 = vmatpush2.bf16.msra.mxu0 0
  %8127 = vmatprep.subr.bf16.mxu0 0
  %8128 = vmatpush2.bf16.msra.mxu0 0
  %8129 = vmatprep.subr.bf16.mxu0 0
  %8130 = vmatpush2.bf16.msra.mxu0 0
  %8131 = vmatprep.subr.bf16.mxu0 0
  %8132 = vmatpush2.bf16.msra.mxu0 0
  %8133 = vmatprep.subr.bf16.mxu0 0
  %8134 = vmatpush2.bf16.msra.mxu0 0
  %8135 = vmatprep.subr.bf16.mxu0 0
  %8136 = vmatpush2.bf16.msra.mxu0 0
  %8137 = vmatprep.subr.bf16.mxu0 0
  %8138 = vmatpush2.bf16.msra.mxu0 0
  %8139 = vmatprep.subr.bf16.mxu0 %v7314
  %8140 = vmatpush2.bf16.msra.mxu0 %v7313
  %8141 = vmatprep.mubr.bf16.mxu0 %v7656
  %8142 = vmatmul.mubr.bf16.gmra.mxu0 %v6445
  %v8143 = vpop.f32.mrf.mxu0
  %v8144 = vadd.f32 0.0, %v8143
  %v8145 = vpop.f32.mrf.mxu0
  %v8146 = vadd.f32 0.0, %v8145
  %v8147 = vpop.f32.mrf.mxu0
  %v8148 = vpop.f32.mrf.mxu0
  %8149 = vdwg.mxu0
  %8150 = vmatprep.subr.bf16.mxu0 %v7300
  %8151 = vmatpush1.bf16.msra.mxu0 %v7299
  %8152 = vmatprep.subr.bf16.mxu0 %v7284
  %8153 = vmatpush1.bf16.msra.mxu0 %v7283
  %8154 = vmatprep.subr.bf16.mxu0 %v7268
  %8155 = vmatpush1.bf16.msra.mxu0 %v7267
  %8156 = vmatprep.subr.bf16.mxu0 %v7252
  %8157 = vmatpush1.bf16.msra.mxu0 %v7251
  %8158 = vmatprep.subr.bf16.mxu0 %v7236
  %8159 = vmatpush1.bf16.msra.mxu0 %v7235
  %8160 = vmatprep.subr.bf16.mxu0 %v7220
  %8161 = vmatpush1.bf16.msra.mxu0 %v7219
  %8162 = vmatprep.subr.bf16.mxu0 %v7204
  %8163 = vmatpush1.bf16.msra.mxu0 %v7203
  %8164 = vmatprep.subr.bf16.mxu0 %v7188
  %8165 = vmatpush1.bf16.msra.mxu0 %v7187
  %8166 = vmatprep.subr.bf16.mxu0 0
  %8167 = vmatpush2.bf16.msra.mxu0 0
  %8168 = vmatprep.subr.bf16.mxu0 0
  %8169 = vmatpush2.bf16.msra.mxu0 0
  %8170 = vmatprep.subr.bf16.mxu0 0
  %8171 = vmatpush2.bf16.msra.mxu0 0
  %8172 = vmatprep.subr.bf16.mxu0 0
  %8173 = vmatpush2.bf16.msra.mxu0 0
  %8174 = vmatprep.subr.bf16.mxu0 0
  %8175 = vmatpush2.bf16.msra.mxu0 0
  %8176 = vmatprep.subr.bf16.mxu0 0
  %8177 = vmatpush2.bf16.msra.mxu0 0
  %8178 = vmatprep.subr.bf16.mxu0 0
  %8179 = vmatpush2.bf16.msra.mxu0 0
  %8180 = vmatprep.subr.bf16.mxu0 %v7316
  %8181 = vmatpush2.bf16.msra.mxu0 %v7315
  %8182 = vmatprep.mubr.bf16.mxu0 %v7656
  %8183 = vmatmul.mubr.bf16.gmra.mxu0 %v6445
  %v8184 = vpop.f32.mrf.mxu0
  %v8185 = vadd.f32 0.0, %v8184
  %v8186 = vpop.f32.mrf.mxu0
  %v8187 = vadd.f32 0.0, %v8186
  %v8188 = vpop.f32.mrf.mxu0
  %v8189 = vpop.f32.mrf.mxu0
  %8190 = vdwg.mxu0
  %8191 = vmatprep.subr.bf16.mxu0 %v7302
  %8192 = vmatpush1.bf16.msra.mxu0 %v7301
  %8193 = vmatprep.subr.bf16.mxu0 %v7286
  %8194 = vmatpush1.bf16.msra.mxu0 %v7285
  %8195 = vmatprep.subr.bf16.mxu0 %v7270
  %8196 = vmatpush1.bf16.msra.mxu0 %v7269
  %8197 = vmatprep.subr.bf16.mxu0 %v7254
  %8198 = vmatpush1.bf16.msra.mxu0 %v7253
  %8199 = vmatprep.subr.bf16.mxu0 %v7238
  %8200 = vmatpush1.bf16.msra.mxu0 %v7237
  %8201 = vmatprep.subr.bf16.mxu0 %v7222
  %8202 = vmatpush1.bf16.msra.mxu0 %v7221
  %8203 = vmatprep.subr.bf16.mxu0 %v7206
  %8204 = vmatpush1.bf16.msra.mxu0 %v7205
  %8205 = vmatprep.subr.bf16.mxu0 %v7190
  %8206 = vmatpush1.bf16.msra.mxu0 %v7189
  %8207 = vmatprep.subr.bf16.mxu0 0
  %8208 = vmatpush2.bf16.msra.mxu0 0
  %8209 = vmatprep.subr.bf16.mxu0 0
  %8210 = vmatpush2.bf16.msra.mxu0 0
  %8211 = vmatprep.subr.bf16.mxu0 0
  %8212 = vmatpush2.bf16.msra.mxu0 0
  %8213 = vmatprep.subr.bf16.mxu0 0
  %8214 = vmatpush2.bf16.msra.mxu0 0
  %8215 = vmatprep.subr.bf16.mxu0 0
  %8216 = vmatpush2.bf16.msra.mxu0 0
  %8217 = vmatprep.subr.bf16.mxu0 0
  %8218 = vmatpush2.bf16.msra.mxu0 0
  %8219 = vmatprep.subr.bf16.mxu0 0
  %8220 = vmatpush2.bf16.msra.mxu0 0
  %8221 = vmatprep.subr.bf16.mxu0 %v7318
  %8222 = vmatpush2.bf16.msra.mxu0 %v7317
  %8223 = vmatprep.mubr.bf16.mxu0 %v7656
  %8224 = vmatmul.mubr.bf16.gmra.mxu0 %v6445
  %v8225 = vpop.f32.mrf.mxu0
  %v8226 = vadd.f32 0.0, %v8225
  %v8227 = vpop.f32.mrf.mxu0
  %v8228 = vadd.f32 0.0, %v8227
  %v8229 = vpop.f32.mrf.mxu0
  %v8230 = vpop.f32.mrf.mxu0
  %8231 = vdwg.mxu0
  %8232 = vmatprep.subr.bf16.mxu0 %v7304
  %8233 = vmatpush1.bf16.msra.mxu0 %v7303
  %8234 = vmatprep.subr.bf16.mxu0 %v7288
  %8235 = vmatpush1.bf16.msra.mxu0 %v7287
  %8236 = vmatprep.subr.bf16.mxu0 %v7272
  %8237 = vmatpush1.bf16.msra.mxu0 %v7271
  %8238 = vmatprep.subr.bf16.mxu0 %v7256
  %8239 = vmatpush1.bf16.msra.mxu0 %v7255
  %8240 = vmatprep.subr.bf16.mxu0 %v7240
  %8241 = vmatpush1.bf16.msra.mxu0 %v7239
  %8242 = vmatprep.subr.bf16.mxu0 %v7224
  %8243 = vmatpush1.bf16.msra.mxu0 %v7223
  %8244 = vmatprep.subr.bf16.mxu0 %v7208
  %8245 = vmatpush1.bf16.msra.mxu0 %v7207
  %8246 = vmatprep.subr.bf16.mxu0 %v7192
  %8247 = vmatpush1.bf16.msra.mxu0 %v7191
  %8248 = vmatprep.subr.bf16.mxu0 0
  %8249 = vmatpush2.bf16.msra.mxu0 0
  %8250 = vmatprep.subr.bf16.mxu0 0
  %8251 = vmatpush2.bf16.msra.mxu0 0
  %8252 = vmatprep.subr.bf16.mxu0 0
  %8253 = vmatpush2.bf16.msra.mxu0 0
  %8254 = vmatprep.subr.bf16.mxu0 0
  %8255 = vmatpush2.bf16.msra.mxu0 0
  %8256 = vmatprep.subr.bf16.mxu0 0
  %8257 = vmatpush2.bf16.msra.mxu0 0
  %8258 = vmatprep.subr.bf16.mxu0 0
  %8259 = vmatpush2.bf16.msra.mxu0 0
  %8260 = vmatprep.subr.bf16.mxu0 0
  %8261 = vmatpush2.bf16.msra.mxu0 0
  %8262 = vmatprep.subr.bf16.mxu0 %v7320
  %8263 = vmatpush2.bf16.msra.mxu0 %v7319
  %8264 = vmatprep.mubr.bf16.mxu0 %v7656
  %8265 = vmatmul.mubr.bf16.gmra.mxu0 %v6445
  %v8266 = vpop.f32.mrf.mxu0
  %v8267 = vadd.f32 0.0, %v8266
  %v8268 = vpop.f32.mrf.mxu0
  %v8269 = vadd.f32 0.0, %v8268
  %v8270 = vpop.f32.mrf.mxu0
  %v8271 = vpop.f32.mrf.mxu0
  %8272 = vdwg.mxu0
  %8273 = vmatprep.subr.bf16.mxu0 %v7306
  %8274 = vmatpush1.bf16.msra.mxu0 %v7305
  %8275 = vmatprep.subr.bf16.mxu0 %v7290
  %8276 = vmatpush1.bf16.msra.mxu0 %v7289
  %8277 = vmatprep.subr.bf16.mxu0 %v7274
  %8278 = vmatpush1.bf16.msra.mxu0 %v7273
  %8279 = vmatprep.subr.bf16.mxu0 %v7258
  %8280 = vmatpush1.bf16.msra.mxu0 %v7257
  %8281 = vmatprep.subr.bf16.mxu0 %v7242
  %8282 = vmatpush1.bf16.msra.mxu0 %v7241
  %8283 = vmatprep.subr.bf16.mxu0 %v7226
  %8284 = vmatpush1.bf16.msra.mxu0 %v7225
  %8285 = vmatprep.subr.bf16.mxu0 %v7210
  %8286 = vmatpush1.bf16.msra.mxu0 %v7209
  %8287 = vmatprep.subr.bf16.mxu0 %v7194
  %8288 = vmatpush1.bf16.msra.mxu0 %v7193
  %8289 = vmatprep.subr.bf16.mxu0 0
  %8290 = vmatpush2.bf16.msra.mxu0 0
  %8291 = vmatprep.subr.bf16.mxu0 0
  %8292 = vmatpush2.bf16.msra.mxu0 0
  %8293 = vmatprep.subr.bf16.mxu0 0
  %8294 = vmatpush2.bf16.msra.mxu0 0
  %8295 = vmatprep.subr.bf16.mxu0 0
  %8296 = vmatpush2.bf16.msra.mxu0 0
  %8297 = vmatprep.subr.bf16.mxu0 0
  %8298 = vmatpush2.bf16.msra.mxu0 0
  %8299 = vmatprep.subr.bf16.mxu0 0
  %8300 = vmatpush2.bf16.msra.mxu0 0
  %8301 = vmatprep.subr.bf16.mxu0 0
  %8302 = vmatpush2.bf16.msra.mxu0 0
  %8303 = vmatprep.subr.bf16.mxu0 %v7322
  %8304 = vmatpush2.bf16.msra.mxu0 %v7321
  %8305 = vmatprep.mubr.bf16.mxu0 %v7656
  %8306 = vmatmul.mubr.bf16.gmra.mxu0 %v6445
  %v8307 = vpop.f32.mrf.mxu0
  %v8308 = vadd.f32 0.0, %v8307
  %v8309 = vpop.f32.mrf.mxu0
  %v8310 = vadd.f32 0.0, %v8309
  %v8311 = vpop.f32.mrf.mxu0
  %v8312 = vpop.f32.mrf.mxu0
  %8313 = vdwg.mxu0
  %v8314 = vadd.f32 %v7693, %v8021
  %v8315 = vadd.f32 %v7695, %v8023
  %v8316 = vadd.f32 %v7734, %v8062
  %v8317 = vadd.f32 %v7736, %v8064
  %v8318 = vadd.f32 %v7775, %v8103
  %v8319 = vadd.f32 %v7777, %v8105
  %v8320 = vadd.f32 %v7816, %v8144
  %v8321 = vadd.f32 %v7818, %v8146
  %v8322 = vadd.f32 %v7857, %v8185
  %v8323 = vadd.f32 %v7859, %v8187
  %v8324 = vadd.f32 %v7898, %v8226
  %v8325 = vadd.f32 %v7900, %v8228
  %v8326 = vadd.f32 %v7939, %v8267
  %v8327 = vadd.f32 %v7941, %v8269
  %v8328 = vadd.f32 %v7980, %v8308
  %v8329 = vadd.f32 %v7982, %v8310
  %v8330 = vld [vmem:[%s4] sm:$0xf]
  %8332 = vset.pattern.permute.xlu0 0
  %8333 = vperm.xlu0 %8332, %v8330
  %v8334 = vpop.permute.xlu0 %8333
  %v8336 = vadd.f32 %v8314, %v8334
  %v8337 = vadd.f32 %v8315, %v8334
  %v8338 = vadd.f32 %v8316, %v8334
  %v8339 = vadd.f32 %v8317, %v8334
  %v8340 = vadd.f32 %v8318, %v8334
  %v8341 = vadd.f32 %v8319, %v8334
  %v8342 = vadd.f32 %v8320, %v8334
  %v8343 = vadd.f32 %v8321, %v8334
  %v8344 = vadd.f32 %v8322, %v8334
  %v8345 = vadd.f32 %v8323, %v8334
  %v8346 = vadd.f32 %v8324, %v8334
  %v8347 = vadd.f32 %v8325, %v8334
  %v8348 = vadd.f32 %v8326, %v8334
  %v8349 = vadd.f32 %v8327, %v8334
  %v8350 = vadd.f32 %v8328, %v8334
  %v8351 = vadd.f32 %v8329, %v8334
  %v8352 = vmax.f32 %v8336, 0.0
  %v8353 = vmax.f32 %v8337, 0.0
  %v8354 = vmax.f32 %v8338, 0.0
  %v8355 = vmax.f32 %v8339, 0.0
  %v8356 = vmax.f32 %v8340, 0.0
  %v8357 = vmax.f32 %v8341, 0.0
  %v8358 = vmax.f32 %v8342, 0.0
  %v8359 = vmax.f32 %v8343, 0.0
  %v8360 = vmax.f32 %v8344, 0.0
  %v8361 = vmax.f32 %v8345, 0.0
  %v8362 = vmax.f32 %v8346, 0.0
  %v8363 = vmax.f32 %v8347, 0.0
  %v8364 = vmax.f32 %v8348, 0.0
  %v8365 = vmax.f32 %v8349, 0.0
  %v8366 = vmax.f32 %v8350, 0.0
  %v8367 = vmax.f32 %v8351, 0.0
  %v8368 = vmax.f32 %v8352, %v8356
  %v8369 = vmax.f32 %v8353, %v8357
  %v8370 = vmax.f32 %v8354, %v8358
  %v8371 = vmax.f32 %v8355, %v8359
  %v8372 = vmax.f32 %v8368, %v8369
  %v8373 = vmax.f32 %v8370, %v8371
  %v8374 = vmax.f32 %v8360, %v8364
  %v8375 = vmax.f32 %v8361, %v8365
  %v8376 = vmax.f32 %v8362, %v8366
  %v8377 = vmax.f32 %v8363, %v8367
  %v8378 = vmax.f32 %v8374, %v8375
  %v8379 = vmax.f32 %v8376, %v8377
  %v8380 = vld [vmem:[%s5] sm:$0xff]
  %v8381 = vld [vmem:[%s5 + $0x8] sm:$0xff]
  %v8382 = vld [vmem:[%s5 + $0x10] sm:$0xff]
  %v8383 = vld [vmem:[%s5 + $0x18] sm:$0xff]
  %v8384 = vld [vmem:[%s5 + $0x20] sm:$0xff]
  %v8385 = vld [vmem:[%s5 + $0x28] sm:$0xff]
  %v8386 = vld [vmem:[%s5 + $0x30] sm:$0xff]
  %v8387 = vld [vmem:[%s5 + $0x38] sm:$0xff]
  %v8388 = vpack.c.bf16 %v8381, %v8380
  %v8389 = vpack.c.bf16 %v8383, %v8382
  %v8390 = vpack.c.bf16 %v8385, %v8384
  %v8391 = vpack.c.bf16 %v8387, %v8386
  %v8392 = vunpack.c.l.bf16 %v8388
  %v8393 = vunpack.c.h.bf16 %v8388
  %v8394 = vunpack.c.l.bf16 %v8389
  %v8395 = vunpack.c.h.bf16 %v8389
  %v8396 = vunpack.c.l.bf16 %v8390
  %v8397 = vunpack.c.h.bf16 %v8390
  %v8398 = vunpack.c.l.bf16 %v8391
  %v8399 = vunpack.c.h.bf16 %v8391
  %v8400 = vsub.f32 %v8380, %v8392
  %v8401 = vsub.f32 %v8381, %v8393
  %v8402 = vsub.f32 %v8382, %v8394
  %v8403 = vsub.f32 %v8383, %v8395
  %v8404 = vsub.f32 %v8384, %v8396
  %v8405 = vsub.f32 %v8385, %v8397
  %v8406 = vsub.f32 %v8386, %v8398
  %v8407 = vsub.f32 %v8387, %v8399
  %v8408 = vpack.c.bf16 %v8401, %v8400
  %v8409 = vpack.c.bf16 %v8403, %v8402
  %v8410 = vpack.c.bf16 %v8405, %v8404
  %v8411 = vpack.c.bf16 %v8407, %v8406
  %v8412 = vpack.c.bf16 %v8372, %v8372
  %v8413 = vpack.c.bf16 %v8373, %v8373
  %v8414 = vpack.c.bf16 %v8378, %v8378
  %v8415 = vpack.c.bf16 %v8379, %v8379
  %v8416 = vunpack.c.l.bf16 %v8412
  %v8417 = vunpack.c.l.bf16 %v8413
  %v8418 = vunpack.c.l.bf16 %v8414
  %v8419 = vunpack.c.l.bf16 %v8415
  %v8420 = vsub.f32 %v8372, %v8416
  %v8421 = vsub.f32 %v8373, %v8417
  %v8422 = vsub.f32 %v8378, %v8418
  %v8423 = vsub.f32 %v8379, %v8419
  %v8424 = vpack.c.bf16 %v8420, %v8420
  %v8425 = vpack.c.bf16 %v8421, %v8421
  %v8426 = vpack.c.bf16 %v8422, %v8422
  %v8427 = vpack.c.bf16 %v8423, %v8423
  %vm8428 = vcmask 31744
  %v8430 = vsel %vm8428, %v8408, 0
  %v8433 = vsel %vm8428, %v8409, 0
  %v8436 = vsel %vm8428, %v8410, 0
  %v8439 = vsel %vm8428, %v8411, 0
  %vm8441 = vcmask 1041408
  %v8443 = vsel %vm8441, %v8412, 0
  %v8446 = vsel %vm8441, %v8413, 0
  %v8449 = vsel %vm8441, %v8414, 0
  %v8452 = vsel %vm8441, %v8415, 0
  %8454 = vmatprep.subr.bf16.mxu0 0
  %8455 = vmatpush1.bf16.msra.mxu0 0
  %8456 = vmatprep.subr.bf16.mxu0 0
  %8457 = vmatpush1.bf16.msra.mxu0 0
  %8458 = vmatprep.subr.bf16.mxu0 0
  %8459 = vmatpush1.bf16.msra.mxu0 0
  %8460 = vmatprep.subr.bf16.mxu0 0
  %8461 = vmatpush1.bf16.msra.mxu0 0
  %8462 = vmatprep.subr.bf16.mxu0 0
  %8463 = vmatpush1.bf16.msra.mxu0 0
  %8464 = vmatprep.subr.bf16.mxu0 0
  %8465 = vmatpush1.bf16.msra.mxu0 0
  %8466 = vmatprep.subr.bf16.mxu0 0
  %8467 = vmatpush1.bf16.msra.mxu0 0
  %8468 = vmatprep.subr.bf16.mxu0 %v8446
  %8469 = vmatpush1.bf16.msra.mxu0 %v8443
  %8470 = vmatprep.subr.bf16.mxu0 0
  %8471 = vmatpush2.bf16.msra.mxu0 0
  %8472 = vmatprep.subr.bf16.mxu0 0
  %8473 = vmatpush2.bf16.msra.mxu0 0
  %8474 = vmatprep.subr.bf16.mxu0 0
  %8475 = vmatpush2.bf16.msra.mxu0 0
  %8476 = vmatprep.subr.bf16.mxu0 0
  %8477 = vmatpush2.bf16.msra.mxu0 0
  %8478 = vmatprep.subr.bf16.mxu0 0
  %8479 = vmatpush2.bf16.msra.mxu0 0
  %8480 = vmatprep.subr.bf16.mxu0 0
  %8481 = vmatpush2.bf16.msra.mxu0 0
  %8482 = vmatprep.subr.bf16.mxu0 0
  %8483 = vmatpush2.bf16.msra.mxu0 0
  %8484 = vmatprep.subr.bf16.mxu0 0
  %8485 = vmatpush2.bf16.msra.mxu0 0
  %8486 = vmatprep.mubr.bf16.mxu0 0
  %8487 = vmatmul.mubr.bf16.gmra.mxu0 %v8430
  %v8488 = vpop.f32.mrf.mxu0
  %v8489 = vadd.f32 0.0, %v8488
  %v8490 = vpop.f32.mrf.mxu0
  %v8491 = vadd.f32 0.0, %v8490
  %v8492 = vpop.f32.mrf.mxu0
  %v8493 = vadd.f32 0.0, %v8492
  %v8494 = vpop.f32.mrf.mxu0
  %v8495 = vadd.f32 0.0, %v8494
  %8496 = vmatprep.mubr.bf16.mxu0 0
  %8497 = vmatmul.mubr.bf16.gmra.mxu0 %v8433
  %v8498 = vpop.f32.mrf.mxu0
  %v8499 = vadd.f32 0.0, %v8498
  %v8500 = vpop.f32.mrf.mxu0
  %v8501 = vadd.f32 0.0, %v8500
  %v8502 = vpop.f32.mrf.mxu0
  %v8503 = vadd.f32 0.0, %v8502
  %v8504 = vpop.f32.mrf.mxu0
  %v8505 = vadd.f32 0.0, %v8504
  %8506 = vmatprep.mubr.bf16.mxu0 0
  %8507 = vmatmul.mubr.bf16.gmra.mxu0 %v8436
  %v8508 = vpop.f32.mrf.mxu0
  %v8509 = vadd.f32 0.0, %v8508
  %v8510 = vpop.f32.mrf.mxu0
  %v8511 = vadd.f32 0.0, %v8510
  %v8512 = vpop.f32.mrf.mxu0
  %v8513 = vadd.f32 0.0, %v8512
  %v8514 = vpop.f32.mrf.mxu0
  %v8515 = vadd.f32 0.0, %v8514
  %8516 = vmatprep.mubr.bf16.mxu0 0
  %8517 = vmatmul.mubr.bf16.gmra.mxu0 %v8439
  %v8518 = vpop.f32.mrf.mxu0
  %v8519 = vadd.f32 0.0, %v8518
  %v8520 = vpop.f32.mrf.mxu0
  %v8521 = vadd.f32 0.0, %v8520
  %v8522 = vpop.f32.mrf.mxu0
  %v8523 = vadd.f32 0.0, %v8522
  %v8524 = vpop.f32.mrf.mxu0
  %v8525 = vadd.f32 0.0, %v8524
  %8526 = vdwg.mxu0
  %8527 = vmatprep.subr.bf16.mxu0 0
  %8528 = vmatpush1.bf16.msra.mxu0 0
  %8529 = vmatprep.subr.bf16.mxu0 0
  %8530 = vmatpush1.bf16.msra.mxu0 0
  %8531 = vmatprep.subr.bf16.mxu0 0
  %8532 = vmatpush1.bf16.msra.mxu0 0
  %8533 = vmatprep.subr.bf16.mxu0 0
  %8534 = vmatpush1.bf16.msra.mxu0 0
  %8535 = vmatprep.subr.bf16.mxu0 0
  %8536 = vmatpush1.bf16.msra.mxu0 0
  %8537 = vmatprep.subr.bf16.mxu0 0
  %8538 = vmatpush1.bf16.msra.mxu0 0
  %8539 = vmatprep.subr.bf16.mxu0 0
  %8540 = vmatpush1.bf16.msra.mxu0 0
  %8541 = vmatprep.subr.bf16.mxu0 %v8452
  %8542 = vmatpush1.bf16.msra.mxu0 %v8449
  %8543 = vmatprep.subr.bf16.mxu0 0
  %8544 = vmatpush2.bf16.msra.mxu0 0
  %8545 = vmatprep.subr.bf16.mxu0 0
  %8546 = vmatpush2.bf16.msra.mxu0 0
  %8547 = vmatprep.subr.bf16.mxu0 0
  %8548 = vmatpush2.bf16.msra.mxu0 0
  %8549 = vmatprep.subr.bf16.mxu0 0
  %8550 = vmatpush2.bf16.msra.mxu0 0
  %8551 = vmatprep.subr.bf16.mxu0 0
  %8552 = vmatpush2.bf16.msra.mxu0 0
  %8553 = vmatprep.subr.bf16.mxu0 0
  %8554 = vmatpush2.bf16.msra.mxu0 0
  %8555 = vmatprep.subr.bf16.mxu0 0
  %8556 = vmatpush2.bf16.msra.mxu0 0
  %8557 = vmatprep.subr.bf16.mxu0 0
  %8558 = vmatpush2.bf16.msra.mxu0 0
  %8559 = vmatprep.mubr.bf16.mxu0 0
  %8560 = vmatmul.mubr.bf16.gmra.mxu0 %v8430
  %v8561 = vpop.f32.mrf.mxu0
  %v8562 = vadd.f32 0.0, %v8561
  %v8563 = vpop.f32.mrf.mxu0
  %v8564 = vadd.f32 0.0, %v8563
  %v8565 = vpop.f32.mrf.mxu0
  %v8566 = vadd.f32 0.0, %v8565
  %v8567 = vpop.f32.mrf.mxu0
  %v8568 = vadd.f32 0.0, %v8567
  %8569 = vmatprep.mubr.bf16.mxu0 0
  %8570 = vmatmul.mubr.bf16.gmra.mxu0 %v8433
  %v8571 = vpop.f32.mrf.mxu0
  %v8572 = vadd.f32 0.0, %v8571
  %v8573 = vpop.f32.mrf.mxu0
  %v8574 = vadd.f32 0.0, %v8573
  %v8575 = vpop.f32.mrf.mxu0
  %v8576 = vadd.f32 0.0, %v8575
  %v8577 = vpop.f32.mrf.mxu0
  %v8578 = vadd.f32 0.0, %v8577
  %8579 = vmatprep.mubr.bf16.mxu0 0
  %8580 = vmatmul.mubr.bf16.gmra.mxu0 %v8436
  %v8581 = vpop.f32.mrf.mxu0
  %v8582 = vadd.f32 0.0, %v8581
  %v8583 = vpop.f32.mrf.mxu0
  %v8584 = vadd.f32 0.0, %v8583
  %v8585 = vpop.f32.mrf.mxu0
  %v8586 = vadd.f32 0.0, %v8585
  %v8587 = vpop.f32.mrf.mxu0
  %v8588 = vadd.f32 0.0, %v8587
  %8589 = vmatprep.mubr.bf16.mxu0 0
  %8590 = vmatmul.mubr.bf16.gmra.mxu0 %v8439
  %v8591 = vpop.f32.mrf.mxu0
  %v8592 = vadd.f32 0.0, %v8591
  %v8593 = vpop.f32.mrf.mxu0
  %v8594 = vadd.f32 0.0, %v8593
  %v8595 = vpop.f32.mrf.mxu0
  %v8596 = vadd.f32 0.0, %v8595
  %v8597 = vpop.f32.mrf.mxu0
  %v8598 = vadd.f32 0.0, %v8597
  %8599 = vdwg.mxu0
  %v8601 = vsel %vm8428, %v8388, 0
  %v8604 = vsel %vm8428, %v8389, 0
  %v8607 = vsel %vm8428, %v8390, 0
  %v8610 = vsel %vm8428, %v8391, 0
  %8612 = vmatprep.subr.bf16.mxu0 0
  %8613 = vmatpush1.bf16.msra.mxu0 0
  %8614 = vmatprep.subr.bf16.mxu0 0
  %8615 = vmatpush1.bf16.msra.mxu0 0
  %8616 = vmatprep.subr.bf16.mxu0 0
  %8617 = vmatpush1.bf16.msra.mxu0 0
  %8618 = vmatprep.subr.bf16.mxu0 0
  %8619 = vmatpush1.bf16.msra.mxu0 0
  %8620 = vmatprep.subr.bf16.mxu0 0
  %8621 = vmatpush1.bf16.msra.mxu0 0
  %8622 = vmatprep.subr.bf16.mxu0 0
  %8623 = vmatpush1.bf16.msra.mxu0 0
  %8624 = vmatprep.subr.bf16.mxu0 0
  %8625 = vmatpush1.bf16.msra.mxu0 0
  %8626 = vmatprep.subr.bf16.mxu0 %v8446
  %8627 = vmatpush1.bf16.msra.mxu0 %v8443
  %8628 = vmatprep.subr.bf16.mxu0 0
  %8629 = vmatpush2.bf16.msra.mxu0 0
  %8630 = vmatprep.subr.bf16.mxu0 0
  %8631 = vmatpush2.bf16.msra.mxu0 0
  %8632 = vmatprep.subr.bf16.mxu0 0
  %8633 = vmatpush2.bf16.msra.mxu0 0
  %8634 = vmatprep.subr.bf16.mxu0 0
  %8635 = vmatpush2.bf16.msra.mxu0 0
  %8636 = vmatprep.subr.bf16.mxu0 0
  %8637 = vmatpush2.bf16.msra.mxu0 0
  %8638 = vmatprep.subr.bf16.mxu0 0
  %8639 = vmatpush2.bf16.msra.mxu0 0
  %8640 = vmatprep.subr.bf16.mxu0 0
  %8641 = vmatpush2.bf16.msra.mxu0 0
  %8642 = vmatprep.subr.bf16.mxu0 0
  %8643 = vmatpush2.bf16.msra.mxu0 0
  %8644 = vmatprep.mubr.bf16.mxu0 0
  %8645 = vmatmul.mubr.bf16.gmra.mxu0 %v8601
  %v8646 = vpop.f32.mrf.mxu0
  %v8647 = vadd.f32 %v8489, %v8646
  %v8648 = vpop.f32.mrf.mxu0
  %v8649 = vadd.f32 %v8491, %v8648
  %v8650 = vpop.f32.mrf.mxu0
  %v8651 = vadd.f32 %v8493, %v8650
  %v8652 = vpop.f32.mrf.mxu0
  %v8653 = vadd.f32 %v8495, %v8652
  %8654 = vmatprep.mubr.bf16.mxu0 0
  %8655 = vmatmul.mubr.bf16.gmra.mxu0 %v8604
  %v8656 = vpop.f32.mrf.mxu0
  %v8657 = vadd.f32 %v8499, %v8656
  %v8658 = vpop.f32.mrf.mxu0
  %v8659 = vadd.f32 %v8501, %v8658
  %v8660 = vpop.f32.mrf.mxu0
  %v8661 = vadd.f32 %v8503, %v8660
  %v8662 = vpop.f32.mrf.mxu0
  %v8663 = vadd.f32 %v8505, %v8662
  %8664 = vmatprep.mubr.bf16.mxu0 0
  %8665 = vmatmul.mubr.bf16.gmra.mxu0 %v8607
  %v8666 = vpop.f32.mrf.mxu0
  %v8667 = vadd.f32 %v8509, %v8666
  %v8668 = vpop.f32.mrf.mxu0
  %v8669 = vadd.f32 %v8511, %v8668
  %v8670 = vpop.f32.mrf.mxu0
  %v8671 = vadd.f32 %v8513, %v8670
  %v8672 = vpop.f32.mrf.mxu0
  %v8673 = vadd.f32 %v8515, %v8672
  %8674 = vmatprep.mubr.bf16.mxu0 0
  %8675 = vmatmul.mubr.bf16.gmra.mxu0 %v8610
  %v8676 = vpop.f32.mrf.mxu0
  %v8677 = vadd.f32 %v8519, %v8676
  %v8678 = vpop.f32.mrf.mxu0
  %v8679 = vadd.f32 %v8521, %v8678
  %v8680 = vpop.f32.mrf.mxu0
  %v8681 = vadd.f32 %v8523, %v8680
  %v8682 = vpop.f32.mrf.mxu0
  %v8683 = vadd.f32 %v8525, %v8682
  %8684 = vdwg.mxu0
  %8685 = vmatprep.subr.bf16.mxu0 0
  %8686 = vmatpush1.bf16.msra.mxu0 0
  %8687 = vmatprep.subr.bf16.mxu0 0
  %8688 = vmatpush1.bf16.msra.mxu0 0
  %8689 = vmatprep.subr.bf16.mxu0 0
  %8690 = vmatpush1.bf16.msra.mxu0 0
  %8691 = vmatprep.subr.bf16.mxu0 0
  %8692 = vmatpush1.bf16.msra.mxu0 0
  %8693 = vmatprep.subr.bf16.mxu0 0
  %8694 = vmatpush1.bf16.msra.mxu0 0
  %8695 = vmatprep.subr.bf16.mxu0 0
  %8696 = vmatpush1.bf16.msra.mxu0 0
  %8697 = vmatprep.subr.bf16.mxu0 0
  %8698 = vmatpush1.bf16.msra.mxu0 0
  %8699 = vmatprep.subr.bf16.mxu0 %v8452
  %8700 = vmatpush1.bf16.msra.mxu0 %v8449
  %8701 = vmatprep.subr.bf16.mxu0 0
  %8702 = vmatpush2.bf16.msra.mxu0 0
  %8703 = vmatprep.subr.bf16.mxu0 0
  %8704 = vmatpush2.bf16.msra.mxu0 0
  %8705 = vmatprep.subr.bf16.mxu0 0
  %8706 = vmatpush2.bf16.msra.mxu0 0
  %8707 = vmatprep.subr.bf16.mxu0 0
  %8708 = vmatpush2.bf16.msra.mxu0 0
  %8709 = vmatprep.subr.bf16.mxu0 0
  %8710 = vmatpush2.bf16.msra.mxu0 0
  %8711 = vmatprep.subr.bf16.mxu0 0
  %8712 = vmatpush2.bf16.msra.mxu0 0
  %8713 = vmatprep.subr.bf16.mxu0 0
  %8714 = vmatpush2.bf16.msra.mxu0 0
  %8715 = vmatprep.subr.bf16.mxu0 0
  %8716 = vmatpush2.bf16.msra.mxu0 0
  %8717 = vmatprep.mubr.bf16.mxu0 0
  %8718 = vmatmul.mubr.bf16.gmra.mxu0 %v8601
  %v8719 = vpop.f32.mrf.mxu0
  %v8720 = vadd.f32 %v8562, %v8719
  %v8721 = vpop.f32.mrf.mxu0
  %v8722 = vadd.f32 %v8564, %v8721
  %v8723 = vpop.f32.mrf.mxu0
  %v8724 = vadd.f32 %v8566, %v8723
  %v8725 = vpop.f32.mrf.mxu0
  %v8726 = vadd.f32 %v8568, %v8725
  %8727 = vmatprep.mubr.bf16.mxu0 0
  %8728 = vmatmul.mubr.bf16.gmra.mxu0 %v8604
  %v8729 = vpop.f32.mrf.mxu0
  %v8730 = vadd.f32 %v8572, %v8729
  %v8731 = vpop.f32.mrf.mxu0
  %v8732 = vadd.f32 %v8574, %v8731
  %v8733 = vpop.f32.mrf.mxu0
  %v8734 = vadd.f32 %v8576, %v8733
  %v8735 = vpop.f32.mrf.mxu0
  %v8736 = vadd.f32 %v8578, %v8735
  %8737 = vmatprep.mubr.bf16.mxu0 0
  %8738 = vmatmul.mubr.bf16.gmra.mxu0 %v8607
  %v8739 = vpop.f32.mrf.mxu0
  %v8740 = vadd.f32 %v8582, %v8739
  %v8741 = vpop.f32.mrf.mxu0
  %v8742 = vadd.f32 %v8584, %v8741
  %v8743 = vpop.f32.mrf.mxu0
  %v8744 = vadd.f32 %v8586, %v8743
  %v8745 = vpop.f32.mrf.mxu0
  %v8746 = vadd.f32 %v8588, %v8745
  %8747 = vmatprep.mubr.bf16.mxu0 0
  %8748 = vmatmul.mubr.bf16.gmra.mxu0 %v8610
  %v8749 = vpop.f32.mrf.mxu0
  %v8750 = vadd.f32 %v8592, %v8749
  %v8751 = vpop.f32.mrf.mxu0
  %v8752 = vadd.f32 %v8594, %v8751
  %v8753 = vpop.f32.mrf.mxu0
  %v8754 = vadd.f32 %v8596, %v8753
  %v8755 = vpop.f32.mrf.mxu0
  %v8756 = vadd.f32 %v8598, %v8755
  %8757 = vdwg.mxu0
  %v8759 = vsel %vm8441, %v8424, 0
  %v8762 = vsel %vm8441, %v8425, 0
  %v8765 = vsel %vm8441, %v8426, 0
  %v8768 = vsel %vm8441, %v8427, 0
  %8770 = vmatprep.subr.bf16.mxu0 0
  %8771 = vmatpush1.bf16.msra.mxu0 0
  %8772 = vmatprep.subr.bf16.mxu0 0
  %8773 = vmatpush1.bf16.msra.mxu0 0
  %8774 = vmatprep.subr.bf16.mxu0 0
  %8775 = vmatpush1.bf16.msra.mxu0 0
  %8776 = vmatprep.subr.bf16.mxu0 0
  %8777 = vmatpush1.bf16.msra.mxu0 0
  %8778 = vmatprep.subr.bf16.mxu0 0
  %8779 = vmatpush1.bf16.msra.mxu0 0
  %8780 = vmatprep.subr.bf16.mxu0 0
  %8781 = vmatpush1.bf16.msra.mxu0 0
  %8782 = vmatprep.subr.bf16.mxu0 0
  %8783 = vmatpush1.bf16.msra.mxu0 0
  %8784 = vmatprep.subr.bf16.mxu0 %v8762
  %8785 = vmatpush1.bf16.msra.mxu0 %v8759
  %8786 = vmatprep.subr.bf16.mxu0 0
  %8787 = vmatpush2.bf16.msra.mxu0 0
  %8788 = vmatprep.subr.bf16.mxu0 0
  %8789 = vmatpush2.bf16.msra.mxu0 0
  %8790 = vmatprep.subr.bf16.mxu0 0
  %8791 = vmatpush2.bf16.msra.mxu0 0
  %8792 = vmatprep.subr.bf16.mxu0 0
  %8793 = vmatpush2.bf16.msra.mxu0 0
  %8794 = vmatprep.subr.bf16.mxu0 0
  %8795 = vmatpush2.bf16.msra.mxu0 0
  %8796 = vmatprep.subr.bf16.mxu0 0
  %8797 = vmatpush2.bf16.msra.mxu0 0
  %8798 = vmatprep.subr.bf16.mxu0 0
  %8799 = vmatpush2.bf16.msra.mxu0 0
  %8800 = vmatprep.subr.bf16.mxu0 0
  %8801 = vmatpush2.bf16.msra.mxu0 0
  %8802 = vmatprep.mubr.bf16.mxu0 0
  %8803 = vmatmul.mubr.bf16.gmra.mxu0 %v8601
  %v8804 = vpop.f32.mrf.mxu0
  %v8805 = vadd.f32 0.0, %v8804
  %v8806 = vpop.f32.mrf.mxu0
  %v8807 = vadd.f32 0.0, %v8806
  %v8808 = vpop.f32.mrf.mxu0
  %v8809 = vadd.f32 0.0, %v8808
  %v8810 = vpop.f32.mrf.mxu0
  %v8811 = vadd.f32 0.0, %v8810
  %8812 = vmatprep.mubr.bf16.mxu0 0
  %8813 = vmatmul.mubr.bf16.gmra.mxu0 %v8604
  %v8814 = vpop.f32.mrf.mxu0
  %v8815 = vadd.f32 0.0, %v8814
  %v8816 = vpop.f32.mrf.mxu0
  %v8817 = vadd.f32 0.0, %v8816
  %v8818 = vpop.f32.mrf.mxu0
  %v8819 = vadd.f32 0.0, %v8818
  %v8820 = vpop.f32.mrf.mxu0
  %v8821 = vadd.f32 0.0, %v8820
  %8822 = vmatprep.mubr.bf16.mxu0 0
  %8823 = vmatmul.mubr.bf16.gmra.mxu0 %v8607
  %v8824 = vpop.f32.mrf.mxu0
  %v8825 = vadd.f32 0.0, %v8824
  %v8826 = vpop.f32.mrf.mxu0
  %v8827 = vadd.f32 0.0, %v8826
  %v8828 = vpop.f32.mrf.mxu0
  %v8829 = vadd.f32 0.0, %v8828
  %v8830 = vpop.f32.mrf.mxu0
  %v8831 = vadd.f32 0.0, %v8830
  %8832 = vmatprep.mubr.bf16.mxu0 0
  %8833 = vmatmul.mubr.bf16.gmra.mxu0 %v8610
  %v8834 = vpop.f32.mrf.mxu0
  %v8835 = vadd.f32 0.0, %v8834
  %v8836 = vpop.f32.mrf.mxu0
  %v8837 = vadd.f32 0.0, %v8836
  %v8838 = vpop.f32.mrf.mxu0
  %v8839 = vadd.f32 0.0, %v8838
  %v8840 = vpop.f32.mrf.mxu0
  %v8841 = vadd.f32 0.0, %v8840
  %8842 = vdwg.mxu0
  %8843 = vmatprep.subr.bf16.mxu0 0
  %8844 = vmatpush1.bf16.msra.mxu0 0
  %8845 = vmatprep.subr.bf16.mxu0 0
  %8846 = vmatpush1.bf16.msra.mxu0 0
  %8847 = vmatprep.subr.bf16.mxu0 0
  %8848 = vmatpush1.bf16.msra.mxu0 0
  %8849 = vmatprep.subr.bf16.mxu0 0
  %8850 = vmatpush1.bf16.msra.mxu0 0
  %8851 = vmatprep.subr.bf16.mxu0 0
  %8852 = vmatpush1.bf16.msra.mxu0 0
  %8853 = vmatprep.subr.bf16.mxu0 0
  %8854 = vmatpush1.bf16.msra.mxu0 0
  %8855 = vmatprep.subr.bf16.mxu0 0
  %8856 = vmatpush1.bf16.msra.mxu0 0
  %8857 = vmatprep.subr.bf16.mxu0 %v8768
  %8858 = vmatpush1.bf16.msra.mxu0 %v8765
  %8859 = vmatprep.subr.bf16.mxu0 0
  %8860 = vmatpush2.bf16.msra.mxu0 0
  %8861 = vmatprep.subr.bf16.mxu0 0
  %8862 = vmatpush2.bf16.msra.mxu0 0
  %8863 = vmatprep.subr.bf16.mxu0 0
  %8864 = vmatpush2.bf16.msra.mxu0 0
  %8865 = vmatprep.subr.bf16.mxu0 0
  %8866 = vmatpush2.bf16.msra.mxu0 0
  %8867 = vmatprep.subr.bf16.mxu0 0
  %8868 = vmatpush2.bf16.msra.mxu0 0
  %8869 = vmatprep.subr.bf16.mxu0 0
  %8870 = vmatpush2.bf16.msra.mxu0 0
  %8871 = vmatprep.subr.bf16.mxu0 0
  %8872 = vmatpush2.bf16.msra.mxu0 0
  %8873 = vmatprep.subr.bf16.mxu0 0
  %8874 = vmatpush2.bf16.msra.mxu0 0
  %8875 = vmatprep.mubr.bf16.mxu0 0
  %8876 = vmatmul.mubr.bf16.gmra.mxu0 %v8601
  %v8877 = vpop.f32.mrf.mxu0
  %v8878 = vadd.f32 0.0, %v8877
  %v8879 = vpop.f32.mrf.mxu0
  %v8880 = vadd.f32 0.0, %v8879
  %v8881 = vpop.f32.mrf.mxu0
  %v8882 = vadd.f32 0.0, %v8881
  %v8883 = vpop.f32.mrf.mxu0
  %v8884 = vadd.f32 0.0, %v8883
  %8885 = vmatprep.mubr.bf16.mxu0 0
  %8886 = vmatmul.mubr.bf16.gmra.mxu0 %v8604
  %v8887 = vpop.f32.mrf.mxu0
  %v8888 = vadd.f32 0.0, %v8887
  %v8889 = vpop.f32.mrf.mxu0
  %v8890 = vadd.f32 0.0, %v8889
  %v8891 = vpop.f32.mrf.mxu0
  %v8892 = vadd.f32 0.0, %v8891
  %v8893 = vpop.f32.mrf.mxu0
  %v8894 = vadd.f32 0.0, %v8893
  %8895 = vmatprep.mubr.bf16.mxu0 0
  %8896 = vmatmul.mubr.bf16.gmra.mxu0 %v8607
  %v8897 = vpop.f32.mrf.mxu0
  %v8898 = vadd.f32 0.0, %v8897
  %v8899 = vpop.f32.mrf.mxu0
  %v8900 = vadd.f32 0.0, %v8899
  %v8901 = vpop.f32.mrf.mxu0
  %v8902 = vadd.f32 0.0, %v8901
  %v8903 = vpop.f32.mrf.mxu0
  %v8904 = vadd.f32 0.0, %v8903
  %8905 = vmatprep.mubr.bf16.mxu0 0
  %8906 = vmatmul.mubr.bf16.gmra.mxu0 %v8610
  %v8907 = vpop.f32.mrf.mxu0
  %v8908 = vadd.f32 0.0, %v8907
  %v8909 = vpop.f32.mrf.mxu0
  %v8910 = vadd.f32 0.0, %v8909
  %v8911 = vpop.f32.mrf.mxu0
  %v8912 = vadd.f32 0.0, %v8911
  %v8913 = vpop.f32.mrf.mxu0
  %v8914 = vadd.f32 0.0, %v8913
  %8915 = vdwg.mxu0
  %v8916 = vadd.f32 %v8647, %v8805
  %v8917 = vadd.f32 %v8649, %v8807
  %v8918 = vadd.f32 %v8720, %v8878
  %v8919 = vadd.f32 %v8722, %v8880
  %v8920 = vadd.f32 %v8651, %v8809
  %v8921 = vadd.f32 %v8653, %v8811
  %v8922 = vadd.f32 %v8724, %v8882
  %v8923 = vadd.f32 %v8726, %v8884
  %v8924 = vadd.f32 %v8657, %v8815
  %v8925 = vadd.f32 %v8659, %v8817
  %v8926 = vadd.f32 %v8730, %v8888
  %v8927 = vadd.f32 %v8732, %v8890
  %v8928 = vadd.f32 %v8661, %v8819
  %v8929 = vadd.f32 %v8663, %v8821
  %v8930 = vadd.f32 %v8734, %v8892
  %v8931 = vadd.f32 %v8736, %v8894
  %v8932 = vadd.f32 %v8667, %v8825
  %v8933 = vadd.f32 %v8669, %v8827
  %v8934 = vadd.f32 %v8740, %v8898
  %v8935 = vadd.f32 %v8742, %v8900
  %v8936 = vadd.f32 %v8671, %v8829
  %v8937 = vadd.f32 %v8673, %v8831
  %v8938 = vadd.f32 %v8744, %v8902
  %v8939 = vadd.f32 %v8746, %v8904
  %v8940 = vadd.f32 %v8677, %v8835
  %v8941 = vadd.f32 %v8679, %v8837
  %v8942 = vadd.f32 %v8750, %v8908
  %v8943 = vadd.f32 %v8752, %v8910
  %v8944 = vadd.f32 %v8681, %v8839
  %v8945 = vadd.f32 %v8683, %v8841
  %v8946 = vadd.f32 %v8754, %v8912
  %v8947 = vadd.f32 %v8756, %v8914
  %v8948 = vld [vmem:[%s6] sm:$0xff]
  %v8949 = vld [vmem:[%s6 + $0x8] sm:$0xff]
  %v8950 = vld [vmem:[%s6 + $0x10] sm:$0xff]
  %v8951 = vld [vmem:[%s6 + $0x18] sm:$0xff]
  %v8952 = vld [vmem:[%s6 + $0x20] sm:$0xff]
  %v8953 = vld [vmem:[%s6 + $0x28] sm:$0xff]
  %v8954 = vld [vmem:[%s6 + $0x30] sm:$0xff]
  %v8955 = vld [vmem:[%s6 + $0x38] sm:$0xff]
  %8957 = vset.pattern.permute.xlu0 0
  %8958 = vperm.xlu0 %8957, %v8948
  %v8959 = vpop.permute.xlu0 %8958
  %8962 = vset.pattern.permute.xlu0 0
  %8963 = vperm.xlu0 %8962, %v8949
  %v8964 = vpop.permute.xlu0 %8963
  %8967 = vset.pattern.permute.xlu0 0
  %8968 = vperm.xlu0 %8967, %v8950
  %v8969 = vpop.permute.xlu0 %8968
  %8972 = vset.pattern.permute.xlu0 0
  %8973 = vperm.xlu0 %8972, %v8951
  %v8974 = vpop.permute.xlu0 %8973
  %8977 = vset.pattern.permute.xlu0 0
  %8978 = vperm.xlu0 %8977, %v8952
  %v8979 = vpop.permute.xlu0 %8978
  %8982 = vset.pattern.permute.xlu0 0
  %8983 = vperm.xlu0 %8982, %v8953
  %v8984 = vpop.permute.xlu0 %8983
  %8987 = vset.pattern.permute.xlu0 0
  %8988 = vperm.xlu0 %8987, %v8954
  %v8989 = vpop.permute.xlu0 %8988
  %8992 = vset.pattern.permute.xlu0 0
  %8993 = vperm.xlu0 %8992, %v8955
  %v8994 = vpop.permute.xlu0 %8993
  %v8996 = vadd.f32 %v8916, %v8959
  %v8997 = vadd.f32 %v8917, %v8959
  %v8998 = vadd.f32 %v8918, %v8959
  %v8999 = vadd.f32 %v8919, %v8959
  %v9000 = vadd.f32 %v8920, %v8964
  %v9001 = vadd.f32 %v8921, %v8964
  %v9002 = vadd.f32 %v8922, %v8964
  %v9003 = vadd.f32 %v8923, %v8964
  %v9004 = vadd.f32 %v8924, %v8969
  %v9005 = vadd.f32 %v8925, %v8969
  %v9006 = vadd.f32 %v8926, %v8969
  %v9007 = vadd.f32 %v8927, %v8969
  %v9008 = vadd.f32 %v8928, %v8974
  %v9009 = vadd.f32 %v8929, %v8974
  %v9010 = vadd.f32 %v8930, %v8974
  %v9011 = vadd.f32 %v8931, %v8974
  %v9012 = vadd.f32 %v8932, %v8979
  %v9013 = vadd.f32 %v8933, %v8979
  %v9014 = vadd.f32 %v8934, %v8979
  %v9015 = vadd.f32 %v8935, %v8979
  %v9016 = vadd.f32 %v8936, %v8984
  %v9017 = vadd.f32 %v8937, %v8984
  %v9018 = vadd.f32 %v8938, %v8984
  %v9019 = vadd.f32 %v8939, %v8984
  %v9020 = vadd.f32 %v8940, %v8989
  %v9021 = vadd.f32 %v8941, %v8989
  %v9022 = vadd.f32 %v8942, %v8989
  %v9023 = vadd.f32 %v8943, %v8989
  %v9024 = vadd.f32 %v8944, %v8994
  %v9025 = vadd.f32 %v8945, %v8994
  %v9026 = vadd.f32 %v8946, %v8994
  %v9027 = vadd.f32 %v8947, %v8994
  %v9028 = vmax.f32 %v8996, 0.0
  %v9029 = vmax.f32 %v8997, 0.0
  %v9030 = vmax.f32 %v8998, 0.0
  %v9031 = vmax.f32 %v8999, 0.0
  %v9032 = vmax.f32 %v9000, 0.0
  %v9033 = vmax.f32 %v9001, 0.0
  %v9034 = vmax.f32 %v9002, 0.0
  %v9035 = vmax.f32 %v9003, 0.0
  %v9036 = vmax.f32 %v9004, 0.0
  %v9037 = vmax.f32 %v9005, 0.0
  %v9038 = vmax.f32 %v9006, 0.0
  %v9039 = vmax.f32 %v9007, 0.0
  %v9040 = vmax.f32 %v9008, 0.0
  %v9041 = vmax.f32 %v9009, 0.0
  %v9042 = vmax.f32 %v9010, 0.0
  %v9043 = vmax.f32 %v9011, 0.0
  %v9044 = vmax.f32 %v9012, 0.0
  %v9045 = vmax.f32 %v9013, 0.0
  %v9046 = vmax.f32 %v9014, 0.0
  %v9047 = vmax.f32 %v9015, 0.0
  %v9048 = vmax.f32 %v9016, 0.0
  %v9049 = vmax.f32 %v9017, 0.0
  %v9050 = vmax.f32 %v9018, 0.0
  %v9051 = vmax.f32 %v9019, 0.0
  %v9052 = vmax.f32 %v9020, 0.0
  %v9053 = vmax.f32 %v9021, 0.0
  %v9054 = vmax.f32 %v9022, 0.0
  %v9055 = vmax.f32 %v9023, 0.0
  %v9056 = vmax.f32 %v9024, 0.0
  %v9057 = vmax.f32 %v9025, 0.0
  %v9058 = vmax.f32 %v9026, 0.0
  %v9059 = vmax.f32 %v9027, 0.0
  %v9060 = vld [vmem:[%s7] sm:$0xff]
  %v9061 = vld [vmem:[%s7 + $0x8] sm:$0xff]
  %v9062 = vpack.c.bf16 %v9061, %v9060
  %v9063 = vunpack.c.l.bf16 %v9062
  %v9064 = vunpack.c.h.bf16 %v9062
  %v9065 = vsub.f32 %v9060, %v9063
  %v9066 = vsub.f32 %v9061, %v9064
  %v9067 = vpack.c.bf16 %v9066, %v9065
  %v9068 = vpack.c.bf16 %v9032, %v9028
  %v9069 = vpack.c.bf16 %v9033, %v9029
  %v9070 = vpack.c.bf16 %v9034, %v9030
  %v9071 = vpack.c.bf16 %v9035, %v9031
  %v9072 = vpack.c.bf16 %v9040, %v9036
  %v9073 = vpack.c.bf16 %v9041, %v9037
  %v9074 = vpack.c.bf16 %v9042, %v9038
  %v9075 = vpack.c.bf16 %v9043, %v9039
  %v9076 = vpack.c.bf16 %v9048, %v9044
  %v9077 = vpack.c.bf16 %v9049, %v9045
  %v9078 = vpack.c.bf16 %v9050, %v9046
  %v9079 = vpack.c.bf16 %v9051, %v9047
  %v9080 = vpack.c.bf16 %v9056, %v9052
  %v9081 = vpack.c.bf16 %v9057, %v9053
  %v9082 = vpack.c.bf16 %v9058, %v9054
  %v9083 = vpack.c.bf16 %v9059, %v9055
  %v9084 = vunpack.c.l.bf16 %v9068
  %v9085 = vunpack.c.l.bf16 %v9069
  %v9086 = vunpack.c.l.bf16 %v9070
  %v9087 = vunpack.c.l.bf16 %v9071
  %v9088 = vunpack.c.h.bf16 %v9068
  %v9089 = vunpack.c.h.bf16 %v9069
  %v9090 = vunpack.c.h.bf16 %v9070
  %v9091 = vunpack.c.h.bf16 %v9071
  %v9092 = vunpack.c.l.bf16 %v9072
  %v9093 = vunpack.c.l.bf16 %v9073
  %v9094 = vunpack.c.l.bf16 %v9074
  %v9095 = vunpack.c.l.bf16 %v9075
  %v9096 = vunpack.c.h.bf16 %v9072
  %v9097 = vunpack.c.h.bf16 %v9073
  %v9098 = vunpack.c.h.bf16 %v9074
  %v9099 = vunpack.c.h.bf16 %v9075
  %v9100 = vunpack.c.l.bf16 %v9076
  %v9101 = vunpack.c.l.bf16 %v9077
  %v9102 = vunpack.c.l.bf16 %v9078
  %v9103 = vunpack.c.l.bf16 %v9079
  %v9104 = vunpack.c.h.bf16 %v9076
  %v9105 = vunpack.c.h.bf16 %v9077
  %v9106 = vunpack.c.h.bf16 %v9078
  %v9107 = vunpack.c.h.bf16 %v9079
  %v9108 = vunpack.c.l.bf16 %v9080
  %v9109 = vunpack.c.l.bf16 %v9081
  %v9110 = vunpack.c.l.bf16 %v9082
  %v9111 = vunpack.c.l.bf16 %v9083
  %v9112 = vunpack.c.h.bf16 %v9080
  %v9113 = vunpack.c.h.bf16 %v9081
  %v9114 = vunpack.c.h.bf16 %v9082
  %v9115 = vunpack.c.h.bf16 %v9083
  %v9116 = vsub.f32 %v9028, %v9084
  %v9117 = vsub.f32 %v9029, %v9085
  %v9118 = vsub.f32 %v9030, %v9086
  %v9119 = vsub.f32 %v9031, %v9087
  %v9120 = vsub.f32 %v9032, %v9088
  %v9121 = vsub.f32 %v9033, %v9089
  %v9122 = vsub.f32 %v9034, %v9090
  %v9123 = vsub.f32 %v9035, %v9091
  %v9124 = vsub.f32 %v9036, %v9092
  %v9125 = vsub.f32 %v9037, %v9093
  %v9126 = vsub.f32 %v9038, %v9094
  %v9127 = vsub.f32 %v9039, %v9095
  %v9128 = vsub.f32 %v9040, %v9096
  %v9129 = vsub.f32 %v9041, %v9097
  %v9130 = vsub.f32 %v9042, %v9098
  %v9131 = vsub.f32 %v9043, %v9099
  %v9132 = vsub.f32 %v9044, %v9100
  %v9133 = vsub.f32 %v9045, %v9101
  %v9134 = vsub.f32 %v9046, %v9102
  %v9135 = vsub.f32 %v9047, %v9103
  %v9136 = vsub.f32 %v9048, %v9104
  %v9137 = vsub.f32 %v9049, %v9105
  %v9138 = vsub.f32 %v9050, %v9106
  %v9139 = vsub.f32 %v9051, %v9107
  %v9140 = vsub.f32 %v9052, %v9108
  %v9141 = vsub.f32 %v9053, %v9109
  %v9142 = vsub.f32 %v9054, %v9110
  %v9143 = vsub.f32 %v9055, %v9111
  %v9144 = vsub.f32 %v9056, %v9112
  %v9145 = vsub.f32 %v9057, %v9113
  %v9146 = vsub.f32 %v9058, %v9114
  %v9147 = vsub.f32 %v9059, %v9115
  %v9148 = vpack.c.bf16 %v9120, %v9116
  %v9149 = vpack.c.bf16 %v9121, %v9117
  %v9150 = vpack.c.bf16 %v9122, %v9118
  %v9151 = vpack.c.bf16 %v9123, %v9119
  %v9152 = vpack.c.bf16 %v9128, %v9124
  %v9153 = vpack.c.bf16 %v9129, %v9125
  %v9154 = vpack.c.bf16 %v9130, %v9126
  %v9155 = vpack.c.bf16 %v9131, %v9127
  %v9156 = vpack.c.bf16 %v9136, %v9132
  %v9157 = vpack.c.bf16 %v9137, %v9133
  %v9158 = vpack.c.bf16 %v9138, %v9134
  %v9159 = vpack.c.bf16 %v9139, %v9135
  %v9160 = vpack.c.bf16 %v9144, %v9140
  %v9161 = vpack.c.bf16 %v9145, %v9141
  %v9162 = vpack.c.bf16 %v9146, %v9142
  %v9163 = vpack.c.bf16 %v9147, %v9143
  %vm9164 = vcmask 523264
  %v9166 = vsel %vm9164, %v9067, 0
  %9168 = vmatprep.subr.bf16.mxu0 0
  %9169 = vmatpush1.bf16.msra.mxu0 0
  %9170 = vmatprep.subr.bf16.mxu0 0
  %9171 = vmatpush1.bf16.msra.mxu0 0
  %9172 = vmatprep.subr.bf16.mxu0 0
  %9173 = vmatpush1.bf16.msra.mxu0 0
  %9174 = vmatprep.subr.bf16.mxu0 0
  %9175 = vmatpush1.bf16.msra.mxu0 0
  %9176 = vmatprep.subr.bf16.mxu0 %v9081
  %9177 = vmatpush1.bf16.msra.mxu0 %v9080
  %9178 = vmatprep.subr.bf16.mxu0 %v9077
  %9179 = vmatpush1.bf16.msra.mxu0 %v9076
  %9180 = vmatprep.subr.bf16.mxu0 %v9073
  %9181 = vmatpush1.bf16.msra.mxu0 %v9072
  %9182 = vmatprep.subr.bf16.mxu0 %v9069
  %9183 = vmatpush1.bf16.msra.mxu0 %v9068
  %9184 = vmatprep.subr.bf16.mxu0 0
  %9185 = vmatpush2.bf16.msra.mxu0 0
  %9186 = vmatprep.subr.bf16.mxu0 0
  %9187 = vmatpush2.bf16.msra.mxu0 0
  %9188 = vmatprep.subr.bf16.mxu0 0
  %9189 = vmatpush2.bf16.msra.mxu0 0
  %9190 = vmatprep.subr.bf16.mxu0 0
  %9191 = vmatpush2.bf16.msra.mxu0 0
  %9192 = vmatprep.subr.bf16.mxu0 0
  %9193 = vmatpush2.bf16.msra.mxu0 0
  %9194 = vmatprep.subr.bf16.mxu0 0
  %9195 = vmatpush2.bf16.msra.mxu0 0
  %9196 = vmatprep.subr.bf16.mxu0 0
  %9197 = vmatpush2.bf16.msra.mxu0 0
  %9198 = vmatprep.subr.bf16.mxu0 0
  %9199 = vmatpush2.bf16.msra.mxu0 0
  %9200 = vmatprep.mubr.bf16.mxu0 0
  %9201 = vmatmul.mubr.bf16.gmra.mxu0 %v9166
  %v9202 = vpop.f32.mrf.mxu0
  %v9203 = vadd.f32 0.0, %v9202
  %v9204 = vpop.f32.mrf.mxu0
  %v9205 = vadd.f32 0.0, %v9204
  %v9206 = vpop.f32.mrf.mxu0
  %v9207 = vadd.f32 0.0, %v9206
  %v9208 = vpop.f32.mrf.mxu0
  %v9209 = vadd.f32 0.0, %v9208
  %9210 = vdwg.mxu0
  %9211 = vmatprep.subr.bf16.mxu0 0
  %9212 = vmatpush1.bf16.msra.mxu0 0
  %9213 = vmatprep.subr.bf16.mxu0 0
  %9214 = vmatpush1.bf16.msra.mxu0 0
  %9215 = vmatprep.subr.bf16.mxu0 0
  %9216 = vmatpush1.bf16.msra.mxu0 0
  %9217 = vmatprep.subr.bf16.mxu0 0
  %9218 = vmatpush1.bf16.msra.mxu0 0
  %9219 = vmatprep.subr.bf16.mxu0 %v9083
  %9220 = vmatpush1.bf16.msra.mxu0 %v9082
  %9221 = vmatprep.subr.bf16.mxu0 %v9079
  %9222 = vmatpush1.bf16.msra.mxu0 %v9078
  %9223 = vmatprep.subr.bf16.mxu0 %v9075
  %9224 = vmatpush1.bf16.msra.mxu0 %v9074
  %9225 = vmatprep.subr.bf16.mxu0 %v9071
  %9226 = vmatpush1.bf16.msra.mxu0 %v9070
  %9227 = vmatprep.subr.bf16.mxu0 0
  %9228 = vmatpush2.bf16.msra.mxu0 0
  %9229 = vmatprep.subr.bf16.mxu0 0
  %9230 = vmatpush2.bf16.msra.mxu0 0
  %9231 = vmatprep.subr.bf16.mxu0 0
  %9232 = vmatpush2.bf16.msra.mxu0 0
  %9233 = vmatprep.subr.bf16.mxu0 0
  %9234 = vmatpush2.bf16.msra.mxu0 0
  %9235 = vmatprep.subr.bf16.mxu0 0
  %9236 = vmatpush2.bf16.msra.mxu0 0
  %9237 = vmatprep.subr.bf16.mxu0 0
  %9238 = vmatpush2.bf16.msra.mxu0 0
  %9239 = vmatprep.subr.bf16.mxu0 0
  %9240 = vmatpush2.bf16.msra.mxu0 0
  %9241 = vmatprep.subr.bf16.mxu0 0
  %9242 = vmatpush2.bf16.msra.mxu0 0
  %9243 = vmatprep.mubr.bf16.mxu0 0
  %9244 = vmatmul.mubr.bf16.gmra.mxu0 %v9166
  %v9245 = vpop.f32.mrf.mxu0
  %v9246 = vadd.f32 0.0, %v9245
  %v9247 = vpop.f32.mrf.mxu0
  %v9248 = vadd.f32 0.0, %v9247
  %v9249 = vpop.f32.mrf.mxu0
  %v9250 = vadd.f32 0.0, %v9249
  %v9251 = vpop.f32.mrf.mxu0
  %v9252 = vadd.f32 0.0, %v9251
  %9253 = vdwg.mxu0
  %v9255 = vsel %vm9164, %v9062, 0
  %9257 = vmatprep.subr.bf16.mxu0 0
  %9258 = vmatpush1.bf16.msra.mxu0 0
  %9259 = vmatprep.subr.bf16.mxu0 0
  %9260 = vmatpush1.bf16.msra.mxu0 0
  %9261 = vmatprep.subr.bf16.mxu0 0
  %9262 = vmatpush1.bf16.msra.mxu0 0
  %9263 = vmatprep.subr.bf16.mxu0 0
  %9264 = vmatpush1.bf16.msra.mxu0 0
  %9265 = vmatprep.subr.bf16.mxu0 %v9081
  %9266 = vmatpush1.bf16.msra.mxu0 %v9080
  %9267 = vmatprep.subr.bf16.mxu0 %v9077
  %9268 = vmatpush1.bf16.msra.mxu0 %v9076
  %9269 = vmatprep.subr.bf16.mxu0 %v9073
  %9270 = vmatpush1.bf16.msra.mxu0 %v9072
  %9271 = vmatprep.subr.bf16.mxu0 %v9069
  %9272 = vmatpush1.bf16.msra.mxu0 %v9068
  %9273 = vmatprep.subr.bf16.mxu0 0
  %9274 = vmatpush2.bf16.msra.mxu0 0
  %9275 = vmatprep.subr.bf16.mxu0 0
  %9276 = vmatpush2.bf16.msra.mxu0 0
  %9277 = vmatprep.subr.bf16.mxu0 0
  %9278 = vmatpush2.bf16.msra.mxu0 0
  %9279 = vmatprep.subr.bf16.mxu0 0
  %9280 = vmatpush2.bf16.msra.mxu0 0
  %9281 = vmatprep.subr.bf16.mxu0 0
  %9282 = vmatpush2.bf16.msra.mxu0 0
  %9283 = vmatprep.subr.bf16.mxu0 0
  %9284 = vmatpush2.bf16.msra.mxu0 0
  %9285 = vmatprep.subr.bf16.mxu0 0
  %9286 = vmatpush2.bf16.msra.mxu0 0
  %9287 = vmatprep.subr.bf16.mxu0 0
  %9288 = vmatpush2.bf16.msra.mxu0 0
  %9289 = vmatprep.mubr.bf16.mxu0 0
  %9290 = vmatmul.mubr.bf16.gmra.mxu0 %v9255
  %v9291 = vpop.f32.mrf.mxu0
  %v9292 = vadd.f32 %v9203, %v9291
  %v9293 = vpop.f32.mrf.mxu0
  %v9294 = vadd.f32 %v9205, %v9293
  %v9295 = vpop.f32.mrf.mxu0
  %v9296 = vadd.f32 %v9207, %v9295
  %v9297 = vpop.f32.mrf.mxu0
  %v9298 = vadd.f32 %v9209, %v9297
  %9299 = vdwg.mxu0
  %9300 = vmatprep.subr.bf16.mxu0 0
  %9301 = vmatpush1.bf16.msra.mxu0 0
  %9302 = vmatprep.subr.bf16.mxu0 0
  %9303 = vmatpush1.bf16.msra.mxu0 0
  %9304 = vmatprep.subr.bf16.mxu0 0
  %9305 = vmatpush1.bf16.msra.mxu0 0
  %9306 = vmatprep.subr.bf16.mxu0 0
  %9307 = vmatpush1.bf16.msra.mxu0 0
  %9308 = vmatprep.subr.bf16.mxu0 %v9083
  %9309 = vmatpush1.bf16.msra.mxu0 %v9082
  %9310 = vmatprep.subr.bf16.mxu0 %v9079
  %9311 = vmatpush1.bf16.msra.mxu0 %v9078
  %9312 = vmatprep.subr.bf16.mxu0 %v9075
  %9313 = vmatpush1.bf16.msra.mxu0 %v9074
  %9314 = vmatprep.subr.bf16.mxu0 %v9071
  %9315 = vmatpush1.bf16.msra.mxu0 %v9070
  %9316 = vmatprep.subr.bf16.mxu0 0
  %9317 = vmatpush2.bf16.msra.mxu0 0
  %9318 = vmatprep.subr.bf16.mxu0 0
  %9319 = vmatpush2.bf16.msra.mxu0 0
  %9320 = vmatprep.subr.bf16.mxu0 0
  %9321 = vmatpush2.bf16.msra.mxu0 0
  %9322 = vmatprep.subr.bf16.mxu0 0
  %9323 = vmatpush2.bf16.msra.mxu0 0
  %9324 = vmatprep.subr.bf16.mxu0 0
  %9325 = vmatpush2.bf16.msra.mxu0 0
  %9326 = vmatprep.subr.bf16.mxu0 0
  %9327 = vmatpush2.bf16.msra.mxu0 0
  %9328 = vmatprep.subr.bf16.mxu0 0
  %9329 = vmatpush2.bf16.msra.mxu0 0
  %9330 = vmatprep.subr.bf16.mxu0 0
  %9331 = vmatpush2.bf16.msra.mxu0 0
  %9332 = vmatprep.mubr.bf16.mxu0 0
  %9333 = vmatmul.mubr.bf16.gmra.mxu0 %v9255
  %v9334 = vpop.f32.mrf.mxu0
  %v9335 = vadd.f32 %v9246, %v9334
  %v9336 = vpop.f32.mrf.mxu0
  %v9337 = vadd.f32 %v9248, %v9336
  %v9338 = vpop.f32.mrf.mxu0
  %v9339 = vadd.f32 %v9250, %v9338
  %v9340 = vpop.f32.mrf.mxu0
  %v9341 = vadd.f32 %v9252, %v9340
  %9342 = vdwg.mxu0
  %9343 = vmatprep.subr.bf16.mxu0 0
  %9344 = vmatpush1.bf16.msra.mxu0 0
  %9345 = vmatprep.subr.bf16.mxu0 0
  %9346 = vmatpush1.bf16.msra.mxu0 0
  %9347 = vmatprep.subr.bf16.mxu0 0
  %9348 = vmatpush1.bf16.msra.mxu0 0
  %9349 = vmatprep.subr.bf16.mxu0 0
  %9350 = vmatpush1.bf16.msra.mxu0 0
  %9351 = vmatprep.subr.bf16.mxu0 %v9161
  %9352 = vmatpush1.bf16.msra.mxu0 %v9160
  %9353 = vmatprep.subr.bf16.mxu0 %v9157
  %9354 = vmatpush1.bf16.msra.mxu0 %v9156
  %9355 = vmatprep.subr.bf16.mxu0 %v9153
  %9356 = vmatpush1.bf16.msra.mxu0 %v9152
  %9357 = vmatprep.subr.bf16.mxu0 %v9149
  %9358 = vmatpush1.bf16.msra.mxu0 %v9148
  %9359 = vmatprep.subr.bf16.mxu0 0
  %9360 = vmatpush2.bf16.msra.mxu0 0
  %9361 = vmatprep.subr.bf16.mxu0 0
  %9362 = vmatpush2.bf16.msra.mxu0 0
  %9363 = vmatprep.subr.bf16.mxu0 0
  %9364 = vmatpush2.bf16.msra.mxu0 0
  %9365 = vmatprep.subr.bf16.mxu0 0
  %9366 = vmatpush2.bf16.msra.mxu0 0
  %9367 = vmatprep.subr.bf16.mxu0 0
  %9368 = vmatpush2.bf16.msra.mxu0 0
  %9369 = vmatprep.subr.bf16.mxu0 0
  %9370 = vmatpush2.bf16.msra.mxu0 0
  %9371 = vmatprep.subr.bf16.mxu0 0
  %9372 = vmatpush2.bf16.msra.mxu0 0
  %9373 = vmatprep.subr.bf16.mxu0 0
  %9374 = vmatpush2.bf16.msra.mxu0 0
  %9375 = vmatprep.mubr.bf16.mxu0 0
  %9376 = vmatmul.mubr.bf16.gmra.mxu0 %v9255
  %v9377 = vpop.f32.mrf.mxu0
  %v9378 = vadd.f32 0.0, %v9377
  %v9379 = vpop.f32.mrf.mxu0
  %v9380 = vadd.f32 0.0, %v9379
  %v9381 = vpop.f32.mrf.mxu0
  %v9382 = vadd.f32 0.0, %v9381
  %v9383 = vpop.f32.mrf.mxu0
  %v9384 = vadd.f32 0.0, %v9383
  %9385 = vdwg.mxu0
  %9386 = vmatprep.subr.bf16.mxu0 0
  %9387 = vmatpush1.bf16.msra.mxu0 0
  %9388 = vmatprep.subr.bf16.mxu0 0
  %9389 = vmatpush1.bf16.msra.mxu0 0
  %9390 = vmatprep.subr.bf16.mxu0 0
  %9391 = vmatpush1.bf16.msra.mxu0 0
  %9392 = vmatprep.subr.bf16.mxu0 0
  %9393 = vmatpush1.bf16.msra.mxu0 0
  %9394 = vmatprep.subr.bf16.mxu0 %v9163
  %9395 = vmatpush1.bf16.msra.mxu0 %v9162
  %9396 = vmatprep.subr.bf16.mxu0 %v9159
  %9397 = vmatpush1.bf16.msra.mxu0 %v9158
  %9398 = vmatprep.subr.bf16.mxu0 %v9155
  %9399 = vmatpush1.bf16.msra.mxu0 %v9154
  %9400 = vmatprep.subr.bf16.mxu0 %v9151
  %9401 = vmatpush1.bf16.msra.mxu0 %v9150
  %9402 = vmatprep.subr.bf16.mxu0 0
  %9403 = vmatpush2.bf16.msra.mxu0 0
  %9404 = vmatprep.subr.bf16.mxu0 0
  %9405 = vmatpush2.bf16.msra.mxu0 0
  %9406 = vmatprep.subr.bf16.mxu0 0
  %9407 = vmatpush2.bf16.msra.mxu0 0
  %9408 = vmatprep.subr.bf16.mxu0 0
  %9409 = vmatpush2.bf16.msra.mxu0 0
  %9410 = vmatprep.subr.bf16.mxu0 0
  %9411 = vmatpush2.bf16.msra.mxu0 0
  %9412 = vmatprep.subr.bf16.mxu0 0
  %9413 = vmatpush2.bf16.msra.mxu0 0
  %9414 = vmatprep.subr.bf16.mxu0 0
  %9415 = vmatpush2.bf16.msra.mxu0 0
  %9416 = vmatprep.subr.bf16.mxu0 0
  %9417 = vmatpush2.bf16.msra.mxu0 0
  %9418 = vmatprep.mubr.bf16.mxu0 0
  %9419 = vmatmul.mubr.bf16.gmra.mxu0 %v9255
  %v9420 = vpop.f32.mrf.mxu0
  %v9421 = vadd.f32 0.0, %v9420
  %v9422 = vpop.f32.mrf.mxu0
  %v9423 = vadd.f32 0.0, %v9422
  %v9424 = vpop.f32.mrf.mxu0
  %v9425 = vadd.f32 0.0, %v9424
  %v9426 = vpop.f32.mrf.mxu0
  %v9427 = vadd.f32 0.0, %v9426
  %9428 = vdwg.mxu0
  %v9429 = vadd.f32 %v9292, %v9378
  %v9430 = vadd.f32 %v9294, %v9380
  %v9431 = vadd.f32 %v9335, %v9421
  %v9432 = vadd.f32 %v9337, %v9423
  %v9433 = vadd.f32 %v9296, %v9382
  %v9434 = vadd.f32 %v9298, %v9384
  %v9435 = vadd.f32 %v9339, %v9425
  %v9436 = vadd.f32 %v9341, %v9427
  %v9437 = vld [vmem:[#allocation4] sm:$0x1]
  %v9439 = vlaneseq
  %v9440 = vshrl.u32 %v9439, 7
  %v9441 = vsub.s32 0, %v9440
  %v9442 = vrot.slane %v9437, %v9441
  %9443 = vset.pattern.permute.xlu0 0
  %9444 = vperm.xlu0 %9443, %v9442
  %v9445 = vpop.permute.xlu0 %9444
  %v9447 = vadd.f32 %v9429, %v9445
  %v9448 = vadd.f32 %v9430, %v9445
  %v9449 = vadd.f32 %v9431, %v9445
  %v9450 = vadd.f32 %v9432, %v9445
  %v9451 = vadd.f32 %v9433, %v9445
  %v9452 = vadd.f32 %v9434, %v9445
  %v9453 = vadd.f32 %v9435, %v9445
  %v9454 = vadd.f32 %v9436, %v9445
  %9455 = vst [vmem:[%s9] sm:$0xff] %v9447
  %9456 = vst [vmem:[%s9 + $0x8] sm:$0xff] %v9448
  %9457 = vst [vmem:[%s9 + $0x10] sm:$0xff] %v9449
  %9458 = vst [vmem:[%s9 + $0x18] sm:$0xff] %v9450
  %9459 = vst [vmem:[%s9 + $0x20] sm:$0xff] %v9451
  %9460 = vst [vmem:[%s9 + $0x28] sm:$0xff] %v9452
  %9461 = vst [vmem:[%s9 + $0x30] sm:$0xff] %v9453
  %9462 = vst [vmem:[%s9 + $0x38] sm:$0xff] %v9454
  // Predicated region
  $region38: #{conv_ae_forward.1} parent=0 // pred_check
    _
  $region39: #{conv_ae_forward.1} parent=0 // pred_check_branch
    %9464 = sbr.rel (0) target = $region41
  $region40: #{conv_ae_forward.1} parent=0 // pred_region
    _
  $region41: #{conv_ae_forward.1} parent=0 // pred_fallthru
    _
  // Predicated region
  $region42: #{conv_ae_forward.1} parent=0 // pred_check
    _
  $region43: #{conv_ae_forward.1} parent=0 // pred_check_branch
    %9466 = sbr.rel (0) target = $region45
  $region44: #{conv_ae_forward.1} parent=0 // pred_region
    _
  $region45: #{conv_ae_forward.1} parent=0 // pred_fallthru
    _

</llo_original>
